<compile_context>
chip_gen: v6e
topology: v6e:2x2x1
jax: 0.10.0
libtpu: 0.0.40
codegen_flags: <defaults>
</compile_context>

<pallas_src>
import functools

import jax
import jax.numpy as jnp
from jax.experimental import pallas as pl
from jax.experimental.pallas import tpu as pltpu


# ----------------------------- kernel ---------------------------------------


def _layernorm(x, gamma, beta, eps=1e-5):
    mu = jnp.mean(x, axis=-1, keepdims=True)
    var = jnp.mean((x - mu) ** 2, axis=-1, keepdims=True)
    return (x - mu) * jax.lax.rsqrt(var + eps) * gamma + beta


def slot_attention_kernel(
    # per-grid-step blocks --------------------------------------------------
    x_ref,        # (Bb*N, D)   flattened normalized-input rows for this chunk
    slots0_ref,   # (Bb*S, D)   flattened initial slots for this chunk
    # packed weights (batch-shared, whole-array blocks) ----------------------
    wdd_ref,      # (9, D, D): wk, wv, wq*scale, wir, wiz, win, whr, whz, whn
    vec_ref,      # (14, D):  g_in, b_in, g_s, b_s, g_p, b_p, bk, bv,
                  #           bq*scale, br(=bir+bhr), bz(=biz+bhz), bin, bhn, b2
    w1_ref,       # (D, H)
    b1_ref,       # (1, H)
    w2_ref,       # (H, D)
    # output -----------------------------------------------------------------
    out_ref,      # (Bb*S, D)
    *,
    iters: int,
    eps: float,
    n_tokens: int,
    n_slots: int,
    batch_block: int,
):
    d = x_ref.shape[-1]
    rs = slots0_ref.shape[0]          # batch_block * n_slots

    # ---- unpack packed weights (loaded once, reused across the unrolled loop)
    wk, wv, wq = wdd_ref[0], wdd_ref[1], wdd_ref[2]         # wq already * scale
    wir, wiz, win_ = wdd_ref[3], wdd_ref[4], wdd_ref[5]
    whr, whz, whn = wdd_ref[6], wdd_ref[7], wdd_ref[8]

    g_in, b_in = vec_ref[0, :], vec_ref[1, :]
    g_s, b_s = vec_ref[2, :], vec_ref[3, :]
    g_p, b_p = vec_ref[4, :], vec_ref[5, :]
    bk, bv = vec_ref[6, :], vec_ref[7, :]
    bq = vec_ref[8, :]                                       # already * scale
    br, bz = vec_ref[9, :], vec_ref[10, :]                   # combined r/z bias
    bin_, bhn = vec_ref[11, :], vec_ref[12, :]
    b2 = vec_ref[13, :]

    w1 = w1_ref[...]
    w2 = w2_ref[...]

    # ---- hoist loop-invariant broadcasts out of the unrolled iteration loop
    g_s_b = jnp.broadcast_to(g_s, (rs, d))
    b_s_b = jnp.broadcast_to(b_s, (rs, d))
    g_p_b = jnp.broadcast_to(g_p, (rs, d))
    b_p_b = jnp.broadcast_to(b_p, (rs, d))
    bq_b = jnp.broadcast_to(bq, (rs, d))
    br_b = jnp.broadcast_to(br, (rs, d))
    bz_b = jnp.broadcast_to(bz, (rs, d))
    bin_b = jnp.broadcast_to(bin_, (rs, d))
    bhn_b = jnp.broadcast_to(bhn, (rs, d))
    b2_b = jnp.broadcast_to(b2, (rs, d))
    b1_b = jnp.broadcast_to(b1_ref[...], (rs, w1.shape[-1]))

    # ---- normalize inputs, project to k / v once (all batch rows fused)
    x = x_ref[...]                                           # (Bb*N, D)
    xn = _layernorm(x, g_in, b_in)
    k = jnp.dot(xn, wk, preferred_element_type=jnp.float32) + bk
    v = jnp.dot(xn, wv, preferred_element_type=jnp.float32) + bv

    # hoist the per-batch key transposes out of the iteration loop
    kT = [k[b * n_tokens:(b + 1) * n_tokens, :].T for b in range(batch_block)]
    v_b = [v[b * n_tokens:(b + 1) * n_tokens, :] for b in range(batch_block)]

    slots = slots0_ref[...]                                  # (Bb*S, D)

    for _ in range(iters):
        slots_prev = slots

        sn = _layernorm(slots, g_s_b, b_s_b)
        # scale is folded into wq / bq in the wrapper
        q = jnp.dot(sn, wq, preferred_element_type=jnp.float32) + bq_b

        # ---- attention: short static per-batch loop (dots / softmax / updates)
        upds = []
        for b in range(batch_block):
            q_b = q[b * n_slots:(b + 1) * n_slots, :]        # (S, D)
            dots = jnp.dot(q_b, kT[b],
                           preferred_element_type=jnp.float32)   # (S, N)
            # softmax over the SLOT axis (torch dim=1 of (B, S, N)) == axis 0
            m = jnp.max(dots, axis=0, keepdims=True)
            e = jnp.exp(dots - m)
            attn = e * pl.reciprocal(jnp.sum(e, axis=0, keepdims=True),
                                     approx=True) + eps
            # renormalize over the token axis
            attn = attn * pl.reciprocal(jnp.sum(attn, axis=-1, keepdims=True),
                                        approx=True)
            upds.append(jnp.dot(attn, v_b[b],
                                preferred_element_type=jnp.float32))  # (S, D)
        updates = upds[0] if batch_block == 1 else jnp.concatenate(upds, axis=0)

        # ---- GRUCell(input=updates, hidden=slots_prev); per-gate matmuls
        r = jax.nn.sigmoid(
            jnp.dot(updates, wir, preferred_element_type=jnp.float32)
            + jnp.dot(slots_prev, whr, preferred_element_type=jnp.float32)
            + br_b)
        z = jax.nn.sigmoid(
            jnp.dot(updates, wiz, preferred_element_type=jnp.float32)
            + jnp.dot(slots_prev, whz, preferred_element_type=jnp.float32)
            + bz_b)
        hn = jnp.dot(slots_prev, whn, preferred_element_type=jnp.float32) + bhn_b
        n_gate = jnp.tanh(
            jnp.dot(updates, win_, preferred_element_type=jnp.float32)
            + bin_b + r * hn)
        slots = (1.0 - z) * n_gate + z * slots_prev

        # ---- residual MLP on pre-ff-normalized slots
        pre = _layernorm(slots, g_p_b, b_p_b)
        h = jnp.maximum(
            jnp.dot(pre, w1, preferred_element_type=jnp.float32) + b1_b, 0.0)
        slots = slots + jnp.dot(h, w2, preferred_element_type=jnp.float32) + b2_b

    # TODO(synk): at large S*D a lane-dense (B, S*D) output slab would avoid
    # masked stores; at D=32/S=4 the in-kernel relayout would cost more.
    out_ref[...] = slots.astype(out_ref.dtype)


# ----------------------------- wrapper ---------------------------------------


def slot_attention_forward(inputs, slots_init, params, *, iters=5, eps=1e-8,
                           batch_block=None):
    """inputs: (B, N, D) f32, slots_init: (B, S, D) f32."""
    b, n, d = inputs.shape
    _, s, _ = slots_init.shape
    scale = d ** (-0.5)

    if batch_block is None:
        # Fold batch into the block to amortize per-grid-step overhead, but
        # keep >=2 grid steps when possible so v7x's two TensorCores both get
        # work.  (Callers on 1-TC chips may pass batch_block=b.)
        batch_block = b // 2 if (b >= 4 and b % 2 == 0) else 1
    assert b % batch_block == 0
    grid_b = b // batch_block

    # ---- parameter packing (done once, in plain JAX, outside the kernel) ----
    wq_s = params["wq"] * scale
    bq_s = params["bq"] * scale

    wih, whh = params["wih"], params["whh"]
    bih, bhh = params["bih"], params["bhh"]
    wir, wiz, win_ = wih[:, :d], wih[:, d:2 * d], wih[:, 2 * d:]
    whr, whz, whn = whh[:, :d], whh[:, d:2 * d], whh[:, 2 * d:]
    br = bih[:, :d] + bhh[:, :d]
    bz = bih[:, d:2 * d] + bhh[:, d:2 * d]
    bin_ = bih[:, 2 * d:]
    bhn = bhh[:, 2 * d:]

    wdd = jnp.stack(
        [params["wk"], params["wv"], wq_s, wir, wiz, win_, whr, whz, whn],
        axis=0)                                              # (9, D, D)

    def row(v):
        return jnp.reshape(v, (d,))

    vecs = jnp.stack(
        [row(params["g_in"]), row(params["b_in"]),
         row(params["g_s"]), row(params["b_s"]),
         row(params["g_p"]), row(params["b_p"]),
         row(params["bk"]), row(params["bv"]),
         row(bq_s), row(br), row(bz), row(bin_), row(bhn),
         row(params["b2"])],
        axis=0)                                              # (14, D)

    x_flat = inputs.reshape(b * n, d)
    s_flat = slots_init.reshape(b * s, d)

    kernel = functools.partial(
        slot_attention_kernel, iters=iters, eps=eps,
        n_tokens=n, n_slots=s, batch_block=batch_block)

    def full(arr):
        nd = arr.ndim
        return pl.BlockSpec(arr.shape, lambda i, _nd=nd: (0,) * _nd)

    out_flat = pl.pallas_call(
        kernel,
        out_shape=jax.ShapeDtypeStruct((b * s, d), jnp.float32),
        grid_spec=pltpu.PrefetchScalarGridSpec(
            num_scalar_prefetch=0,
            grid=(grid_b,),
            in_specs=[
                pl.BlockSpec((batch_block * n, d), lambda i: (i, 0)),  # inputs
                pl.BlockSpec((batch_block * s, d), lambda i: (i, 0)),  # slots
                full(wdd),
                full(vecs),
                full(params["w1"]),
                full(params["b1"]),
                full(params["w2"]),
            ],
            out_specs=pl.BlockSpec((batch_block * s, d), lambda i: (i, 0)),
        ),
        compiler_params=pltpu.CompilerParams(
            dimension_semantics=("parallel",)),
    )(x_flat, s_flat, wdd, vecs, params["w1"], params["b1"], params["w2"])

    return out_flat.reshape(b, s, d)


# ----------------------------- reference (pure JAX) ---------------------------


def slot_attention_ref(inputs, slots_init, params, *, iters=5, eps=1e-8):
    b, n, d = inputs.shape
    scale = d ** (-0.5)

    def ln(x, g, bb, e=1e-5):
        mu = jnp.mean(x, axis=-1, keepdims=True)
        var = jnp.mean((x - mu) ** 2, axis=-1, keepdims=True)
        return (x - mu) / jnp.sqrt(var + e) * g + bb

    x = ln(inputs, params["g_in"], params["b_in"])
    k = x @ params["wk"] + params["bk"]
    v = x @ params["wv"] + params["bv"]
    slots = slots_init
    for _ in range(iters):
        slots_prev = slots
        sn = ln(slots, params["g_s"], params["b_s"])
        q = sn @ params["wq"] + params["bq"]
        dots = jnp.einsum("bid,bjd->bij", q, k) * scale
        attn = jax.nn.softmax(dots, axis=1) + eps
        attn = attn / jnp.sum(attn, axis=-1, keepdims=True)
        updates = jnp.einsum("bjd,bij->bid", v, attn)
        gi = updates @ params["wih"] + params["bih"]
        gh = slots_prev @ params["whh"] + params["bhh"]
        r = jax.nn.sigmoid(gi[..., :d] + gh[..., :d])
        z = jax.nn.sigmoid(gi[..., d:2 * d] + gh[..., d:2 * d])
        ng = jnp.tanh(gi[..., 2 * d:] + r * gh[..., 2 * d:])
        slots = (1 - z) * ng + z * slots_prev
        pre = ln(slots, params["g_p"], params["b_p"])
        mlp = jnp.maximum(pre @ params["w1"] + params["b1"], 0.0) @ params["w2"] + params["b2"]
        slots = slots + mlp
    return slots


# ----------------------------- main -------------------------------------------


if __name__ == "__main__":
    B, N, D, S = 4, 64, 32, 4          # batch, tokens, dim, num_slots
    H = max(D, 128)                    # mlp hidden (max(dim, hidden_dim))
    ITERS, EPS = 5, 1e-8

    key = jax.random.PRNGKey(0)
    keys = jax.random.split(key, 24)

    def w(k_, shape, scl=0.1):
        return jax.random.normal(k_, shape, dtype=jnp.float32) * scl

    params = {
        "g_in": jnp.ones((1, D), jnp.float32), "b_in": jnp.zeros((1, D), jnp.float32),
        "g_s":  jnp.ones((1, D), jnp.float32), "b_s":  jnp.zeros((1, D), jnp.float32),
        "g_p":  jnp.ones((1, D), jnp.float32), "b_p":  jnp.zeros((1, D), jnp.float32),
        "wk": w(keys[0], (D, D)),  "bk": w(keys[1], (1, D)),
        "wv": w(keys[2], (D, D)),  "bv": w(keys[3], (1, D)),
        "wq": w(keys[4], (D, D)),  "bq": w(keys[5], (1, D)),
        "wih": w(keys[6], (D, 3 * D)), "bih": w(keys[7], (1, 3 * D)),
        "whh": w(keys[8], (D, 3 * D)), "bhh": w(keys[9], (1, 3 * D)),
        "w1": w(keys[10], (D, H)), "b1": w(keys[11], (1, H)),
        "w2": w(keys[12], (H, D)), "b2": w(keys[13], (1, D)),
    }

    slots_mu = w(keys[14], (1, 1, D), 1.0)
    slots_sigma = w(keys[15], (1, 1, D), 1.0)

    inputs = jax.random.normal(keys[16], (B, N, D), dtype=jnp.float32)

    # slots = torch.normal(mu.expand(B,S,D), sigma.expand(B,S,D))  (JAX glue)
    noise = jax.random.normal(keys[17], (B, S, D), dtype=jnp.float32)
    slots_init = slots_mu + slots_sigma * noise   # broadcast to (B, S, D)

    out = slot_attention_forward(inputs, slots_init, params, iters=ITERS, eps=EPS)
    out = jax.block_until_ready(out)

    ref = slot_attention_ref(inputs, slots_init, params, iters=ITERS, eps=EPS)
    assert out.shape == (B, S, D)
    err = float(jnp.max(jnp.abs(out - ref)))
    assert jnp.allclose(out, ref, atol=2e-2, rtol=2e-2), err

    print("KERNEL_OK")
</pallas_src>

<mosaic_0001>
module attributes {stable_mosaic.version = 11 : i64} {
  func.func @slot_attention_kernel(%arg0: i32, %arg1: memref<128x32xf32, #tpu.memory_space<vmem>>, %arg2: memref<8x32xf32, #tpu.memory_space<vmem>>, %arg3: memref<9x32x32xf32, #tpu.memory_space<vmem>>, %arg4: memref<14x32xf32, #tpu.memory_space<vmem>>, %arg5: memref<32x128xf32, #tpu.memory_space<vmem>>, %arg6: memref<1x128xf32, #tpu.memory_space<vmem>>, %arg7: memref<128x32xf32, #tpu.memory_space<vmem>>, %arg8: memref<8x32xf32, #tpu.memory_space<vmem>>) attributes {dimension_semantics = [#tpu.dimension_semantics<parallel>], iteration_bounds = array<i64: 2>, scalar_prefetch = 0 : i64, scratch_operands = 0 : i64, tpu.core_type = #tpu.core_type<tc>, window_params = [{transform_indices = @transform_0, window_bounds = array<i64: 128, 32>}, {transform_indices = @transform_1, window_bounds = array<i64: 8, 32>}, {pipeline_mode = #tpu.pipeline_mode<synchronous>, transform_indices = @transform_2, window_bounds = array<i64: 9, 32, 32>}, {pipeline_mode = #tpu.pipeline_mode<synchronous>, transform_indices = @transform_3, window_bounds = array<i64: 14, 32>}, {pipeline_mode = #tpu.pipeline_mode<synchronous>, transform_indices = @transform_4, window_bounds = array<i64: 32, 128>}, {pipeline_mode = #tpu.pipeline_mode<synchronous>, transform_indices = @transform_5, window_bounds = array<i64: 1, 128>}, {pipeline_mode = #tpu.pipeline_mode<synchronous>, transform_indices = @transform_6, window_bounds = array<i64: 128, 32>}, {transform_indices = @transform_7, window_bounds = array<i64: 8, 32>}]} {
    %c0 = arith.constant 0 : index
    %c0_0 = arith.constant 0 : index
    %c0_1 = arith.constant 0 : index
    %0 = vector.load %arg3[%c0, %c0_0, %c0_1] : memref<9x32x32xf32, #tpu.memory_space<vmem>>, vector<1x32x32xf32>
    %1 = vector.shape_cast %0 : vector<1x32x32xf32> to vector<32x32xf32>
    %c1 = arith.constant 1 : index
    %c0_2 = arith.constant 0 : index
    %c0_3 = arith.constant 0 : index
    %2 = vector.load %arg3[%c1, %c0_2, %c0_3] : memref<9x32x32xf32, #tpu.memory_space<vmem>>, vector<1x32x32xf32>
    %3 = vector.shape_cast %2 : vector<1x32x32xf32> to vector<32x32xf32>
    %c2 = arith.constant 2 : index
    %c0_4 = arith.constant 0 : index
    %c0_5 = arith.constant 0 : index
    %4 = vector.load %arg3[%c2, %c0_4, %c0_5] : memref<9x32x32xf32, #tpu.memory_space<vmem>>, vector<1x32x32xf32>
    %5 = vector.shape_cast %4 : vector<1x32x32xf32> to vector<32x32xf32>
    %c3 = arith.constant 3 : index
    %c0_6 = arith.constant 0 : index
    %c0_7 = arith.constant 0 : index
    %6 = vector.load %arg3[%c3, %c0_6, %c0_7] : memref<9x32x32xf32, #tpu.memory_space<vmem>>, vector<1x32x32xf32>
    %7 = vector.shape_cast %6 : vector<1x32x32xf32> to vector<32x32xf32>
    %c4 = arith.constant 4 : index
    %c0_8 = arith.constant 0 : index
    %c0_9 = arith.constant 0 : index
    %8 = vector.load %arg3[%c4, %c0_8, %c0_9] : memref<9x32x32xf32, #tpu.memory_space<vmem>>, vector<1x32x32xf32>
    %9 = vector.shape_cast %8 : vector<1x32x32xf32> to vector<32x32xf32>
    %c5 = arith.constant 5 : index
    %c0_10 = arith.constant 0 : index
    %c0_11 = arith.constant 0 : index
    %10 = vector.load %arg3[%c5, %c0_10, %c0_11] : memref<9x32x32xf32, #tpu.memory_space<vmem>>, vector<1x32x32xf32>
    %11 = vector.shape_cast %10 : vector<1x32x32xf32> to vector<32x32xf32>
    %c6 = arith.constant 6 : index
    %c0_12 = arith.constant 0 : index
    %c0_13 = arith.constant 0 : index
    %12 = vector.load %arg3[%c6, %c0_12, %c0_13] : memref<9x32x32xf32, #tpu.memory_space<vmem>>, vector<1x32x32xf32>
    %13 = vector.shape_cast %12 : vector<1x32x32xf32> to vector<32x32xf32>
    %c7 = arith.constant 7 : index
    %c0_14 = arith.constant 0 : index
    %c0_15 = arith.constant 0 : index
    %14 = vector.load %arg3[%c7, %c0_14, %c0_15] : memref<9x32x32xf32, #tpu.memory_space<vmem>>, vector<1x32x32xf32>
    %15 = vector.shape_cast %14 : vector<1x32x32xf32> to vector<32x32xf32>
    %c8 = arith.constant 8 : index
    %c0_16 = arith.constant 0 : index
    %c0_17 = arith.constant 0 : index
    %16 = vector.load %arg3[%c8, %c0_16, %c0_17] : memref<9x32x32xf32, #tpu.memory_space<vmem>>, vector<1x32x32xf32>
    %17 = vector.shape_cast %16 : vector<1x32x32xf32> to vector<32x32xf32>
    %c0_18 = arith.constant 0 : index
    %c0_19 = arith.constant 0 : index
    %18 = vector.load %arg4[%c0_18, %c0_19] : memref<14x32xf32, #tpu.memory_space<vmem>>, vector<1x32xf32>
    %19 = vector.shape_cast %18 : vector<1x32xf32> to vector<32xf32>
    %c1_20 = arith.constant 1 : index
    %c0_21 = arith.constant 0 : index
    %20 = vector.load %arg4[%c1_20, %c0_21] : memref<14x32xf32, #tpu.memory_space<vmem>>, vector<1x32xf32>
    %21 = vector.shape_cast %20 : vector<1x32xf32> to vector<32xf32>
    %c2_22 = arith.constant 2 : index
    %c0_23 = arith.constant 0 : index
    %22 = vector.load %arg4[%c2_22, %c0_23] : memref<14x32xf32, #tpu.memory_space<vmem>>, vector<1x32xf32>
    %23 = vector.shape_cast %22 : vector<1x32xf32> to vector<32xf32>
    %c3_24 = arith.constant 3 : index
    %c0_25 = arith.constant 0 : index
    %24 = vector.load %arg4[%c3_24, %c0_25] : memref<14x32xf32, #tpu.memory_space<vmem>>, vector<1x32xf32>
    %25 = vector.shape_cast %24 : vector<1x32xf32> to vector<32xf32>
    %c4_26 = arith.constant 4 : index
    %c0_27 = arith.constant 0 : index
    %26 = vector.load %arg4[%c4_26, %c0_27] : memref<14x32xf32, #tpu.memory_space<vmem>>, vector<1x32xf32>
    %27 = vector.shape_cast %26 : vector<1x32xf32> to vector<32xf32>
    %c5_28 = arith.constant 5 : index
    %c0_29 = arith.constant 0 : index
    %28 = vector.load %arg4[%c5_28, %c0_29] : memref<14x32xf32, #tpu.memory_space<vmem>>, vector<1x32xf32>
    %29 = vector.shape_cast %28 : vector<1x32xf32> to vector<32xf32>
    %c6_30 = arith.constant 6 : index
    %c0_31 = arith.constant 0 : index
    %30 = vector.load %arg4[%c6_30, %c0_31] : memref<14x32xf32, #tpu.memory_space<vmem>>, vector<1x32xf32>
    %31 = vector.shape_cast %30 : vector<1x32xf32> to vector<32xf32>
    %c7_32 = arith.constant 7 : index
    %c0_33 = arith.constant 0 : index
    %32 = vector.load %arg4[%c7_32, %c0_33] : memref<14x32xf32, #tpu.memory_space<vmem>>, vector<1x32xf32>
    %33 = vector.shape_cast %32 : vector<1x32xf32> to vector<32xf32>
    %c8_34 = arith.constant 8 : index
    %c0_35 = arith.constant 0 : index
    %34 = vector.load %arg4[%c8_34, %c0_35] : memref<14x32xf32, #tpu.memory_space<vmem>>, vector<1x32xf32>
    %35 = vector.shape_cast %34 : vector<1x32xf32> to vector<32xf32>
    %c9 = arith.constant 9 : index
    %c0_36 = arith.constant 0 : index
    %36 = vector.load %arg4[%c9, %c0_36] : memref<14x32xf32, #tpu.memory_space<vmem>>, vector<1x32xf32>
    %37 = vector.shape_cast %36 : vector<1x32xf32> to vector<32xf32>
    %c10 = arith.constant 10 : index
    %c0_37 = arith.constant 0 : index
    %38 = vector.load %arg4[%c10, %c0_37] : memref<14x32xf32, #tpu.memory_space<vmem>>, vector<1x32xf32>
    %39 = vector.shape_cast %38 : vector<1x32xf32> to vector<32xf32>
    %c11 = arith.constant 11 : index
    %c0_38 = arith.constant 0 : index
    %40 = vector.load %arg4[%c11, %c0_38] : memref<14x32xf32, #tpu.memory_space<vmem>>, vector<1x32xf32>
    %41 = vector.shape_cast %40 : vector<1x32xf32> to vector<32xf32>
    %c12 = arith.constant 12 : index
    %c0_39 = arith.constant 0 : index
    %42 = vector.load %arg4[%c12, %c0_39] : memref<14x32xf32, #tpu.memory_space<vmem>>, vector<1x32xf32>
    %43 = vector.shape_cast %42 : vector<1x32xf32> to vector<32xf32>
    %c13 = arith.constant 13 : index
    %c0_40 = arith.constant 0 : index
    %44 = vector.load %arg4[%c13, %c0_40] : memref<14x32xf32, #tpu.memory_space<vmem>>, vector<1x32xf32>
    %45 = vector.shape_cast %44 : vector<1x32xf32> to vector<32xf32>
    %c0_41 = arith.constant 0 : index
    %c0_42 = arith.constant 0 : index
    %46 = vector.load %arg5[%c0_41, %c0_42] : memref<32x128xf32, #tpu.memory_space<vmem>>, vector<32x128xf32>
    %c0_43 = arith.constant 0 : index
    %c0_44 = arith.constant 0 : index
    %47 = vector.load %arg7[%c0_43, %c0_44] : memref<128x32xf32, #tpu.memory_space<vmem>>, vector<128x32xf32>
    %48 = vector.shape_cast %23 : vector<32xf32> to vector<1x32xf32>
    %49 = vector.broadcast %48 : vector<1x32xf32> to vector<8x32xf32>
    %50 = vector.shape_cast %25 : vector<32xf32> to vector<1x32xf32>
    %51 = vector.broadcast %50 : vector<1x32xf32> to vector<8x32xf32>
    %52 = vector.shape_cast %27 : vector<32xf32> to vector<1x32xf32>
    %53 = vector.broadcast %52 : vector<1x32xf32> to vector<8x32xf32>
    %54 = vector.shape_cast %29 : vector<32xf32> to vector<1x32xf32>
    %55 = vector.broadcast %54 : vector<1x32xf32> to vector<8x32xf32>
    %56 = vector.shape_cast %35 : vector<32xf32> to vector<1x32xf32>
    %57 = vector.broadcast %56 : vector<1x32xf32> to vector<8x32xf32>
    %58 = vector.shape_cast %37 : vector<32xf32> to vector<1x32xf32>
    %59 = vector.broadcast %58 : vector<1x32xf32> to vector<8x32xf32>
    %60 = vector.shape_cast %39 : vector<32xf32> to vector<1x32xf32>
    %61 = vector.broadcast %60 : vector<1x32xf32> to vector<8x32xf32>
    %62 = vector.shape_cast %41 : vector<32xf32> to vector<1x32xf32>
    %63 = vector.broadcast %62 : vector<1x32xf32> to vector<8x32xf32>
    %64 = vector.shape_cast %43 : vector<32xf32> to vector<1x32xf32>
    %65 = vector.broadcast %64 : vector<1x32xf32> to vector<8x32xf32>
    %66 = vector.shape_cast %45 : vector<32xf32> to vector<1x32xf32>
    %67 = vector.broadcast %66 : vector<1x32xf32> to vector<8x32xf32>
    %c0_45 = arith.constant 0 : index
    %c0_46 = arith.constant 0 : index
    %68 = vector.load %arg6[%c0_45, %c0_46] : memref<1x128xf32, #tpu.memory_space<vmem>>, vector<1x128xf32>
    %69 = vector.shape_cast %68 : vector<1x128xf32> to vector<1x128xf32>
    %70 = vector.broadcast %69 : vector<1x128xf32> to vector<8x128xf32>
    %c0_47 = arith.constant 0 : index
    %c0_48 = arith.constant 0 : index
    %71 = vector.load %arg1[%c0_47, %c0_48] : memref<128x32xf32, #tpu.memory_space<vmem>>, vector<128x32xf32>
    %cst = arith.constant dense<0.000000e+00> : vector<128xf32>
    %72 = vector.multi_reduction <add>, %71, %cst [1] : vector<128x32xf32> to vector<128xf32>
    %73 = vector.shape_cast %72 : vector<128xf32> to vector<128x1xf32>
    %cst_49 = arith.constant 3.200000e+01 : f32
    %74 = vector.broadcast %cst_49 : f32 to vector<128x1xf32>
    %75 = arith.divf %73, %74 : vector<128x1xf32>
    %76 = vector.broadcast %75 : vector<128x1xf32> to vector<128x32xf32>
    %77 = arith.subf %71, %76 : vector<128x32xf32>
    %78 = arith.mulf %77, %77 : vector<128x32xf32>
    %cst_50 = arith.constant dense<0.000000e+00> : vector<128xf32>
    %79 = vector.multi_reduction <add>, %78, %cst_50 [1] : vector<128x32xf32> to vector<128xf32>
    %80 = vector.shape_cast %79 : vector<128xf32> to vector<128x1xf32>
    %cst_51 = arith.constant 3.200000e+01 : f32
    %81 = vector.broadcast %cst_51 : f32 to vector<128x1xf32>
    %82 = arith.divf %80, %81 : vector<128x1xf32>
    %83 = vector.broadcast %75 : vector<128x1xf32> to vector<128x32xf32>
    %84 = arith.subf %71, %83 : vector<128x32xf32>
    %cst_52 = arith.constant 9.99999974E-6 : f32
    %85 = vector.broadcast %cst_52 : f32 to vector<128x1xf32>
    %86 = arith.addf %82, %85 : vector<128x1xf32>
    %87 = math.rsqrt %86 : vector<128x1xf32>
    %88 = vector.broadcast %87 : vector<128x1xf32> to vector<128x32xf32>
    %89 = arith.mulf %84, %88 : vector<128x32xf32>
    %90 = vector.shape_cast %19 : vector<32xf32> to vector<1x32xf32>
    %91 = vector.broadcast %90 : vector<1x32xf32> to vector<128x32xf32>
    %92 = arith.mulf %89, %91 : vector<128x32xf32>
    %93 = vector.shape_cast %21 : vector<32xf32> to vector<1x32xf32>
    %94 = vector.broadcast %93 : vector<1x32xf32> to vector<128x32xf32>
    %95 = arith.addf %92, %94 : vector<128x32xf32>
    %cst_53 = arith.constant dense<0.000000e+00> : vector<128x32xf32>
    %96 = tpu.matmul %95, %1, %cst_53 {dimension_numbers = #tpu.dot_dimension_numbers<[1], [0], [0], [1], [0, 0, 1, 1], [], []>} : vector<128x32xf32>, vector<32x32xf32>, vector<128x32xf32> -> vector<128x32xf32>
    %97 = vector.shape_cast %31 : vector<32xf32> to vector<1x32xf32>
    %98 = vector.broadcast %97 : vector<1x32xf32> to vector<128x32xf32>
    %99 = arith.addf %96, %98 : vector<128x32xf32>
    %cst_54 = arith.constant dense<0.000000e+00> : vector<128x32xf32>
    %100 = tpu.matmul %95, %3, %cst_54 {dimension_numbers = #tpu.dot_dimension_numbers<[1], [0], [0], [1], [0, 0, 1, 1], [], []>} : vector<128x32xf32>, vector<32x32xf32>, vector<128x32xf32> -> vector<128x32xf32>
    %101 = vector.shape_cast %33 : vector<32xf32> to vector<1x32xf32>
    %102 = vector.broadcast %101 : vector<1x32xf32> to vector<128x32xf32>
    %103 = arith.addf %100, %102 : vector<128x32xf32>
    %104 = vector.extract_strided_slice %99 {offsets = [0, 0], sizes = [64, 32], strides = [1, 1]} : vector<128x32xf32> to vector<64x32xf32>
    %105 = tpu.transpose %104, [1, 0] : vector<64x32xf32> -> vector<32x64xf32>
    %106 = vector.extract_strided_slice %99 {offsets = [64, 0], sizes = [64, 32], strides = [1, 1]} : vector<128x32xf32> to vector<64x32xf32>
    %107 = tpu.transpose %106, [1, 0] : vector<64x32xf32> -> vector<32x64xf32>
    %108 = vector.extract_strided_slice %103 {offsets = [0, 0], sizes = [64, 32], strides = [1, 1]} : vector<128x32xf32> to vector<64x32xf32>
    %109 = vector.extract_strided_slice %103 {offsets = [64, 0], sizes = [64, 32], strides = [1, 1]} : vector<128x32xf32> to vector<64x32xf32>
    %c0_55 = arith.constant 0 : index
    %c0_56 = arith.constant 0 : index
    %110 = vector.load %arg2[%c0_55, %c0_56] : memref<8x32xf32, #tpu.memory_space<vmem>>, vector<8x32xf32>
    %cst_57 = arith.constant dense<0.000000e+00> : vector<8xf32>
    %111 = vector.multi_reduction <add>, %110, %cst_57 [1] : vector<8x32xf32> to vector<8xf32>
    %112 = vector.shape_cast %111 : vector<8xf32> to vector<8x1xf32>
    %cst_58 = arith.constant 3.200000e+01 : f32
    %113 = vector.broadcast %cst_58 : f32 to vector<8x1xf32>
    %114 = arith.divf %112, %113 : vector<8x1xf32>
    %115 = vector.broadcast %114 : vector<8x1xf32> to vector<8x32xf32>
    %116 = arith.subf %110, %115 : vector<8x32xf32>
    %117 = arith.mulf %116, %116 : vector<8x32xf32>
    %cst_59 = arith.constant dense<0.000000e+00> : vector<8xf32>
    %118 = vector.multi_reduction <add>, %117, %cst_59 [1] : vector<8x32xf32> to vector<8xf32>
    %119 = vector.shape_cast %118 : vector<8xf32> to vector<8x1xf32>
    %cst_60 = arith.constant 3.200000e+01 : f32
    %120 = vector.broadcast %cst_60 : f32 to vector<8x1xf32>
    %121 = arith.divf %119, %120 : vector<8x1xf32>
    %122 = vector.broadcast %114 : vector<8x1xf32> to vector<8x32xf32>
    %123 = arith.subf %110, %122 : vector<8x32xf32>
    %cst_61 = arith.constant 9.99999974E-6 : f32
    %124 = vector.broadcast %cst_61 : f32 to vector<8x1xf32>
    %125 = arith.addf %121, %124 : vector<8x1xf32>
    %126 = math.rsqrt %125 : vector<8x1xf32>
    %127 = vector.broadcast %126 : vector<8x1xf32> to vector<8x32xf32>
    %128 = arith.mulf %123, %127 : vector<8x32xf32>
    %129 = arith.mulf %128, %49 : vector<8x32xf32>
    %130 = arith.addf %129, %51 : vector<8x32xf32>
    %cst_62 = arith.constant dense<0.000000e+00> : vector<8x32xf32>
    %131 = tpu.matmul %130, %5, %cst_62 {dimension_numbers = #tpu.dot_dimension_numbers<[1], [0], [0], [1], [0, 0, 1, 1], [], []>} : vector<8x32xf32>, vector<32x32xf32>, vector<8x32xf32> -> vector<8x32xf32>
    %132 = arith.addf %131, %57 : vector<8x32xf32>
    %133 = vector.extract_strided_slice %132 {offsets = [0, 0], sizes = [4, 32], strides = [1, 1]} : vector<8x32xf32> to vector<4x32xf32>
    %cst_63 = arith.constant dense<0.000000e+00> : vector<4x64xf32>
    %134 = tpu.matmul %133, %105, %cst_63 {dimension_numbers = #tpu.dot_dimension_numbers<[1], [0], [0], [1], [0, 0, 1, 1], [], []>} : vector<4x32xf32>, vector<32x64xf32>, vector<4x64xf32> -> vector<4x64xf32>
    %cst_64 = arith.constant dense<0xFF800000> : vector<64xf32>
    %135 = vector.multi_reduction <maximumf>, %134, %cst_64 [0] : vector<4x64xf32> to vector<64xf32>
    %136 = vector.shape_cast %135 : vector<64xf32> to vector<1x64xf32>
    %137 = vector.broadcast %136 : vector<1x64xf32> to vector<4x64xf32>
    %138 = arith.subf %134, %137 : vector<4x64xf32>
    %139 = math.exp %138 : vector<4x64xf32>
    %cst_65 = arith.constant dense<0.000000e+00> : vector<64xf32>
    %140 = vector.multi_reduction <add>, %139, %cst_65 [0] : vector<4x64xf32> to vector<64xf32>
    %141 = vector.shape_cast %140 : vector<64xf32> to vector<1x64xf32>
    %142 = tpu.reciprocal %141 {approx = true} : vector<1x64xf32> -> vector<1x64xf32>
    %143 = vector.broadcast %142 : vector<1x64xf32> to vector<4x64xf32>
    %144 = arith.mulf %139, %143 : vector<4x64xf32>
    %cst_66 = arith.constant 9.99999993E-9 : f32
    %145 = vector.broadcast %cst_66 : f32 to vector<4x64xf32>
    %146 = arith.addf %144, %145 : vector<4x64xf32>
    %cst_67 = arith.constant dense<0.000000e+00> : vector<4xf32>
    %147 = vector.multi_reduction <add>, %146, %cst_67 [1] : vector<4x64xf32> to vector<4xf32>
    %148 = vector.shape_cast %147 : vector<4xf32> to vector<4x1xf32>
    %149 = tpu.reciprocal %148 {approx = true} : vector<4x1xf32> -> vector<4x1xf32>
    %150 = vector.broadcast %149 : vector<4x1xf32> to vector<4x64xf32>
    %151 = arith.mulf %146, %150 : vector<4x64xf32>
    %cst_68 = arith.constant dense<0.000000e+00> : vector<4x32xf32>
    %152 = tpu.matmul %151, %108, %cst_68 {dimension_numbers = #tpu.dot_dimension_numbers<[1], [0], [0], [1], [0, 0, 1, 1], [], []>} : vector<4x64xf32>, vector<64x32xf32>, vector<4x32xf32> -> vector<4x32xf32>
    %153 = vector.extract_strided_slice %132 {offsets = [4, 0], sizes = [4, 32], strides = [1, 1]} : vector<8x32xf32> to vector<4x32xf32>
    %cst_69 = arith.constant dense<0.000000e+00> : vector<4x64xf32>
    %154 = tpu.matmul %153, %107, %cst_69 {dimension_numbers = #tpu.dot_dimension_numbers<[1], [0], [0], [1], [0, 0, 1, 1], [], []>} : vector<4x32xf32>, vector<32x64xf32>, vector<4x64xf32> -> vector<4x64xf32>
    %cst_70 = arith.constant dense<0xFF800000> : vector<64xf32>
    %155 = vector.multi_reduction <maximumf>, %154, %cst_70 [0] : vector<4x64xf32> to vector<64xf32>
    %156 = vector.shape_cast %155 : vector<64xf32> to vector<1x64xf32>
    %157 = vector.broadcast %156 : vector<1x64xf32> to vector<4x64xf32>
    %158 = arith.subf %154, %157 : vector<4x64xf32>
    %159 = math.exp %158 : vector<4x64xf32>
    %cst_71 = arith.constant dense<0.000000e+00> : vector<64xf32>
    %160 = vector.multi_reduction <add>, %159, %cst_71 [0] : vector<4x64xf32> to vector<64xf32>
    %161 = vector.shape_cast %160 : vector<64xf32> to vector<1x64xf32>
    %162 = tpu.reciprocal %161 {approx = true} : vector<1x64xf32> -> vector<1x64xf32>
    %163 = vector.broadcast %162 : vector<1x64xf32> to vector<4x64xf32>
    %164 = arith.mulf %159, %163 : vector<4x64xf32>
    %cst_72 = arith.constant 9.99999993E-9 : f32
    %165 = vector.broadcast %cst_72 : f32 to vector<4x64xf32>
    %166 = arith.addf %164, %165 : vector<4x64xf32>
    %cst_73 = arith.constant dense<0.000000e+00> : vector<4xf32>
    %167 = vector.multi_reduction <add>, %166, %cst_73 [1] : vector<4x64xf32> to vector<4xf32>
    %168 = vector.shape_cast %167 : vector<4xf32> to vector<4x1xf32>
    %169 = tpu.reciprocal %168 {approx = true} : vector<4x1xf32> -> vector<4x1xf32>
    %170 = vector.broadcast %169 : vector<4x1xf32> to vector<4x64xf32>
    %171 = arith.mulf %166, %170 : vector<4x64xf32>
    %cst_74 = arith.constant dense<0.000000e+00> : vector<4x32xf32>
    %172 = tpu.matmul %171, %109, %cst_74 {dimension_numbers = #tpu.dot_dimension_numbers<[1], [0], [0], [1], [0, 0, 1, 1], [], []>} : vector<4x64xf32>, vector<64x32xf32>, vector<4x32xf32> -> vector<4x32xf32>
    %173 = tpu.concatenate %152, %172 in 0 : vector<4x32xf32>, vector<4x32xf32> -> vector<8x32xf32>
    %cst_75 = arith.constant dense<0.000000e+00> : vector<8x32xf32>
    %174 = tpu.matmul %173, %7, %cst_75 {dimension_numbers = #tpu.dot_dimension_numbers<[1], [0], [0], [1], [0, 0, 1, 1], [], []>} : vector<8x32xf32>, vector<32x32xf32>, vector<8x32xf32> -> vector<8x32xf32>
    %cst_76 = arith.constant dense<0.000000e+00> : vector<8x32xf32>
    %175 = tpu.matmul %110, %13, %cst_76 {dimension_numbers = #tpu.dot_dimension_numbers<[1], [0], [0], [1], [0, 0, 1, 1], [], []>} : vector<8x32xf32>, vector<32x32xf32>, vector<8x32xf32> -> vector<8x32xf32>
    %176 = arith.addf %174, %175 : vector<8x32xf32>
    %177 = arith.addf %176, %59 : vector<8x32xf32>
    %178 = arith.negf %177 : vector<8x32xf32>
    %179 = math.exp %178 : vector<8x32xf32>
    %cst_77 = arith.constant 1.000000e+00 : f32
    %180 = vector.broadcast %cst_77 : f32 to vector<8x32xf32>
    %181 = arith.addf %180, %179 : vector<8x32xf32>
    %182 = arith.divf %180, %181 : vector<8x32xf32>
    %cst_78 = arith.constant dense<0.000000e+00> : vector<8x32xf32>
    %183 = tpu.matmul %173, %9, %cst_78 {dimension_numbers = #tpu.dot_dimension_numbers<[1], [0], [0], [1], [0, 0, 1, 1], [], []>} : vector<8x32xf32>, vector<32x32xf32>, vector<8x32xf32> -> vector<8x32xf32>
    %cst_79 = arith.constant dense<0.000000e+00> : vector<8x32xf32>
    %184 = tpu.matmul %110, %15, %cst_79 {dimension_numbers = #tpu.dot_dimension_numbers<[1], [0], [0], [1], [0, 0, 1, 1], [], []>} : vector<8x32xf32>, vector<32x32xf32>, vector<8x32xf32> -> vector<8x32xf32>
    %185 = arith.addf %183, %184 : vector<8x32xf32>
    %186 = arith.addf %185, %61 : vector<8x32xf32>
    %187 = arith.negf %186 : vector<8x32xf32>
    %188 = math.exp %187 : vector<8x32xf32>
    %cst_80 = arith.constant 1.000000e+00 : f32
    %189 = vector.broadcast %cst_80 : f32 to vector<8x32xf32>
    %190 = arith.addf %189, %188 : vector<8x32xf32>
    %191 = arith.divf %189, %190 : vector<8x32xf32>
    %cst_81 = arith.constant dense<0.000000e+00> : vector<8x32xf32>
    %192 = tpu.matmul %110, %17, %cst_81 {dimension_numbers = #tpu.dot_dimension_numbers<[1], [0], [0], [1], [0, 0, 1, 1], [], []>} : vector<8x32xf32>, vector<32x32xf32>, vector<8x32xf32> -> vector<8x32xf32>
    %193 = arith.addf %192, %65 : vector<8x32xf32>
    %cst_82 = arith.constant dense<0.000000e+00> : vector<8x32xf32>
    %194 = tpu.matmul %173, %11, %cst_82 {dimension_numbers = #tpu.dot_dimension_numbers<[1], [0], [0], [1], [0, 0, 1, 1], [], []>} : vector<8x32xf32>, vector<32x32xf32>, vector<8x32xf32> -> vector<8x32xf32>
    %195 = arith.addf %194, %63 : vector<8x32xf32>
    %196 = arith.mulf %182, %193 : vector<8x32xf32>
    %197 = arith.addf %195, %196 : vector<8x32xf32>
    %198 = math.tanh %197 : vector<8x32xf32>
    %cst_83 = arith.constant 1.000000e+00 : f32
    %199 = vector.broadcast %cst_83 : f32 to vector<8x32xf32>
    %200 = arith.subf %199, %191 : vector<8x32xf32>
    %201 = arith.mulf %200, %198 : vector<8x32xf32>
    %202 = arith.mulf %191, %110 : vector<8x32xf32>
    %203 = arith.addf %201, %202 : vector<8x32xf32>
    %cst_84 = arith.constant dense<0.000000e+00> : vector<8xf32>
    %204 = vector.multi_reduction <add>, %203, %cst_84 [1] : vector<8x32xf32> to vector<8xf32>
    %205 = vector.shape_cast %204 : vector<8xf32> to vector<8x1xf32>
    %cst_85 = arith.constant 3.200000e+01 : f32
    %206 = vector.broadcast %cst_85 : f32 to vector<8x1xf32>
    %207 = arith.divf %205, %206 : vector<8x1xf32>
    %208 = vector.broadcast %207 : vector<8x1xf32> to vector<8x32xf32>
    %209 = arith.subf %203, %208 : vector<8x32xf32>
    %210 = arith.mulf %209, %209 : vector<8x32xf32>
    %cst_86 = arith.constant dense<0.000000e+00> : vector<8xf32>
    %211 = vector.multi_reduction <add>, %210, %cst_86 [1] : vector<8x32xf32> to vector<8xf32>
    %212 = vector.shape_cast %211 : vector<8xf32> to vector<8x1xf32>
    %cst_87 = arith.constant 3.200000e+01 : f32
    %213 = vector.broadcast %cst_87 : f32 to vector<8x1xf32>
    %214 = arith.divf %212, %213 : vector<8x1xf32>
    %215 = vector.broadcast %207 : vector<8x1xf32> to vector<8x32xf32>
    %216 = arith.subf %203, %215 : vector<8x32xf32>
    %cst_88 = arith.constant 9.99999974E-6 : f32
    %217 = vector.broadcast %cst_88 : f32 to vector<8x1xf32>
    %218 = arith.addf %214, %217 : vector<8x1xf32>
    %219 = math.rsqrt %218 : vector<8x1xf32>
    %220 = vector.broadcast %219 : vector<8x1xf32> to vector<8x32xf32>
    %221 = arith.mulf %216, %220 : vector<8x32xf32>
    %222 = arith.mulf %221, %53 : vector<8x32xf32>
    %223 = arith.addf %222, %55 : vector<8x32xf32>
    %cst_89 = arith.constant dense<0.000000e+00> : vector<8x128xf32>
    %224 = tpu.matmul %223, %46, %cst_89 {dimension_numbers = #tpu.dot_dimension_numbers<[1], [0], [0], [1], [0, 0, 1, 1], [], []>} : vector<8x32xf32>, vector<32x128xf32>, vector<8x128xf32> -> vector<8x128xf32>
    %225 = arith.addf %224, %70 : vector<8x128xf32>
    %cst_90 = arith.constant 0.000000e+00 : f32
    %226 = vector.broadcast %cst_90 : f32 to vector<8x128xf32>
    %227 = arith.maximumf %225, %226 : vector<8x128xf32>
    %cst_91 = arith.constant dense<0.000000e+00> : vector<8x32xf32>
    %228 = tpu.matmul %227, %47, %cst_91 {dimension_numbers = #tpu.dot_dimension_numbers<[1], [0], [0], [1], [0, 0, 1, 1], [], []>} : vector<8x128xf32>, vector<128x32xf32>, vector<8x32xf32> -> vector<8x32xf32>
    %229 = arith.addf %203, %228 : vector<8x32xf32>
    %230 = arith.addf %229, %67 : vector<8x32xf32>
    %cst_92 = arith.constant dense<0.000000e+00> : vector<8xf32>
    %231 = vector.multi_reduction <add>, %230, %cst_92 [1] : vector<8x32xf32> to vector<8xf32>
    %232 = vector.shape_cast %231 : vector<8xf32> to vector<8x1xf32>
    %cst_93 = arith.constant 3.200000e+01 : f32
    %233 = vector.broadcast %cst_93 : f32 to vector<8x1xf32>
    %234 = arith.divf %232, %233 : vector<8x1xf32>
    %235 = vector.broadcast %234 : vector<8x1xf32> to vector<8x32xf32>
    %236 = arith.subf %230, %235 : vector<8x32xf32>
    %237 = arith.mulf %236, %236 : vector<8x32xf32>
    %cst_94 = arith.constant dense<0.000000e+00> : vector<8xf32>
    %238 = vector.multi_reduction <add>, %237, %cst_94 [1] : vector<8x32xf32> to vector<8xf32>
    %239 = vector.shape_cast %238 : vector<8xf32> to vector<8x1xf32>
    %cst_95 = arith.constant 3.200000e+01 : f32
    %240 = vector.broadcast %cst_95 : f32 to vector<8x1xf32>
    %241 = arith.divf %239, %240 : vector<8x1xf32>
    %242 = vector.broadcast %234 : vector<8x1xf32> to vector<8x32xf32>
    %243 = arith.subf %230, %242 : vector<8x32xf32>
    %cst_96 = arith.constant 9.99999974E-6 : f32
    %244 = vector.broadcast %cst_96 : f32 to vector<8x1xf32>
    %245 = arith.addf %241, %244 : vector<8x1xf32>
    %246 = math.rsqrt %245 : vector<8x1xf32>
    %247 = vector.broadcast %246 : vector<8x1xf32> to vector<8x32xf32>
    %248 = arith.mulf %243, %247 : vector<8x32xf32>
    %249 = arith.mulf %248, %49 : vector<8x32xf32>
    %250 = arith.addf %249, %51 : vector<8x32xf32>
    %cst_97 = arith.constant dense<0.000000e+00> : vector<8x32xf32>
    %251 = tpu.matmul %250, %5, %cst_97 {dimension_numbers = #tpu.dot_dimension_numbers<[1], [0], [0], [1], [0, 0, 1, 1], [], []>} : vector<8x32xf32>, vector<32x32xf32>, vector<8x32xf32> -> vector<8x32xf32>
    %252 = arith.addf %251, %57 : vector<8x32xf32>
    %253 = vector.extract_strided_slice %252 {offsets = [0, 0], sizes = [4, 32], strides = [1, 1]} : vector<8x32xf32> to vector<4x32xf32>
    %cst_98 = arith.constant dense<0.000000e+00> : vector<4x64xf32>
    %254 = tpu.matmul %253, %105, %cst_98 {dimension_numbers = #tpu.dot_dimension_numbers<[1], [0], [0], [1], [0, 0, 1, 1], [], []>} : vector<4x32xf32>, vector<32x64xf32>, vector<4x64xf32> -> vector<4x64xf32>
    %cst_99 = arith.constant dense<0xFF800000> : vector<64xf32>
    %255 = vector.multi_reduction <maximumf>, %254, %cst_99 [0] : vector<4x64xf32> to vector<64xf32>
    %256 = vector.shape_cast %255 : vector<64xf32> to vector<1x64xf32>
    %257 = vector.broadcast %256 : vector<1x64xf32> to vector<4x64xf32>
    %258 = arith.subf %254, %257 : vector<4x64xf32>
    %259 = math.exp %258 : vector<4x64xf32>
    %cst_100 = arith.constant dense<0.000000e+00> : vector<64xf32>
    %260 = vector.multi_reduction <add>, %259, %cst_100 [0] : vector<4x64xf32> to vector<64xf32>
    %261 = vector.shape_cast %260 : vector<64xf32> to vector<1x64xf32>
    %262 = tpu.reciprocal %261 {approx = true} : vector<1x64xf32> -> vector<1x64xf32>
    %263 = vector.broadcast %262 : vector<1x64xf32> to vector<4x64xf32>
    %264 = arith.mulf %259, %263 : vector<4x64xf32>
    %cst_101 = arith.constant 9.99999993E-9 : f32
    %265 = vector.broadcast %cst_101 : f32 to vector<4x64xf32>
    %266 = arith.addf %264, %265 : vector<4x64xf32>
    %cst_102 = arith.constant dense<0.000000e+00> : vector<4xf32>
    %267 = vector.multi_reduction <add>, %266, %cst_102 [1] : vector<4x64xf32> to vector<4xf32>
    %268 = vector.shape_cast %267 : vector<4xf32> to vector<4x1xf32>
    %269 = tpu.reciprocal %268 {approx = true} : vector<4x1xf32> -> vector<4x1xf32>
    %270 = vector.broadcast %269 : vector<4x1xf32> to vector<4x64xf32>
    %271 = arith.mulf %266, %270 : vector<4x64xf32>
    %cst_103 = arith.constant dense<0.000000e+00> : vector<4x32xf32>
    %272 = tpu.matmul %271, %108, %cst_103 {dimension_numbers = #tpu.dot_dimension_numbers<[1], [0], [0], [1], [0, 0, 1, 1], [], []>} : vector<4x64xf32>, vector<64x32xf32>, vector<4x32xf32> -> vector<4x32xf32>
    %273 = vector.extract_strided_slice %252 {offsets = [4, 0], sizes = [4, 32], strides = [1, 1]} : vector<8x32xf32> to vector<4x32xf32>
    %cst_104 = arith.constant dense<0.000000e+00> : vector<4x64xf32>
    %274 = tpu.matmul %273, %107, %cst_104 {dimension_numbers = #tpu.dot_dimension_numbers<[1], [0], [0], [1], [0, 0, 1, 1], [], []>} : vector<4x32xf32>, vector<32x64xf32>, vector<4x64xf32> -> vector<4x64xf32>
    %cst_105 = arith.constant dense<0xFF800000> : vector<64xf32>
    %275 = vector.multi_reduction <maximumf>, %274, %cst_105 [0] : vector<4x64xf32> to vector<64xf32>
    %276 = vector.shape_cast %275 : vector<64xf32> to vector<1x64xf32>
    %277 = vector.broadcast %276 : vector<1x64xf32> to vector<4x64xf32>
    %278 = arith.subf %274, %277 : vector<4x64xf32>
    %279 = math.exp %278 : vector<4x64xf32>
    %cst_106 = arith.constant dense<0.000000e+00> : vector<64xf32>
    %280 = vector.multi_reduction <add>, %279, %cst_106 [0] : vector<4x64xf32> to vector<64xf32>
    %281 = vector.shape_cast %280 : vector<64xf32> to vector<1x64xf32>
    %282 = tpu.reciprocal %281 {approx = true} : vector<1x64xf32> -> vector<1x64xf32>
    %283 = vector.broadcast %282 : vector<1x64xf32> to vector<4x64xf32>
    %284 = arith.mulf %279, %283 : vector<4x64xf32>
    %cst_107 = arith.constant 9.99999993E-9 : f32
    %285 = vector.broadcast %cst_107 : f32 to vector<4x64xf32>
    %286 = arith.addf %284, %285 : vector<4x64xf32>
    %cst_108 = arith.constant dense<0.000000e+00> : vector<4xf32>
    %287 = vector.multi_reduction <add>, %286, %cst_108 [1] : vector<4x64xf32> to vector<4xf32>
    %288 = vector.shape_cast %287 : vector<4xf32> to vector<4x1xf32>
    %289 = tpu.reciprocal %288 {approx = true} : vector<4x1xf32> -> vector<4x1xf32>
    %290 = vector.broadcast %289 : vector<4x1xf32> to vector<4x64xf32>
    %291 = arith.mulf %286, %290 : vector<4x64xf32>
    %cst_109 = arith.constant dense<0.000000e+00> : vector<4x32xf32>
    %292 = tpu.matmul %291, %109, %cst_109 {dimension_numbers = #tpu.dot_dimension_numbers<[1], [0], [0], [1], [0, 0, 1, 1], [], []>} : vector<4x64xf32>, vector<64x32xf32>, vector<4x32xf32> -> vector<4x32xf32>
    %293 = tpu.concatenate %272, %292 in 0 : vector<4x32xf32>, vector<4x32xf32> -> vector<8x32xf32>
    %cst_110 = arith.constant dense<0.000000e+00> : vector<8x32xf32>
    %294 = tpu.matmul %293, %7, %cst_110 {dimension_numbers = #tpu.dot_dimension_numbers<[1], [0], [0], [1], [0, 0, 1, 1], [], []>} : vector<8x32xf32>, vector<32x32xf32>, vector<8x32xf32> -> vector<8x32xf32>
    %cst_111 = arith.constant dense<0.000000e+00> : vector<8x32xf32>
    %295 = tpu.matmul %230, %13, %cst_111 {dimension_numbers = #tpu.dot_dimension_numbers<[1], [0], [0], [1], [0, 0, 1, 1], [], []>} : vector<8x32xf32>, vector<32x32xf32>, vector<8x32xf32> -> vector<8x32xf32>
    %296 = arith.addf %294, %295 : vector<8x32xf32>
    %297 = arith.addf %296, %59 : vector<8x32xf32>
    %298 = arith.negf %297 : vector<8x32xf32>
    %299 = math.exp %298 : vector<8x32xf32>
    %cst_112 = arith.constant 1.000000e+00 : f32
    %300 = vector.broadcast %cst_112 : f32 to vector<8x32xf32>
    %301 = arith.addf %300, %299 : vector<8x32xf32>
    %302 = arith.divf %300, %301 : vector<8x32xf32>
    %cst_113 = arith.constant dense<0.000000e+00> : vector<8x32xf32>
    %303 = tpu.matmul %293, %9, %cst_113 {dimension_numbers = #tpu.dot_dimension_numbers<[1], [0], [0], [1], [0, 0, 1, 1], [], []>} : vector<8x32xf32>, vector<32x32xf32>, vector<8x32xf32> -> vector<8x32xf32>
    %cst_114 = arith.constant dense<0.000000e+00> : vector<8x32xf32>
    %304 = tpu.matmul %230, %15, %cst_114 {dimension_numbers = #tpu.dot_dimension_numbers<[1], [0], [0], [1], [0, 0, 1, 1], [], []>} : vector<8x32xf32>, vector<32x32xf32>, vector<8x32xf32> -> vector<8x32xf32>
    %305 = arith.addf %303, %304 : vector<8x32xf32>
    %306 = arith.addf %305, %61 : vector<8x32xf32>
    %307 = arith.negf %306 : vector<8x32xf32>
    %308 = math.exp %307 : vector<8x32xf32>
    %cst_115 = arith.constant 1.000000e+00 : f32
    %309 = vector.broadcast %cst_115 : f32 to vector<8x32xf32>
    %310 = arith.addf %309, %308 : vector<8x32xf32>
    %311 = arith.divf %309, %310 : vector<8x32xf32>
    %cst_116 = arith.constant dense<0.000000e+00> : vector<8x32xf32>
    %312 = tpu.matmul %230, %17, %cst_116 {dimension_numbers = #tpu.dot_dimension_numbers<[1], [0], [0], [1], [0, 0, 1, 1], [], []>} : vector<8x32xf32>, vector<32x32xf32>, vector<8x32xf32> -> vector<8x32xf32>
    %313 = arith.addf %312, %65 : vector<8x32xf32>
    %cst_117 = arith.constant dense<0.000000e+00> : vector<8x32xf32>
    %314 = tpu.matmul %293, %11, %cst_117 {dimension_numbers = #tpu.dot_dimension_numbers<[1], [0], [0], [1], [0, 0, 1, 1], [], []>} : vector<8x32xf32>, vector<32x32xf32>, vector<8x32xf32> -> vector<8x32xf32>
    %315 = arith.addf %314, %63 : vector<8x32xf32>
    %316 = arith.mulf %302, %313 : vector<8x32xf32>
    %317 = arith.addf %315, %316 : vector<8x32xf32>
    %318 = math.tanh %317 : vector<8x32xf32>
    %cst_118 = arith.constant 1.000000e+00 : f32
    %319 = vector.broadcast %cst_118 : f32 to vector<8x32xf32>
    %320 = arith.subf %319, %311 : vector<8x32xf32>
    %321 = arith.mulf %320, %318 : vector<8x32xf32>
    %322 = arith.mulf %311, %230 : vector<8x32xf32>
    %323 = arith.addf %321, %322 : vector<8x32xf32>
    %cst_119 = arith.constant dense<0.000000e+00> : vector<8xf32>
    %324 = vector.multi_reduction <add>, %323, %cst_119 [1] : vector<8x32xf32> to vector<8xf32>
    %325 = vector.shape_cast %324 : vector<8xf32> to vector<8x1xf32>
    %cst_120 = arith.constant 3.200000e+01 : f32
    %326 = vector.broadcast %cst_120 : f32 to vector<8x1xf32>
    %327 = arith.divf %325, %326 : vector<8x1xf32>
    %328 = vector.broadcast %327 : vector<8x1xf32> to vector<8x32xf32>
    %329 = arith.subf %323, %328 : vector<8x32xf32>
    %330 = arith.mulf %329, %329 : vector<8x32xf32>
    %cst_121 = arith.constant dense<0.000000e+00> : vector<8xf32>
    %331 = vector.multi_reduction <add>, %330, %cst_121 [1] : vector<8x32xf32> to vector<8xf32>
    %332 = vector.shape_cast %331 : vector<8xf32> to vector<8x1xf32>
    %cst_122 = arith.constant 3.200000e+01 : f32
    %333 = vector.broadcast %cst_122 : f32 to vector<8x1xf32>
    %334 = arith.divf %332, %333 : vector<8x1xf32>
    %335 = vector.broadcast %327 : vector<8x1xf32> to vector<8x32xf32>
    %336 = arith.subf %323, %335 : vector<8x32xf32>
    %cst_123 = arith.constant 9.99999974E-6 : f32
    %337 = vector.broadcast %cst_123 : f32 to vector<8x1xf32>
    %338 = arith.addf %334, %337 : vector<8x1xf32>
    %339 = math.rsqrt %338 : vector<8x1xf32>
    %340 = vector.broadcast %339 : vector<8x1xf32> to vector<8x32xf32>
    %341 = arith.mulf %336, %340 : vector<8x32xf32>
    %342 = arith.mulf %341, %53 : vector<8x32xf32>
    %343 = arith.addf %342, %55 : vector<8x32xf32>
    %cst_124 = arith.constant dense<0.000000e+00> : vector<8x128xf32>
    %344 = tpu.matmul %343, %46, %cst_124 {dimension_numbers = #tpu.dot_dimension_numbers<[1], [0], [0], [1], [0, 0, 1, 1], [], []>} : vector<8x32xf32>, vector<32x128xf32>, vector<8x128xf32> -> vector<8x128xf32>
    %345 = arith.addf %344, %70 : vector<8x128xf32>
    %cst_125 = arith.constant 0.000000e+00 : f32
    %346 = vector.broadcast %cst_125 : f32 to vector<8x128xf32>
    %347 = arith.maximumf %345, %346 : vector<8x128xf32>
    %cst_126 = arith.constant dense<0.000000e+00> : vector<8x32xf32>
    %348 = tpu.matmul %347, %47, %cst_126 {dimension_numbers = #tpu.dot_dimension_numbers<[1], [0], [0], [1], [0, 0, 1, 1], [], []>} : vector<8x128xf32>, vector<128x32xf32>, vector<8x32xf32> -> vector<8x32xf32>
    %349 = arith.addf %323, %348 : vector<8x32xf32>
    %350 = arith.addf %349, %67 : vector<8x32xf32>
    %cst_127 = arith.constant dense<0.000000e+00> : vector<8xf32>
    %351 = vector.multi_reduction <add>, %350, %cst_127 [1] : vector<8x32xf32> to vector<8xf32>
    %352 = vector.shape_cast %351 : vector<8xf32> to vector<8x1xf32>
    %cst_128 = arith.constant 3.200000e+01 : f32
    %353 = vector.broadcast %cst_128 : f32 to vector<8x1xf32>
    %354 = arith.divf %352, %353 : vector<8x1xf32>
    %355 = vector.broadcast %354 : vector<8x1xf32> to vector<8x32xf32>
    %356 = arith.subf %350, %355 : vector<8x32xf32>
    %357 = arith.mulf %356, %356 : vector<8x32xf32>
    %cst_129 = arith.constant dense<0.000000e+00> : vector<8xf32>
    %358 = vector.multi_reduction <add>, %357, %cst_129 [1] : vector<8x32xf32> to vector<8xf32>
    %359 = vector.shape_cast %358 : vector<8xf32> to vector<8x1xf32>
    %cst_130 = arith.constant 3.200000e+01 : f32
    %360 = vector.broadcast %cst_130 : f32 to vector<8x1xf32>
    %361 = arith.divf %359, %360 : vector<8x1xf32>
    %362 = vector.broadcast %354 : vector<8x1xf32> to vector<8x32xf32>
    %363 = arith.subf %350, %362 : vector<8x32xf32>
    %cst_131 = arith.constant 9.99999974E-6 : f32
    %364 = vector.broadcast %cst_131 : f32 to vector<8x1xf32>
    %365 = arith.addf %361, %364 : vector<8x1xf32>
    %366 = math.rsqrt %365 : vector<8x1xf32>
    %367 = vector.broadcast %366 : vector<8x1xf32> to vector<8x32xf32>
    %368 = arith.mulf %363, %367 : vector<8x32xf32>
    %369 = arith.mulf %368, %49 : vector<8x32xf32>
    %370 = arith.addf %369, %51 : vector<8x32xf32>
    %cst_132 = arith.constant dense<0.000000e+00> : vector<8x32xf32>
    %371 = tpu.matmul %370, %5, %cst_132 {dimension_numbers = #tpu.dot_dimension_numbers<[1], [0], [0], [1], [0, 0, 1, 1], [], []>} : vector<8x32xf32>, vector<32x32xf32>, vector<8x32xf32> -> vector<8x32xf32>
    %372 = arith.addf %371, %57 : vector<8x32xf32>
    %373 = vector.extract_strided_slice %372 {offsets = [0, 0], sizes = [4, 32], strides = [1, 1]} : vector<8x32xf32> to vector<4x32xf32>
    %cst_133 = arith.constant dense<0.000000e+00> : vector<4x64xf32>
    %374 = tpu.matmul %373, %105, %cst_133 {dimension_numbers = #tpu.dot_dimension_numbers<[1], [0], [0], [1], [0, 0, 1, 1], [], []>} : vector<4x32xf32>, vector<32x64xf32>, vector<4x64xf32> -> vector<4x64xf32>
    %cst_134 = arith.constant dense<0xFF800000> : vector<64xf32>
    %375 = vector.multi_reduction <maximumf>, %374, %cst_134 [0] : vector<4x64xf32> to vector<64xf32>
    %376 = vector.shape_cast %375 : vector<64xf32> to vector<1x64xf32>
    %377 = vector.broadcast %376 : vector<1x64xf32> to vector<4x64xf32>
    %378 = arith.subf %374, %377 : vector<4x64xf32>
    %379 = math.exp %378 : vector<4x64xf32>
    %cst_135 = arith.constant dense<0.000000e+00> : vector<64xf32>
    %380 = vector.multi_reduction <add>, %379, %cst_135 [0] : vector<4x64xf32> to vector<64xf32>
    %381 = vector.shape_cast %380 : vector<64xf32> to vector<1x64xf32>
    %382 = tpu.reciprocal %381 {approx = true} : vector<1x64xf32> -> vector<1x64xf32>
    %383 = vector.broadcast %382 : vector<1x64xf32> to vector<4x64xf32>
    %384 = arith.mulf %379, %383 : vector<4x64xf32>
    %cst_136 = arith.constant 9.99999993E-9 : f32
    %385 = vector.broadcast %cst_136 : f32 to vector<4x64xf32>
    %386 = arith.addf %384, %385 : vector<4x64xf32>
    %cst_137 = arith.constant dense<0.000000e+00> : vector<4xf32>
    %387 = vector.multi_reduction <add>, %386, %cst_137 [1] : vector<4x64xf32> to vector<4xf32>
    %388 = vector.shape_cast %387 : vector<4xf32> to vector<4x1xf32>
    %389 = tpu.reciprocal %388 {approx = true} : vector<4x1xf32> -> vector<4x1xf32>
    %390 = vector.broadcast %389 : vector<4x1xf32> to vector<4x64xf32>
    %391 = arith.mulf %386, %390 : vector<4x64xf32>
    %cst_138 = arith.constant dense<0.000000e+00> : vector<4x32xf32>
    %392 = tpu.matmul %391, %108, %cst_138 {dimension_numbers = #tpu.dot_dimension_numbers<[1], [0], [0], [1], [0, 0, 1, 1], [], []>} : vector<4x64xf32>, vector<64x32xf32>, vector<4x32xf32> -> vector<4x32xf32>
    %393 = vector.extract_strided_slice %372 {offsets = [4, 0], sizes = [4, 32], strides = [1, 1]} : vector<8x32xf32> to vector<4x32xf32>
    %cst_139 = arith.constant dense<0.000000e+00> : vector<4x64xf32>
    %394 = tpu.matmul %393, %107, %cst_139 {dimension_numbers = #tpu.dot_dimension_numbers<[1], [0], [0], [1], [0, 0, 1, 1], [], []>} : vector<4x32xf32>, vector<32x64xf32>, vector<4x64xf32> -> vector<4x64xf32>
    %cst_140 = arith.constant dense<0xFF800000> : vector<64xf32>
    %395 = vector.multi_reduction <maximumf>, %394, %cst_140 [0] : vector<4x64xf32> to vector<64xf32>
    %396 = vector.shape_cast %395 : vector<64xf32> to vector<1x64xf32>
    %397 = vector.broadcast %396 : vector<1x64xf32> to vector<4x64xf32>
    %398 = arith.subf %394, %397 : vector<4x64xf32>
    %399 = math.exp %398 : vector<4x64xf32>
    %cst_141 = arith.constant dense<0.000000e+00> : vector<64xf32>
    %400 = vector.multi_reduction <add>, %399, %cst_141 [0] : vector<4x64xf32> to vector<64xf32>
    %401 = vector.shape_cast %400 : vector<64xf32> to vector<1x64xf32>
    %402 = tpu.reciprocal %401 {approx = true} : vector<1x64xf32> -> vector<1x64xf32>
    %403 = vector.broadcast %402 : vector<1x64xf32> to vector<4x64xf32>
    %404 = arith.mulf %399, %403 : vector<4x64xf32>
    %cst_142 = arith.constant 9.99999993E-9 : f32
    %405 = vector.broadcast %cst_142 : f32 to vector<4x64xf32>
    %406 = arith.addf %404, %405 : vector<4x64xf32>
    %cst_143 = arith.constant dense<0.000000e+00> : vector<4xf32>
    %407 = vector.multi_reduction <add>, %406, %cst_143 [1] : vector<4x64xf32> to vector<4xf32>
    %408 = vector.shape_cast %407 : vector<4xf32> to vector<4x1xf32>
    %409 = tpu.reciprocal %408 {approx = true} : vector<4x1xf32> -> vector<4x1xf32>
    %410 = vector.broadcast %409 : vector<4x1xf32> to vector<4x64xf32>
    %411 = arith.mulf %406, %410 : vector<4x64xf32>
    %cst_144 = arith.constant dense<0.000000e+00> : vector<4x32xf32>
    %412 = tpu.matmul %411, %109, %cst_144 {dimension_numbers = #tpu.dot_dimension_numbers<[1], [0], [0], [1], [0, 0, 1, 1], [], []>} : vector<4x64xf32>, vector<64x32xf32>, vector<4x32xf32> -> vector<4x32xf32>
    %413 = tpu.concatenate %392, %412 in 0 : vector<4x32xf32>, vector<4x32xf32> -> vector<8x32xf32>
    %cst_145 = arith.constant dense<0.000000e+00> : vector<8x32xf32>
    %414 = tpu.matmul %413, %7, %cst_145 {dimension_numbers = #tpu.dot_dimension_numbers<[1], [0], [0], [1], [0, 0, 1, 1], [], []>} : vector<8x32xf32>, vector<32x32xf32>, vector<8x32xf32> -> vector<8x32xf32>
    %cst_146 = arith.constant dense<0.000000e+00> : vector<8x32xf32>
    %415 = tpu.matmul %350, %13, %cst_146 {dimension_numbers = #tpu.dot_dimension_numbers<[1], [0], [0], [1], [0, 0, 1, 1], [], []>} : vector<8x32xf32>, vector<32x32xf32>, vector<8x32xf32> -> vector<8x32xf32>
    %416 = arith.addf %414, %415 : vector<8x32xf32>
    %417 = arith.addf %416, %59 : vector<8x32xf32>
    %418 = arith.negf %417 : vector<8x32xf32>
    %419 = math.exp %418 : vector<8x32xf32>
    %cst_147 = arith.constant 1.000000e+00 : f32
    %420 = vector.broadcast %cst_147 : f32 to vector<8x32xf32>
    %421 = arith.addf %420, %419 : vector<8x32xf32>
    %422 = arith.divf %420, %421 : vector<8x32xf32>
    %cst_148 = arith.constant dense<0.000000e+00> : vector<8x32xf32>
    %423 = tpu.matmul %413, %9, %cst_148 {dimension_numbers = #tpu.dot_dimension_numbers<[1], [0], [0], [1], [0, 0, 1, 1], [], []>} : vector<8x32xf32>, vector<32x32xf32>, vector<8x32xf32> -> vector<8x32xf32>
    %cst_149 = arith.constant dense<0.000000e+00> : vector<8x32xf32>
    %424 = tpu.matmul %350, %15, %cst_149 {dimension_numbers = #tpu.dot_dimension_numbers<[1], [0], [0], [1], [0, 0, 1, 1], [], []>} : vector<8x32xf32>, vector<32x32xf32>, vector<8x32xf32> -> vector<8x32xf32>
    %425 = arith.addf %423, %424 : vector<8x32xf32>
    %426 = arith.addf %425, %61 : vector<8x32xf32>
    %427 = arith.negf %426 : vector<8x32xf32>
    %428 = math.exp %427 : vector<8x32xf32>
    %cst_150 = arith.constant 1.000000e+00 : f32
    %429 = vector.broadcast %cst_150 : f32 to vector<8x32xf32>
    %430 = arith.addf %429, %428 : vector<8x32xf32>
    %431 = arith.divf %429, %430 : vector<8x32xf32>
    %cst_151 = arith.constant dense<0.000000e+00> : vector<8x32xf32>
    %432 = tpu.matmul %350, %17, %cst_151 {dimension_numbers = #tpu.dot_dimension_numbers<[1], [0], [0], [1], [0, 0, 1, 1], [], []>} : vector<8x32xf32>, vector<32x32xf32>, vector<8x32xf32> -> vector<8x32xf32>
    %433 = arith.addf %432, %65 : vector<8x32xf32>
    %cst_152 = arith.constant dense<0.000000e+00> : vector<8x32xf32>
    %434 = tpu.matmul %413, %11, %cst_152 {dimension_numbers = #tpu.dot_dimension_numbers<[1], [0], [0], [1], [0, 0, 1, 1], [], []>} : vector<8x32xf32>, vector<32x32xf32>, vector<8x32xf32> -> vector<8x32xf32>
    %435 = arith.addf %434, %63 : vector<8x32xf32>
    %436 = arith.mulf %422, %433 : vector<8x32xf32>
    %437 = arith.addf %435, %436 : vector<8x32xf32>
    %438 = math.tanh %437 : vector<8x32xf32>
    %cst_153 = arith.constant 1.000000e+00 : f32
    %439 = vector.broadcast %cst_153 : f32 to vector<8x32xf32>
    %440 = arith.subf %439, %431 : vector<8x32xf32>
    %441 = arith.mulf %440, %438 : vector<8x32xf32>
    %442 = arith.mulf %431, %350 : vector<8x32xf32>
    %443 = arith.addf %441, %442 : vector<8x32xf32>
    %cst_154 = arith.constant dense<0.000000e+00> : vector<8xf32>
    %444 = vector.multi_reduction <add>, %443, %cst_154 [1] : vector<8x32xf32> to vector<8xf32>
    %445 = vector.shape_cast %444 : vector<8xf32> to vector<8x1xf32>
    %cst_155 = arith.constant 3.200000e+01 : f32
    %446 = vector.broadcast %cst_155 : f32 to vector<8x1xf32>
    %447 = arith.divf %445, %446 : vector<8x1xf32>
    %448 = vector.broadcast %447 : vector<8x1xf32> to vector<8x32xf32>
    %449 = arith.subf %443, %448 : vector<8x32xf32>
    %450 = arith.mulf %449, %449 : vector<8x32xf32>
    %cst_156 = arith.constant dense<0.000000e+00> : vector<8xf32>
    %451 = vector.multi_reduction <add>, %450, %cst_156 [1] : vector<8x32xf32> to vector<8xf32>
    %452 = vector.shape_cast %451 : vector<8xf32> to vector<8x1xf32>
    %cst_157 = arith.constant 3.200000e+01 : f32
    %453 = vector.broadcast %cst_157 : f32 to vector<8x1xf32>
    %454 = arith.divf %452, %453 : vector<8x1xf32>
    %455 = vector.broadcast %447 : vector<8x1xf32> to vector<8x32xf32>
    %456 = arith.subf %443, %455 : vector<8x32xf32>
    %cst_158 = arith.constant 9.99999974E-6 : f32
    %457 = vector.broadcast %cst_158 : f32 to vector<8x1xf32>
    %458 = arith.addf %454, %457 : vector<8x1xf32>
    %459 = math.rsqrt %458 : vector<8x1xf32>
    %460 = vector.broadcast %459 : vector<8x1xf32> to vector<8x32xf32>
    %461 = arith.mulf %456, %460 : vector<8x32xf32>
    %462 = arith.mulf %461, %53 : vector<8x32xf32>
    %463 = arith.addf %462, %55 : vector<8x32xf32>
    %cst_159 = arith.constant dense<0.000000e+00> : vector<8x128xf32>
    %464 = tpu.matmul %463, %46, %cst_159 {dimension_numbers = #tpu.dot_dimension_numbers<[1], [0], [0], [1], [0, 0, 1, 1], [], []>} : vector<8x32xf32>, vector<32x128xf32>, vector<8x128xf32> -> vector<8x128xf32>
    %465 = arith.addf %464, %70 : vector<8x128xf32>
    %cst_160 = arith.constant 0.000000e+00 : f32
    %466 = vector.broadcast %cst_160 : f32 to vector<8x128xf32>
    %467 = arith.maximumf %465, %466 : vector<8x128xf32>
    %cst_161 = arith.constant dense<0.000000e+00> : vector<8x32xf32>
    %468 = tpu.matmul %467, %47, %cst_161 {dimension_numbers = #tpu.dot_dimension_numbers<[1], [0], [0], [1], [0, 0, 1, 1], [], []>} : vector<8x128xf32>, vector<128x32xf32>, vector<8x32xf32> -> vector<8x32xf32>
    %469 = arith.addf %443, %468 : vector<8x32xf32>
    %470 = arith.addf %469, %67 : vector<8x32xf32>
    %cst_162 = arith.constant dense<0.000000e+00> : vector<8xf32>
    %471 = vector.multi_reduction <add>, %470, %cst_162 [1] : vector<8x32xf32> to vector<8xf32>
    %472 = vector.shape_cast %471 : vector<8xf32> to vector<8x1xf32>
    %cst_163 = arith.constant 3.200000e+01 : f32
    %473 = vector.broadcast %cst_163 : f32 to vector<8x1xf32>
    %474 = arith.divf %472, %473 : vector<8x1xf32>
    %475 = vector.broadcast %474 : vector<8x1xf32> to vector<8x32xf32>
    %476 = arith.subf %470, %475 : vector<8x32xf32>
    %477 = arith.mulf %476, %476 : vector<8x32xf32>
    %cst_164 = arith.constant dense<0.000000e+00> : vector<8xf32>
    %478 = vector.multi_reduction <add>, %477, %cst_164 [1] : vector<8x32xf32> to vector<8xf32>
    %479 = vector.shape_cast %478 : vector<8xf32> to vector<8x1xf32>
    %cst_165 = arith.constant 3.200000e+01 : f32
    %480 = vector.broadcast %cst_165 : f32 to vector<8x1xf32>
    %481 = arith.divf %479, %480 : vector<8x1xf32>
    %482 = vector.broadcast %474 : vector<8x1xf32> to vector<8x32xf32>
    %483 = arith.subf %470, %482 : vector<8x32xf32>
    %cst_166 = arith.constant 9.99999974E-6 : f32
    %484 = vector.broadcast %cst_166 : f32 to vector<8x1xf32>
    %485 = arith.addf %481, %484 : vector<8x1xf32>
    %486 = math.rsqrt %485 : vector<8x1xf32>
    %487 = vector.broadcast %486 : vector<8x1xf32> to vector<8x32xf32>
    %488 = arith.mulf %483, %487 : vector<8x32xf32>
    %489 = arith.mulf %488, %49 : vector<8x32xf32>
    %490 = arith.addf %489, %51 : vector<8x32xf32>
    %cst_167 = arith.constant dense<0.000000e+00> : vector<8x32xf32>
    %491 = tpu.matmul %490, %5, %cst_167 {dimension_numbers = #tpu.dot_dimension_numbers<[1], [0], [0], [1], [0, 0, 1, 1], [], []>} : vector<8x32xf32>, vector<32x32xf32>, vector<8x32xf32> -> vector<8x32xf32>
    %492 = arith.addf %491, %57 : vector<8x32xf32>
    %493 = vector.extract_strided_slice %492 {offsets = [0, 0], sizes = [4, 32], strides = [1, 1]} : vector<8x32xf32> to vector<4x32xf32>
    %cst_168 = arith.constant dense<0.000000e+00> : vector<4x64xf32>
    %494 = tpu.matmul %493, %105, %cst_168 {dimension_numbers = #tpu.dot_dimension_numbers<[1], [0], [0], [1], [0, 0, 1, 1], [], []>} : vector<4x32xf32>, vector<32x64xf32>, vector<4x64xf32> -> vector<4x64xf32>
    %cst_169 = arith.constant dense<0xFF800000> : vector<64xf32>
    %495 = vector.multi_reduction <maximumf>, %494, %cst_169 [0] : vector<4x64xf32> to vector<64xf32>
    %496 = vector.shape_cast %495 : vector<64xf32> to vector<1x64xf32>
    %497 = vector.broadcast %496 : vector<1x64xf32> to vector<4x64xf32>
    %498 = arith.subf %494, %497 : vector<4x64xf32>
    %499 = math.exp %498 : vector<4x64xf32>
    %cst_170 = arith.constant dense<0.000000e+00> : vector<64xf32>
    %500 = vector.multi_reduction <add>, %499, %cst_170 [0] : vector<4x64xf32> to vector<64xf32>
    %501 = vector.shape_cast %500 : vector<64xf32> to vector<1x64xf32>
    %502 = tpu.reciprocal %501 {approx = true} : vector<1x64xf32> -> vector<1x64xf32>
    %503 = vector.broadcast %502 : vector<1x64xf32> to vector<4x64xf32>
    %504 = arith.mulf %499, %503 : vector<4x64xf32>
    %cst_171 = arith.constant 9.99999993E-9 : f32
    %505 = vector.broadcast %cst_171 : f32 to vector<4x64xf32>
    %506 = arith.addf %504, %505 : vector<4x64xf32>
    %cst_172 = arith.constant dense<0.000000e+00> : vector<4xf32>
    %507 = vector.multi_reduction <add>, %506, %cst_172 [1] : vector<4x64xf32> to vector<4xf32>
    %508 = vector.shape_cast %507 : vector<4xf32> to vector<4x1xf32>
    %509 = tpu.reciprocal %508 {approx = true} : vector<4x1xf32> -> vector<4x1xf32>
    %510 = vector.broadcast %509 : vector<4x1xf32> to vector<4x64xf32>
    %511 = arith.mulf %506, %510 : vector<4x64xf32>
    %cst_173 = arith.constant dense<0.000000e+00> : vector<4x32xf32>
    %512 = tpu.matmul %511, %108, %cst_173 {dimension_numbers = #tpu.dot_dimension_numbers<[1], [0], [0], [1], [0, 0, 1, 1], [], []>} : vector<4x64xf32>, vector<64x32xf32>, vector<4x32xf32> -> vector<4x32xf32>
    %513 = vector.extract_strided_slice %492 {offsets = [4, 0], sizes = [4, 32], strides = [1, 1]} : vector<8x32xf32> to vector<4x32xf32>
    %cst_174 = arith.constant dense<0.000000e+00> : vector<4x64xf32>
    %514 = tpu.matmul %513, %107, %cst_174 {dimension_numbers = #tpu.dot_dimension_numbers<[1], [0], [0], [1], [0, 0, 1, 1], [], []>} : vector<4x32xf32>, vector<32x64xf32>, vector<4x64xf32> -> vector<4x64xf32>
    %cst_175 = arith.constant dense<0xFF800000> : vector<64xf32>
    %515 = vector.multi_reduction <maximumf>, %514, %cst_175 [0] : vector<4x64xf32> to vector<64xf32>
    %516 = vector.shape_cast %515 : vector<64xf32> to vector<1x64xf32>
    %517 = vector.broadcast %516 : vector<1x64xf32> to vector<4x64xf32>
    %518 = arith.subf %514, %517 : vector<4x64xf32>
    %519 = math.exp %518 : vector<4x64xf32>
    %cst_176 = arith.constant dense<0.000000e+00> : vector<64xf32>
    %520 = vector.multi_reduction <add>, %519, %cst_176 [0] : vector<4x64xf32> to vector<64xf32>
    %521 = vector.shape_cast %520 : vector<64xf32> to vector<1x64xf32>
    %522 = tpu.reciprocal %521 {approx = true} : vector<1x64xf32> -> vector<1x64xf32>
    %523 = vector.broadcast %522 : vector<1x64xf32> to vector<4x64xf32>
    %524 = arith.mulf %519, %523 : vector<4x64xf32>
    %cst_177 = arith.constant 9.99999993E-9 : f32
    %525 = vector.broadcast %cst_177 : f32 to vector<4x64xf32>
    %526 = arith.addf %524, %525 : vector<4x64xf32>
    %cst_178 = arith.constant dense<0.000000e+00> : vector<4xf32>
    %527 = vector.multi_reduction <add>, %526, %cst_178 [1] : vector<4x64xf32> to vector<4xf32>
    %528 = vector.shape_cast %527 : vector<4xf32> to vector<4x1xf32>
    %529 = tpu.reciprocal %528 {approx = true} : vector<4x1xf32> -> vector<4x1xf32>
    %530 = vector.broadcast %529 : vector<4x1xf32> to vector<4x64xf32>
    %531 = arith.mulf %526, %530 : vector<4x64xf32>
    %cst_179 = arith.constant dense<0.000000e+00> : vector<4x32xf32>
    %532 = tpu.matmul %531, %109, %cst_179 {dimension_numbers = #tpu.dot_dimension_numbers<[1], [0], [0], [1], [0, 0, 1, 1], [], []>} : vector<4x64xf32>, vector<64x32xf32>, vector<4x32xf32> -> vector<4x32xf32>
    %533 = tpu.concatenate %512, %532 in 0 : vector<4x32xf32>, vector<4x32xf32> -> vector<8x32xf32>
    %cst_180 = arith.constant dense<0.000000e+00> : vector<8x32xf32>
    %534 = tpu.matmul %533, %7, %cst_180 {dimension_numbers = #tpu.dot_dimension_numbers<[1], [0], [0], [1], [0, 0, 1, 1], [], []>} : vector<8x32xf32>, vector<32x32xf32>, vector<8x32xf32> -> vector<8x32xf32>
    %cst_181 = arith.constant dense<0.000000e+00> : vector<8x32xf32>
    %535 = tpu.matmul %470, %13, %cst_181 {dimension_numbers = #tpu.dot_dimension_numbers<[1], [0], [0], [1], [0, 0, 1, 1], [], []>} : vector<8x32xf32>, vector<32x32xf32>, vector<8x32xf32> -> vector<8x32xf32>
    %536 = arith.addf %534, %535 : vector<8x32xf32>
    %537 = arith.addf %536, %59 : vector<8x32xf32>
    %538 = arith.negf %537 : vector<8x32xf32>
    %539 = math.exp %538 : vector<8x32xf32>
    %cst_182 = arith.constant 1.000000e+00 : f32
    %540 = vector.broadcast %cst_182 : f32 to vector<8x32xf32>
    %541 = arith.addf %540, %539 : vector<8x32xf32>
    %542 = arith.divf %540, %541 : vector<8x32xf32>
    %cst_183 = arith.constant dense<0.000000e+00> : vector<8x32xf32>
    %543 = tpu.matmul %533, %9, %cst_183 {dimension_numbers = #tpu.dot_dimension_numbers<[1], [0], [0], [1], [0, 0, 1, 1], [], []>} : vector<8x32xf32>, vector<32x32xf32>, vector<8x32xf32> -> vector<8x32xf32>
    %cst_184 = arith.constant dense<0.000000e+00> : vector<8x32xf32>
    %544 = tpu.matmul %470, %15, %cst_184 {dimension_numbers = #tpu.dot_dimension_numbers<[1], [0], [0], [1], [0, 0, 1, 1], [], []>} : vector<8x32xf32>, vector<32x32xf32>, vector<8x32xf32> -> vector<8x32xf32>
    %545 = arith.addf %543, %544 : vector<8x32xf32>
    %546 = arith.addf %545, %61 : vector<8x32xf32>
    %547 = arith.negf %546 : vector<8x32xf32>
    %548 = math.exp %547 : vector<8x32xf32>
    %cst_185 = arith.constant 1.000000e+00 : f32
    %549 = vector.broadcast %cst_185 : f32 to vector<8x32xf32>
    %550 = arith.addf %549, %548 : vector<8x32xf32>
    %551 = arith.divf %549, %550 : vector<8x32xf32>
    %cst_186 = arith.constant dense<0.000000e+00> : vector<8x32xf32>
    %552 = tpu.matmul %470, %17, %cst_186 {dimension_numbers = #tpu.dot_dimension_numbers<[1], [0], [0], [1], [0, 0, 1, 1], [], []>} : vector<8x32xf32>, vector<32x32xf32>, vector<8x32xf32> -> vector<8x32xf32>
    %553 = arith.addf %552, %65 : vector<8x32xf32>
    %cst_187 = arith.constant dense<0.000000e+00> : vector<8x32xf32>
    %554 = tpu.matmul %533, %11, %cst_187 {dimension_numbers = #tpu.dot_dimension_numbers<[1], [0], [0], [1], [0, 0, 1, 1], [], []>} : vector<8x32xf32>, vector<32x32xf32>, vector<8x32xf32> -> vector<8x32xf32>
    %555 = arith.addf %554, %63 : vector<8x32xf32>
    %556 = arith.mulf %542, %553 : vector<8x32xf32>
    %557 = arith.addf %555, %556 : vector<8x32xf32>
    %558 = math.tanh %557 : vector<8x32xf32>
    %cst_188 = arith.constant 1.000000e+00 : f32
    %559 = vector.broadcast %cst_188 : f32 to vector<8x32xf32>
    %560 = arith.subf %559, %551 : vector<8x32xf32>
    %561 = arith.mulf %560, %558 : vector<8x32xf32>
    %562 = arith.mulf %551, %470 : vector<8x32xf32>
    %563 = arith.addf %561, %562 : vector<8x32xf32>
    %cst_189 = arith.constant dense<0.000000e+00> : vector<8xf32>
    %564 = vector.multi_reduction <add>, %563, %cst_189 [1] : vector<8x32xf32> to vector<8xf32>
    %565 = vector.shape_cast %564 : vector<8xf32> to vector<8x1xf32>
    %cst_190 = arith.constant 3.200000e+01 : f32
    %566 = vector.broadcast %cst_190 : f32 to vector<8x1xf32>
    %567 = arith.divf %565, %566 : vector<8x1xf32>
    %568 = vector.broadcast %567 : vector<8x1xf32> to vector<8x32xf32>
    %569 = arith.subf %563, %568 : vector<8x32xf32>
    %570 = arith.mulf %569, %569 : vector<8x32xf32>
    %cst_191 = arith.constant dense<0.000000e+00> : vector<8xf32>
    %571 = vector.multi_reduction <add>, %570, %cst_191 [1] : vector<8x32xf32> to vector<8xf32>
    %572 = vector.shape_cast %571 : vector<8xf32> to vector<8x1xf32>
    %cst_192 = arith.constant 3.200000e+01 : f32
    %573 = vector.broadcast %cst_192 : f32 to vector<8x1xf32>
    %574 = arith.divf %572, %573 : vector<8x1xf32>
    %575 = vector.broadcast %567 : vector<8x1xf32> to vector<8x32xf32>
    %576 = arith.subf %563, %575 : vector<8x32xf32>
    %cst_193 = arith.constant 9.99999974E-6 : f32
    %577 = vector.broadcast %cst_193 : f32 to vector<8x1xf32>
    %578 = arith.addf %574, %577 : vector<8x1xf32>
    %579 = math.rsqrt %578 : vector<8x1xf32>
    %580 = vector.broadcast %579 : vector<8x1xf32> to vector<8x32xf32>
    %581 = arith.mulf %576, %580 : vector<8x32xf32>
    %582 = arith.mulf %581, %53 : vector<8x32xf32>
    %583 = arith.addf %582, %55 : vector<8x32xf32>
    %cst_194 = arith.constant dense<0.000000e+00> : vector<8x128xf32>
    %584 = tpu.matmul %583, %46, %cst_194 {dimension_numbers = #tpu.dot_dimension_numbers<[1], [0], [0], [1], [0, 0, 1, 1], [], []>} : vector<8x32xf32>, vector<32x128xf32>, vector<8x128xf32> -> vector<8x128xf32>
    %585 = arith.addf %584, %70 : vector<8x128xf32>
    %cst_195 = arith.constant 0.000000e+00 : f32
    %586 = vector.broadcast %cst_195 : f32 to vector<8x128xf32>
    %587 = arith.maximumf %585, %586 : vector<8x128xf32>
    %cst_196 = arith.constant dense<0.000000e+00> : vector<8x32xf32>
    %588 = tpu.matmul %587, %47, %cst_196 {dimension_numbers = #tpu.dot_dimension_numbers<[1], [0], [0], [1], [0, 0, 1, 1], [], []>} : vector<8x128xf32>, vector<128x32xf32>, vector<8x32xf32> -> vector<8x32xf32>
    %589 = arith.addf %563, %588 : vector<8x32xf32>
    %590 = arith.addf %589, %67 : vector<8x32xf32>
    %cst_197 = arith.constant dense<0.000000e+00> : vector<8xf32>
    %591 = vector.multi_reduction <add>, %590, %cst_197 [1] : vector<8x32xf32> to vector<8xf32>
    %592 = vector.shape_cast %591 : vector<8xf32> to vector<8x1xf32>
    %cst_198 = arith.constant 3.200000e+01 : f32
    %593 = vector.broadcast %cst_198 : f32 to vector<8x1xf32>
    %594 = arith.divf %592, %593 : vector<8x1xf32>
    %595 = vector.broadcast %594 : vector<8x1xf32> to vector<8x32xf32>
    %596 = arith.subf %590, %595 : vector<8x32xf32>
    %597 = arith.mulf %596, %596 : vector<8x32xf32>
    %cst_199 = arith.constant dense<0.000000e+00> : vector<8xf32>
    %598 = vector.multi_reduction <add>, %597, %cst_199 [1] : vector<8x32xf32> to vector<8xf32>
    %599 = vector.shape_cast %598 : vector<8xf32> to vector<8x1xf32>
    %cst_200 = arith.constant 3.200000e+01 : f32
    %600 = vector.broadcast %cst_200 : f32 to vector<8x1xf32>
    %601 = arith.divf %599, %600 : vector<8x1xf32>
    %602 = vector.broadcast %594 : vector<8x1xf32> to vector<8x32xf32>
    %603 = arith.subf %590, %602 : vector<8x32xf32>
    %cst_201 = arith.constant 9.99999974E-6 : f32
    %604 = vector.broadcast %cst_201 : f32 to vector<8x1xf32>
    %605 = arith.addf %601, %604 : vector<8x1xf32>
    %606 = math.rsqrt %605 : vector<8x1xf32>
    %607 = vector.broadcast %606 : vector<8x1xf32> to vector<8x32xf32>
    %608 = arith.mulf %603, %607 : vector<8x32xf32>
    %609 = arith.mulf %608, %49 : vector<8x32xf32>
    %610 = arith.addf %609, %51 : vector<8x32xf32>
    %cst_202 = arith.constant dense<0.000000e+00> : vector<8x32xf32>
    %611 = tpu.matmul %610, %5, %cst_202 {dimension_numbers = #tpu.dot_dimension_numbers<[1], [0], [0], [1], [0, 0, 1, 1], [], []>} : vector<8x32xf32>, vector<32x32xf32>, vector<8x32xf32> -> vector<8x32xf32>
    %612 = arith.addf %611, %57 : vector<8x32xf32>
    %613 = vector.extract_strided_slice %612 {offsets = [0, 0], sizes = [4, 32], strides = [1, 1]} : vector<8x32xf32> to vector<4x32xf32>
    %cst_203 = arith.constant dense<0.000000e+00> : vector<4x64xf32>
    %614 = tpu.matmul %613, %105, %cst_203 {dimension_numbers = #tpu.dot_dimension_numbers<[1], [0], [0], [1], [0, 0, 1, 1], [], []>} : vector<4x32xf32>, vector<32x64xf32>, vector<4x64xf32> -> vector<4x64xf32>
    %cst_204 = arith.constant dense<0xFF800000> : vector<64xf32>
    %615 = vector.multi_reduction <maximumf>, %614, %cst_204 [0] : vector<4x64xf32> to vector<64xf32>
    %616 = vector.shape_cast %615 : vector<64xf32> to vector<1x64xf32>
    %617 = vector.broadcast %616 : vector<1x64xf32> to vector<4x64xf32>
    %618 = arith.subf %614, %617 : vector<4x64xf32>
    %619 = math.exp %618 : vector<4x64xf32>
    %cst_205 = arith.constant dense<0.000000e+00> : vector<64xf32>
    %620 = vector.multi_reduction <add>, %619, %cst_205 [0] : vector<4x64xf32> to vector<64xf32>
    %621 = vector.shape_cast %620 : vector<64xf32> to vector<1x64xf32>
    %622 = tpu.reciprocal %621 {approx = true} : vector<1x64xf32> -> vector<1x64xf32>
    %623 = vector.broadcast %622 : vector<1x64xf32> to vector<4x64xf32>
    %624 = arith.mulf %619, %623 : vector<4x64xf32>
    %cst_206 = arith.constant 9.99999993E-9 : f32
    %625 = vector.broadcast %cst_206 : f32 to vector<4x64xf32>
    %626 = arith.addf %624, %625 : vector<4x64xf32>
    %cst_207 = arith.constant dense<0.000000e+00> : vector<4xf32>
    %627 = vector.multi_reduction <add>, %626, %cst_207 [1] : vector<4x64xf32> to vector<4xf32>
    %628 = vector.shape_cast %627 : vector<4xf32> to vector<4x1xf32>
    %629 = tpu.reciprocal %628 {approx = true} : vector<4x1xf32> -> vector<4x1xf32>
    %630 = vector.broadcast %629 : vector<4x1xf32> to vector<4x64xf32>
    %631 = arith.mulf %626, %630 : vector<4x64xf32>
    %cst_208 = arith.constant dense<0.000000e+00> : vector<4x32xf32>
    %632 = tpu.matmul %631, %108, %cst_208 {dimension_numbers = #tpu.dot_dimension_numbers<[1], [0], [0], [1], [0, 0, 1, 1], [], []>} : vector<4x64xf32>, vector<64x32xf32>, vector<4x32xf32> -> vector<4x32xf32>
    %633 = vector.extract_strided_slice %612 {offsets = [4, 0], sizes = [4, 32], strides = [1, 1]} : vector<8x32xf32> to vector<4x32xf32>
    %cst_209 = arith.constant dense<0.000000e+00> : vector<4x64xf32>
    %634 = tpu.matmul %633, %107, %cst_209 {dimension_numbers = #tpu.dot_dimension_numbers<[1], [0], [0], [1], [0, 0, 1, 1], [], []>} : vector<4x32xf32>, vector<32x64xf32>, vector<4x64xf32> -> vector<4x64xf32>
    %cst_210 = arith.constant dense<0xFF800000> : vector<64xf32>
    %635 = vector.multi_reduction <maximumf>, %634, %cst_210 [0] : vector<4x64xf32> to vector<64xf32>
    %636 = vector.shape_cast %635 : vector<64xf32> to vector<1x64xf32>
    %637 = vector.broadcast %636 : vector<1x64xf32> to vector<4x64xf32>
    %638 = arith.subf %634, %637 : vector<4x64xf32>
    %639 = math.exp %638 : vector<4x64xf32>
    %cst_211 = arith.constant dense<0.000000e+00> : vector<64xf32>
    %640 = vector.multi_reduction <add>, %639, %cst_211 [0] : vector<4x64xf32> to vector<64xf32>
    %641 = vector.shape_cast %640 : vector<64xf32> to vector<1x64xf32>
    %642 = tpu.reciprocal %641 {approx = true} : vector<1x64xf32> -> vector<1x64xf32>
    %643 = vector.broadcast %642 : vector<1x64xf32> to vector<4x64xf32>
    %644 = arith.mulf %639, %643 : vector<4x64xf32>
    %cst_212 = arith.constant 9.99999993E-9 : f32
    %645 = vector.broadcast %cst_212 : f32 to vector<4x64xf32>
    %646 = arith.addf %644, %645 : vector<4x64xf32>
    %cst_213 = arith.constant dense<0.000000e+00> : vector<4xf32>
    %647 = vector.multi_reduction <add>, %646, %cst_213 [1] : vector<4x64xf32> to vector<4xf32>
    %648 = vector.shape_cast %647 : vector<4xf32> to vector<4x1xf32>
    %649 = tpu.reciprocal %648 {approx = true} : vector<4x1xf32> -> vector<4x1xf32>
    %650 = vector.broadcast %649 : vector<4x1xf32> to vector<4x64xf32>
    %651 = arith.mulf %646, %650 : vector<4x64xf32>
    %cst_214 = arith.constant dense<0.000000e+00> : vector<4x32xf32>
    %652 = tpu.matmul %651, %109, %cst_214 {dimension_numbers = #tpu.dot_dimension_numbers<[1], [0], [0], [1], [0, 0, 1, 1], [], []>} : vector<4x64xf32>, vector<64x32xf32>, vector<4x32xf32> -> vector<4x32xf32>
    %653 = tpu.concatenate %632, %652 in 0 : vector<4x32xf32>, vector<4x32xf32> -> vector<8x32xf32>
    %cst_215 = arith.constant dense<0.000000e+00> : vector<8x32xf32>
    %654 = tpu.matmul %653, %7, %cst_215 {dimension_numbers = #tpu.dot_dimension_numbers<[1], [0], [0], [1], [0, 0, 1, 1], [], []>} : vector<8x32xf32>, vector<32x32xf32>, vector<8x32xf32> -> vector<8x32xf32>
    %cst_216 = arith.constant dense<0.000000e+00> : vector<8x32xf32>
    %655 = tpu.matmul %590, %13, %cst_216 {dimension_numbers = #tpu.dot_dimension_numbers<[1], [0], [0], [1], [0, 0, 1, 1], [], []>} : vector<8x32xf32>, vector<32x32xf32>, vector<8x32xf32> -> vector<8x32xf32>
    %656 = arith.addf %654, %655 : vector<8x32xf32>
    %657 = arith.addf %656, %59 : vector<8x32xf32>
    %658 = arith.negf %657 : vector<8x32xf32>
    %659 = math.exp %658 : vector<8x32xf32>
    %cst_217 = arith.constant 1.000000e+00 : f32
    %660 = vector.broadcast %cst_217 : f32 to vector<8x32xf32>
    %661 = arith.addf %660, %659 : vector<8x32xf32>
    %662 = arith.divf %660, %661 : vector<8x32xf32>
    %cst_218 = arith.constant dense<0.000000e+00> : vector<8x32xf32>
    %663 = tpu.matmul %653, %9, %cst_218 {dimension_numbers = #tpu.dot_dimension_numbers<[1], [0], [0], [1], [0, 0, 1, 1], [], []>} : vector<8x32xf32>, vector<32x32xf32>, vector<8x32xf32> -> vector<8x32xf32>
    %cst_219 = arith.constant dense<0.000000e+00> : vector<8x32xf32>
    %664 = tpu.matmul %590, %15, %cst_219 {dimension_numbers = #tpu.dot_dimension_numbers<[1], [0], [0], [1], [0, 0, 1, 1], [], []>} : vector<8x32xf32>, vector<32x32xf32>, vector<8x32xf32> -> vector<8x32xf32>
    %665 = arith.addf %663, %664 : vector<8x32xf32>
    %666 = arith.addf %665, %61 : vector<8x32xf32>
    %667 = arith.negf %666 : vector<8x32xf32>
    %668 = math.exp %667 : vector<8x32xf32>
    %cst_220 = arith.constant 1.000000e+00 : f32
    %669 = vector.broadcast %cst_220 : f32 to vector<8x32xf32>
    %670 = arith.addf %669, %668 : vector<8x32xf32>
    %671 = arith.divf %669, %670 : vector<8x32xf32>
    %cst_221 = arith.constant dense<0.000000e+00> : vector<8x32xf32>
    %672 = tpu.matmul %590, %17, %cst_221 {dimension_numbers = #tpu.dot_dimension_numbers<[1], [0], [0], [1], [0, 0, 1, 1], [], []>} : vector<8x32xf32>, vector<32x32xf32>, vector<8x32xf32> -> vector<8x32xf32>
    %673 = arith.addf %672, %65 : vector<8x32xf32>
    %cst_222 = arith.constant dense<0.000000e+00> : vector<8x32xf32>
    %674 = tpu.matmul %653, %11, %cst_222 {dimension_numbers = #tpu.dot_dimension_numbers<[1], [0], [0], [1], [0, 0, 1, 1], [], []>} : vector<8x32xf32>, vector<32x32xf32>, vector<8x32xf32> -> vector<8x32xf32>
    %675 = arith.addf %674, %63 : vector<8x32xf32>
    %676 = arith.mulf %662, %673 : vector<8x32xf32>
    %677 = arith.addf %675, %676 : vector<8x32xf32>
    %678 = math.tanh %677 : vector<8x32xf32>
    %cst_223 = arith.constant 1.000000e+00 : f32
    %679 = vector.broadcast %cst_223 : f32 to vector<8x32xf32>
    %680 = arith.subf %679, %671 : vector<8x32xf32>
    %681 = arith.mulf %680, %678 : vector<8x32xf32>
    %682 = arith.mulf %671, %590 : vector<8x32xf32>
    %683 = arith.addf %681, %682 : vector<8x32xf32>
    %cst_224 = arith.constant dense<0.000000e+00> : vector<8xf32>
    %684 = vector.multi_reduction <add>, %683, %cst_224 [1] : vector<8x32xf32> to vector<8xf32>
    %685 = vector.shape_cast %684 : vector<8xf32> to vector<8x1xf32>
    %cst_225 = arith.constant 3.200000e+01 : f32
    %686 = vector.broadcast %cst_225 : f32 to vector<8x1xf32>
    %687 = arith.divf %685, %686 : vector<8x1xf32>
    %688 = vector.broadcast %687 : vector<8x1xf32> to vector<8x32xf32>
    %689 = arith.subf %683, %688 : vector<8x32xf32>
    %690 = arith.mulf %689, %689 : vector<8x32xf32>
    %cst_226 = arith.constant dense<0.000000e+00> : vector<8xf32>
    %691 = vector.multi_reduction <add>, %690, %cst_226 [1] : vector<8x32xf32> to vector<8xf32>
    %692 = vector.shape_cast %691 : vector<8xf32> to vector<8x1xf32>
    %cst_227 = arith.constant 3.200000e+01 : f32
    %693 = vector.broadcast %cst_227 : f32 to vector<8x1xf32>
    %694 = arith.divf %692, %693 : vector<8x1xf32>
    %695 = vector.broadcast %687 : vector<8x1xf32> to vector<8x32xf32>
    %696 = arith.subf %683, %695 : vector<8x32xf32>
    %cst_228 = arith.constant 9.99999974E-6 : f32
    %697 = vector.broadcast %cst_228 : f32 to vector<8x1xf32>
    %698 = arith.addf %694, %697 : vector<8x1xf32>
    %699 = math.rsqrt %698 : vector<8x1xf32>
    %700 = vector.broadcast %699 : vector<8x1xf32> to vector<8x32xf32>
    %701 = arith.mulf %696, %700 : vector<8x32xf32>
    %702 = arith.mulf %701, %53 : vector<8x32xf32>
    %703 = arith.addf %702, %55 : vector<8x32xf32>
    %cst_229 = arith.constant dense<0.000000e+00> : vector<8x128xf32>
    %704 = tpu.matmul %703, %46, %cst_229 {dimension_numbers = #tpu.dot_dimension_numbers<[1], [0], [0], [1], [0, 0, 1, 1], [], []>} : vector<8x32xf32>, vector<32x128xf32>, vector<8x128xf32> -> vector<8x128xf32>
    %705 = arith.addf %704, %70 : vector<8x128xf32>
    %cst_230 = arith.constant 0.000000e+00 : f32
    %706 = vector.broadcast %cst_230 : f32 to vector<8x128xf32>
    %707 = arith.maximumf %705, %706 : vector<8x128xf32>
    %cst_231 = arith.constant dense<0.000000e+00> : vector<8x32xf32>
    %708 = tpu.matmul %707, %47, %cst_231 {dimension_numbers = #tpu.dot_dimension_numbers<[1], [0], [0], [1], [0, 0, 1, 1], [], []>} : vector<8x128xf32>, vector<128x32xf32>, vector<8x32xf32> -> vector<8x32xf32>
    %709 = arith.addf %683, %708 : vector<8x32xf32>
    %710 = arith.addf %709, %67 : vector<8x32xf32>
    %c0_232 = arith.constant 0 : index
    %c0_233 = arith.constant 0 : index
    %711 = vector.load %arg8[%c0_232, %c0_233] : memref<8x32xf32, #tpu.memory_space<vmem>>, vector<8x32xf32>
    tpu.vector_store %arg8[%c0_232, %c0_233], %710 {strides = array<i32>} : memref<8x32xf32, #tpu.memory_space<vmem>>, vector<8x32xf32>,
    return
  }
  func.func @transform_0(%arg0: i32) -> (i32, i32) {
    %c0_i32 = arith.constant 0 : i32
    %c0_i32_0 = arith.constant 0 : i32
    return %arg0, %c0_i32 : i32, i32
  }
  func.func @transform_1(%arg0: i32) -> (i32, i32) {
    %c0_i32 = arith.constant 0 : i32
    %c0_i32_0 = arith.constant 0 : i32
    return %arg0, %c0_i32 : i32, i32
  }
  func.func @transform_2(%arg0: i32) -> (i32, i32, i32) {
    %c0_i32 = arith.constant 0 : i32
    %c0_i32_0 = arith.constant 0 : i32
    %c0_i32_1 = arith.constant 0 : i32
    %c0_i32_2 = arith.constant 0 : i32
    return %c0_i32, %c0_i32_0, %c0_i32_1 : i32, i32, i32
  }
  func.func @transform_3(%arg0: i32) -> (i32, i32) {
    %c0_i32 = arith.constant 0 : i32
    %c0_i32_0 = arith.constant 0 : i32
    %c0_i32_1 = arith.constant 0 : i32
    return %c0_i32, %c0_i32_0 : i32, i32
  }
  func.func @transform_4(%arg0: i32) -> (i32, i32) {
    %c0_i32 = arith.constant 0 : i32
    %c0_i32_0 = arith.constant 0 : i32
    %c0_i32_1 = arith.constant 0 : i32
    return %c0_i32, %c0_i32_0 : i32, i32
  }
  func.func @transform_5(%arg0: i32) -> (i32, i32) {
    %c0_i32 = arith.constant 0 : i32
    %c0_i32_0 = arith.constant 0 : i32
    %c0_i32_1 = arith.constant 0 : i32
    return %c0_i32, %c0_i32_0 : i32, i32
  }
  func.func @transform_6(%arg0: i32) -> (i32, i32) {
    %c0_i32 = arith.constant 0 : i32
    %c0_i32_0 = arith.constant 0 : i32
    %c0_i32_1 = arith.constant 0 : i32
    return %c0_i32, %c0_i32_0 : i32, i32
  }
  func.func @transform_7(%arg0: i32) -> (i32, i32) {
    %c0_i32 = arith.constant 0 : i32
    %c0_i32_0 = arith.constant 0 : i32
    return %arg0, %c0_i32 : i32, i32
  }
}

</mosaic_0001>

<llo_original>
// kernel: tpu_custom_call.1
$region0: #{tpu_custom_call.1}
  #allocation0 [shape = 'u32[]', space=smem, size = 0x4, offset = 0x4, fixed_abs, tag = 'smem constant byte address 0x4 - core index']
  #allocation1 [shape = 'u32[144,128]{1,0:T(1,128)}', space=vmem, size = 0x12000, scoped, tag = 'internal scratch']
  %s0 = inlined_call_operand.vmem [shape: f32[256,32], index: 0, kind: input, shape index: {}]
  %s1 = inlined_call_operand.vmem [shape: f32[16,32], index: 1, kind: input, shape index: {}]
  %s2 = inlined_call_operand.vmem [shape: f32[9,32,32], index: 2, kind: input, shape index: {}]
  %s3 = inlined_call_operand.vmem [shape: f32[14,32], index: 3, kind: input, shape index: {}]
  %s4 = inlined_call_operand.vmem [shape: f32[32,128], index: 4, kind: input, shape index: {}]
  %s5 = inlined_call_operand.vmem [shape: f32[1,128], index: 5, kind: input, shape index: {}]
  %s6 = inlined_call_operand.vmem [shape: f32[128,32], index: 6, kind: input, shape index: {}]
  %s7 = inlined_call_operand.hbm [shape: f32[16,32], index: 7, kind: output, shape index: {}]
  %s8 = sld [smem:[#allocation0]]
  $region61: #{tpu_custom_call.1} parent=0
    _
  %s10 = ssub.s32 1, %s8
  %s11 = scalar_select 0, %s10, %s8
  $region1: #{tpu_custom_call.1} parent=0
    #allocation2 [shape = 'u8[8192]{0}', space=vmem, size = 0x2000, scoped, tag = 'output window, operand 0']
    #allocation3 [shape = 's32[2]{0}', space=sflag, size = 0x8, scoped, tag = 'scoped memory for tpu_custom_call.1']
    %12 = vsyncpa [#allocation3], 0
    %s13 = scalar_lea.sflag [#allocation3], 1
    %14 = vsyncpa %s13, 0
    loop: start=0, step=1, limit=4
    $region2: #{tpu_custom_call.1} parent=1 // loop_pre_header
      _
    $region3: #{tpu_custom_call.1} parent=1 // loop_header
      %s16 = sphi 0, %s20
      %p17 = scmp.ge.s32.totalorder %s16, 4
      %s26 = sphi 0, %s28
      %s29 = sphi 0, %s26
      %s30 = sphi 0, %s29
      %s46 = sphi 0, %s30
      %s52 = sphi 0, %s54
      %s55 = sphi 0, %s52
      %s56 = sphi 0, %s55
      %s72 = sphi 0, %s56
      %s76 = sphi 0, %s76
      %s78 = sphi 0, %s76
      %s79 = sphi 0, %s78
      %s93 = sphi 0, %s79
      %s97 = sphi 0, %s97
      %s99 = sphi 0, %s97
      %s100 = sphi 0, %s99
      %s114 = sphi 0, %s100
      %s118 = sphi 0, %s118
      %s120 = sphi 0, %s118
      %s121 = sphi 0, %s120
      %s135 = sphi 0, %s121
      %s139 = sphi 0, %s139
      %s141 = sphi 0, %s139
      %s142 = sphi 0, %s141
      %s156 = sphi 0, %s142
      %s160 = sphi 0, %s160
      %s162 = sphi 0, %s160
      %s163 = sphi 0, %s162
      %s177 = sphi 0, %s163
      %s183 = sphi 0, %s185
      %s186 = sphi 0, %s183
      %s187 = sphi 0, %s186
      %s203 = sphi 0, %s187
    $region4: #{tpu_custom_call.1} parent=1 // loop_header_branch
      %19 = sbr.rel (%p17) target = $region8
    $region5: #{tpu_custom_call.1} parent=1 // loop_body
      %s21 = ssub.s32 %s16, 1
      %s22 = ssub.s32 %s16, 2
      %s23 = sadd.s32 %s16, 1
      %s24 = ssub.s32 %s16, %s23
      %p25 = scmp.eq.s32.totalorder %s24, 0
      %s27 = sadd.s32 %s26, 1
      %s28 = scalar_select %p25, %s26, %s27
      %p31 = pneg %p25
      %p32 = scmp.eq.s32.totalorder %s16, 1
      %p33 = por %p31, %p32
      %p34 = scmp.ne.s32.totalorder %s26, %s29
      %p35 = scmp.eq.s32.totalorder %s16, 0
      %p36 = por %p34, %p35
      %p37 = scmp.ne.s32.totalorder %s26, %s29
      %p38 = scmp.eq.s32.totalorder %s21, 1
      %p39 = por %p37, %p38
      %p40 = scmp.ne.s32.totalorder %s29, %s30
      %p41 = scmp.eq.s32.totalorder %s21, 0
      %p42 = por %p40, %p41
      %p43 = scmp.ne.s32.totalorder %s29, %s30
      %p44 = scmp.eq.s32.totalorder %s22, 1
      %p45 = por %p43, %p44
      %p47 = scmp.ne.s32.totalorder %s30, %s46
      %p48 = scmp.eq.s32.totalorder %s22, 0
      %p49 = por %p47, %p48
      %s50 = ssub.s32 %s16, %s23
      %p51 = scmp.eq.s32.totalorder %s50, 0
      %s53 = sadd.s32 %s52, 1
      %s54 = scalar_select %p51, %s52, %s53
      %p57 = pneg %p51
      %p58 = scmp.eq.s32.totalorder %s16, 1
      %p59 = por %p57, %p58
      %p60 = scmp.ne.s32.totalorder %s52, %s55
      %p61 = scmp.eq.s32.totalorder %s16, 0
      %p62 = por %p60, %p61
      %p63 = scmp.ne.s32.totalorder %s52, %s55
      %p64 = scmp.eq.s32.totalorder %s21, 1
      %p65 = por %p63, %p64
      %p66 = scmp.ne.s32.totalorder %s55, %s56
      %p67 = scmp.eq.s32.totalorder %s21, 0
      %p68 = por %p66, %p67
      %p69 = scmp.ne.s32.totalorder %s55, %s56
      %p70 = scmp.eq.s32.totalorder %s22, 1
      %p71 = por %p69, %p70
      %p73 = scmp.ne.s32.totalorder %s56, %s72
      %p74 = scmp.eq.s32.totalorder %s22, 0
      %p75 = por %p73, %p74
      %s77 = sadd.s32 %s76, 1
      %p80 = scmp.eq.s32.totalorder %s16, 1
      %p81 = scmp.ne.s32.totalorder %s76, %s78
      %p82 = scmp.eq.s32.totalorder %s16, 0
      %p83 = por %p81, %p82
      %p84 = scmp.ne.s32.totalorder %s76, %s78
      %p85 = scmp.eq.s32.totalorder %s21, 1
      %p86 = por %p84, %p85
      %p87 = scmp.ne.s32.totalorder %s78, %s79
      %p88 = scmp.eq.s32.totalorder %s21, 0
      %p89 = por %p87, %p88
      %p90 = scmp.ne.s32.totalorder %s78, %s79
      %p91 = scmp.eq.s32.totalorder %s22, 1
      %p92 = por %p90, %p91
      %p94 = scmp.ne.s32.totalorder %s79, %s93
      %p95 = scmp.eq.s32.totalorder %s22, 0
      %p96 = por %p94, %p95
      %s98 = sadd.s32 %s97, 1
      %p101 = scmp.eq.s32.totalorder %s16, 1
      %p102 = scmp.ne.s32.totalorder %s97, %s99
      %p103 = scmp.eq.s32.totalorder %s16, 0
      %p104 = por %p102, %p103
      %p105 = scmp.ne.s32.totalorder %s97, %s99
      %p106 = scmp.eq.s32.totalorder %s21, 1
      %p107 = por %p105, %p106
      %p108 = scmp.ne.s32.totalorder %s99, %s100
      %p109 = scmp.eq.s32.totalorder %s21, 0
      %p110 = por %p108, %p109
      %p111 = scmp.ne.s32.totalorder %s99, %s100
      %p112 = scmp.eq.s32.totalorder %s22, 1
      %p113 = por %p111, %p112
      %p115 = scmp.ne.s32.totalorder %s100, %s114
      %p116 = scmp.eq.s32.totalorder %s22, 0
      %p117 = por %p115, %p116
      %s119 = sadd.s32 %s118, 1
      %p122 = scmp.eq.s32.totalorder %s16, 1
      %p123 = scmp.ne.s32.totalorder %s118, %s120
      %p124 = scmp.eq.s32.totalorder %s16, 0
      %p125 = por %p123, %p124
      %p126 = scmp.ne.s32.totalorder %s118, %s120
      %p127 = scmp.eq.s32.totalorder %s21, 1
      %p128 = por %p126, %p127
      %p129 = scmp.ne.s32.totalorder %s120, %s121
      %p130 = scmp.eq.s32.totalorder %s21, 0
      %p131 = por %p129, %p130
      %p132 = scmp.ne.s32.totalorder %s120, %s121
      %p133 = scmp.eq.s32.totalorder %s22, 1
      %p134 = por %p132, %p133
      %p136 = scmp.ne.s32.totalorder %s121, %s135
      %p137 = scmp.eq.s32.totalorder %s22, 0
      %p138 = por %p136, %p137
      %s140 = sadd.s32 %s139, 1
      %p143 = scmp.eq.s32.totalorder %s16, 1
      %p144 = scmp.ne.s32.totalorder %s139, %s141
      %p145 = scmp.eq.s32.totalorder %s16, 0
      %p146 = por %p144, %p145
      %p147 = scmp.ne.s32.totalorder %s139, %s141
      %p148 = scmp.eq.s32.totalorder %s21, 1
      %p149 = por %p147, %p148
      %p150 = scmp.ne.s32.totalorder %s141, %s142
      %p151 = scmp.eq.s32.totalorder %s21, 0
      %p152 = por %p150, %p151
      %p153 = scmp.ne.s32.totalorder %s141, %s142
      %p154 = scmp.eq.s32.totalorder %s22, 1
      %p155 = por %p153, %p154
      %p157 = scmp.ne.s32.totalorder %s142, %s156
      %p158 = scmp.eq.s32.totalorder %s22, 0
      %p159 = por %p157, %p158
      %s161 = sadd.s32 %s160, 1
      %p164 = scmp.eq.s32.totalorder %s16, 1
      %p165 = scmp.ne.s32.totalorder %s160, %s162
      %p166 = scmp.eq.s32.totalorder %s16, 0
      %p167 = por %p165, %p166
      %p168 = scmp.ne.s32.totalorder %s160, %s162
      %p169 = scmp.eq.s32.totalorder %s21, 1
      %p170 = por %p168, %p169
      %p171 = scmp.ne.s32.totalorder %s162, %s163
      %p172 = scmp.eq.s32.totalorder %s21, 0
      %p173 = por %p171, %p172
      %p174 = scmp.ne.s32.totalorder %s162, %s163
      %p175 = scmp.eq.s32.totalorder %s22, 1
      %p176 = por %p174, %p175
      %p178 = scmp.ne.s32.totalorder %s163, %s177
      %p179 = scmp.eq.s32.totalorder %s22, 0
      %p180 = por %p178, %p179
      %s181 = ssub.s32 %s16, %s23
      %p182 = scmp.eq.s32.totalorder %s181, 0
      %s184 = sadd.s32 %s183, 1
      %s185 = scalar_select %p182, %s183, %s184
      %p188 = pneg %p182
      %p189 = scmp.eq.s32.totalorder %s16, 1
      %p190 = por %p188, %p189
      %p191 = scmp.ne.s32.totalorder %s183, %s186
      %p192 = scmp.eq.s32.totalorder %s16, 0
      %p193 = por %p191, %p192
      %p194 = scmp.ne.s32.totalorder %s183, %s186
      %p195 = scmp.eq.s32.totalorder %s21, 1
      %p196 = por %p194, %p195
      %p197 = scmp.ne.s32.totalorder %s186, %s187
      %p198 = scmp.eq.s32.totalorder %s21, 0
      %p199 = por %p197, %p198
      %p200 = scmp.ne.s32.totalorder %s186, %s187
      %p201 = scmp.eq.s32.totalorder %s22, 1
      %p202 = por %p200, %p201
      %p204 = scmp.ne.s32.totalorder %s187, %s203
      %p205 = scmp.eq.s32.totalorder %s22, 0
      %p206 = por %p204, %p205
      %p207 = scmp.le.s32.totalorder 1, %s16
      %p208 = scmp.lt.s32.totalorder %s16, 3
      %p209 = pnand %p207, %p208
      %p210 = pneg %p209
      // Predicated region
      $region9: #{tpu_custom_call.1} parent=5 // pred_check
        _
      $region10: #{tpu_custom_call.1} parent=5 // pred_check_branch
        %212 = sbr.rel (%p209) target = $region12
      $region11: #{tpu_custom_call.1} parent=5 // pred_region
        %s213 = ssub.s32 %s16, 1
        // Predicated region
        $region13: #{tpu_custom_call.1} parent=11 // pred_check
          %p214 = pneg %p89
        $region14: #{tpu_custom_call.1} parent=11 // pred_check_branch
          %216 = sbr.rel (%p214) target = $region16
        $region15: #{tpu_custom_call.1} parent=11 // pred_region
          _
        $region16: #{tpu_custom_call.1} parent=11 // pred_fallthru
          _
        // Predicated region
        $region17: #{tpu_custom_call.1} parent=11 // pred_check
          %p217 = pneg %p110
        $region18: #{tpu_custom_call.1} parent=11 // pred_check_branch
          %219 = sbr.rel (%p217) target = $region20
        $region19: #{tpu_custom_call.1} parent=11 // pred_region
          _
        $region20: #{tpu_custom_call.1} parent=11 // pred_fallthru
          _
        // Predicated region
        $region21: #{tpu_custom_call.1} parent=11 // pred_check
          %p220 = pneg %p131
        $region22: #{tpu_custom_call.1} parent=11 // pred_check_branch
          %222 = sbr.rel (%p220) target = $region24
        $region23: #{tpu_custom_call.1} parent=11 // pred_region
          _
        $region24: #{tpu_custom_call.1} parent=11 // pred_fallthru
          _
        // Predicated region
        $region25: #{tpu_custom_call.1} parent=11 // pred_check
          %p223 = pneg %p152
        $region26: #{tpu_custom_call.1} parent=11 // pred_check_branch
          %225 = sbr.rel (%p223) target = $region28
        $region27: #{tpu_custom_call.1} parent=11 // pred_region
          _
        $region28: #{tpu_custom_call.1} parent=11 // pred_fallthru
          _
        // Predicated region
        $region29: #{tpu_custom_call.1} parent=11 // pred_check
          %p226 = pneg %p173
        $region30: #{tpu_custom_call.1} parent=11 // pred_check_branch
          %228 = sbr.rel (%p226) target = $region32
        $region31: #{tpu_custom_call.1} parent=11 // pred_region
          _
        $region32: #{tpu_custom_call.1} parent=11 // pred_fallthru
          _
      $region12: #{tpu_custom_call.1} parent=5 // pred_fallthru
        _
      %p229 = scmp.lt.s32.totalorder %s16, 2
      // Predicated region
      $region33: #{tpu_custom_call.1} parent=5 // pred_check
        %p230 = pneg %p229
      $region34: #{tpu_custom_call.1} parent=5 // pred_check_branch
        %232 = sbr.rel (%p230) target = $region36
      $region35: #{tpu_custom_call.1} parent=5 // pred_region
        // Predicated region
        $region37: #{tpu_custom_call.1} parent=35 // pred_check
          %p233 = pneg %p36
        $region38: #{tpu_custom_call.1} parent=35 // pred_check_branch
          %235 = sbr.rel (%p233) target = $region40
        $region39: #{tpu_custom_call.1} parent=35 // pred_region
          %s236 = smul.u32 16, %s16
          %p237 = scmp.lt.s32.totalorder %s236, 31
          %s238 = scalar_select %p237, %s236, 31
          %s239 = smul.addr %s238, 8
          %s240 = scalar_lea.vmem %s0, %s239
          %s241 = smul.u32 16, %s16
        $region40: #{tpu_custom_call.1} parent=35 // pred_fallthru
          _
        // Predicated region
        $region41: #{tpu_custom_call.1} parent=35 // pred_check
          %p242 = pneg %p62
        $region42: #{tpu_custom_call.1} parent=35 // pred_check_branch
          %244 = sbr.rel (%p242) target = $region44
        $region43: #{tpu_custom_call.1} parent=35 // pred_region
          %p245 = scmp.lt.s32.totalorder %s16, 1
          %s246 = scalar_select %p245, %s16, 1
          %s247 = smul.addr %s246, 8
          %s248 = scalar_lea.vmem %s1, %s247
        $region44: #{tpu_custom_call.1} parent=35 // pred_fallthru
          _
      $region36: #{tpu_custom_call.1} parent=5 // pred_fallthru
        _
      %p249 = scmp.le.s32.totalorder 1, %s16
      %p250 = scmp.lt.s32.totalorder %s16, 3
      %p251 = pnand %p249, %p250
      %p252 = pneg %p251
      // Predicated region
      $region45: #{tpu_custom_call.1} parent=5 // pred_check
        _
      $region46: #{tpu_custom_call.1} parent=5 // pred_check_branch
        %254 = sbr.rel (%p251) target = $region48
      $region47: #{tpu_custom_call.1} parent=5 // pred_region
        %s255 = ssub.s32 %s16, 1
        %s256 = smul.u32 16, %s21
        %p257 = scmp.lt.s32.totalorder %s256, 31
        %s258 = scalar_select %p257, %s256, 31
        %s259 = smul.addr %s258, 8
        %s260 = scalar_lea.vmem %s0, %s259
        %p261 = pneg %p42
        %p262 = pneg %p39
        %p263 = scmp.lt.s32.totalorder %s21, 1
        %s264 = scalar_select %p263, %s21, 1
        %s265 = smul.addr %s264, 8
        %s266 = scalar_lea.vmem %s1, %s265
        %p267 = pneg %p68
        %p268 = pneg %p65
        %p269 = pneg %p89
        %p270 = pneg %p86
        %p271 = pneg %p110
        %p272 = pneg %p107
        %p273 = pneg %p131
        %p274 = pneg %p128
        %p275 = pneg %p152
        %p276 = pneg %p149
        %p277 = pneg %p173
        %p278 = pneg %p170
        %p279 = pneg %p199
        %p280 = pneg %p196
        %s281 = sand.u32 %s186, 1
        %s282 = scalar_lea.sflag [#allocation3], %s281
        %s283 = sand.u32 %s186, 1
        %s284 = smul.addr %s283, 8
        %s285 = scalar_lea.vmem [#allocation2], %s284
        %s286 = smul.u32 16, %s21
        %p287 = scmp.lt.s32.totalorder %s286, 31
        %s288 = scalar_select %p287, %s286, 31
        %s289 = smul.addr %s288, 8
        %s290 = scalar_lea.vmem %s0, %s289
        %s291 = smul.u32 16, %s21
        %p292 = scmp.lt.s32.totalorder %s21, 1
        %s293 = scalar_select %p292, %s21, 1
        %s294 = smul.addr %s293, 8
        %s295 = scalar_lea.vmem %s1, %s294
        %v296 = vld [vmem:[%s2] sm:$0xff]
        %v297 = vld [vmem:[%s2 + $0x8] sm:$0xff]
        %v298 = vld [vmem:[%s2 + $0x10] sm:$0xff]
        %v299 = vld [vmem:[%s2 + $0x18] sm:$0xff]
        %s300 = scalar_lea.vmem %s2, 32
        %v301 = vld [vmem:[%s300] sm:$0xff]
        %v302 = vld [vmem:[%s300 + $0x8] sm:$0xff]
        %v303 = vld [vmem:[%s300 + $0x10] sm:$0xff]
        %v304 = vld [vmem:[%s300 + $0x18] sm:$0xff]
        %s305 = scalar_lea.vmem %s2, 64
        %v306 = vld [vmem:[%s305] sm:$0xff]
        %v307 = vld [vmem:[%s305 + $0x8] sm:$0xff]
        %v308 = vld [vmem:[%s305 + $0x10] sm:$0xff]
        %v309 = vld [vmem:[%s305 + $0x18] sm:$0xff]
        %s310 = scalar_lea.vmem %s2, 96
        %v311 = vld [vmem:[%s310] sm:$0xff]
        %v312 = vld [vmem:[%s310 + $0x8] sm:$0xff]
        %v313 = vld [vmem:[%s310 + $0x10] sm:$0xff]
        %v314 = vld [vmem:[%s310 + $0x18] sm:$0xff]
        %s315 = scalar_lea.vmem %s2, 128
        %v316 = vld [vmem:[%s315] sm:$0xff]
        %v317 = vld [vmem:[%s315 + $0x8] sm:$0xff]
        %v318 = vld [vmem:[%s315 + $0x10] sm:$0xff]
        %v319 = vld [vmem:[%s315 + $0x18] sm:$0xff]
        %s320 = scalar_lea.vmem %s2, 160
        %v321 = vld [vmem:[%s320] sm:$0xff]
        %v322 = vld [vmem:[%s320 + $0x8] sm:$0xff]
        %v323 = vld [vmem:[%s320 + $0x10] sm:$0xff]
        %v324 = vld [vmem:[%s320 + $0x18] sm:$0xff]
        %s325 = scalar_lea.vmem %s2, 192
        %v326 = vld [vmem:[%s325] sm:$0xff]
        %v327 = vld [vmem:[%s325 + $0x8] sm:$0xff]
        %v328 = vld [vmem:[%s325 + $0x10] sm:$0xff]
        %v329 = vld [vmem:[%s325 + $0x18] sm:$0xff]
        %s330 = scalar_lea.vmem %s2, 224
        %v331 = vld [vmem:[%s330] sm:$0xff]
        %v332 = vld [vmem:[%s330 + $0x8] sm:$0xff]
        %v333 = vld [vmem:[%s330 + $0x10] sm:$0xff]
        %v334 = vld [vmem:[%s330 + $0x18] sm:$0xff]
        %s335 = scalar_lea.vmem %s2, 256
        %v336 = vld [vmem:[%s335] sm:$0xff]
        %v337 = vld [vmem:[%s335 + $0x8] sm:$0xff]
        %v338 = vld [vmem:[%s335 + $0x10] sm:$0xff]
        %v339 = vld [vmem:[%s335 + $0x18] sm:$0xff]
        %v340 = vld [vmem:[%s3] sm:$0x1]
        %v341 = vld [vmem:[%s3 + $0x1] sm:$0x1]
        %v342 = vld [vmem:[%s3 + $0x2] sm:$0x1]
        %v343 = vld [vmem:[%s3 + $0x3] sm:$0x1]
        %v344 = vld [vmem:[%s3 + $0x4] sm:$0x1]
        %v345 = vld [vmem:[%s3 + $0x5] sm:$0x1]
        %v346 = vld [vmem:[%s3 + $0x6] sm:$0x1]
        %v347 = vld [vmem:[%s3 + $0x7] sm:$0x1]
        %v348 = vld [vmem:[%s3 + $0x8] sm:$0x1]
        %v349 = vld [vmem:[%s3 + $0x9] sm:$0x1]
        %v350 = vld [vmem:[%s3 + $0xa] sm:$0x1]
        %v351 = vld [vmem:[%s3 + $0xb] sm:$0x1]
        %v352 = vld [vmem:[%s3 + $0xc] sm:$0x1]
        %v353 = vld [vmem:[%s3 + $0xd] sm:$0x1]
        %v354 = vld [vmem:[%s4] sm:$0xff]
        %v355 = vld [vmem:[%s4 + $0x8] sm:$0xff]
        %v356 = vld [vmem:[%s4 + $0x10] sm:$0xff]
        %v357 = vld [vmem:[%s4 + $0x18] sm:$0xff]
        %v358 = vld [vmem:[%s6] sm:$0xff]
        %v359 = vld [vmem:[%s6 + $0x8] sm:$0xff]
        %v360 = vld [vmem:[%s6 + $0x10] sm:$0xff]
        %v361 = vld [vmem:[%s6 + $0x18] sm:$0xff]
        %v362 = vld [vmem:[%s6 + $0x20] sm:$0xff]
        %v363 = vld [vmem:[%s6 + $0x28] sm:$0xff]
        %v364 = vld [vmem:[%s6 + $0x30] sm:$0xff]
        %v365 = vld [vmem:[%s6 + $0x38] sm:$0xff]
        %v366 = vld [vmem:[%s6 + $0x40] sm:$0xff]
        %v367 = vld [vmem:[%s6 + $0x48] sm:$0xff]
        %v368 = vld [vmem:[%s6 + $0x50] sm:$0xff]
        %v369 = vld [vmem:[%s6 + $0x58] sm:$0xff]
        %v370 = vld [vmem:[%s6 + $0x60] sm:$0xff]
        %v371 = vld [vmem:[%s6 + $0x68] sm:$0xff]
        %v372 = vld [vmem:[%s6 + $0x70] sm:$0xff]
        %v373 = vld [vmem:[%s6 + $0x78] sm:$0xff]
        %v374 = vlaneseq
        %v375 = vshrl.u32 %v374, 7
        %v376 = vsub.s32 0, %v375
        %v377 = vrot.slane %v342, %v376
        %v378 = vlaneseq
        %v379 = vshrl.u32 %v378, 7
        %v380 = vsub.s32 0, %v379
        %v381 = vrot.slane %v343, %v380
        %v382 = vlaneseq
        %v383 = vshrl.u32 %v382, 7
        %v384 = vsub.s32 0, %v383
        %v385 = vrot.slane %v344, %v384
        %v386 = vlaneseq
        %v387 = vshrl.u32 %v386, 7
        %v388 = vsub.s32 0, %v387
        %v389 = vrot.slane %v345, %v388
        %v390 = vlaneseq
        %v391 = vshrl.u32 %v390, 7
        %v392 = vsub.s32 0, %v391
        %v393 = vrot.slane %v348, %v392
        %v394 = vlaneseq
        %v395 = vshrl.u32 %v394, 7
        %v396 = vsub.s32 0, %v395
        %v397 = vrot.slane %v349, %v396
        %v398 = vlaneseq
        %v399 = vshrl.u32 %v398, 7
        %v400 = vsub.s32 0, %v399
        %v401 = vrot.slane %v350, %v400
        %v402 = vlaneseq
        %v403 = vshrl.u32 %v402, 7
        %v404 = vsub.s32 0, %v403
        %v405 = vrot.slane %v351, %v404
        %v406 = vlaneseq
        %v407 = vshrl.u32 %v406, 7
        %v408 = vsub.s32 0, %v407
        %v409 = vrot.slane %v352, %v408
        %v410 = vlaneseq
        %v411 = vshrl.u32 %v410, 7
        %v412 = vsub.s32 0, %v411
        %v413 = vrot.slane %v353, %v412
        %v414 = vld [vmem:[%s5] sm:$0x1]
        %v416 = vlaneseq
        %v417 = vshrl.u32 %v416, 7
        %v418 = vsub.s32 0, %v417
        %v419 = vrot.slane %v414, %v418
        %v421 = vld [vmem:[%s290] sm:$0xff]
        %v422 = vld [vmem:[%s290 + $0x8] sm:$0xff]
        %v423 = vld [vmem:[%s290 + $0x10] sm:$0xff]
        %v424 = vld [vmem:[%s290 + $0x18] sm:$0xff]
        %v425 = vld [vmem:[%s290 + $0x20] sm:$0xff]
        %v426 = vld [vmem:[%s290 + $0x28] sm:$0xff]
        %v427 = vld [vmem:[%s290 + $0x30] sm:$0xff]
        %v428 = vld [vmem:[%s290 + $0x38] sm:$0xff]
        %v429 = vld [vmem:[%s290 + $0x40] sm:$0xff]
        %v430 = vld [vmem:[%s290 + $0x48] sm:$0xff]
        %v431 = vld [vmem:[%s290 + $0x50] sm:$0xff]
        %v432 = vld [vmem:[%s290 + $0x58] sm:$0xff]
        %v433 = vld [vmem:[%s290 + $0x60] sm:$0xff]
        %v434 = vld [vmem:[%s290 + $0x68] sm:$0xff]
        %v435 = vld [vmem:[%s290 + $0x70] sm:$0xff]
        %v436 = vld [vmem:[%s290 + $0x78] sm:$0xff]
        %vm437 = vcmask 261120
        %v438 = vsel %vm437, %v421, 0.0
        %439 = vadd.xlane.f32.xlu0 %v438
        %v440 = vpop.xlane.xlu0 %439
        %v441 = vsel %vm437, %v422, 0.0
        %442 = vadd.xlane.f32.xlu0 %v441
        %v443 = vpop.xlane.xlu0 %442
        %v444 = vsel %vm437, %v423, 0.0
        %445 = vadd.xlane.f32.xlu0 %v444
        %v446 = vpop.xlane.xlu0 %445
        %v447 = vsel %vm437, %v424, 0.0
        %448 = vadd.xlane.f32.xlu0 %v447
        %v449 = vpop.xlane.xlu0 %448
        %v450 = vsel %vm437, %v425, 0.0
        %451 = vadd.xlane.f32.xlu0 %v450
        %v452 = vpop.xlane.xlu0 %451
        %v453 = vsel %vm437, %v426, 0.0
        %454 = vadd.xlane.f32.xlu0 %v453
        %v455 = vpop.xlane.xlu0 %454
        %v456 = vsel %vm437, %v427, 0.0
        %457 = vadd.xlane.f32.xlu0 %v456
        %v458 = vpop.xlane.xlu0 %457
        %v459 = vsel %vm437, %v428, 0.0
        %460 = vadd.xlane.f32.xlu0 %v459
        %v461 = vpop.xlane.xlu0 %460
        %v462 = vsel %vm437, %v429, 0.0
        %463 = vadd.xlane.f32.xlu0 %v462
        %v464 = vpop.xlane.xlu0 %463
        %v465 = vsel %vm437, %v430, 0.0
        %466 = vadd.xlane.f32.xlu0 %v465
        %v467 = vpop.xlane.xlu0 %466
        %v468 = vsel %vm437, %v431, 0.0
        %469 = vadd.xlane.f32.xlu0 %v468
        %v470 = vpop.xlane.xlu0 %469
        %v471 = vsel %vm437, %v432, 0.0
        %472 = vadd.xlane.f32.xlu0 %v471
        %v473 = vpop.xlane.xlu0 %472
        %v474 = vsel %vm437, %v433, 0.0
        %475 = vadd.xlane.f32.xlu0 %v474
        %v476 = vpop.xlane.xlu0 %475
        %v477 = vsel %vm437, %v434, 0.0
        %478 = vadd.xlane.f32.xlu0 %v477
        %v479 = vpop.xlane.xlu0 %478
        %v480 = vsel %vm437, %v435, 0.0
        %481 = vadd.xlane.f32.xlu0 %v480
        %v482 = vpop.xlane.xlu0 %481
        %v483 = vsel %vm437, %v436, 0.0
        %484 = vadd.xlane.f32.xlu0 %v483
        %v485 = vpop.xlane.xlu0 %484
        %v486 = vrcp.pop 32.0
        %v487 = vmul.f32 %v440, %v486
        %v488 = vmul.f32 %v443, %v486
        %v489 = vmul.f32 %v446, %v486
        %v490 = vmul.f32 %v449, %v486
        %v491 = vmul.f32 %v452, %v486
        %v492 = vmul.f32 %v455, %v486
        %v493 = vmul.f32 %v458, %v486
        %v494 = vmul.f32 %v461, %v486
        %v495 = vmul.f32 %v464, %v486
        %v496 = vmul.f32 %v467, %v486
        %v497 = vmul.f32 %v470, %v486
        %v498 = vmul.f32 %v473, %v486
        %v499 = vmul.f32 %v476, %v486
        %v500 = vmul.f32 %v479, %v486
        %v501 = vmul.f32 %v482, %v486
        %v502 = vmul.f32 %v485, %v486
        %v503 = vsub.f32 %v421, %v487
        %v504 = vsub.f32 %v422, %v488
        %v505 = vsub.f32 %v423, %v489
        %v506 = vsub.f32 %v424, %v490
        %v507 = vsub.f32 %v425, %v491
        %v508 = vsub.f32 %v426, %v492
        %v509 = vsub.f32 %v427, %v493
        %v510 = vsub.f32 %v428, %v494
        %v511 = vsub.f32 %v429, %v495
        %v512 = vsub.f32 %v430, %v496
        %v513 = vsub.f32 %v431, %v497
        %v514 = vsub.f32 %v432, %v498
        %v515 = vsub.f32 %v433, %v499
        %v516 = vsub.f32 %v434, %v500
        %v517 = vsub.f32 %v435, %v501
        %v518 = vsub.f32 %v436, %v502
        %v519 = vmul.f32 %v503, %v503
        %v520 = vmul.f32 %v504, %v504
        %v521 = vmul.f32 %v505, %v505
        %v522 = vmul.f32 %v506, %v506
        %v523 = vmul.f32 %v507, %v507
        %v524 = vmul.f32 %v508, %v508
        %v525 = vmul.f32 %v509, %v509
        %v526 = vmul.f32 %v510, %v510
        %v527 = vmul.f32 %v511, %v511
        %v528 = vmul.f32 %v512, %v512
        %v529 = vmul.f32 %v513, %v513
        %v530 = vmul.f32 %v514, %v514
        %v531 = vmul.f32 %v515, %v515
        %v532 = vmul.f32 %v516, %v516
        %v533 = vmul.f32 %v517, %v517
        %v534 = vmul.f32 %v518, %v518
        %v535 = vsel %vm437, %v519, 0.0
        %536 = vadd.xlane.f32.xlu0 %v535
        %v537 = vpop.xlane.xlu0 %536
        %v538 = vsel %vm437, %v520, 0.0
        %539 = vadd.xlane.f32.xlu0 %v538
        %v540 = vpop.xlane.xlu0 %539
        %v541 = vsel %vm437, %v521, 0.0
        %542 = vadd.xlane.f32.xlu0 %v541
        %v543 = vpop.xlane.xlu0 %542
        %v544 = vsel %vm437, %v522, 0.0
        %545 = vadd.xlane.f32.xlu0 %v544
        %v546 = vpop.xlane.xlu0 %545
        %v547 = vsel %vm437, %v523, 0.0
        %548 = vadd.xlane.f32.xlu0 %v547
        %v549 = vpop.xlane.xlu0 %548
        %v550 = vsel %vm437, %v524, 0.0
        %551 = vadd.xlane.f32.xlu0 %v550
        %v552 = vpop.xlane.xlu0 %551
        %v553 = vsel %vm437, %v525, 0.0
        %554 = vadd.xlane.f32.xlu0 %v553
        %v555 = vpop.xlane.xlu0 %554
        %v556 = vsel %vm437, %v526, 0.0
        %557 = vadd.xlane.f32.xlu0 %v556
        %v558 = vpop.xlane.xlu0 %557
        %v559 = vsel %vm437, %v527, 0.0
        %560 = vadd.xlane.f32.xlu0 %v559
        %v561 = vpop.xlane.xlu0 %560
        %v562 = vsel %vm437, %v528, 0.0
        %563 = vadd.xlane.f32.xlu0 %v562
        %v564 = vpop.xlane.xlu0 %563
        %v565 = vsel %vm437, %v529, 0.0
        %566 = vadd.xlane.f32.xlu0 %v565
        %v567 = vpop.xlane.xlu0 %566
        %v568 = vsel %vm437, %v530, 0.0
        %569 = vadd.xlane.f32.xlu0 %v568
        %v570 = vpop.xlane.xlu0 %569
        %v571 = vsel %vm437, %v531, 0.0
        %572 = vadd.xlane.f32.xlu0 %v571
        %v573 = vpop.xlane.xlu0 %572
        %v574 = vsel %vm437, %v532, 0.0
        %575 = vadd.xlane.f32.xlu0 %v574
        %v576 = vpop.xlane.xlu0 %575
        %v577 = vsel %vm437, %v533, 0.0
        %578 = vadd.xlane.f32.xlu0 %v577
        %v579 = vpop.xlane.xlu0 %578
        %v580 = vsel %vm437, %v534, 0.0
        %581 = vadd.xlane.f32.xlu0 %v580
        %v582 = vpop.xlane.xlu0 %581
        %v583 = vmul.f32 %v537, %v486
        %v584 = vmul.f32 %v540, %v486
        %v585 = vmul.f32 %v543, %v486
        %v586 = vmul.f32 %v546, %v486
        %v587 = vmul.f32 %v549, %v486
        %v588 = vmul.f32 %v552, %v486
        %v589 = vmul.f32 %v555, %v486
        %v590 = vmul.f32 %v558, %v486
        %v591 = vmul.f32 %v561, %v486
        %v592 = vmul.f32 %v564, %v486
        %v593 = vmul.f32 %v567, %v486
        %v594 = vmul.f32 %v570, %v486
        %v595 = vmul.f32 %v573, %v486
        %v596 = vmul.f32 %v576, %v486
        %v597 = vmul.f32 %v579, %v486
        %v598 = vmul.f32 %v582, %v486
        %v599 = vadd.f32 %v583, 1e-05
        %v600 = vadd.f32 %v584, 1e-05
        %v601 = vadd.f32 %v585, 1e-05
        %v602 = vadd.f32 %v586, 1e-05
        %v603 = vadd.f32 %v587, 1e-05
        %v604 = vadd.f32 %v588, 1e-05
        %v605 = vadd.f32 %v589, 1e-05
        %v606 = vadd.f32 %v590, 1e-05
        %v607 = vadd.f32 %v591, 1e-05
        %v608 = vadd.f32 %v592, 1e-05
        %v609 = vadd.f32 %v593, 1e-05
        %v610 = vadd.f32 %v594, 1e-05
        %v611 = vadd.f32 %v595, 1e-05
        %v612 = vadd.f32 %v596, 1e-05
        %v613 = vadd.f32 %v597, 1e-05
        %v614 = vadd.f32 %v598, 1e-05
        %v615 = vrsqrt.pop %v599
        %v616 = vrsqrt.pop %v600
        %v617 = vrsqrt.pop %v601
        %v618 = vrsqrt.pop %v602
        %v619 = vrsqrt.pop %v603
        %v620 = vrsqrt.pop %v604
        %v621 = vrsqrt.pop %v605
        %v622 = vrsqrt.pop %v606
        %v623 = vrsqrt.pop %v607
        %v624 = vrsqrt.pop %v608
        %v625 = vrsqrt.pop %v609
        %v626 = vrsqrt.pop %v610
        %v627 = vrsqrt.pop %v611
        %v628 = vrsqrt.pop %v612
        %v629 = vrsqrt.pop %v613
        %v630 = vrsqrt.pop %v614
        %v631 = vmul.f32 %v503, %v615
        %v632 = vmul.f32 %v504, %v616
        %v633 = vmul.f32 %v505, %v617
        %v634 = vmul.f32 %v506, %v618
        %v635 = vmul.f32 %v507, %v619
        %v636 = vmul.f32 %v508, %v620
        %v637 = vmul.f32 %v509, %v621
        %v638 = vmul.f32 %v510, %v622
        %v639 = vmul.f32 %v511, %v623
        %v640 = vmul.f32 %v512, %v624
        %v641 = vmul.f32 %v513, %v625
        %v642 = vmul.f32 %v514, %v626
        %v643 = vmul.f32 %v515, %v627
        %v644 = vmul.f32 %v516, %v628
        %v645 = vmul.f32 %v517, %v629
        %v646 = vmul.f32 %v518, %v630
        %v647 = vlaneseq
        %v648 = vshrl.u32 %v647, 7
        %v649 = vsub.s32 0, %v648
        %v650 = vrot.slane %v340, %v649
        %v651 = vmul.f32 %v631, %v650
        %v652 = vmul.f32 %v632, %v650
        %v653 = vmul.f32 %v633, %v650
        %v654 = vmul.f32 %v634, %v650
        %v655 = vmul.f32 %v635, %v650
        %v656 = vmul.f32 %v636, %v650
        %v657 = vmul.f32 %v637, %v650
        %v658 = vmul.f32 %v638, %v650
        %v659 = vmul.f32 %v639, %v650
        %v660 = vmul.f32 %v640, %v650
        %v661 = vmul.f32 %v641, %v650
        %v662 = vmul.f32 %v642, %v650
        %v663 = vmul.f32 %v643, %v650
        %v664 = vmul.f32 %v644, %v650
        %v665 = vmul.f32 %v645, %v650
        %v666 = vmul.f32 %v646, %v650
        %v667 = vlaneseq
        %v668 = vshrl.u32 %v667, 7
        %v669 = vsub.s32 0, %v668
        %v670 = vrot.slane %v341, %v669
        %v671 = vadd.f32 %v651, %v670
        %v672 = vadd.f32 %v652, %v670
        %v673 = vadd.f32 %v653, %v670
        %v674 = vadd.f32 %v654, %v670
        %v675 = vadd.f32 %v655, %v670
        %v676 = vadd.f32 %v656, %v670
        %v677 = vadd.f32 %v657, %v670
        %v678 = vadd.f32 %v658, %v670
        %v679 = vadd.f32 %v659, %v670
        %v680 = vadd.f32 %v660, %v670
        %v681 = vadd.f32 %v661, %v670
        %v682 = vadd.f32 %v662, %v670
        %v683 = vadd.f32 %v663, %v670
        %v684 = vadd.f32 %v664, %v670
        %v685 = vadd.f32 %v665, %v670
        %v686 = vadd.f32 %v666, %v670
        %v687 = vlaneseq
        %v688 = vshrl.u32 %v687, 7
        %v689 = vsub.s32 0, %v688
        %v690 = vrot.slane %v346, %v689
        %v692 = vsel %vm437, %v671, 0
        %v695 = vsel %vm437, %v672, 0
        %v698 = vsel %vm437, %v673, 0
        %v701 = vsel %vm437, %v674, 0
        %v704 = vsel %vm437, %v675, 0
        %v707 = vsel %vm437, %v676, 0
        %v710 = vsel %vm437, %v677, 0
        %v713 = vsel %vm437, %v678, 0
        %v716 = vsel %vm437, %v679, 0
        %v719 = vsel %vm437, %v680, 0
        %v722 = vsel %vm437, %v681, 0
        %v725 = vsel %vm437, %v682, 0
        %v728 = vsel %vm437, %v683, 0
        %v731 = vsel %vm437, %v684, 0
        %v734 = vsel %vm437, %v685, 0
        %v737 = vsel %vm437, %v686, 0
        %739 = vmatprep.subr.mxu0 0.0
        %740 = vmatpush1.msra.mxu0 0.0
        %741 = vmatprep.subr.mxu0 0.0
        %742 = vmatpush1.msra.mxu0 0.0
        %743 = vmatprep.subr.mxu0 0.0
        %744 = vmatpush1.msra.mxu0 0.0
        %745 = vmatprep.subr.mxu0 0.0
        %746 = vmatpush1.msra.mxu0 0.0
        %747 = vmatprep.subr.mxu0 0.0
        %748 = vmatpush1.msra.mxu0 0.0
        %749 = vmatprep.subr.mxu0 0.0
        %750 = vmatpush1.msra.mxu0 0.0
        %751 = vmatprep.subr.mxu0 0.0
        %752 = vmatpush1.msra.mxu0 0.0
        %753 = vmatprep.subr.mxu0 0.0
        %754 = vmatpush1.msra.mxu0 0.0
        %755 = vmatprep.subr.mxu0 0.0
        %756 = vmatpush1.msra.mxu0 0.0
        %757 = vmatprep.subr.mxu0 0.0
        %758 = vmatpush1.msra.mxu0 0.0
        %759 = vmatprep.subr.mxu0 0.0
        %760 = vmatpush1.msra.mxu0 0.0
        %761 = vmatprep.subr.mxu0 0.0
        %762 = vmatpush1.msra.mxu0 0.0
        %763 = vmatprep.subr.mxu0 0.0
        %764 = vmatpush1.msra.mxu0 %v299
        %765 = vmatprep.subr.mxu0 0.0
        %766 = vmatpush1.msra.mxu0 %v298
        %767 = vmatprep.subr.mxu0 0.0
        %768 = vmatpush1.msra.mxu0 %v297
        %769 = vmatprep.subr.mxu0 0.0
        %770 = vmatpush1.msra.mxu0 %v296
        %771 = vmatprep.subr.mxu0 0.0
        %772 = vmatpush2.msra.mxu0 0.0
        %773 = vmatprep.subr.mxu0 0.0
        %774 = vmatpush2.msra.mxu0 0.0
        %775 = vmatprep.subr.mxu0 0.0
        %776 = vmatpush2.msra.mxu0 0.0
        %777 = vmatprep.subr.mxu0 0.0
        %778 = vmatpush2.msra.mxu0 0.0
        %779 = vmatprep.subr.mxu0 0.0
        %780 = vmatpush2.msra.mxu0 0.0
        %781 = vmatprep.subr.mxu0 0.0
        %782 = vmatpush2.msra.mxu0 0.0
        %783 = vmatprep.subr.mxu0 0.0
        %784 = vmatpush2.msra.mxu0 0.0
        %785 = vmatprep.subr.mxu0 0.0
        %786 = vmatpush2.msra.mxu0 0.0
        %787 = vmatprep.subr.mxu0 0.0
        %788 = vmatpush2.msra.mxu0 0.0
        %789 = vmatprep.subr.mxu0 0.0
        %790 = vmatpush2.msra.mxu0 0.0
        %791 = vmatprep.subr.mxu0 0.0
        %792 = vmatpush2.msra.mxu0 0.0
        %793 = vmatprep.subr.mxu0 0.0
        %794 = vmatpush2.msra.mxu0 0.0
        %795 = vmatprep.subr.mxu0 0.0
        %796 = vmatpush2.msra.mxu0 0.0
        %797 = vmatprep.subr.mxu0 0.0
        %798 = vmatpush2.msra.mxu0 0.0
        %799 = vmatprep.subr.mxu0 0.0
        %800 = vmatpush2.msra.mxu0 0.0
        %801 = vmatprep.subr.mxu0 0.0
        %802 = vmatpush2.msra.mxu0 0.0
        %803 = vmatprep.mubr.f32.mxu0 0.0
        %804 = vmatmul.mubr.f32.gmra.mxu0 %v692
        %v805 = vpop.f32.mrf.mxu0
        %v806 = vadd.f32 %v690, %v805
        %v807 = vpop.f32.mrf.mxu0
        %808 = vmatprep.mubr.f32.mxu0 0.0
        %809 = vmatmul.mubr.f32.gmra.mxu0 %v695
        %v810 = vpop.f32.mrf.mxu0
        %v811 = vadd.f32 %v690, %v810
        %v812 = vpop.f32.mrf.mxu0
        %813 = vmatprep.mubr.f32.mxu0 0.0
        %814 = vmatmul.mubr.f32.gmra.mxu0 %v698
        %v815 = vpop.f32.mrf.mxu0
        %v816 = vadd.f32 %v690, %v815
        %v817 = vpop.f32.mrf.mxu0
        %818 = vmatprep.mubr.f32.mxu0 0.0
        %819 = vmatmul.mubr.f32.gmra.mxu0 %v701
        %v820 = vpop.f32.mrf.mxu0
        %v821 = vadd.f32 %v690, %v820
        %v822 = vpop.f32.mrf.mxu0
        %823 = vmatprep.mubr.f32.mxu0 0.0
        %824 = vmatmul.mubr.f32.gmra.mxu0 %v704
        %v825 = vpop.f32.mrf.mxu0
        %v826 = vadd.f32 %v690, %v825
        %v827 = vpop.f32.mrf.mxu0
        %828 = vmatprep.mubr.f32.mxu0 0.0
        %829 = vmatmul.mubr.f32.gmra.mxu0 %v707
        %v830 = vpop.f32.mrf.mxu0
        %v831 = vadd.f32 %v690, %v830
        %v832 = vpop.f32.mrf.mxu0
        %833 = vmatprep.mubr.f32.mxu0 0.0
        %834 = vmatmul.mubr.f32.gmra.mxu0 %v710
        %v835 = vpop.f32.mrf.mxu0
        %v836 = vadd.f32 %v690, %v835
        %v837 = vpop.f32.mrf.mxu0
        %838 = vmatprep.mubr.f32.mxu0 0.0
        %839 = vmatmul.mubr.f32.gmra.mxu0 %v713
        %v840 = vpop.f32.mrf.mxu0
        %v841 = vadd.f32 %v690, %v840
        %v842 = vpop.f32.mrf.mxu0
        %843 = vmatprep.mubr.f32.mxu0 0.0
        %844 = vmatmul.mubr.f32.gmra.mxu0 %v716
        %v845 = vpop.f32.mrf.mxu0
        %v846 = vadd.f32 %v690, %v845
        %v847 = vpop.f32.mrf.mxu0
        %848 = vmatprep.mubr.f32.mxu0 0.0
        %849 = vmatmul.mubr.f32.gmra.mxu0 %v719
        %v850 = vpop.f32.mrf.mxu0
        %v851 = vadd.f32 %v690, %v850
        %v852 = vpop.f32.mrf.mxu0
        %853 = vmatprep.mubr.f32.mxu0 0.0
        %854 = vmatmul.mubr.f32.gmra.mxu0 %v722
        %v855 = vpop.f32.mrf.mxu0
        %v856 = vadd.f32 %v690, %v855
        %v857 = vpop.f32.mrf.mxu0
        %858 = vmatprep.mubr.f32.mxu0 0.0
        %859 = vmatmul.mubr.f32.gmra.mxu0 %v725
        %v860 = vpop.f32.mrf.mxu0
        %v861 = vadd.f32 %v690, %v860
        %v862 = vpop.f32.mrf.mxu0
        %863 = vmatprep.mubr.f32.mxu0 0.0
        %864 = vmatmul.mubr.f32.gmra.mxu0 %v728
        %v865 = vpop.f32.mrf.mxu0
        %v866 = vadd.f32 %v690, %v865
        %v867 = vpop.f32.mrf.mxu0
        %868 = vmatprep.mubr.f32.mxu0 0.0
        %869 = vmatmul.mubr.f32.gmra.mxu0 %v731
        %v870 = vpop.f32.mrf.mxu0
        %v871 = vadd.f32 %v690, %v870
        %v872 = vpop.f32.mrf.mxu0
        %873 = vmatprep.mubr.f32.mxu0 0.0
        %874 = vmatmul.mubr.f32.gmra.mxu0 %v734
        %v875 = vpop.f32.mrf.mxu0
        %v876 = vadd.f32 %v690, %v875
        %v877 = vpop.f32.mrf.mxu0
        %878 = vmatprep.mubr.f32.mxu0 0.0
        %879 = vmatmul.mubr.f32.gmra.mxu0 %v737
        %v880 = vpop.f32.mrf.mxu0
        %v881 = vadd.f32 %v690, %v880
        %v882 = vpop.f32.mrf.mxu0
        %883 = vdwg.mxu0
        %v884 = vlaneseq
        %v885 = vshrl.u32 %v884, 7
        %v886 = vsub.s32 0, %v885
        %v887 = vrot.slane %v347, %v886
        %888 = vmatprep.subr.mxu0 0.0
        %889 = vmatpush1.msra.mxu0 0.0
        %890 = vmatprep.subr.mxu0 0.0
        %891 = vmatpush1.msra.mxu0 0.0
        %892 = vmatprep.subr.mxu0 0.0
        %893 = vmatpush1.msra.mxu0 0.0
        %894 = vmatprep.subr.mxu0 0.0
        %895 = vmatpush1.msra.mxu0 0.0
        %896 = vmatprep.subr.mxu0 0.0
        %897 = vmatpush1.msra.mxu0 0.0
        %898 = vmatprep.subr.mxu0 0.0
        %899 = vmatpush1.msra.mxu0 0.0
        %900 = vmatprep.subr.mxu0 0.0
        %901 = vmatpush1.msra.mxu0 0.0
        %902 = vmatprep.subr.mxu0 0.0
        %903 = vmatpush1.msra.mxu0 0.0
        %904 = vmatprep.subr.mxu0 0.0
        %905 = vmatpush1.msra.mxu0 0.0
        %906 = vmatprep.subr.mxu0 0.0
        %907 = vmatpush1.msra.mxu0 0.0
        %908 = vmatprep.subr.mxu0 0.0
        %909 = vmatpush1.msra.mxu0 0.0
        %910 = vmatprep.subr.mxu0 0.0
        %911 = vmatpush1.msra.mxu0 0.0
        %912 = vmatprep.subr.mxu0 0.0
        %913 = vmatpush1.msra.mxu0 %v304
        %914 = vmatprep.subr.mxu0 0.0
        %915 = vmatpush1.msra.mxu0 %v303
        %916 = vmatprep.subr.mxu0 0.0
        %917 = vmatpush1.msra.mxu0 %v302
        %918 = vmatprep.subr.mxu0 0.0
        %919 = vmatpush1.msra.mxu0 %v301
        %920 = vmatprep.subr.mxu0 0.0
        %921 = vmatpush2.msra.mxu0 0.0
        %922 = vmatprep.subr.mxu0 0.0
        %923 = vmatpush2.msra.mxu0 0.0
        %924 = vmatprep.subr.mxu0 0.0
        %925 = vmatpush2.msra.mxu0 0.0
        %926 = vmatprep.subr.mxu0 0.0
        %927 = vmatpush2.msra.mxu0 0.0
        %928 = vmatprep.subr.mxu0 0.0
        %929 = vmatpush2.msra.mxu0 0.0
        %930 = vmatprep.subr.mxu0 0.0
        %931 = vmatpush2.msra.mxu0 0.0
        %932 = vmatprep.subr.mxu0 0.0
        %933 = vmatpush2.msra.mxu0 0.0
        %934 = vmatprep.subr.mxu0 0.0
        %935 = vmatpush2.msra.mxu0 0.0
        %936 = vmatprep.subr.mxu0 0.0
        %937 = vmatpush2.msra.mxu0 0.0
        %938 = vmatprep.subr.mxu0 0.0
        %939 = vmatpush2.msra.mxu0 0.0
        %940 = vmatprep.subr.mxu0 0.0
        %941 = vmatpush2.msra.mxu0 0.0
        %942 = vmatprep.subr.mxu0 0.0
        %943 = vmatpush2.msra.mxu0 0.0
        %944 = vmatprep.subr.mxu0 0.0
        %945 = vmatpush2.msra.mxu0 0.0
        %946 = vmatprep.subr.mxu0 0.0
        %947 = vmatpush2.msra.mxu0 0.0
        %948 = vmatprep.subr.mxu0 0.0
        %949 = vmatpush2.msra.mxu0 0.0
        %950 = vmatprep.subr.mxu0 0.0
        %951 = vmatpush2.msra.mxu0 0.0
        %952 = vmatprep.mubr.f32.mxu0 0.0
        %953 = vmatmul.mubr.f32.gmra.mxu0 %v692
        %v954 = vpop.f32.mrf.mxu0
        %v955 = vadd.f32 %v887, %v954
        %v956 = vpop.f32.mrf.mxu0
        %957 = vmatprep.mubr.f32.mxu0 0.0
        %958 = vmatmul.mubr.f32.gmra.mxu0 %v695
        %v959 = vpop.f32.mrf.mxu0
        %v960 = vadd.f32 %v887, %v959
        %v961 = vpop.f32.mrf.mxu0
        %962 = vmatprep.mubr.f32.mxu0 0.0
        %963 = vmatmul.mubr.f32.gmra.mxu0 %v698
        %v964 = vpop.f32.mrf.mxu0
        %v965 = vadd.f32 %v887, %v964
        %v966 = vpop.f32.mrf.mxu0
        %967 = vmatprep.mubr.f32.mxu0 0.0
        %968 = vmatmul.mubr.f32.gmra.mxu0 %v701
        %v969 = vpop.f32.mrf.mxu0
        %v970 = vadd.f32 %v887, %v969
        %v971 = vpop.f32.mrf.mxu0
        %972 = vmatprep.mubr.f32.mxu0 0.0
        %973 = vmatmul.mubr.f32.gmra.mxu0 %v704
        %v974 = vpop.f32.mrf.mxu0
        %v975 = vadd.f32 %v887, %v974
        %v976 = vpop.f32.mrf.mxu0
        %977 = vmatprep.mubr.f32.mxu0 0.0
        %978 = vmatmul.mubr.f32.gmra.mxu0 %v707
        %v979 = vpop.f32.mrf.mxu0
        %v980 = vadd.f32 %v887, %v979
        %v981 = vpop.f32.mrf.mxu0
        %982 = vmatprep.mubr.f32.mxu0 0.0
        %983 = vmatmul.mubr.f32.gmra.mxu0 %v710
        %v984 = vpop.f32.mrf.mxu0
        %v985 = vadd.f32 %v887, %v984
        %v986 = vpop.f32.mrf.mxu0
        %987 = vmatprep.mubr.f32.mxu0 0.0
        %988 = vmatmul.mubr.f32.gmra.mxu0 %v713
        %v989 = vpop.f32.mrf.mxu0
        %v990 = vadd.f32 %v887, %v989
        %v991 = vpop.f32.mrf.mxu0
        %992 = vmatprep.mubr.f32.mxu0 0.0
        %993 = vmatmul.mubr.f32.gmra.mxu0 %v716
        %v994 = vpop.f32.mrf.mxu0
        %v995 = vadd.f32 %v887, %v994
        %v996 = vpop.f32.mrf.mxu0
        %997 = vmatprep.mubr.f32.mxu0 0.0
        %998 = vmatmul.mubr.f32.gmra.mxu0 %v719
        %v999 = vpop.f32.mrf.mxu0
        %v1000 = vadd.f32 %v887, %v999
        %v1001 = vpop.f32.mrf.mxu0
        %1002 = vmatprep.mubr.f32.mxu0 0.0
        %1003 = vmatmul.mubr.f32.gmra.mxu0 %v722
        %v1004 = vpop.f32.mrf.mxu0
        %v1005 = vadd.f32 %v887, %v1004
        %v1006 = vpop.f32.mrf.mxu0
        %1007 = vmatprep.mubr.f32.mxu0 0.0
        %1008 = vmatmul.mubr.f32.gmra.mxu0 %v725
        %v1009 = vpop.f32.mrf.mxu0
        %v1010 = vadd.f32 %v887, %v1009
        %v1011 = vpop.f32.mrf.mxu0
        %1012 = vmatprep.mubr.f32.mxu0 0.0
        %1013 = vmatmul.mubr.f32.gmra.mxu0 %v728
        %v1014 = vpop.f32.mrf.mxu0
        %v1015 = vadd.f32 %v887, %v1014
        %v1016 = vpop.f32.mrf.mxu0
        %1017 = vmatprep.mubr.f32.mxu0 0.0
        %1018 = vmatmul.mubr.f32.gmra.mxu0 %v731
        %v1019 = vpop.f32.mrf.mxu0
        %v1020 = vadd.f32 %v887, %v1019
        %v1021 = vpop.f32.mrf.mxu0
        %1022 = vmatprep.mubr.f32.mxu0 0.0
        %1023 = vmatmul.mubr.f32.gmra.mxu0 %v734
        %v1024 = vpop.f32.mrf.mxu0
        %v1025 = vadd.f32 %v887, %v1024
        %v1026 = vpop.f32.mrf.mxu0
        %1027 = vmatprep.mubr.f32.mxu0 0.0
        %1028 = vmatmul.mubr.f32.gmra.mxu0 %v737
        %v1029 = vpop.f32.mrf.mxu0
        %v1030 = vadd.f32 %v887, %v1029
        %v1031 = vpop.f32.mrf.mxu0
        %1032 = vdwg.mxu0
        %v1033 = vld [vmem:[%s295] sm:$0xff]
        %v1034 = vsel %vm437, %v1033, 0.0
        %1035 = vadd.xlane.f32.xlu0 %v1034
        %v1036 = vpop.xlane.xlu0 %1035
        %v1037 = vmul.f32 %v1036, %v486
        %v1038 = vsub.f32 %v1033, %v1037
        %v1039 = vmul.f32 %v1038, %v1038
        %v1040 = vsel %vm437, %v1039, 0.0
        %1041 = vadd.xlane.f32.xlu0 %v1040
        %v1042 = vpop.xlane.xlu0 %1041
        %v1043 = vmul.f32 %v1042, %v486
        %v1044 = vadd.f32 %v1043, 1e-05
        %v1045 = vrsqrt.pop %v1044
        %v1046 = vmul.f32 %v1038, %v1045
        %v1047 = vmul.f32 %v1046, %v377
        %v1048 = vadd.f32 %v1047, %v381
        %v1050 = vsel %vm437, %v1048, 0
        %1052 = vmatprep.subr.mxu0 0.0
        %1053 = vmatpush1.msra.mxu0 0.0
        %1054 = vmatprep.subr.mxu0 0.0
        %1055 = vmatpush1.msra.mxu0 0.0
        %1056 = vmatprep.subr.mxu0 0.0
        %1057 = vmatpush1.msra.mxu0 0.0
        %1058 = vmatprep.subr.mxu0 0.0
        %1059 = vmatpush1.msra.mxu0 0.0
        %1060 = vmatprep.subr.mxu0 0.0
        %1061 = vmatpush1.msra.mxu0 0.0
        %1062 = vmatprep.subr.mxu0 0.0
        %1063 = vmatpush1.msra.mxu0 0.0
        %1064 = vmatprep.subr.mxu0 0.0
        %1065 = vmatpush1.msra.mxu0 0.0
        %1066 = vmatprep.subr.mxu0 0.0
        %1067 = vmatpush1.msra.mxu0 0.0
        %1068 = vmatprep.subr.mxu0 0.0
        %1069 = vmatpush1.msra.mxu0 0.0
        %1070 = vmatprep.subr.mxu0 0.0
        %1071 = vmatpush1.msra.mxu0 0.0
        %1072 = vmatprep.subr.mxu0 0.0
        %1073 = vmatpush1.msra.mxu0 0.0
        %1074 = vmatprep.subr.mxu0 0.0
        %1075 = vmatpush1.msra.mxu0 0.0
        %1076 = vmatprep.subr.mxu0 0.0
        %1077 = vmatpush1.msra.mxu0 %v309
        %1078 = vmatprep.subr.mxu0 0.0
        %1079 = vmatpush1.msra.mxu0 %v308
        %1080 = vmatprep.subr.mxu0 0.0
        %1081 = vmatpush1.msra.mxu0 %v307
        %1082 = vmatprep.subr.mxu0 0.0
        %1083 = vmatpush1.msra.mxu0 %v306
        %1084 = vmatprep.subr.mxu0 0.0
        %1085 = vmatpush2.msra.mxu0 0.0
        %1086 = vmatprep.subr.mxu0 0.0
        %1087 = vmatpush2.msra.mxu0 0.0
        %1088 = vmatprep.subr.mxu0 0.0
        %1089 = vmatpush2.msra.mxu0 0.0
        %1090 = vmatprep.subr.mxu0 0.0
        %1091 = vmatpush2.msra.mxu0 0.0
        %1092 = vmatprep.subr.mxu0 0.0
        %1093 = vmatpush2.msra.mxu0 0.0
        %1094 = vmatprep.subr.mxu0 0.0
        %1095 = vmatpush2.msra.mxu0 0.0
        %1096 = vmatprep.subr.mxu0 0.0
        %1097 = vmatpush2.msra.mxu0 0.0
        %1098 = vmatprep.subr.mxu0 0.0
        %1099 = vmatpush2.msra.mxu0 0.0
        %1100 = vmatprep.subr.mxu0 0.0
        %1101 = vmatpush2.msra.mxu0 0.0
        %1102 = vmatprep.subr.mxu0 0.0
        %1103 = vmatpush2.msra.mxu0 0.0
        %1104 = vmatprep.subr.mxu0 0.0
        %1105 = vmatpush2.msra.mxu0 0.0
        %1106 = vmatprep.subr.mxu0 0.0
        %1107 = vmatpush2.msra.mxu0 0.0
        %1108 = vmatprep.subr.mxu0 0.0
        %1109 = vmatpush2.msra.mxu0 0.0
        %1110 = vmatprep.subr.mxu0 0.0
        %1111 = vmatpush2.msra.mxu0 0.0
        %1112 = vmatprep.subr.mxu0 0.0
        %1113 = vmatpush2.msra.mxu0 0.0
        %1114 = vmatprep.subr.mxu0 0.0
        %1115 = vmatpush2.msra.mxu0 0.0
        %1116 = vmatprep.mubr.f32.mxu0 0.0
        %1117 = vmatmul.mubr.f32.gmra.mxu0 %v1050
        %v1118 = vpop.f32.mrf.mxu0
        %v1119 = vadd.f32 %v393, %v1118
        %v1120 = vpop.f32.mrf.mxu0
        %1121 = vdwg.mxu0
        %v1123 = vsel %vm437, %v1119, 0
        %v1126 = vsel %vm437, %v806, 0
        %v1129 = vsel %vm437, %v811, 0
        %v1132 = vsel %vm437, %v816, 0
        %v1135 = vsel %vm437, %v821, 0
        %v1138 = vsel %vm437, %v826, 0
        %v1141 = vsel %vm437, %v831, 0
        %v1144 = vsel %vm437, %v836, 0
        %v1147 = vsel %vm437, %v841, 0
        %1149 = vmatprep.subr.mxu0 0.0
        %1150 = vmatpush1.xpose.msra.mxu0 0.0
        %1151 = vmatprep.subr.mxu0 0.0
        %1152 = vmatpush1.xpose.msra.mxu0 0.0
        %1153 = vmatprep.subr.mxu0 0.0
        %1154 = vmatpush1.xpose.msra.mxu0 0.0
        %1155 = vmatprep.subr.mxu0 0.0
        %1156 = vmatpush1.xpose.msra.mxu0 0.0
        %1157 = vmatprep.subr.mxu0 0.0
        %1158 = vmatpush1.xpose.msra.mxu0 0.0
        %1159 = vmatprep.subr.mxu0 0.0
        %1160 = vmatpush1.xpose.msra.mxu0 0.0
        %1161 = vmatprep.subr.mxu0 0.0
        %1162 = vmatpush1.xpose.msra.mxu0 0.0
        %1163 = vmatprep.subr.mxu0 0.0
        %1164 = vmatpush1.xpose.msra.mxu0 0.0
        %1165 = vmatprep.subr.mxu0 0.0
        %1166 = vmatpush1.xpose.msra.mxu0 %v1147
        %1167 = vmatprep.subr.mxu0 0.0
        %1168 = vmatpush1.xpose.msra.mxu0 %v1144
        %1169 = vmatprep.subr.mxu0 0.0
        %1170 = vmatpush1.xpose.msra.mxu0 %v1141
        %1171 = vmatprep.subr.mxu0 0.0
        %1172 = vmatpush1.xpose.msra.mxu0 %v1138
        %1173 = vmatprep.subr.mxu0 0.0
        %1174 = vmatpush1.xpose.msra.mxu0 %v1135
        %1175 = vmatprep.subr.mxu0 0.0
        %1176 = vmatpush1.xpose.msra.mxu0 %v1132
        %1177 = vmatprep.subr.mxu0 0.0
        %1178 = vmatpush1.xpose.msra.mxu0 %v1129
        %1179 = vmatprep.subr.mxu0 0.0
        %1180 = vmatpush1.xpose.msra.mxu0 %v1126
        %1181 = vmatprep.subr.mxu0 0.0
        %1182 = vmatpush2.xpose.msra.mxu0 0.0
        %1183 = vmatprep.subr.mxu0 0.0
        %1184 = vmatpush2.xpose.msra.mxu0 0.0
        %1185 = vmatprep.subr.mxu0 0.0
        %1186 = vmatpush2.xpose.msra.mxu0 0.0
        %1187 = vmatprep.subr.mxu0 0.0
        %1188 = vmatpush2.xpose.msra.mxu0 0.0
        %1189 = vmatprep.subr.mxu0 0.0
        %1190 = vmatpush2.xpose.msra.mxu0 0.0
        %1191 = vmatprep.subr.mxu0 0.0
        %1192 = vmatpush2.xpose.msra.mxu0 0.0
        %1193 = vmatprep.subr.mxu0 0.0
        %1194 = vmatpush2.xpose.msra.mxu0 0.0
        %1195 = vmatprep.subr.mxu0 0.0
        %1196 = vmatpush2.xpose.msra.mxu0 0.0
        %1197 = vmatprep.subr.mxu0 0.0
        %1198 = vmatpush2.xpose.msra.mxu0 0.0
        %1199 = vmatprep.subr.mxu0 0.0
        %1200 = vmatpush2.xpose.msra.mxu0 0.0
        %1201 = vmatprep.subr.mxu0 0.0
        %1202 = vmatpush2.xpose.msra.mxu0 0.0
        %1203 = vmatprep.subr.mxu0 0.0
        %1204 = vmatpush2.xpose.msra.mxu0 0.0
        %1205 = vmatprep.subr.mxu0 0.0
        %1206 = vmatpush2.xpose.msra.mxu0 0.0
        %1207 = vmatprep.subr.mxu0 0.0
        %1208 = vmatpush2.xpose.msra.mxu0 0.0
        %1209 = vmatprep.subr.mxu0 0.0
        %1210 = vmatpush2.xpose.msra.mxu0 0.0
        %1211 = vmatprep.subr.mxu0 0.0
        %1212 = vmatpush2.xpose.msra.mxu0 0.0
        %1213 = vmatprep.mubr.f32.mxu0 0.0
        %1214 = vmatmul.mubr.f32.gmra.mxu0 %v1123
        %v1215 = vpop.f32.mrf.mxu0
        %v1216 = vadd.f32 0.0, %v1215
        %v1217 = vpop.f32.mrf.mxu0
        %1218 = vdwg.mxu0
        %vm1219 = vcmask 519168
        %v1220 = vsel %vm1219, %v1216, -inf
        %v1221 = vrot.slane %v1220, 4
        %v1222 = vmax.f32 %v1220, %v1221
        %v1223 = vrot.slane %v1222, 2
        %v1224 = vmax.f32 %v1222, %v1223
        %v1225 = vrot.slane %v1224, 1
        %v1226 = vmax.f32 %v1224, %v1225
        %v1227 = vsub.f32 %v1216, %v1226
        %v1228 = vmul.f32 %v1227, 1.442695
        %v1229 = vpow.pop %v1228
        %v1230 = vsel %vm1219, %v1229, 0.0
        %v1231 = vrot.slane %v1230, 4
        %v1232 = vadd.f32 %v1230, %v1231
        %v1233 = vrot.slane %v1232, 2
        %v1234 = vadd.f32 %v1232, %v1233
        %v1235 = vrot.slane %v1234, 1
        %v1236 = vadd.f32 %v1234, %v1235
        %v1237 = vrcp.pop %v1236
        %v1238 = vmul.f32 %v1229, %v1237
        %v1239 = vadd.f32 %v1238, 1e-08
        %v1240 = vsel %vm1219, %v1239, 0.0
        %1241 = vadd.xlane.f32.xlu0 %v1240
        %v1242 = vpop.xlane.xlu0 %1241
        %v1243 = vrcp.pop %v1242
        %v1244 = vmul.f32 %v1239, %v1243
        %vm1245 = vcmask 523264
        %v1247 = vsel %vm1245, %v1244, 0
        %1249 = vmatprep.subr.mxu0 0.0
        %1250 = vmatpush1.msra.mxu0 0.0
        %1251 = vmatprep.subr.mxu0 0.0
        %1252 = vmatpush1.msra.mxu0 0.0
        %1253 = vmatprep.subr.mxu0 0.0
        %1254 = vmatpush1.msra.mxu0 0.0
        %1255 = vmatprep.subr.mxu0 0.0
        %1256 = vmatpush1.msra.mxu0 0.0
        %1257 = vmatprep.subr.mxu0 0.0
        %1258 = vmatpush1.msra.mxu0 0.0
        %1259 = vmatprep.subr.mxu0 0.0
        %1260 = vmatpush1.msra.mxu0 0.0
        %1261 = vmatprep.subr.mxu0 0.0
        %1262 = vmatpush1.msra.mxu0 0.0
        %1263 = vmatprep.subr.mxu0 0.0
        %1264 = vmatpush1.msra.mxu0 0.0
        %1265 = vmatprep.subr.mxu0 0.0
        %1266 = vmatpush1.msra.mxu0 %v990
        %1267 = vmatprep.subr.mxu0 0.0
        %1268 = vmatpush1.msra.mxu0 %v985
        %1269 = vmatprep.subr.mxu0 0.0
        %1270 = vmatpush1.msra.mxu0 %v980
        %1271 = vmatprep.subr.mxu0 0.0
        %1272 = vmatpush1.msra.mxu0 %v975
        %1273 = vmatprep.subr.mxu0 0.0
        %1274 = vmatpush1.msra.mxu0 %v970
        %1275 = vmatprep.subr.mxu0 0.0
        %1276 = vmatpush1.msra.mxu0 %v965
        %1277 = vmatprep.subr.mxu0 0.0
        %1278 = vmatpush1.msra.mxu0 %v960
        %1279 = vmatprep.subr.mxu0 0.0
        %1280 = vmatpush1.msra.mxu0 %v955
        %1281 = vmatprep.subr.mxu0 0.0
        %1282 = vmatpush2.msra.mxu0 0.0
        %1283 = vmatprep.subr.mxu0 0.0
        %1284 = vmatpush2.msra.mxu0 0.0
        %1285 = vmatprep.subr.mxu0 0.0
        %1286 = vmatpush2.msra.mxu0 0.0
        %1287 = vmatprep.subr.mxu0 0.0
        %1288 = vmatpush2.msra.mxu0 0.0
        %1289 = vmatprep.subr.mxu0 0.0
        %1290 = vmatpush2.msra.mxu0 0.0
        %1291 = vmatprep.subr.mxu0 0.0
        %1292 = vmatpush2.msra.mxu0 0.0
        %1293 = vmatprep.subr.mxu0 0.0
        %1294 = vmatpush2.msra.mxu0 0.0
        %1295 = vmatprep.subr.mxu0 0.0
        %1296 = vmatpush2.msra.mxu0 0.0
        %1297 = vmatprep.subr.mxu0 0.0
        %1298 = vmatpush2.msra.mxu0 0.0
        %1299 = vmatprep.subr.mxu0 0.0
        %1300 = vmatpush2.msra.mxu0 0.0
        %1301 = vmatprep.subr.mxu0 0.0
        %1302 = vmatpush2.msra.mxu0 0.0
        %1303 = vmatprep.subr.mxu0 0.0
        %1304 = vmatpush2.msra.mxu0 0.0
        %1305 = vmatprep.subr.mxu0 0.0
        %1306 = vmatpush2.msra.mxu0 0.0
        %1307 = vmatprep.subr.mxu0 0.0
        %1308 = vmatpush2.msra.mxu0 0.0
        %1309 = vmatprep.subr.mxu0 0.0
        %1310 = vmatpush2.msra.mxu0 0.0
        %1311 = vmatprep.subr.mxu0 0.0
        %1312 = vmatpush2.msra.mxu0 0.0
        %1313 = vmatprep.mubr.f32.mxu0 0.0
        %1314 = vmatmul.mubr.f32.gmra.mxu0 %v1247
        %v1315 = vpop.f32.mrf.mxu0
        %v1316 = vadd.f32 0.0, %v1315
        %v1317 = vpop.f32.mrf.mxu0
        %1318 = vdwg.mxu0
        %v1319 = vrot.slane %v1119, 4
        %v1320 = vsel %vm437, %v1319, 0
        %v1323 = vsel %vm437, %v846, 0
        %v1326 = vsel %vm437, %v851, 0
        %v1329 = vsel %vm437, %v856, 0
        %v1332 = vsel %vm437, %v861, 0
        %v1335 = vsel %vm437, %v866, 0
        %v1338 = vsel %vm437, %v871, 0
        %v1341 = vsel %vm437, %v876, 0
        %v1344 = vsel %vm437, %v881, 0
        %1346 = vmatprep.subr.mxu0 0.0
        %1347 = vmatpush1.xpose.msra.mxu0 0.0
        %1348 = vmatprep.subr.mxu0 0.0
        %1349 = vmatpush1.xpose.msra.mxu0 0.0
        %1350 = vmatprep.subr.mxu0 0.0
        %1351 = vmatpush1.xpose.msra.mxu0 0.0
        %1352 = vmatprep.subr.mxu0 0.0
        %1353 = vmatpush1.xpose.msra.mxu0 0.0
        %1354 = vmatprep.subr.mxu0 0.0
        %1355 = vmatpush1.xpose.msra.mxu0 0.0
        %1356 = vmatprep.subr.mxu0 0.0
        %1357 = vmatpush1.xpose.msra.mxu0 0.0
        %1358 = vmatprep.subr.mxu0 0.0
        %1359 = vmatpush1.xpose.msra.mxu0 0.0
        %1360 = vmatprep.subr.mxu0 0.0
        %1361 = vmatpush1.xpose.msra.mxu0 0.0
        %1362 = vmatprep.subr.mxu0 0.0
        %1363 = vmatpush1.xpose.msra.mxu0 %v1344
        %1364 = vmatprep.subr.mxu0 0.0
        %1365 = vmatpush1.xpose.msra.mxu0 %v1341
        %1366 = vmatprep.subr.mxu0 0.0
        %1367 = vmatpush1.xpose.msra.mxu0 %v1338
        %1368 = vmatprep.subr.mxu0 0.0
        %1369 = vmatpush1.xpose.msra.mxu0 %v1335
        %1370 = vmatprep.subr.mxu0 0.0
        %1371 = vmatpush1.xpose.msra.mxu0 %v1332
        %1372 = vmatprep.subr.mxu0 0.0
        %1373 = vmatpush1.xpose.msra.mxu0 %v1329
        %1374 = vmatprep.subr.mxu0 0.0
        %1375 = vmatpush1.xpose.msra.mxu0 %v1326
        %1376 = vmatprep.subr.mxu0 0.0
        %1377 = vmatpush1.xpose.msra.mxu0 %v1323
        %1378 = vmatprep.subr.mxu0 0.0
        %1379 = vmatpush2.xpose.msra.mxu0 0.0
        %1380 = vmatprep.subr.mxu0 0.0
        %1381 = vmatpush2.xpose.msra.mxu0 0.0
        %1382 = vmatprep.subr.mxu0 0.0
        %1383 = vmatpush2.xpose.msra.mxu0 0.0
        %1384 = vmatprep.subr.mxu0 0.0
        %1385 = vmatpush2.xpose.msra.mxu0 0.0
        %1386 = vmatprep.subr.mxu0 0.0
        %1387 = vmatpush2.xpose.msra.mxu0 0.0
        %1388 = vmatprep.subr.mxu0 0.0
        %1389 = vmatpush2.xpose.msra.mxu0 0.0
        %1390 = vmatprep.subr.mxu0 0.0
        %1391 = vmatpush2.xpose.msra.mxu0 0.0
        %1392 = vmatprep.subr.mxu0 0.0
        %1393 = vmatpush2.xpose.msra.mxu0 0.0
        %1394 = vmatprep.subr.mxu0 0.0
        %1395 = vmatpush2.xpose.msra.mxu0 0.0
        %1396 = vmatprep.subr.mxu0 0.0
        %1397 = vmatpush2.xpose.msra.mxu0 0.0
        %1398 = vmatprep.subr.mxu0 0.0
        %1399 = vmatpush2.xpose.msra.mxu0 0.0
        %1400 = vmatprep.subr.mxu0 0.0
        %1401 = vmatpush2.xpose.msra.mxu0 0.0
        %1402 = vmatprep.subr.mxu0 0.0
        %1403 = vmatpush2.xpose.msra.mxu0 0.0
        %1404 = vmatprep.subr.mxu0 0.0
        %1405 = vmatpush2.xpose.msra.mxu0 0.0
        %1406 = vmatprep.subr.mxu0 0.0
        %1407 = vmatpush2.xpose.msra.mxu0 0.0
        %1408 = vmatprep.subr.mxu0 0.0
        %1409 = vmatpush2.xpose.msra.mxu0 0.0
        %1410 = vmatprep.mubr.f32.mxu0 0.0
        %1411 = vmatmul.mubr.f32.gmra.mxu0 %v1320
        %v1412 = vpop.f32.mrf.mxu0
        %v1413 = vadd.f32 0.0, %v1412
        %v1414 = vpop.f32.mrf.mxu0
        %1415 = vdwg.mxu0
        %v1416 = vsel %vm1219, %v1413, -inf
        %v1417 = vrot.slane %v1416, 4
        %v1418 = vmax.f32 %v1416, %v1417
        %v1419 = vrot.slane %v1418, 2
        %v1420 = vmax.f32 %v1418, %v1419
        %v1421 = vrot.slane %v1420, 1
        %v1422 = vmax.f32 %v1420, %v1421
        %v1423 = vsub.f32 %v1413, %v1422
        %v1424 = vmul.f32 %v1423, 1.442695
        %v1425 = vpow.pop %v1424
        %v1426 = vsel %vm1219, %v1425, 0.0
        %v1427 = vrot.slane %v1426, 4
        %v1428 = vadd.f32 %v1426, %v1427
        %v1429 = vrot.slane %v1428, 2
        %v1430 = vadd.f32 %v1428, %v1429
        %v1431 = vrot.slane %v1430, 1
        %v1432 = vadd.f32 %v1430, %v1431
        %v1433 = vrcp.pop %v1432
        %v1434 = vmul.f32 %v1425, %v1433
        %v1435 = vadd.f32 %v1434, 1e-08
        %v1436 = vsel %vm1219, %v1435, 0.0
        %1437 = vadd.xlane.f32.xlu0 %v1436
        %v1438 = vpop.xlane.xlu0 %1437
        %v1439 = vrcp.pop %v1438
        %v1440 = vmul.f32 %v1435, %v1439
        %v1442 = vsel %vm1245, %v1440, 0
        %1444 = vmatprep.subr.mxu0 0.0
        %1445 = vmatpush1.msra.mxu0 0.0
        %1446 = vmatprep.subr.mxu0 0.0
        %1447 = vmatpush1.msra.mxu0 0.0
        %1448 = vmatprep.subr.mxu0 0.0
        %1449 = vmatpush1.msra.mxu0 0.0
        %1450 = vmatprep.subr.mxu0 0.0
        %1451 = vmatpush1.msra.mxu0 0.0
        %1452 = vmatprep.subr.mxu0 0.0
        %1453 = vmatpush1.msra.mxu0 0.0
        %1454 = vmatprep.subr.mxu0 0.0
        %1455 = vmatpush1.msra.mxu0 0.0
        %1456 = vmatprep.subr.mxu0 0.0
        %1457 = vmatpush1.msra.mxu0 0.0
        %1458 = vmatprep.subr.mxu0 0.0
        %1459 = vmatpush1.msra.mxu0 0.0
        %1460 = vmatprep.subr.mxu0 0.0
        %1461 = vmatpush1.msra.mxu0 %v1030
        %1462 = vmatprep.subr.mxu0 0.0
        %1463 = vmatpush1.msra.mxu0 %v1025
        %1464 = vmatprep.subr.mxu0 0.0
        %1465 = vmatpush1.msra.mxu0 %v1020
        %1466 = vmatprep.subr.mxu0 0.0
        %1467 = vmatpush1.msra.mxu0 %v1015
        %1468 = vmatprep.subr.mxu0 0.0
        %1469 = vmatpush1.msra.mxu0 %v1010
        %1470 = vmatprep.subr.mxu0 0.0
        %1471 = vmatpush1.msra.mxu0 %v1005
        %1472 = vmatprep.subr.mxu0 0.0
        %1473 = vmatpush1.msra.mxu0 %v1000
        %1474 = vmatprep.subr.mxu0 0.0
        %1475 = vmatpush1.msra.mxu0 %v995
        %1476 = vmatprep.subr.mxu0 0.0
        %1477 = vmatpush2.msra.mxu0 0.0
        %1478 = vmatprep.subr.mxu0 0.0
        %1479 = vmatpush2.msra.mxu0 0.0
        %1480 = vmatprep.subr.mxu0 0.0
        %1481 = vmatpush2.msra.mxu0 0.0
        %1482 = vmatprep.subr.mxu0 0.0
        %1483 = vmatpush2.msra.mxu0 0.0
        %1484 = vmatprep.subr.mxu0 0.0
        %1485 = vmatpush2.msra.mxu0 0.0
        %1486 = vmatprep.subr.mxu0 0.0
        %1487 = vmatpush2.msra.mxu0 0.0
        %1488 = vmatprep.subr.mxu0 0.0
        %1489 = vmatpush2.msra.mxu0 0.0
        %1490 = vmatprep.subr.mxu0 0.0
        %1491 = vmatpush2.msra.mxu0 0.0
        %1492 = vmatprep.subr.mxu0 0.0
        %1493 = vmatpush2.msra.mxu0 0.0
        %1494 = vmatprep.subr.mxu0 0.0
        %1495 = vmatpush2.msra.mxu0 0.0
        %1496 = vmatprep.subr.mxu0 0.0
        %1497 = vmatpush2.msra.mxu0 0.0
        %1498 = vmatprep.subr.mxu0 0.0
        %1499 = vmatpush2.msra.mxu0 0.0
        %1500 = vmatprep.subr.mxu0 0.0
        %1501 = vmatpush2.msra.mxu0 0.0
        %1502 = vmatprep.subr.mxu0 0.0
        %1503 = vmatpush2.msra.mxu0 0.0
        %1504 = vmatprep.subr.mxu0 0.0
        %1505 = vmatpush2.msra.mxu0 0.0
        %1506 = vmatprep.subr.mxu0 0.0
        %1507 = vmatpush2.msra.mxu0 0.0
        %1508 = vmatprep.mubr.f32.mxu0 0.0
        %1509 = vmatmul.mubr.f32.gmra.mxu0 %v1442
        %v1510 = vpop.f32.mrf.mxu0
        %v1511 = vadd.f32 0.0, %v1510
        %v1512 = vpop.f32.mrf.mxu0
        %1513 = vdwg.mxu0
        %v1515 = vrot.slane %v1511, 4
        %vm1517 = vcmask 1043456
        %v1518 = vsel %vm1517, %v1316, %v1515
        %v1520 = vsel %vm437, %v1033, 0
        %1522 = vmatprep.subr.mxu0 0.0
        %1523 = vmatpush1.msra.mxu0 0.0
        %1524 = vmatprep.subr.mxu0 0.0
        %1525 = vmatpush1.msra.mxu0 0.0
        %1526 = vmatprep.subr.mxu0 0.0
        %1527 = vmatpush1.msra.mxu0 0.0
        %1528 = vmatprep.subr.mxu0 0.0
        %1529 = vmatpush1.msra.mxu0 0.0
        %1530 = vmatprep.subr.mxu0 0.0
        %1531 = vmatpush1.msra.mxu0 0.0
        %1532 = vmatprep.subr.mxu0 0.0
        %1533 = vmatpush1.msra.mxu0 0.0
        %1534 = vmatprep.subr.mxu0 0.0
        %1535 = vmatpush1.msra.mxu0 0.0
        %1536 = vmatprep.subr.mxu0 0.0
        %1537 = vmatpush1.msra.mxu0 0.0
        %1538 = vmatprep.subr.mxu0 0.0
        %1539 = vmatpush1.msra.mxu0 0.0
        %1540 = vmatprep.subr.mxu0 0.0
        %1541 = vmatpush1.msra.mxu0 0.0
        %1542 = vmatprep.subr.mxu0 0.0
        %1543 = vmatpush1.msra.mxu0 0.0
        %1544 = vmatprep.subr.mxu0 0.0
        %1545 = vmatpush1.msra.mxu0 0.0
        %1546 = vmatprep.subr.mxu0 0.0
        %1547 = vmatpush1.msra.mxu0 %v329
        %1548 = vmatprep.subr.mxu0 0.0
        %1549 = vmatpush1.msra.mxu0 %v328
        %1550 = vmatprep.subr.mxu0 0.0
        %1551 = vmatpush1.msra.mxu0 %v327
        %1552 = vmatprep.subr.mxu0 0.0
        %1553 = vmatpush1.msra.mxu0 %v326
        %1554 = vmatprep.subr.mxu0 0.0
        %1555 = vmatpush2.msra.mxu0 0.0
        %1556 = vmatprep.subr.mxu0 0.0
        %1557 = vmatpush2.msra.mxu0 0.0
        %1558 = vmatprep.subr.mxu0 0.0
        %1559 = vmatpush2.msra.mxu0 0.0
        %1560 = vmatprep.subr.mxu0 0.0
        %1561 = vmatpush2.msra.mxu0 0.0
        %1562 = vmatprep.subr.mxu0 0.0
        %1563 = vmatpush2.msra.mxu0 0.0
        %1564 = vmatprep.subr.mxu0 0.0
        %1565 = vmatpush2.msra.mxu0 0.0
        %1566 = vmatprep.subr.mxu0 0.0
        %1567 = vmatpush2.msra.mxu0 0.0
        %1568 = vmatprep.subr.mxu0 0.0
        %1569 = vmatpush2.msra.mxu0 0.0
        %1570 = vmatprep.subr.mxu0 0.0
        %1571 = vmatpush2.msra.mxu0 0.0
        %1572 = vmatprep.subr.mxu0 0.0
        %1573 = vmatpush2.msra.mxu0 0.0
        %1574 = vmatprep.subr.mxu0 0.0
        %1575 = vmatpush2.msra.mxu0 0.0
        %1576 = vmatprep.subr.mxu0 0.0
        %1577 = vmatpush2.msra.mxu0 0.0
        %1578 = vmatprep.subr.mxu0 0.0
        %1579 = vmatpush2.msra.mxu0 0.0
        %1580 = vmatprep.subr.mxu0 0.0
        %1581 = vmatpush2.msra.mxu0 0.0
        %1582 = vmatprep.subr.mxu0 0.0
        %1583 = vmatpush2.msra.mxu0 0.0
        %1584 = vmatprep.subr.mxu0 0.0
        %1585 = vmatpush2.msra.mxu0 0.0
        %1586 = vmatprep.mubr.f32.mxu0 0.0
        %1587 = vmatmul.mubr.f32.gmra.mxu0 %v1520
        %v1588 = vpop.f32.mrf.mxu0
        %v1589 = vadd.f32 0.0, %v1588
        %v1590 = vpop.f32.mrf.mxu0
        %1591 = vdwg.mxu0
        %v1593 = vsel %vm437, %v1518, 0
        %1595 = vmatprep.subr.mxu0 0.0
        %1596 = vmatpush1.msra.mxu0 0.0
        %1597 = vmatprep.subr.mxu0 0.0
        %1598 = vmatpush1.msra.mxu0 0.0
        %1599 = vmatprep.subr.mxu0 0.0
        %1600 = vmatpush1.msra.mxu0 0.0
        %1601 = vmatprep.subr.mxu0 0.0
        %1602 = vmatpush1.msra.mxu0 0.0
        %1603 = vmatprep.subr.mxu0 0.0
        %1604 = vmatpush1.msra.mxu0 0.0
        %1605 = vmatprep.subr.mxu0 0.0
        %1606 = vmatpush1.msra.mxu0 0.0
        %1607 = vmatprep.subr.mxu0 0.0
        %1608 = vmatpush1.msra.mxu0 0.0
        %1609 = vmatprep.subr.mxu0 0.0
        %1610 = vmatpush1.msra.mxu0 0.0
        %1611 = vmatprep.subr.mxu0 0.0
        %1612 = vmatpush1.msra.mxu0 0.0
        %1613 = vmatprep.subr.mxu0 0.0
        %1614 = vmatpush1.msra.mxu0 0.0
        %1615 = vmatprep.subr.mxu0 0.0
        %1616 = vmatpush1.msra.mxu0 0.0
        %1617 = vmatprep.subr.mxu0 0.0
        %1618 = vmatpush1.msra.mxu0 0.0
        %1619 = vmatprep.subr.mxu0 0.0
        %1620 = vmatpush1.msra.mxu0 %v314
        %1621 = vmatprep.subr.mxu0 0.0
        %1622 = vmatpush1.msra.mxu0 %v313
        %1623 = vmatprep.subr.mxu0 0.0
        %1624 = vmatpush1.msra.mxu0 %v312
        %1625 = vmatprep.subr.mxu0 0.0
        %1626 = vmatpush1.msra.mxu0 %v311
        %1627 = vmatprep.subr.mxu0 0.0
        %1628 = vmatpush2.msra.mxu0 0.0
        %1629 = vmatprep.subr.mxu0 0.0
        %1630 = vmatpush2.msra.mxu0 0.0
        %1631 = vmatprep.subr.mxu0 0.0
        %1632 = vmatpush2.msra.mxu0 0.0
        %1633 = vmatprep.subr.mxu0 0.0
        %1634 = vmatpush2.msra.mxu0 0.0
        %1635 = vmatprep.subr.mxu0 0.0
        %1636 = vmatpush2.msra.mxu0 0.0
        %1637 = vmatprep.subr.mxu0 0.0
        %1638 = vmatpush2.msra.mxu0 0.0
        %1639 = vmatprep.subr.mxu0 0.0
        %1640 = vmatpush2.msra.mxu0 0.0
        %1641 = vmatprep.subr.mxu0 0.0
        %1642 = vmatpush2.msra.mxu0 0.0
        %1643 = vmatprep.subr.mxu0 0.0
        %1644 = vmatpush2.msra.mxu0 0.0
        %1645 = vmatprep.subr.mxu0 0.0
        %1646 = vmatpush2.msra.mxu0 0.0
        %1647 = vmatprep.subr.mxu0 0.0
        %1648 = vmatpush2.msra.mxu0 0.0
        %1649 = vmatprep.subr.mxu0 0.0
        %1650 = vmatpush2.msra.mxu0 0.0
        %1651 = vmatprep.subr.mxu0 0.0
        %1652 = vmatpush2.msra.mxu0 0.0
        %1653 = vmatprep.subr.mxu0 0.0
        %1654 = vmatpush2.msra.mxu0 0.0
        %1655 = vmatprep.subr.mxu0 0.0
        %1656 = vmatpush2.msra.mxu0 0.0
        %1657 = vmatprep.subr.mxu0 0.0
        %1658 = vmatpush2.msra.mxu0 0.0
        %1659 = vmatprep.mubr.f32.mxu0 0.0
        %1660 = vmatmul.mubr.f32.gmra.mxu0 %v1593
        %v1661 = vpop.f32.mrf.mxu0
        %v1662 = vadd.f32 %v1589, %v1661
        %v1663 = vpop.f32.mrf.mxu0
        %1664 = vdwg.mxu0
        %v1665 = vadd.f32 %v1662, %v397
        %v1666 = vxor.u32 %v1665, 2147483648
        %v1667 = vmul.f32 %v1666, 1.442695
        %v1668 = vpow.pop %v1667
        %v1669 = vadd.f32 %v1668, 1.0
        %v1670 = vrcp.pop %v1669
        %v1671 = vmul.f32 1.0, %v1670
        %1672 = vmatprep.subr.mxu0 0.0
        %1673 = vmatpush1.msra.mxu0 0.0
        %1674 = vmatprep.subr.mxu0 0.0
        %1675 = vmatpush1.msra.mxu0 0.0
        %1676 = vmatprep.subr.mxu0 0.0
        %1677 = vmatpush1.msra.mxu0 0.0
        %1678 = vmatprep.subr.mxu0 0.0
        %1679 = vmatpush1.msra.mxu0 0.0
        %1680 = vmatprep.subr.mxu0 0.0
        %1681 = vmatpush1.msra.mxu0 0.0
        %1682 = vmatprep.subr.mxu0 0.0
        %1683 = vmatpush1.msra.mxu0 0.0
        %1684 = vmatprep.subr.mxu0 0.0
        %1685 = vmatpush1.msra.mxu0 0.0
        %1686 = vmatprep.subr.mxu0 0.0
        %1687 = vmatpush1.msra.mxu0 0.0
        %1688 = vmatprep.subr.mxu0 0.0
        %1689 = vmatpush1.msra.mxu0 0.0
        %1690 = vmatprep.subr.mxu0 0.0
        %1691 = vmatpush1.msra.mxu0 0.0
        %1692 = vmatprep.subr.mxu0 0.0
        %1693 = vmatpush1.msra.mxu0 0.0
        %1694 = vmatprep.subr.mxu0 0.0
        %1695 = vmatpush1.msra.mxu0 0.0
        %1696 = vmatprep.subr.mxu0 0.0
        %1697 = vmatpush1.msra.mxu0 %v334
        %1698 = vmatprep.subr.mxu0 0.0
        %1699 = vmatpush1.msra.mxu0 %v333
        %1700 = vmatprep.subr.mxu0 0.0
        %1701 = vmatpush1.msra.mxu0 %v332
        %1702 = vmatprep.subr.mxu0 0.0
        %1703 = vmatpush1.msra.mxu0 %v331
        %1704 = vmatprep.subr.mxu0 0.0
        %1705 = vmatpush2.msra.mxu0 0.0
        %1706 = vmatprep.subr.mxu0 0.0
        %1707 = vmatpush2.msra.mxu0 0.0
        %1708 = vmatprep.subr.mxu0 0.0
        %1709 = vmatpush2.msra.mxu0 0.0
        %1710 = vmatprep.subr.mxu0 0.0
        %1711 = vmatpush2.msra.mxu0 0.0
        %1712 = vmatprep.subr.mxu0 0.0
        %1713 = vmatpush2.msra.mxu0 0.0
        %1714 = vmatprep.subr.mxu0 0.0
        %1715 = vmatpush2.msra.mxu0 0.0
        %1716 = vmatprep.subr.mxu0 0.0
        %1717 = vmatpush2.msra.mxu0 0.0
        %1718 = vmatprep.subr.mxu0 0.0
        %1719 = vmatpush2.msra.mxu0 0.0
        %1720 = vmatprep.subr.mxu0 0.0
        %1721 = vmatpush2.msra.mxu0 0.0
        %1722 = vmatprep.subr.mxu0 0.0
        %1723 = vmatpush2.msra.mxu0 0.0
        %1724 = vmatprep.subr.mxu0 0.0
        %1725 = vmatpush2.msra.mxu0 0.0
        %1726 = vmatprep.subr.mxu0 0.0
        %1727 = vmatpush2.msra.mxu0 0.0
        %1728 = vmatprep.subr.mxu0 0.0
        %1729 = vmatpush2.msra.mxu0 0.0
        %1730 = vmatprep.subr.mxu0 0.0
        %1731 = vmatpush2.msra.mxu0 0.0
        %1732 = vmatprep.subr.mxu0 0.0
        %1733 = vmatpush2.msra.mxu0 0.0
        %1734 = vmatprep.subr.mxu0 0.0
        %1735 = vmatpush2.msra.mxu0 0.0
        %1736 = vmatprep.mubr.f32.mxu0 0.0
        %1737 = vmatmul.mubr.f32.gmra.mxu0 %v1520
        %v1738 = vpop.f32.mrf.mxu0
        %v1739 = vadd.f32 0.0, %v1738
        %v1740 = vpop.f32.mrf.mxu0
        %1741 = vdwg.mxu0
        %1742 = vmatprep.subr.mxu0 0.0
        %1743 = vmatpush1.msra.mxu0 0.0
        %1744 = vmatprep.subr.mxu0 0.0
        %1745 = vmatpush1.msra.mxu0 0.0
        %1746 = vmatprep.subr.mxu0 0.0
        %1747 = vmatpush1.msra.mxu0 0.0
        %1748 = vmatprep.subr.mxu0 0.0
        %1749 = vmatpush1.msra.mxu0 0.0
        %1750 = vmatprep.subr.mxu0 0.0
        %1751 = vmatpush1.msra.mxu0 0.0
        %1752 = vmatprep.subr.mxu0 0.0
        %1753 = vmatpush1.msra.mxu0 0.0
        %1754 = vmatprep.subr.mxu0 0.0
        %1755 = vmatpush1.msra.mxu0 0.0
        %1756 = vmatprep.subr.mxu0 0.0
        %1757 = vmatpush1.msra.mxu0 0.0
        %1758 = vmatprep.subr.mxu0 0.0
        %1759 = vmatpush1.msra.mxu0 0.0
        %1760 = vmatprep.subr.mxu0 0.0
        %1761 = vmatpush1.msra.mxu0 0.0
        %1762 = vmatprep.subr.mxu0 0.0
        %1763 = vmatpush1.msra.mxu0 0.0
        %1764 = vmatprep.subr.mxu0 0.0
        %1765 = vmatpush1.msra.mxu0 0.0
        %1766 = vmatprep.subr.mxu0 0.0
        %1767 = vmatpush1.msra.mxu0 %v319
        %1768 = vmatprep.subr.mxu0 0.0
        %1769 = vmatpush1.msra.mxu0 %v318
        %1770 = vmatprep.subr.mxu0 0.0
        %1771 = vmatpush1.msra.mxu0 %v317
        %1772 = vmatprep.subr.mxu0 0.0
        %1773 = vmatpush1.msra.mxu0 %v316
        %1774 = vmatprep.subr.mxu0 0.0
        %1775 = vmatpush2.msra.mxu0 0.0
        %1776 = vmatprep.subr.mxu0 0.0
        %1777 = vmatpush2.msra.mxu0 0.0
        %1778 = vmatprep.subr.mxu0 0.0
        %1779 = vmatpush2.msra.mxu0 0.0
        %1780 = vmatprep.subr.mxu0 0.0
        %1781 = vmatpush2.msra.mxu0 0.0
        %1782 = vmatprep.subr.mxu0 0.0
        %1783 = vmatpush2.msra.mxu0 0.0
        %1784 = vmatprep.subr.mxu0 0.0
        %1785 = vmatpush2.msra.mxu0 0.0
        %1786 = vmatprep.subr.mxu0 0.0
        %1787 = vmatpush2.msra.mxu0 0.0
        %1788 = vmatprep.subr.mxu0 0.0
        %1789 = vmatpush2.msra.mxu0 0.0
        %1790 = vmatprep.subr.mxu0 0.0
        %1791 = vmatpush2.msra.mxu0 0.0
        %1792 = vmatprep.subr.mxu0 0.0
        %1793 = vmatpush2.msra.mxu0 0.0
        %1794 = vmatprep.subr.mxu0 0.0
        %1795 = vmatpush2.msra.mxu0 0.0
        %1796 = vmatprep.subr.mxu0 0.0
        %1797 = vmatpush2.msra.mxu0 0.0
        %1798 = vmatprep.subr.mxu0 0.0
        %1799 = vmatpush2.msra.mxu0 0.0
        %1800 = vmatprep.subr.mxu0 0.0
        %1801 = vmatpush2.msra.mxu0 0.0
        %1802 = vmatprep.subr.mxu0 0.0
        %1803 = vmatpush2.msra.mxu0 0.0
        %1804 = vmatprep.subr.mxu0 0.0
        %1805 = vmatpush2.msra.mxu0 0.0
        %1806 = vmatprep.mubr.f32.mxu0 0.0
        %1807 = vmatmul.mubr.f32.gmra.mxu0 %v1593
        %v1808 = vpop.f32.mrf.mxu0
        %v1809 = vadd.f32 %v1739, %v1808
        %v1810 = vpop.f32.mrf.mxu0
        %1811 = vdwg.mxu0
        %v1812 = vadd.f32 %v1809, %v401
        %v1813 = vxor.u32 %v1812, 2147483648
        %v1814 = vmul.f32 %v1813, 1.442695
        %v1815 = vpow.pop %v1814
        %v1816 = vadd.f32 %v1815, 1.0
        %v1817 = vrcp.pop %v1816
        %v1818 = vmul.f32 1.0, %v1817
        %1819 = vmatprep.subr.mxu0 0.0
        %1820 = vmatpush1.msra.mxu0 0.0
        %1821 = vmatprep.subr.mxu0 0.0
        %1822 = vmatpush1.msra.mxu0 0.0
        %1823 = vmatprep.subr.mxu0 0.0
        %1824 = vmatpush1.msra.mxu0 0.0
        %1825 = vmatprep.subr.mxu0 0.0
        %1826 = vmatpush1.msra.mxu0 0.0
        %1827 = vmatprep.subr.mxu0 0.0
        %1828 = vmatpush1.msra.mxu0 0.0
        %1829 = vmatprep.subr.mxu0 0.0
        %1830 = vmatpush1.msra.mxu0 0.0
        %1831 = vmatprep.subr.mxu0 0.0
        %1832 = vmatpush1.msra.mxu0 0.0
        %1833 = vmatprep.subr.mxu0 0.0
        %1834 = vmatpush1.msra.mxu0 0.0
        %1835 = vmatprep.subr.mxu0 0.0
        %1836 = vmatpush1.msra.mxu0 0.0
        %1837 = vmatprep.subr.mxu0 0.0
        %1838 = vmatpush1.msra.mxu0 0.0
        %1839 = vmatprep.subr.mxu0 0.0
        %1840 = vmatpush1.msra.mxu0 0.0
        %1841 = vmatprep.subr.mxu0 0.0
        %1842 = vmatpush1.msra.mxu0 0.0
        %1843 = vmatprep.subr.mxu0 0.0
        %1844 = vmatpush1.msra.mxu0 %v339
        %1845 = vmatprep.subr.mxu0 0.0
        %1846 = vmatpush1.msra.mxu0 %v338
        %1847 = vmatprep.subr.mxu0 0.0
        %1848 = vmatpush1.msra.mxu0 %v337
        %1849 = vmatprep.subr.mxu0 0.0
        %1850 = vmatpush1.msra.mxu0 %v336
        %1851 = vmatprep.subr.mxu0 0.0
        %1852 = vmatpush2.msra.mxu0 0.0
        %1853 = vmatprep.subr.mxu0 0.0
        %1854 = vmatpush2.msra.mxu0 0.0
        %1855 = vmatprep.subr.mxu0 0.0
        %1856 = vmatpush2.msra.mxu0 0.0
        %1857 = vmatprep.subr.mxu0 0.0
        %1858 = vmatpush2.msra.mxu0 0.0
        %1859 = vmatprep.subr.mxu0 0.0
        %1860 = vmatpush2.msra.mxu0 0.0
        %1861 = vmatprep.subr.mxu0 0.0
        %1862 = vmatpush2.msra.mxu0 0.0
        %1863 = vmatprep.subr.mxu0 0.0
        %1864 = vmatpush2.msra.mxu0 0.0
        %1865 = vmatprep.subr.mxu0 0.0
        %1866 = vmatpush2.msra.mxu0 0.0
        %1867 = vmatprep.subr.mxu0 0.0
        %1868 = vmatpush2.msra.mxu0 0.0
        %1869 = vmatprep.subr.mxu0 0.0
        %1870 = vmatpush2.msra.mxu0 0.0
        %1871 = vmatprep.subr.mxu0 0.0
        %1872 = vmatpush2.msra.mxu0 0.0
        %1873 = vmatprep.subr.mxu0 0.0
        %1874 = vmatpush2.msra.mxu0 0.0
        %1875 = vmatprep.subr.mxu0 0.0
        %1876 = vmatpush2.msra.mxu0 0.0
        %1877 = vmatprep.subr.mxu0 0.0
        %1878 = vmatpush2.msra.mxu0 0.0
        %1879 = vmatprep.subr.mxu0 0.0
        %1880 = vmatpush2.msra.mxu0 0.0
        %1881 = vmatprep.subr.mxu0 0.0
        %1882 = vmatpush2.msra.mxu0 0.0
        %1883 = vmatprep.mubr.f32.mxu0 0.0
        %1884 = vmatmul.mubr.f32.gmra.mxu0 %v1520
        %v1885 = vpop.f32.mrf.mxu0
        %v1886 = vadd.f32 %v409, %v1885
        %v1887 = vpop.f32.mrf.mxu0
        %1888 = vdwg.mxu0
        %1889 = vmatprep.subr.mxu0 0.0
        %1890 = vmatpush1.msra.mxu0 0.0
        %1891 = vmatprep.subr.mxu0 0.0
        %1892 = vmatpush1.msra.mxu0 0.0
        %1893 = vmatprep.subr.mxu0 0.0
        %1894 = vmatpush1.msra.mxu0 0.0
        %1895 = vmatprep.subr.mxu0 0.0
        %1896 = vmatpush1.msra.mxu0 0.0
        %1897 = vmatprep.subr.mxu0 0.0
        %1898 = vmatpush1.msra.mxu0 0.0
        %1899 = vmatprep.subr.mxu0 0.0
        %1900 = vmatpush1.msra.mxu0 0.0
        %1901 = vmatprep.subr.mxu0 0.0
        %1902 = vmatpush1.msra.mxu0 0.0
        %1903 = vmatprep.subr.mxu0 0.0
        %1904 = vmatpush1.msra.mxu0 0.0
        %1905 = vmatprep.subr.mxu0 0.0
        %1906 = vmatpush1.msra.mxu0 0.0
        %1907 = vmatprep.subr.mxu0 0.0
        %1908 = vmatpush1.msra.mxu0 0.0
        %1909 = vmatprep.subr.mxu0 0.0
        %1910 = vmatpush1.msra.mxu0 0.0
        %1911 = vmatprep.subr.mxu0 0.0
        %1912 = vmatpush1.msra.mxu0 0.0
        %1913 = vmatprep.subr.mxu0 0.0
        %1914 = vmatpush1.msra.mxu0 %v324
        %1915 = vmatprep.subr.mxu0 0.0
        %1916 = vmatpush1.msra.mxu0 %v323
        %1917 = vmatprep.subr.mxu0 0.0
        %1918 = vmatpush1.msra.mxu0 %v322
        %1919 = vmatprep.subr.mxu0 0.0
        %1920 = vmatpush1.msra.mxu0 %v321
        %1921 = vmatprep.subr.mxu0 0.0
        %1922 = vmatpush2.msra.mxu0 0.0
        %1923 = vmatprep.subr.mxu0 0.0
        %1924 = vmatpush2.msra.mxu0 0.0
        %1925 = vmatprep.subr.mxu0 0.0
        %1926 = vmatpush2.msra.mxu0 0.0
        %1927 = vmatprep.subr.mxu0 0.0
        %1928 = vmatpush2.msra.mxu0 0.0
        %1929 = vmatprep.subr.mxu0 0.0
        %1930 = vmatpush2.msra.mxu0 0.0
        %1931 = vmatprep.subr.mxu0 0.0
        %1932 = vmatpush2.msra.mxu0 0.0
        %1933 = vmatprep.subr.mxu0 0.0
        %1934 = vmatpush2.msra.mxu0 0.0
        %1935 = vmatprep.subr.mxu0 0.0
        %1936 = vmatpush2.msra.mxu0 0.0
        %1937 = vmatprep.subr.mxu0 0.0
        %1938 = vmatpush2.msra.mxu0 0.0
        %1939 = vmatprep.subr.mxu0 0.0
        %1940 = vmatpush2.msra.mxu0 0.0
        %1941 = vmatprep.subr.mxu0 0.0
        %1942 = vmatpush2.msra.mxu0 0.0
        %1943 = vmatprep.subr.mxu0 0.0
        %1944 = vmatpush2.msra.mxu0 0.0
        %1945 = vmatprep.subr.mxu0 0.0
        %1946 = vmatpush2.msra.mxu0 0.0
        %1947 = vmatprep.subr.mxu0 0.0
        %1948 = vmatpush2.msra.mxu0 0.0
        %1949 = vmatprep.subr.mxu0 0.0
        %1950 = vmatpush2.msra.mxu0 0.0
        %1951 = vmatprep.subr.mxu0 0.0
        %1952 = vmatpush2.msra.mxu0 0.0
        %1953 = vmatprep.mubr.f32.mxu0 0.0
        %1954 = vmatmul.mubr.f32.gmra.mxu0 %v1593
        %v1955 = vpop.f32.mrf.mxu0
        %v1956 = vadd.f32 %v405, %v1955
        %v1957 = vpop.f32.mrf.mxu0
        %1958 = vdwg.mxu0
        %v1959 = vmul.f32 %v1671, %v1886
        %v1960 = vadd.f32 %v1956, %v1959
        %v1961 = vtanh.pop %v1960
        %v1962 = vsub.f32 1.0, %v1818
        %v1963 = vmul.f32 %v1962, %v1961
        %v1964 = vmul.f32 %v1818, %v1033
        %v1965 = vadd.f32 %v1963, %v1964
        %v1966 = vsel %vm437, %v1965, 0.0
        %1967 = vadd.xlane.f32.xlu0 %v1966
        %v1968 = vpop.xlane.xlu0 %1967
        %v1969 = vmul.f32 %v1968, %v486
        %v1970 = vsub.f32 %v1965, %v1969
        %v1971 = vmul.f32 %v1970, %v1970
        %v1972 = vsel %vm437, %v1971, 0.0
        %1973 = vadd.xlane.f32.xlu0 %v1972
        %v1974 = vpop.xlane.xlu0 %1973
        %v1975 = vmul.f32 %v1974, %v486
        %v1976 = vadd.f32 %v1975, 1e-05
        %v1977 = vrsqrt.pop %v1976
        %v1978 = vmul.f32 %v1970, %v1977
        %v1979 = vmul.f32 %v1978, %v385
        %v1980 = vadd.f32 %v1979, %v389
        %v1982 = vsel %vm437, %v1980, 0
        %1984 = vmatprep.subr.mxu0 0.0
        %1985 = vmatpush1.msra.mxu0 0.0
        %1986 = vmatprep.subr.mxu0 0.0
        %1987 = vmatpush1.msra.mxu0 0.0
        %1988 = vmatprep.subr.mxu0 0.0
        %1989 = vmatpush1.msra.mxu0 0.0
        %1990 = vmatprep.subr.mxu0 0.0
        %1991 = vmatpush1.msra.mxu0 0.0
        %1992 = vmatprep.subr.mxu0 0.0
        %1993 = vmatpush1.msra.mxu0 0.0
        %1994 = vmatprep.subr.mxu0 0.0
        %1995 = vmatpush1.msra.mxu0 0.0
        %1996 = vmatprep.subr.mxu0 0.0
        %1997 = vmatpush1.msra.mxu0 0.0
        %1998 = vmatprep.subr.mxu0 0.0
        %1999 = vmatpush1.msra.mxu0 0.0
        %2000 = vmatprep.subr.mxu0 0.0
        %2001 = vmatpush1.msra.mxu0 0.0
        %2002 = vmatprep.subr.mxu0 0.0
        %2003 = vmatpush1.msra.mxu0 0.0
        %2004 = vmatprep.subr.mxu0 0.0
        %2005 = vmatpush1.msra.mxu0 0.0
        %2006 = vmatprep.subr.mxu0 0.0
        %2007 = vmatpush1.msra.mxu0 0.0
        %2008 = vmatprep.subr.mxu0 0.0
        %2009 = vmatpush1.msra.mxu0 %v357
        %2010 = vmatprep.subr.mxu0 0.0
        %2011 = vmatpush1.msra.mxu0 %v356
        %2012 = vmatprep.subr.mxu0 0.0
        %2013 = vmatpush1.msra.mxu0 %v355
        %2014 = vmatprep.subr.mxu0 0.0
        %2015 = vmatpush1.msra.mxu0 %v354
        %2016 = vmatprep.subr.mxu0 0.0
        %2017 = vmatpush2.msra.mxu0 0.0
        %2018 = vmatprep.subr.mxu0 0.0
        %2019 = vmatpush2.msra.mxu0 0.0
        %2020 = vmatprep.subr.mxu0 0.0
        %2021 = vmatpush2.msra.mxu0 0.0
        %2022 = vmatprep.subr.mxu0 0.0
        %2023 = vmatpush2.msra.mxu0 0.0
        %2024 = vmatprep.subr.mxu0 0.0
        %2025 = vmatpush2.msra.mxu0 0.0
        %2026 = vmatprep.subr.mxu0 0.0
        %2027 = vmatpush2.msra.mxu0 0.0
        %2028 = vmatprep.subr.mxu0 0.0
        %2029 = vmatpush2.msra.mxu0 0.0
        %2030 = vmatprep.subr.mxu0 0.0
        %2031 = vmatpush2.msra.mxu0 0.0
        %2032 = vmatprep.subr.mxu0 0.0
        %2033 = vmatpush2.msra.mxu0 0.0
        %2034 = vmatprep.subr.mxu0 0.0
        %2035 = vmatpush2.msra.mxu0 0.0
        %2036 = vmatprep.subr.mxu0 0.0
        %2037 = vmatpush2.msra.mxu0 0.0
        %2038 = vmatprep.subr.mxu0 0.0
        %2039 = vmatpush2.msra.mxu0 0.0
        %2040 = vmatprep.subr.mxu0 0.0
        %2041 = vmatpush2.msra.mxu0 0.0
        %2042 = vmatprep.subr.mxu0 0.0
        %2043 = vmatpush2.msra.mxu0 0.0
        %2044 = vmatprep.subr.mxu0 0.0
        %2045 = vmatpush2.msra.mxu0 0.0
        %2046 = vmatprep.subr.mxu0 0.0
        %2047 = vmatpush2.msra.mxu0 0.0
        %2048 = vmatprep.mubr.f32.mxu0 0.0
        %2049 = vmatmul.mubr.f32.gmra.mxu0 %v1982
        %v2050 = vpop.f32.mrf.mxu0
        %v2051 = vadd.f32 %v419, %v2050
        %v2052 = vpop.f32.mrf.mxu0
        %2053 = vdwg.mxu0
        %v2054 = vmax.f32 %v2051, 0.0
        %2055 = vmatprep.subr.mxu0 0.0
        %2056 = vmatpush1.msra.mxu0 %v373
        %2057 = vmatprep.subr.mxu0 0.0
        %2058 = vmatpush1.msra.mxu0 %v372
        %2059 = vmatprep.subr.mxu0 0.0
        %2060 = vmatpush1.msra.mxu0 %v371
        %2061 = vmatprep.subr.mxu0 0.0
        %2062 = vmatpush1.msra.mxu0 %v370
        %2063 = vmatprep.subr.mxu0 0.0
        %2064 = vmatpush1.msra.mxu0 %v369
        %2065 = vmatprep.subr.mxu0 0.0
        %2066 = vmatpush1.msra.mxu0 %v368
        %2067 = vmatprep.subr.mxu0 0.0
        %2068 = vmatpush1.msra.mxu0 %v367
        %2069 = vmatprep.subr.mxu0 0.0
        %2070 = vmatpush1.msra.mxu0 %v366
        %2071 = vmatprep.subr.mxu0 0.0
        %2072 = vmatpush1.msra.mxu0 %v365
        %2073 = vmatprep.subr.mxu0 0.0
        %2074 = vmatpush1.msra.mxu0 %v364
        %2075 = vmatprep.subr.mxu0 0.0
        %2076 = vmatpush1.msra.mxu0 %v363
        %2077 = vmatprep.subr.mxu0 0.0
        %2078 = vmatpush1.msra.mxu0 %v362
        %2079 = vmatprep.subr.mxu0 0.0
        %2080 = vmatpush1.msra.mxu0 %v361
        %2081 = vmatprep.subr.mxu0 0.0
        %2082 = vmatpush1.msra.mxu0 %v360
        %2083 = vmatprep.subr.mxu0 0.0
        %2084 = vmatpush1.msra.mxu0 %v359
        %2085 = vmatprep.subr.mxu0 0.0
        %2086 = vmatpush1.msra.mxu0 %v358
        %2087 = vmatprep.subr.mxu0 0.0
        %2088 = vmatpush2.msra.mxu0 0.0
        %2089 = vmatprep.subr.mxu0 0.0
        %2090 = vmatpush2.msra.mxu0 0.0
        %2091 = vmatprep.subr.mxu0 0.0
        %2092 = vmatpush2.msra.mxu0 0.0
        %2093 = vmatprep.subr.mxu0 0.0
        %2094 = vmatpush2.msra.mxu0 0.0
        %2095 = vmatprep.subr.mxu0 0.0
        %2096 = vmatpush2.msra.mxu0 0.0
        %2097 = vmatprep.subr.mxu0 0.0
        %2098 = vmatpush2.msra.mxu0 0.0
        %2099 = vmatprep.subr.mxu0 0.0
        %2100 = vmatpush2.msra.mxu0 0.0
        %2101 = vmatprep.subr.mxu0 0.0
        %2102 = vmatpush2.msra.mxu0 0.0
        %2103 = vmatprep.subr.mxu0 0.0
        %2104 = vmatpush2.msra.mxu0 0.0
        %2105 = vmatprep.subr.mxu0 0.0
        %2106 = vmatpush2.msra.mxu0 0.0
        %2107 = vmatprep.subr.mxu0 0.0
        %2108 = vmatpush2.msra.mxu0 0.0
        %2109 = vmatprep.subr.mxu0 0.0
        %2110 = vmatpush2.msra.mxu0 0.0
        %2111 = vmatprep.subr.mxu0 0.0
        %2112 = vmatpush2.msra.mxu0 0.0
        %2113 = vmatprep.subr.mxu0 0.0
        %2114 = vmatpush2.msra.mxu0 0.0
        %2115 = vmatprep.subr.mxu0 0.0
        %2116 = vmatpush2.msra.mxu0 0.0
        %2117 = vmatprep.subr.mxu0 0.0
        %2118 = vmatpush2.msra.mxu0 0.0
        %2119 = vmatprep.mubr.f32.mxu0 0.0
        %2120 = vmatmul.mubr.f32.gmra.mxu0 %v2054
        %v2121 = vpop.f32.mrf.mxu0
        %v2122 = vadd.f32 0.0, %v2121
        %v2123 = vpop.f32.mrf.mxu0
        %2124 = vdwg.mxu0
        %v2125 = vadd.f32 %v1965, %v2122
        %v2126 = vadd.f32 %v2125, %v413
        %v2127 = vsel %vm437, %v2126, 0.0
        %2128 = vadd.xlane.f32.xlu0 %v2127
        %v2129 = vpop.xlane.xlu0 %2128
        %v2130 = vmul.f32 %v2129, %v486
        %v2131 = vsub.f32 %v2126, %v2130
        %v2132 = vmul.f32 %v2131, %v2131
        %v2133 = vsel %vm437, %v2132, 0.0
        %2134 = vadd.xlane.f32.xlu0 %v2133
        %v2135 = vpop.xlane.xlu0 %2134
        %v2136 = vmul.f32 %v2135, %v486
        %v2137 = vadd.f32 %v2136, 1e-05
        %v2138 = vrsqrt.pop %v2137
        %v2139 = vmul.f32 %v2131, %v2138
        %v2140 = vmul.f32 %v2139, %v377
        %v2141 = vadd.f32 %v2140, %v381
        %v2143 = vsel %vm437, %v2141, 0
        %2145 = vmatprep.subr.mxu0 0.0
        %2146 = vmatpush1.msra.mxu0 0.0
        %2147 = vmatprep.subr.mxu0 0.0
        %2148 = vmatpush1.msra.mxu0 0.0
        %2149 = vmatprep.subr.mxu0 0.0
        %2150 = vmatpush1.msra.mxu0 0.0
        %2151 = vmatprep.subr.mxu0 0.0
        %2152 = vmatpush1.msra.mxu0 0.0
        %2153 = vmatprep.subr.mxu0 0.0
        %2154 = vmatpush1.msra.mxu0 0.0
        %2155 = vmatprep.subr.mxu0 0.0
        %2156 = vmatpush1.msra.mxu0 0.0
        %2157 = vmatprep.subr.mxu0 0.0
        %2158 = vmatpush1.msra.mxu0 0.0
        %2159 = vmatprep.subr.mxu0 0.0
        %2160 = vmatpush1.msra.mxu0 0.0
        %2161 = vmatprep.subr.mxu0 0.0
        %2162 = vmatpush1.msra.mxu0 0.0
        %2163 = vmatprep.subr.mxu0 0.0
        %2164 = vmatpush1.msra.mxu0 0.0
        %2165 = vmatprep.subr.mxu0 0.0
        %2166 = vmatpush1.msra.mxu0 0.0
        %2167 = vmatprep.subr.mxu0 0.0
        %2168 = vmatpush1.msra.mxu0 0.0
        %2169 = vmatprep.subr.mxu0 0.0
        %2170 = vmatpush1.msra.mxu0 %v309
        %2171 = vmatprep.subr.mxu0 0.0
        %2172 = vmatpush1.msra.mxu0 %v308
        %2173 = vmatprep.subr.mxu0 0.0
        %2174 = vmatpush1.msra.mxu0 %v307
        %2175 = vmatprep.subr.mxu0 0.0
        %2176 = vmatpush1.msra.mxu0 %v306
        %2177 = vmatprep.subr.mxu0 0.0
        %2178 = vmatpush2.msra.mxu0 0.0
        %2179 = vmatprep.subr.mxu0 0.0
        %2180 = vmatpush2.msra.mxu0 0.0
        %2181 = vmatprep.subr.mxu0 0.0
        %2182 = vmatpush2.msra.mxu0 0.0
        %2183 = vmatprep.subr.mxu0 0.0
        %2184 = vmatpush2.msra.mxu0 0.0
        %2185 = vmatprep.subr.mxu0 0.0
        %2186 = vmatpush2.msra.mxu0 0.0
        %2187 = vmatprep.subr.mxu0 0.0
        %2188 = vmatpush2.msra.mxu0 0.0
        %2189 = vmatprep.subr.mxu0 0.0
        %2190 = vmatpush2.msra.mxu0 0.0
        %2191 = vmatprep.subr.mxu0 0.0
        %2192 = vmatpush2.msra.mxu0 0.0
        %2193 = vmatprep.subr.mxu0 0.0
        %2194 = vmatpush2.msra.mxu0 0.0
        %2195 = vmatprep.subr.mxu0 0.0
        %2196 = vmatpush2.msra.mxu0 0.0
        %2197 = vmatprep.subr.mxu0 0.0
        %2198 = vmatpush2.msra.mxu0 0.0
        %2199 = vmatprep.subr.mxu0 0.0
        %2200 = vmatpush2.msra.mxu0 0.0
        %2201 = vmatprep.subr.mxu0 0.0
        %2202 = vmatpush2.msra.mxu0 0.0
        %2203 = vmatprep.subr.mxu0 0.0
        %2204 = vmatpush2.msra.mxu0 0.0
        %2205 = vmatprep.subr.mxu0 0.0
        %2206 = vmatpush2.msra.mxu0 0.0
        %2207 = vmatprep.subr.mxu0 0.0
        %2208 = vmatpush2.msra.mxu0 0.0
        %2209 = vmatprep.mubr.f32.mxu0 0.0
        %2210 = vmatmul.mubr.f32.gmra.mxu0 %v2143
        %v2211 = vpop.f32.mrf.mxu0
        %v2212 = vadd.f32 %v393, %v2211
        %v2213 = vpop.f32.mrf.mxu0
        %2214 = vdwg.mxu0
        %v2216 = vsel %vm437, %v2212, 0
        %2218 = vmatprep.subr.mxu0 0.0
        %2219 = vmatpush1.xpose.msra.mxu0 0.0
        %2220 = vmatprep.subr.mxu0 0.0
        %2221 = vmatpush1.xpose.msra.mxu0 0.0
        %2222 = vmatprep.subr.mxu0 0.0
        %2223 = vmatpush1.xpose.msra.mxu0 0.0
        %2224 = vmatprep.subr.mxu0 0.0
        %2225 = vmatpush1.xpose.msra.mxu0 0.0
        %2226 = vmatprep.subr.mxu0 0.0
        %2227 = vmatpush1.xpose.msra.mxu0 0.0
        %2228 = vmatprep.subr.mxu0 0.0
        %2229 = vmatpush1.xpose.msra.mxu0 0.0
        %2230 = vmatprep.subr.mxu0 0.0
        %2231 = vmatpush1.xpose.msra.mxu0 0.0
        %2232 = vmatprep.subr.mxu0 0.0
        %2233 = vmatpush1.xpose.msra.mxu0 0.0
        %2234 = vmatprep.subr.mxu0 0.0
        %2235 = vmatpush1.xpose.msra.mxu0 %v1147
        %2236 = vmatprep.subr.mxu0 0.0
        %2237 = vmatpush1.xpose.msra.mxu0 %v1144
        %2238 = vmatprep.subr.mxu0 0.0
        %2239 = vmatpush1.xpose.msra.mxu0 %v1141
        %2240 = vmatprep.subr.mxu0 0.0
        %2241 = vmatpush1.xpose.msra.mxu0 %v1138
        %2242 = vmatprep.subr.mxu0 0.0
        %2243 = vmatpush1.xpose.msra.mxu0 %v1135
        %2244 = vmatprep.subr.mxu0 0.0
        %2245 = vmatpush1.xpose.msra.mxu0 %v1132
        %2246 = vmatprep.subr.mxu0 0.0
        %2247 = vmatpush1.xpose.msra.mxu0 %v1129
        %2248 = vmatprep.subr.mxu0 0.0
        %2249 = vmatpush1.xpose.msra.mxu0 %v1126
        %2250 = vmatprep.subr.mxu0 0.0
        %2251 = vmatpush2.xpose.msra.mxu0 0.0
        %2252 = vmatprep.subr.mxu0 0.0
        %2253 = vmatpush2.xpose.msra.mxu0 0.0
        %2254 = vmatprep.subr.mxu0 0.0
        %2255 = vmatpush2.xpose.msra.mxu0 0.0
        %2256 = vmatprep.subr.mxu0 0.0
        %2257 = vmatpush2.xpose.msra.mxu0 0.0
        %2258 = vmatprep.subr.mxu0 0.0
        %2259 = vmatpush2.xpose.msra.mxu0 0.0
        %2260 = vmatprep.subr.mxu0 0.0
        %2261 = vmatpush2.xpose.msra.mxu0 0.0
        %2262 = vmatprep.subr.mxu0 0.0
        %2263 = vmatpush2.xpose.msra.mxu0 0.0
        %2264 = vmatprep.subr.mxu0 0.0
        %2265 = vmatpush2.xpose.msra.mxu0 0.0
        %2266 = vmatprep.subr.mxu0 0.0
        %2267 = vmatpush2.xpose.msra.mxu0 0.0
        %2268 = vmatprep.subr.mxu0 0.0
        %2269 = vmatpush2.xpose.msra.mxu0 0.0
        %2270 = vmatprep.subr.mxu0 0.0
        %2271 = vmatpush2.xpose.msra.mxu0 0.0
        %2272 = vmatprep.subr.mxu0 0.0
        %2273 = vmatpush2.xpose.msra.mxu0 0.0
        %2274 = vmatprep.subr.mxu0 0.0
        %2275 = vmatpush2.xpose.msra.mxu0 0.0
        %2276 = vmatprep.subr.mxu0 0.0
        %2277 = vmatpush2.xpose.msra.mxu0 0.0
        %2278 = vmatprep.subr.mxu0 0.0
        %2279 = vmatpush2.xpose.msra.mxu0 0.0
        %2280 = vmatprep.subr.mxu0 0.0
        %2281 = vmatpush2.xpose.msra.mxu0 0.0
        %2282 = vmatprep.mubr.f32.mxu0 0.0
        %2283 = vmatmul.mubr.f32.gmra.mxu0 %v2216
        %v2284 = vpop.f32.mrf.mxu0
        %v2285 = vadd.f32 0.0, %v2284
        %v2286 = vpop.f32.mrf.mxu0
        %2287 = vdwg.mxu0
        %v2288 = vsel %vm1219, %v2285, -inf
        %v2289 = vrot.slane %v2288, 4
        %v2290 = vmax.f32 %v2288, %v2289
        %v2291 = vrot.slane %v2290, 2
        %v2292 = vmax.f32 %v2290, %v2291
        %v2293 = vrot.slane %v2292, 1
        %v2294 = vmax.f32 %v2292, %v2293
        %v2295 = vsub.f32 %v2285, %v2294
        %v2296 = vmul.f32 %v2295, 1.442695
        %v2297 = vpow.pop %v2296
        %v2298 = vsel %vm1219, %v2297, 0.0
        %v2299 = vrot.slane %v2298, 4
        %v2300 = vadd.f32 %v2298, %v2299
        %v2301 = vrot.slane %v2300, 2
        %v2302 = vadd.f32 %v2300, %v2301
        %v2303 = vrot.slane %v2302, 1
        %v2304 = vadd.f32 %v2302, %v2303
        %v2305 = vrcp.pop %v2304
        %v2306 = vmul.f32 %v2297, %v2305
        %v2307 = vadd.f32 %v2306, 1e-08
        %v2308 = vsel %vm1219, %v2307, 0.0
        %2309 = vadd.xlane.f32.xlu0 %v2308
        %v2310 = vpop.xlane.xlu0 %2309
        %v2311 = vrcp.pop %v2310
        %v2312 = vmul.f32 %v2307, %v2311
        %v2314 = vsel %vm1245, %v2312, 0
        %2316 = vmatprep.subr.mxu0 0.0
        %2317 = vmatpush1.msra.mxu0 0.0
        %2318 = vmatprep.subr.mxu0 0.0
        %2319 = vmatpush1.msra.mxu0 0.0
        %2320 = vmatprep.subr.mxu0 0.0
        %2321 = vmatpush1.msra.mxu0 0.0
        %2322 = vmatprep.subr.mxu0 0.0
        %2323 = vmatpush1.msra.mxu0 0.0
        %2324 = vmatprep.subr.mxu0 0.0
        %2325 = vmatpush1.msra.mxu0 0.0
        %2326 = vmatprep.subr.mxu0 0.0
        %2327 = vmatpush1.msra.mxu0 0.0
        %2328 = vmatprep.subr.mxu0 0.0
        %2329 = vmatpush1.msra.mxu0 0.0
        %2330 = vmatprep.subr.mxu0 0.0
        %2331 = vmatpush1.msra.mxu0 0.0
        %2332 = vmatprep.subr.mxu0 0.0
        %2333 = vmatpush1.msra.mxu0 %v990
        %2334 = vmatprep.subr.mxu0 0.0
        %2335 = vmatpush1.msra.mxu0 %v985
        %2336 = vmatprep.subr.mxu0 0.0
        %2337 = vmatpush1.msra.mxu0 %v980
        %2338 = vmatprep.subr.mxu0 0.0
        %2339 = vmatpush1.msra.mxu0 %v975
        %2340 = vmatprep.subr.mxu0 0.0
        %2341 = vmatpush1.msra.mxu0 %v970
        %2342 = vmatprep.subr.mxu0 0.0
        %2343 = vmatpush1.msra.mxu0 %v965
        %2344 = vmatprep.subr.mxu0 0.0
        %2345 = vmatpush1.msra.mxu0 %v960
        %2346 = vmatprep.subr.mxu0 0.0
        %2347 = vmatpush1.msra.mxu0 %v955
        %2348 = vmatprep.subr.mxu0 0.0
        %2349 = vmatpush2.msra.mxu0 0.0
        %2350 = vmatprep.subr.mxu0 0.0
        %2351 = vmatpush2.msra.mxu0 0.0
        %2352 = vmatprep.subr.mxu0 0.0
        %2353 = vmatpush2.msra.mxu0 0.0
        %2354 = vmatprep.subr.mxu0 0.0
        %2355 = vmatpush2.msra.mxu0 0.0
        %2356 = vmatprep.subr.mxu0 0.0
        %2357 = vmatpush2.msra.mxu0 0.0
        %2358 = vmatprep.subr.mxu0 0.0
        %2359 = vmatpush2.msra.mxu0 0.0
        %2360 = vmatprep.subr.mxu0 0.0
        %2361 = vmatpush2.msra.mxu0 0.0
        %2362 = vmatprep.subr.mxu0 0.0
        %2363 = vmatpush2.msra.mxu0 0.0
        %2364 = vmatprep.subr.mxu0 0.0
        %2365 = vmatpush2.msra.mxu0 0.0
        %2366 = vmatprep.subr.mxu0 0.0
        %2367 = vmatpush2.msra.mxu0 0.0
        %2368 = vmatprep.subr.mxu0 0.0
        %2369 = vmatpush2.msra.mxu0 0.0
        %2370 = vmatprep.subr.mxu0 0.0
        %2371 = vmatpush2.msra.mxu0 0.0
        %2372 = vmatprep.subr.mxu0 0.0
        %2373 = vmatpush2.msra.mxu0 0.0
        %2374 = vmatprep.subr.mxu0 0.0
        %2375 = vmatpush2.msra.mxu0 0.0
        %2376 = vmatprep.subr.mxu0 0.0
        %2377 = vmatpush2.msra.mxu0 0.0
        %2378 = vmatprep.subr.mxu0 0.0
        %2379 = vmatpush2.msra.mxu0 0.0
        %2380 = vmatprep.mubr.f32.mxu0 0.0
        %2381 = vmatmul.mubr.f32.gmra.mxu0 %v2314
        %v2382 = vpop.f32.mrf.mxu0
        %v2383 = vadd.f32 0.0, %v2382
        %v2384 = vpop.f32.mrf.mxu0
        %2385 = vdwg.mxu0
        %v2386 = vrot.slane %v2212, 4
        %v2387 = vsel %vm437, %v2386, 0
        %2389 = vmatprep.subr.mxu0 0.0
        %2390 = vmatpush1.xpose.msra.mxu0 0.0
        %2391 = vmatprep.subr.mxu0 0.0
        %2392 = vmatpush1.xpose.msra.mxu0 0.0
        %2393 = vmatprep.subr.mxu0 0.0
        %2394 = vmatpush1.xpose.msra.mxu0 0.0
        %2395 = vmatprep.subr.mxu0 0.0
        %2396 = vmatpush1.xpose.msra.mxu0 0.0
        %2397 = vmatprep.subr.mxu0 0.0
        %2398 = vmatpush1.xpose.msra.mxu0 0.0
        %2399 = vmatprep.subr.mxu0 0.0
        %2400 = vmatpush1.xpose.msra.mxu0 0.0
        %2401 = vmatprep.subr.mxu0 0.0
        %2402 = vmatpush1.xpose.msra.mxu0 0.0
        %2403 = vmatprep.subr.mxu0 0.0
        %2404 = vmatpush1.xpose.msra.mxu0 0.0
        %2405 = vmatprep.subr.mxu0 0.0
        %2406 = vmatpush1.xpose.msra.mxu0 %v1344
        %2407 = vmatprep.subr.mxu0 0.0
        %2408 = vmatpush1.xpose.msra.mxu0 %v1341
        %2409 = vmatprep.subr.mxu0 0.0
        %2410 = vmatpush1.xpose.msra.mxu0 %v1338
        %2411 = vmatprep.subr.mxu0 0.0
        %2412 = vmatpush1.xpose.msra.mxu0 %v1335
        %2413 = vmatprep.subr.mxu0 0.0
        %2414 = vmatpush1.xpose.msra.mxu0 %v1332
        %2415 = vmatprep.subr.mxu0 0.0
        %2416 = vmatpush1.xpose.msra.mxu0 %v1329
        %2417 = vmatprep.subr.mxu0 0.0
        %2418 = vmatpush1.xpose.msra.mxu0 %v1326
        %2419 = vmatprep.subr.mxu0 0.0
        %2420 = vmatpush1.xpose.msra.mxu0 %v1323
        %2421 = vmatprep.subr.mxu0 0.0
        %2422 = vmatpush2.xpose.msra.mxu0 0.0
        %2423 = vmatprep.subr.mxu0 0.0
        %2424 = vmatpush2.xpose.msra.mxu0 0.0
        %2425 = vmatprep.subr.mxu0 0.0
        %2426 = vmatpush2.xpose.msra.mxu0 0.0
        %2427 = vmatprep.subr.mxu0 0.0
        %2428 = vmatpush2.xpose.msra.mxu0 0.0
        %2429 = vmatprep.subr.mxu0 0.0
        %2430 = vmatpush2.xpose.msra.mxu0 0.0
        %2431 = vmatprep.subr.mxu0 0.0
        %2432 = vmatpush2.xpose.msra.mxu0 0.0
        %2433 = vmatprep.subr.mxu0 0.0
        %2434 = vmatpush2.xpose.msra.mxu0 0.0
        %2435 = vmatprep.subr.mxu0 0.0
        %2436 = vmatpush2.xpose.msra.mxu0 0.0
        %2437 = vmatprep.subr.mxu0 0.0
        %2438 = vmatpush2.xpose.msra.mxu0 0.0
        %2439 = vmatprep.subr.mxu0 0.0
        %2440 = vmatpush2.xpose.msra.mxu0 0.0
        %2441 = vmatprep.subr.mxu0 0.0
        %2442 = vmatpush2.xpose.msra.mxu0 0.0
        %2443 = vmatprep.subr.mxu0 0.0
        %2444 = vmatpush2.xpose.msra.mxu0 0.0
        %2445 = vmatprep.subr.mxu0 0.0
        %2446 = vmatpush2.xpose.msra.mxu0 0.0
        %2447 = vmatprep.subr.mxu0 0.0
        %2448 = vmatpush2.xpose.msra.mxu0 0.0
        %2449 = vmatprep.subr.mxu0 0.0
        %2450 = vmatpush2.xpose.msra.mxu0 0.0
        %2451 = vmatprep.subr.mxu0 0.0
        %2452 = vmatpush2.xpose.msra.mxu0 0.0
        %2453 = vmatprep.mubr.f32.mxu0 0.0
        %2454 = vmatmul.mubr.f32.gmra.mxu0 %v2387
        %v2455 = vpop.f32.mrf.mxu0
        %v2456 = vadd.f32 0.0, %v2455
        %v2457 = vpop.f32.mrf.mxu0
        %2458 = vdwg.mxu0
        %v2459 = vsel %vm1219, %v2456, -inf
        %v2460 = vrot.slane %v2459, 4
        %v2461 = vmax.f32 %v2459, %v2460
        %v2462 = vrot.slane %v2461, 2
        %v2463 = vmax.f32 %v2461, %v2462
        %v2464 = vrot.slane %v2463, 1
        %v2465 = vmax.f32 %v2463, %v2464
        %v2466 = vsub.f32 %v2456, %v2465
        %v2467 = vmul.f32 %v2466, 1.442695
        %v2468 = vpow.pop %v2467
        %v2469 = vsel %vm1219, %v2468, 0.0
        %v2470 = vrot.slane %v2469, 4
        %v2471 = vadd.f32 %v2469, %v2470
        %v2472 = vrot.slane %v2471, 2
        %v2473 = vadd.f32 %v2471, %v2472
        %v2474 = vrot.slane %v2473, 1
        %v2475 = vadd.f32 %v2473, %v2474
        %v2476 = vrcp.pop %v2475
        %v2477 = vmul.f32 %v2468, %v2476
        %v2478 = vadd.f32 %v2477, 1e-08
        %v2479 = vsel %vm1219, %v2478, 0.0
        %2480 = vadd.xlane.f32.xlu0 %v2479
        %v2481 = vpop.xlane.xlu0 %2480
        %v2482 = vrcp.pop %v2481
        %v2483 = vmul.f32 %v2478, %v2482
        %v2485 = vsel %vm1245, %v2483, 0
        %2487 = vmatprep.subr.mxu0 0.0
        %2488 = vmatpush1.msra.mxu0 0.0
        %2489 = vmatprep.subr.mxu0 0.0
        %2490 = vmatpush1.msra.mxu0 0.0
        %2491 = vmatprep.subr.mxu0 0.0
        %2492 = vmatpush1.msra.mxu0 0.0
        %2493 = vmatprep.subr.mxu0 0.0
        %2494 = vmatpush1.msra.mxu0 0.0
        %2495 = vmatprep.subr.mxu0 0.0
        %2496 = vmatpush1.msra.mxu0 0.0
        %2497 = vmatprep.subr.mxu0 0.0
        %2498 = vmatpush1.msra.mxu0 0.0
        %2499 = vmatprep.subr.mxu0 0.0
        %2500 = vmatpush1.msra.mxu0 0.0
        %2501 = vmatprep.subr.mxu0 0.0
        %2502 = vmatpush1.msra.mxu0 0.0
        %2503 = vmatprep.subr.mxu0 0.0
        %2504 = vmatpush1.msra.mxu0 %v1030
        %2505 = vmatprep.subr.mxu0 0.0
        %2506 = vmatpush1.msra.mxu0 %v1025
        %2507 = vmatprep.subr.mxu0 0.0
        %2508 = vmatpush1.msra.mxu0 %v1020
        %2509 = vmatprep.subr.mxu0 0.0
        %2510 = vmatpush1.msra.mxu0 %v1015
        %2511 = vmatprep.subr.mxu0 0.0
        %2512 = vmatpush1.msra.mxu0 %v1010
        %2513 = vmatprep.subr.mxu0 0.0
        %2514 = vmatpush1.msra.mxu0 %v1005
        %2515 = vmatprep.subr.mxu0 0.0
        %2516 = vmatpush1.msra.mxu0 %v1000
        %2517 = vmatprep.subr.mxu0 0.0
        %2518 = vmatpush1.msra.mxu0 %v995
        %2519 = vmatprep.subr.mxu0 0.0
        %2520 = vmatpush2.msra.mxu0 0.0
        %2521 = vmatprep.subr.mxu0 0.0
        %2522 = vmatpush2.msra.mxu0 0.0
        %2523 = vmatprep.subr.mxu0 0.0
        %2524 = vmatpush2.msra.mxu0 0.0
        %2525 = vmatprep.subr.mxu0 0.0
        %2526 = vmatpush2.msra.mxu0 0.0
        %2527 = vmatprep.subr.mxu0 0.0
        %2528 = vmatpush2.msra.mxu0 0.0
        %2529 = vmatprep.subr.mxu0 0.0
        %2530 = vmatpush2.msra.mxu0 0.0
        %2531 = vmatprep.subr.mxu0 0.0
        %2532 = vmatpush2.msra.mxu0 0.0
        %2533 = vmatprep.subr.mxu0 0.0
        %2534 = vmatpush2.msra.mxu0 0.0
        %2535 = vmatprep.subr.mxu0 0.0
        %2536 = vmatpush2.msra.mxu0 0.0
        %2537 = vmatprep.subr.mxu0 0.0
        %2538 = vmatpush2.msra.mxu0 0.0
        %2539 = vmatprep.subr.mxu0 0.0
        %2540 = vmatpush2.msra.mxu0 0.0
        %2541 = vmatprep.subr.mxu0 0.0
        %2542 = vmatpush2.msra.mxu0 0.0
        %2543 = vmatprep.subr.mxu0 0.0
        %2544 = vmatpush2.msra.mxu0 0.0
        %2545 = vmatprep.subr.mxu0 0.0
        %2546 = vmatpush2.msra.mxu0 0.0
        %2547 = vmatprep.subr.mxu0 0.0
        %2548 = vmatpush2.msra.mxu0 0.0
        %2549 = vmatprep.subr.mxu0 0.0
        %2550 = vmatpush2.msra.mxu0 0.0
        %2551 = vmatprep.mubr.f32.mxu0 0.0
        %2552 = vmatmul.mubr.f32.gmra.mxu0 %v2485
        %v2553 = vpop.f32.mrf.mxu0
        %v2554 = vadd.f32 0.0, %v2553
        %v2555 = vpop.f32.mrf.mxu0
        %2556 = vdwg.mxu0
        %v2558 = vrot.slane %v2554, 4
        %v2560 = vsel %vm1517, %v2383, %v2558
        %v2562 = vsel %vm437, %v2126, 0
        %2564 = vmatprep.subr.mxu0 0.0
        %2565 = vmatpush1.msra.mxu0 0.0
        %2566 = vmatprep.subr.mxu0 0.0
        %2567 = vmatpush1.msra.mxu0 0.0
        %2568 = vmatprep.subr.mxu0 0.0
        %2569 = vmatpush1.msra.mxu0 0.0
        %2570 = vmatprep.subr.mxu0 0.0
        %2571 = vmatpush1.msra.mxu0 0.0
        %2572 = vmatprep.subr.mxu0 0.0
        %2573 = vmatpush1.msra.mxu0 0.0
        %2574 = vmatprep.subr.mxu0 0.0
        %2575 = vmatpush1.msra.mxu0 0.0
        %2576 = vmatprep.subr.mxu0 0.0
        %2577 = vmatpush1.msra.mxu0 0.0
        %2578 = vmatprep.subr.mxu0 0.0
        %2579 = vmatpush1.msra.mxu0 0.0
        %2580 = vmatprep.subr.mxu0 0.0
        %2581 = vmatpush1.msra.mxu0 0.0
        %2582 = vmatprep.subr.mxu0 0.0
        %2583 = vmatpush1.msra.mxu0 0.0
        %2584 = vmatprep.subr.mxu0 0.0
        %2585 = vmatpush1.msra.mxu0 0.0
        %2586 = vmatprep.subr.mxu0 0.0
        %2587 = vmatpush1.msra.mxu0 0.0
        %2588 = vmatprep.subr.mxu0 0.0
        %2589 = vmatpush1.msra.mxu0 %v329
        %2590 = vmatprep.subr.mxu0 0.0
        %2591 = vmatpush1.msra.mxu0 %v328
        %2592 = vmatprep.subr.mxu0 0.0
        %2593 = vmatpush1.msra.mxu0 %v327
        %2594 = vmatprep.subr.mxu0 0.0
        %2595 = vmatpush1.msra.mxu0 %v326
        %2596 = vmatprep.subr.mxu0 0.0
        %2597 = vmatpush2.msra.mxu0 0.0
        %2598 = vmatprep.subr.mxu0 0.0
        %2599 = vmatpush2.msra.mxu0 0.0
        %2600 = vmatprep.subr.mxu0 0.0
        %2601 = vmatpush2.msra.mxu0 0.0
        %2602 = vmatprep.subr.mxu0 0.0
        %2603 = vmatpush2.msra.mxu0 0.0
        %2604 = vmatprep.subr.mxu0 0.0
        %2605 = vmatpush2.msra.mxu0 0.0
        %2606 = vmatprep.subr.mxu0 0.0
        %2607 = vmatpush2.msra.mxu0 0.0
        %2608 = vmatprep.subr.mxu0 0.0
        %2609 = vmatpush2.msra.mxu0 0.0
        %2610 = vmatprep.subr.mxu0 0.0
        %2611 = vmatpush2.msra.mxu0 0.0
        %2612 = vmatprep.subr.mxu0 0.0
        %2613 = vmatpush2.msra.mxu0 0.0
        %2614 = vmatprep.subr.mxu0 0.0
        %2615 = vmatpush2.msra.mxu0 0.0
        %2616 = vmatprep.subr.mxu0 0.0
        %2617 = vmatpush2.msra.mxu0 0.0
        %2618 = vmatprep.subr.mxu0 0.0
        %2619 = vmatpush2.msra.mxu0 0.0
        %2620 = vmatprep.subr.mxu0 0.0
        %2621 = vmatpush2.msra.mxu0 0.0
        %2622 = vmatprep.subr.mxu0 0.0
        %2623 = vmatpush2.msra.mxu0 0.0
        %2624 = vmatprep.subr.mxu0 0.0
        %2625 = vmatpush2.msra.mxu0 0.0
        %2626 = vmatprep.subr.mxu0 0.0
        %2627 = vmatpush2.msra.mxu0 0.0
        %2628 = vmatprep.mubr.f32.mxu0 0.0
        %2629 = vmatmul.mubr.f32.gmra.mxu0 %v2562
        %v2630 = vpop.f32.mrf.mxu0
        %v2631 = vadd.f32 0.0, %v2630
        %v2632 = vpop.f32.mrf.mxu0
        %2633 = vdwg.mxu0
        %v2635 = vsel %vm437, %v2560, 0
        %2637 = vmatprep.subr.mxu0 0.0
        %2638 = vmatpush1.msra.mxu0 0.0
        %2639 = vmatprep.subr.mxu0 0.0
        %2640 = vmatpush1.msra.mxu0 0.0
        %2641 = vmatprep.subr.mxu0 0.0
        %2642 = vmatpush1.msra.mxu0 0.0
        %2643 = vmatprep.subr.mxu0 0.0
        %2644 = vmatpush1.msra.mxu0 0.0
        %2645 = vmatprep.subr.mxu0 0.0
        %2646 = vmatpush1.msra.mxu0 0.0
        %2647 = vmatprep.subr.mxu0 0.0
        %2648 = vmatpush1.msra.mxu0 0.0
        %2649 = vmatprep.subr.mxu0 0.0
        %2650 = vmatpush1.msra.mxu0 0.0
        %2651 = vmatprep.subr.mxu0 0.0
        %2652 = vmatpush1.msra.mxu0 0.0
        %2653 = vmatprep.subr.mxu0 0.0
        %2654 = vmatpush1.msra.mxu0 0.0
        %2655 = vmatprep.subr.mxu0 0.0
        %2656 = vmatpush1.msra.mxu0 0.0
        %2657 = vmatprep.subr.mxu0 0.0
        %2658 = vmatpush1.msra.mxu0 0.0
        %2659 = vmatprep.subr.mxu0 0.0
        %2660 = vmatpush1.msra.mxu0 0.0
        %2661 = vmatprep.subr.mxu0 0.0
        %2662 = vmatpush1.msra.mxu0 %v314
        %2663 = vmatprep.subr.mxu0 0.0
        %2664 = vmatpush1.msra.mxu0 %v313
        %2665 = vmatprep.subr.mxu0 0.0
        %2666 = vmatpush1.msra.mxu0 %v312
        %2667 = vmatprep.subr.mxu0 0.0
        %2668 = vmatpush1.msra.mxu0 %v311
        %2669 = vmatprep.subr.mxu0 0.0
        %2670 = vmatpush2.msra.mxu0 0.0
        %2671 = vmatprep.subr.mxu0 0.0
        %2672 = vmatpush2.msra.mxu0 0.0
        %2673 = vmatprep.subr.mxu0 0.0
        %2674 = vmatpush2.msra.mxu0 0.0
        %2675 = vmatprep.subr.mxu0 0.0
        %2676 = vmatpush2.msra.mxu0 0.0
        %2677 = vmatprep.subr.mxu0 0.0
        %2678 = vmatpush2.msra.mxu0 0.0
        %2679 = vmatprep.subr.mxu0 0.0
        %2680 = vmatpush2.msra.mxu0 0.0
        %2681 = vmatprep.subr.mxu0 0.0
        %2682 = vmatpush2.msra.mxu0 0.0
        %2683 = vmatprep.subr.mxu0 0.0
        %2684 = vmatpush2.msra.mxu0 0.0
        %2685 = vmatprep.subr.mxu0 0.0
        %2686 = vmatpush2.msra.mxu0 0.0
        %2687 = vmatprep.subr.mxu0 0.0
        %2688 = vmatpush2.msra.mxu0 0.0
        %2689 = vmatprep.subr.mxu0 0.0
        %2690 = vmatpush2.msra.mxu0 0.0
        %2691 = vmatprep.subr.mxu0 0.0
        %2692 = vmatpush2.msra.mxu0 0.0
        %2693 = vmatprep.subr.mxu0 0.0
        %2694 = vmatpush2.msra.mxu0 0.0
        %2695 = vmatprep.subr.mxu0 0.0
        %2696 = vmatpush2.msra.mxu0 0.0
        %2697 = vmatprep.subr.mxu0 0.0
        %2698 = vmatpush2.msra.mxu0 0.0
        %2699 = vmatprep.subr.mxu0 0.0
        %2700 = vmatpush2.msra.mxu0 0.0
        %2701 = vmatprep.mubr.f32.mxu0 0.0
        %2702 = vmatmul.mubr.f32.gmra.mxu0 %v2635
        %v2703 = vpop.f32.mrf.mxu0
        %v2704 = vadd.f32 %v2631, %v2703
        %v2705 = vpop.f32.mrf.mxu0
        %2706 = vdwg.mxu0
        %v2707 = vadd.f32 %v2704, %v397
        %v2708 = vxor.u32 %v2707, 2147483648
        %v2709 = vmul.f32 %v2708, 1.442695
        %v2710 = vpow.pop %v2709
        %v2711 = vadd.f32 %v2710, 1.0
        %v2712 = vrcp.pop %v2711
        %v2713 = vmul.f32 1.0, %v2712
        %2714 = vmatprep.subr.mxu0 0.0
        %2715 = vmatpush1.msra.mxu0 0.0
        %2716 = vmatprep.subr.mxu0 0.0
        %2717 = vmatpush1.msra.mxu0 0.0
        %2718 = vmatprep.subr.mxu0 0.0
        %2719 = vmatpush1.msra.mxu0 0.0
        %2720 = vmatprep.subr.mxu0 0.0
        %2721 = vmatpush1.msra.mxu0 0.0
        %2722 = vmatprep.subr.mxu0 0.0
        %2723 = vmatpush1.msra.mxu0 0.0
        %2724 = vmatprep.subr.mxu0 0.0
        %2725 = vmatpush1.msra.mxu0 0.0
        %2726 = vmatprep.subr.mxu0 0.0
        %2727 = vmatpush1.msra.mxu0 0.0
        %2728 = vmatprep.subr.mxu0 0.0
        %2729 = vmatpush1.msra.mxu0 0.0
        %2730 = vmatprep.subr.mxu0 0.0
        %2731 = vmatpush1.msra.mxu0 0.0
        %2732 = vmatprep.subr.mxu0 0.0
        %2733 = vmatpush1.msra.mxu0 0.0
        %2734 = vmatprep.subr.mxu0 0.0
        %2735 = vmatpush1.msra.mxu0 0.0
        %2736 = vmatprep.subr.mxu0 0.0
        %2737 = vmatpush1.msra.mxu0 0.0
        %2738 = vmatprep.subr.mxu0 0.0
        %2739 = vmatpush1.msra.mxu0 %v334
        %2740 = vmatprep.subr.mxu0 0.0
        %2741 = vmatpush1.msra.mxu0 %v333
        %2742 = vmatprep.subr.mxu0 0.0
        %2743 = vmatpush1.msra.mxu0 %v332
        %2744 = vmatprep.subr.mxu0 0.0
        %2745 = vmatpush1.msra.mxu0 %v331
        %2746 = vmatprep.subr.mxu0 0.0
        %2747 = vmatpush2.msra.mxu0 0.0
        %2748 = vmatprep.subr.mxu0 0.0
        %2749 = vmatpush2.msra.mxu0 0.0
        %2750 = vmatprep.subr.mxu0 0.0
        %2751 = vmatpush2.msra.mxu0 0.0
        %2752 = vmatprep.subr.mxu0 0.0
        %2753 = vmatpush2.msra.mxu0 0.0
        %2754 = vmatprep.subr.mxu0 0.0
        %2755 = vmatpush2.msra.mxu0 0.0
        %2756 = vmatprep.subr.mxu0 0.0
        %2757 = vmatpush2.msra.mxu0 0.0
        %2758 = vmatprep.subr.mxu0 0.0
        %2759 = vmatpush2.msra.mxu0 0.0
        %2760 = vmatprep.subr.mxu0 0.0
        %2761 = vmatpush2.msra.mxu0 0.0
        %2762 = vmatprep.subr.mxu0 0.0
        %2763 = vmatpush2.msra.mxu0 0.0
        %2764 = vmatprep.subr.mxu0 0.0
        %2765 = vmatpush2.msra.mxu0 0.0
        %2766 = vmatprep.subr.mxu0 0.0
        %2767 = vmatpush2.msra.mxu0 0.0
        %2768 = vmatprep.subr.mxu0 0.0
        %2769 = vmatpush2.msra.mxu0 0.0
        %2770 = vmatprep.subr.mxu0 0.0
        %2771 = vmatpush2.msra.mxu0 0.0
        %2772 = vmatprep.subr.mxu0 0.0
        %2773 = vmatpush2.msra.mxu0 0.0
        %2774 = vmatprep.subr.mxu0 0.0
        %2775 = vmatpush2.msra.mxu0 0.0
        %2776 = vmatprep.subr.mxu0 0.0
        %2777 = vmatpush2.msra.mxu0 0.0
        %2778 = vmatprep.mubr.f32.mxu0 0.0
        %2779 = vmatmul.mubr.f32.gmra.mxu0 %v2562
        %v2780 = vpop.f32.mrf.mxu0
        %v2781 = vadd.f32 0.0, %v2780
        %v2782 = vpop.f32.mrf.mxu0
        %2783 = vdwg.mxu0
        %2784 = vmatprep.subr.mxu0 0.0
        %2785 = vmatpush1.msra.mxu0 0.0
        %2786 = vmatprep.subr.mxu0 0.0
        %2787 = vmatpush1.msra.mxu0 0.0
        %2788 = vmatprep.subr.mxu0 0.0
        %2789 = vmatpush1.msra.mxu0 0.0
        %2790 = vmatprep.subr.mxu0 0.0
        %2791 = vmatpush1.msra.mxu0 0.0
        %2792 = vmatprep.subr.mxu0 0.0
        %2793 = vmatpush1.msra.mxu0 0.0
        %2794 = vmatprep.subr.mxu0 0.0
        %2795 = vmatpush1.msra.mxu0 0.0
        %2796 = vmatprep.subr.mxu0 0.0
        %2797 = vmatpush1.msra.mxu0 0.0
        %2798 = vmatprep.subr.mxu0 0.0
        %2799 = vmatpush1.msra.mxu0 0.0
        %2800 = vmatprep.subr.mxu0 0.0
        %2801 = vmatpush1.msra.mxu0 0.0
        %2802 = vmatprep.subr.mxu0 0.0
        %2803 = vmatpush1.msra.mxu0 0.0
        %2804 = vmatprep.subr.mxu0 0.0
        %2805 = vmatpush1.msra.mxu0 0.0
        %2806 = vmatprep.subr.mxu0 0.0
        %2807 = vmatpush1.msra.mxu0 0.0
        %2808 = vmatprep.subr.mxu0 0.0
        %2809 = vmatpush1.msra.mxu0 %v319
        %2810 = vmatprep.subr.mxu0 0.0
        %2811 = vmatpush1.msra.mxu0 %v318
        %2812 = vmatprep.subr.mxu0 0.0
        %2813 = vmatpush1.msra.mxu0 %v317
        %2814 = vmatprep.subr.mxu0 0.0
        %2815 = vmatpush1.msra.mxu0 %v316
        %2816 = vmatprep.subr.mxu0 0.0
        %2817 = vmatpush2.msra.mxu0 0.0
        %2818 = vmatprep.subr.mxu0 0.0
        %2819 = vmatpush2.msra.mxu0 0.0
        %2820 = vmatprep.subr.mxu0 0.0
        %2821 = vmatpush2.msra.mxu0 0.0
        %2822 = vmatprep.subr.mxu0 0.0
        %2823 = vmatpush2.msra.mxu0 0.0
        %2824 = vmatprep.subr.mxu0 0.0
        %2825 = vmatpush2.msra.mxu0 0.0
        %2826 = vmatprep.subr.mxu0 0.0
        %2827 = vmatpush2.msra.mxu0 0.0
        %2828 = vmatprep.subr.mxu0 0.0
        %2829 = vmatpush2.msra.mxu0 0.0
        %2830 = vmatprep.subr.mxu0 0.0
        %2831 = vmatpush2.msra.mxu0 0.0
        %2832 = vmatprep.subr.mxu0 0.0
        %2833 = vmatpush2.msra.mxu0 0.0
        %2834 = vmatprep.subr.mxu0 0.0
        %2835 = vmatpush2.msra.mxu0 0.0
        %2836 = vmatprep.subr.mxu0 0.0
        %2837 = vmatpush2.msra.mxu0 0.0
        %2838 = vmatprep.subr.mxu0 0.0
        %2839 = vmatpush2.msra.mxu0 0.0
        %2840 = vmatprep.subr.mxu0 0.0
        %2841 = vmatpush2.msra.mxu0 0.0
        %2842 = vmatprep.subr.mxu0 0.0
        %2843 = vmatpush2.msra.mxu0 0.0
        %2844 = vmatprep.subr.mxu0 0.0
        %2845 = vmatpush2.msra.mxu0 0.0
        %2846 = vmatprep.subr.mxu0 0.0
        %2847 = vmatpush2.msra.mxu0 0.0
        %2848 = vmatprep.mubr.f32.mxu0 0.0
        %2849 = vmatmul.mubr.f32.gmra.mxu0 %v2635
        %v2850 = vpop.f32.mrf.mxu0
        %v2851 = vadd.f32 %v2781, %v2850
        %v2852 = vpop.f32.mrf.mxu0
        %2853 = vdwg.mxu0
        %v2854 = vadd.f32 %v2851, %v401
        %v2855 = vxor.u32 %v2854, 2147483648
        %v2856 = vmul.f32 %v2855, 1.442695
        %v2857 = vpow.pop %v2856
        %v2858 = vadd.f32 %v2857, 1.0
        %v2859 = vrcp.pop %v2858
        %v2860 = vmul.f32 1.0, %v2859
        %2861 = vmatprep.subr.mxu0 0.0
        %2862 = vmatpush1.msra.mxu0 0.0
        %2863 = vmatprep.subr.mxu0 0.0
        %2864 = vmatpush1.msra.mxu0 0.0
        %2865 = vmatprep.subr.mxu0 0.0
        %2866 = vmatpush1.msra.mxu0 0.0
        %2867 = vmatprep.subr.mxu0 0.0
        %2868 = vmatpush1.msra.mxu0 0.0
        %2869 = vmatprep.subr.mxu0 0.0
        %2870 = vmatpush1.msra.mxu0 0.0
        %2871 = vmatprep.subr.mxu0 0.0
        %2872 = vmatpush1.msra.mxu0 0.0
        %2873 = vmatprep.subr.mxu0 0.0
        %2874 = vmatpush1.msra.mxu0 0.0
        %2875 = vmatprep.subr.mxu0 0.0
        %2876 = vmatpush1.msra.mxu0 0.0
        %2877 = vmatprep.subr.mxu0 0.0
        %2878 = vmatpush1.msra.mxu0 0.0
        %2879 = vmatprep.subr.mxu0 0.0
        %2880 = vmatpush1.msra.mxu0 0.0
        %2881 = vmatprep.subr.mxu0 0.0
        %2882 = vmatpush1.msra.mxu0 0.0
        %2883 = vmatprep.subr.mxu0 0.0
        %2884 = vmatpush1.msra.mxu0 0.0
        %2885 = vmatprep.subr.mxu0 0.0
        %2886 = vmatpush1.msra.mxu0 %v339
        %2887 = vmatprep.subr.mxu0 0.0
        %2888 = vmatpush1.msra.mxu0 %v338
        %2889 = vmatprep.subr.mxu0 0.0
        %2890 = vmatpush1.msra.mxu0 %v337
        %2891 = vmatprep.subr.mxu0 0.0
        %2892 = vmatpush1.msra.mxu0 %v336
        %2893 = vmatprep.subr.mxu0 0.0
        %2894 = vmatpush2.msra.mxu0 0.0
        %2895 = vmatprep.subr.mxu0 0.0
        %2896 = vmatpush2.msra.mxu0 0.0
        %2897 = vmatprep.subr.mxu0 0.0
        %2898 = vmatpush2.msra.mxu0 0.0
        %2899 = vmatprep.subr.mxu0 0.0
        %2900 = vmatpush2.msra.mxu0 0.0
        %2901 = vmatprep.subr.mxu0 0.0
        %2902 = vmatpush2.msra.mxu0 0.0
        %2903 = vmatprep.subr.mxu0 0.0
        %2904 = vmatpush2.msra.mxu0 0.0
        %2905 = vmatprep.subr.mxu0 0.0
        %2906 = vmatpush2.msra.mxu0 0.0
        %2907 = vmatprep.subr.mxu0 0.0
        %2908 = vmatpush2.msra.mxu0 0.0
        %2909 = vmatprep.subr.mxu0 0.0
        %2910 = vmatpush2.msra.mxu0 0.0
        %2911 = vmatprep.subr.mxu0 0.0
        %2912 = vmatpush2.msra.mxu0 0.0
        %2913 = vmatprep.subr.mxu0 0.0
        %2914 = vmatpush2.msra.mxu0 0.0
        %2915 = vmatprep.subr.mxu0 0.0
        %2916 = vmatpush2.msra.mxu0 0.0
        %2917 = vmatprep.subr.mxu0 0.0
        %2918 = vmatpush2.msra.mxu0 0.0
        %2919 = vmatprep.subr.mxu0 0.0
        %2920 = vmatpush2.msra.mxu0 0.0
        %2921 = vmatprep.subr.mxu0 0.0
        %2922 = vmatpush2.msra.mxu0 0.0
        %2923 = vmatprep.subr.mxu0 0.0
        %2924 = vmatpush2.msra.mxu0 0.0
        %2925 = vmatprep.mubr.f32.mxu0 0.0
        %2926 = vmatmul.mubr.f32.gmra.mxu0 %v2562
        %v2927 = vpop.f32.mrf.mxu0
        %v2928 = vadd.f32 %v409, %v2927
        %v2929 = vpop.f32.mrf.mxu0
        %2930 = vdwg.mxu0
        %2931 = vmatprep.subr.mxu0 0.0
        %2932 = vmatpush1.msra.mxu0 0.0
        %2933 = vmatprep.subr.mxu0 0.0
        %2934 = vmatpush1.msra.mxu0 0.0
        %2935 = vmatprep.subr.mxu0 0.0
        %2936 = vmatpush1.msra.mxu0 0.0
        %2937 = vmatprep.subr.mxu0 0.0
        %2938 = vmatpush1.msra.mxu0 0.0
        %2939 = vmatprep.subr.mxu0 0.0
        %2940 = vmatpush1.msra.mxu0 0.0
        %2941 = vmatprep.subr.mxu0 0.0
        %2942 = vmatpush1.msra.mxu0 0.0
        %2943 = vmatprep.subr.mxu0 0.0
        %2944 = vmatpush1.msra.mxu0 0.0
        %2945 = vmatprep.subr.mxu0 0.0
        %2946 = vmatpush1.msra.mxu0 0.0
        %2947 = vmatprep.subr.mxu0 0.0
        %2948 = vmatpush1.msra.mxu0 0.0
        %2949 = vmatprep.subr.mxu0 0.0
        %2950 = vmatpush1.msra.mxu0 0.0
        %2951 = vmatprep.subr.mxu0 0.0
        %2952 = vmatpush1.msra.mxu0 0.0
        %2953 = vmatprep.subr.mxu0 0.0
        %2954 = vmatpush1.msra.mxu0 0.0
        %2955 = vmatprep.subr.mxu0 0.0
        %2956 = vmatpush1.msra.mxu0 %v324
        %2957 = vmatprep.subr.mxu0 0.0
        %2958 = vmatpush1.msra.mxu0 %v323
        %2959 = vmatprep.subr.mxu0 0.0
        %2960 = vmatpush1.msra.mxu0 %v322
        %2961 = vmatprep.subr.mxu0 0.0
        %2962 = vmatpush1.msra.mxu0 %v321
        %2963 = vmatprep.subr.mxu0 0.0
        %2964 = vmatpush2.msra.mxu0 0.0
        %2965 = vmatprep.subr.mxu0 0.0
        %2966 = vmatpush2.msra.mxu0 0.0
        %2967 = vmatprep.subr.mxu0 0.0
        %2968 = vmatpush2.msra.mxu0 0.0
        %2969 = vmatprep.subr.mxu0 0.0
        %2970 = vmatpush2.msra.mxu0 0.0
        %2971 = vmatprep.subr.mxu0 0.0
        %2972 = vmatpush2.msra.mxu0 0.0
        %2973 = vmatprep.subr.mxu0 0.0
        %2974 = vmatpush2.msra.mxu0 0.0
        %2975 = vmatprep.subr.mxu0 0.0
        %2976 = vmatpush2.msra.mxu0 0.0
        %2977 = vmatprep.subr.mxu0 0.0
        %2978 = vmatpush2.msra.mxu0 0.0
        %2979 = vmatprep.subr.mxu0 0.0
        %2980 = vmatpush2.msra.mxu0 0.0
        %2981 = vmatprep.subr.mxu0 0.0
        %2982 = vmatpush2.msra.mxu0 0.0
        %2983 = vmatprep.subr.mxu0 0.0
        %2984 = vmatpush2.msra.mxu0 0.0
        %2985 = vmatprep.subr.mxu0 0.0
        %2986 = vmatpush2.msra.mxu0 0.0
        %2987 = vmatprep.subr.mxu0 0.0
        %2988 = vmatpush2.msra.mxu0 0.0
        %2989 = vmatprep.subr.mxu0 0.0
        %2990 = vmatpush2.msra.mxu0 0.0
        %2991 = vmatprep.subr.mxu0 0.0
        %2992 = vmatpush2.msra.mxu0 0.0
        %2993 = vmatprep.subr.mxu0 0.0
        %2994 = vmatpush2.msra.mxu0 0.0
        %2995 = vmatprep.mubr.f32.mxu0 0.0
        %2996 = vmatmul.mubr.f32.gmra.mxu0 %v2635
        %v2997 = vpop.f32.mrf.mxu0
        %v2998 = vadd.f32 %v405, %v2997
        %v2999 = vpop.f32.mrf.mxu0
        %3000 = vdwg.mxu0
        %v3001 = vmul.f32 %v2713, %v2928
        %v3002 = vadd.f32 %v2998, %v3001
        %v3003 = vtanh.pop %v3002
        %v3004 = vsub.f32 1.0, %v2860
        %v3005 = vmul.f32 %v3004, %v3003
        %v3006 = vmul.f32 %v2860, %v2126
        %v3007 = vadd.f32 %v3005, %v3006
        %v3008 = vsel %vm437, %v3007, 0.0
        %3009 = vadd.xlane.f32.xlu0 %v3008
        %v3010 = vpop.xlane.xlu0 %3009
        %v3011 = vmul.f32 %v3010, %v486
        %v3012 = vsub.f32 %v3007, %v3011
        %v3013 = vmul.f32 %v3012, %v3012
        %v3014 = vsel %vm437, %v3013, 0.0
        %3015 = vadd.xlane.f32.xlu0 %v3014
        %v3016 = vpop.xlane.xlu0 %3015
        %v3017 = vmul.f32 %v3016, %v486
        %v3018 = vadd.f32 %v3017, 1e-05
        %v3019 = vrsqrt.pop %v3018
        %v3020 = vmul.f32 %v3012, %v3019
        %v3021 = vmul.f32 %v3020, %v385
        %v3022 = vadd.f32 %v3021, %v389
        %v3024 = vsel %vm437, %v3022, 0
        %3026 = vmatprep.subr.mxu0 0.0
        %3027 = vmatpush1.msra.mxu0 0.0
        %3028 = vmatprep.subr.mxu0 0.0
        %3029 = vmatpush1.msra.mxu0 0.0
        %3030 = vmatprep.subr.mxu0 0.0
        %3031 = vmatpush1.msra.mxu0 0.0
        %3032 = vmatprep.subr.mxu0 0.0
        %3033 = vmatpush1.msra.mxu0 0.0
        %3034 = vmatprep.subr.mxu0 0.0
        %3035 = vmatpush1.msra.mxu0 0.0
        %3036 = vmatprep.subr.mxu0 0.0
        %3037 = vmatpush1.msra.mxu0 0.0
        %3038 = vmatprep.subr.mxu0 0.0
        %3039 = vmatpush1.msra.mxu0 0.0
        %3040 = vmatprep.subr.mxu0 0.0
        %3041 = vmatpush1.msra.mxu0 0.0
        %3042 = vmatprep.subr.mxu0 0.0
        %3043 = vmatpush1.msra.mxu0 0.0
        %3044 = vmatprep.subr.mxu0 0.0
        %3045 = vmatpush1.msra.mxu0 0.0
        %3046 = vmatprep.subr.mxu0 0.0
        %3047 = vmatpush1.msra.mxu0 0.0
        %3048 = vmatprep.subr.mxu0 0.0
        %3049 = vmatpush1.msra.mxu0 0.0
        %3050 = vmatprep.subr.mxu0 0.0
        %3051 = vmatpush1.msra.mxu0 %v357
        %3052 = vmatprep.subr.mxu0 0.0
        %3053 = vmatpush1.msra.mxu0 %v356
        %3054 = vmatprep.subr.mxu0 0.0
        %3055 = vmatpush1.msra.mxu0 %v355
        %3056 = vmatprep.subr.mxu0 0.0
        %3057 = vmatpush1.msra.mxu0 %v354
        %3058 = vmatprep.subr.mxu0 0.0
        %3059 = vmatpush2.msra.mxu0 0.0
        %3060 = vmatprep.subr.mxu0 0.0
        %3061 = vmatpush2.msra.mxu0 0.0
        %3062 = vmatprep.subr.mxu0 0.0
        %3063 = vmatpush2.msra.mxu0 0.0
        %3064 = vmatprep.subr.mxu0 0.0
        %3065 = vmatpush2.msra.mxu0 0.0
        %3066 = vmatprep.subr.mxu0 0.0
        %3067 = vmatpush2.msra.mxu0 0.0
        %3068 = vmatprep.subr.mxu0 0.0
        %3069 = vmatpush2.msra.mxu0 0.0
        %3070 = vmatprep.subr.mxu0 0.0
        %3071 = vmatpush2.msra.mxu0 0.0
        %3072 = vmatprep.subr.mxu0 0.0
        %3073 = vmatpush2.msra.mxu0 0.0
        %3074 = vmatprep.subr.mxu0 0.0
        %3075 = vmatpush2.msra.mxu0 0.0
        %3076 = vmatprep.subr.mxu0 0.0
        %3077 = vmatpush2.msra.mxu0 0.0
        %3078 = vmatprep.subr.mxu0 0.0
        %3079 = vmatpush2.msra.mxu0 0.0
        %3080 = vmatprep.subr.mxu0 0.0
        %3081 = vmatpush2.msra.mxu0 0.0
        %3082 = vmatprep.subr.mxu0 0.0
        %3083 = vmatpush2.msra.mxu0 0.0
        %3084 = vmatprep.subr.mxu0 0.0
        %3085 = vmatpush2.msra.mxu0 0.0
        %3086 = vmatprep.subr.mxu0 0.0
        %3087 = vmatpush2.msra.mxu0 0.0
        %3088 = vmatprep.subr.mxu0 0.0
        %3089 = vmatpush2.msra.mxu0 0.0
        %3090 = vmatprep.mubr.f32.mxu0 0.0
        %3091 = vmatmul.mubr.f32.gmra.mxu0 %v3024
        %v3092 = vpop.f32.mrf.mxu0
        %v3093 = vadd.f32 %v419, %v3092
        %v3094 = vpop.f32.mrf.mxu0
        %3095 = vdwg.mxu0
        %v3096 = vmax.f32 %v3093, 0.0
        %3097 = vmatprep.subr.mxu0 0.0
        %3098 = vmatpush1.msra.mxu0 %v373
        %3099 = vmatprep.subr.mxu0 0.0
        %3100 = vmatpush1.msra.mxu0 %v372
        %3101 = vmatprep.subr.mxu0 0.0
        %3102 = vmatpush1.msra.mxu0 %v371
        %3103 = vmatprep.subr.mxu0 0.0
        %3104 = vmatpush1.msra.mxu0 %v370
        %3105 = vmatprep.subr.mxu0 0.0
        %3106 = vmatpush1.msra.mxu0 %v369
        %3107 = vmatprep.subr.mxu0 0.0
        %3108 = vmatpush1.msra.mxu0 %v368
        %3109 = vmatprep.subr.mxu0 0.0
        %3110 = vmatpush1.msra.mxu0 %v367
        %3111 = vmatprep.subr.mxu0 0.0
        %3112 = vmatpush1.msra.mxu0 %v366
        %3113 = vmatprep.subr.mxu0 0.0
        %3114 = vmatpush1.msra.mxu0 %v365
        %3115 = vmatprep.subr.mxu0 0.0
        %3116 = vmatpush1.msra.mxu0 %v364
        %3117 = vmatprep.subr.mxu0 0.0
        %3118 = vmatpush1.msra.mxu0 %v363
        %3119 = vmatprep.subr.mxu0 0.0
        %3120 = vmatpush1.msra.mxu0 %v362
        %3121 = vmatprep.subr.mxu0 0.0
        %3122 = vmatpush1.msra.mxu0 %v361
        %3123 = vmatprep.subr.mxu0 0.0
        %3124 = vmatpush1.msra.mxu0 %v360
        %3125 = vmatprep.subr.mxu0 0.0
        %3126 = vmatpush1.msra.mxu0 %v359
        %3127 = vmatprep.subr.mxu0 0.0
        %3128 = vmatpush1.msra.mxu0 %v358
        %3129 = vmatprep.subr.mxu0 0.0
        %3130 = vmatpush2.msra.mxu0 0.0
        %3131 = vmatprep.subr.mxu0 0.0
        %3132 = vmatpush2.msra.mxu0 0.0
        %3133 = vmatprep.subr.mxu0 0.0
        %3134 = vmatpush2.msra.mxu0 0.0
        %3135 = vmatprep.subr.mxu0 0.0
        %3136 = vmatpush2.msra.mxu0 0.0
        %3137 = vmatprep.subr.mxu0 0.0
        %3138 = vmatpush2.msra.mxu0 0.0
        %3139 = vmatprep.subr.mxu0 0.0
        %3140 = vmatpush2.msra.mxu0 0.0
        %3141 = vmatprep.subr.mxu0 0.0
        %3142 = vmatpush2.msra.mxu0 0.0
        %3143 = vmatprep.subr.mxu0 0.0
        %3144 = vmatpush2.msra.mxu0 0.0
        %3145 = vmatprep.subr.mxu0 0.0
        %3146 = vmatpush2.msra.mxu0 0.0
        %3147 = vmatprep.subr.mxu0 0.0
        %3148 = vmatpush2.msra.mxu0 0.0
        %3149 = vmatprep.subr.mxu0 0.0
        %3150 = vmatpush2.msra.mxu0 0.0
        %3151 = vmatprep.subr.mxu0 0.0
        %3152 = vmatpush2.msra.mxu0 0.0
        %3153 = vmatprep.subr.mxu0 0.0
        %3154 = vmatpush2.msra.mxu0 0.0
        %3155 = vmatprep.subr.mxu0 0.0
        %3156 = vmatpush2.msra.mxu0 0.0
        %3157 = vmatprep.subr.mxu0 0.0
        %3158 = vmatpush2.msra.mxu0 0.0
        %3159 = vmatprep.subr.mxu0 0.0
        %3160 = vmatpush2.msra.mxu0 0.0
        %3161 = vmatprep.mubr.f32.mxu0 0.0
        %3162 = vmatmul.mubr.f32.gmra.mxu0 %v3096
        %v3163 = vpop.f32.mrf.mxu0
        %v3164 = vadd.f32 0.0, %v3163
        %v3165 = vpop.f32.mrf.mxu0
        %3166 = vdwg.mxu0
        %v3167 = vadd.f32 %v3007, %v3164
        %v3168 = vadd.f32 %v3167, %v413
        %v3169 = vsel %vm437, %v3168, 0.0
        %3170 = vadd.xlane.f32.xlu0 %v3169
        %v3171 = vpop.xlane.xlu0 %3170
        %v3172 = vmul.f32 %v3171, %v486
        %v3173 = vsub.f32 %v3168, %v3172
        %v3174 = vmul.f32 %v3173, %v3173
        %v3175 = vsel %vm437, %v3174, 0.0
        %3176 = vadd.xlane.f32.xlu0 %v3175
        %v3177 = vpop.xlane.xlu0 %3176
        %v3178 = vmul.f32 %v3177, %v486
        %v3179 = vadd.f32 %v3178, 1e-05
        %v3180 = vrsqrt.pop %v3179
        %v3181 = vmul.f32 %v3173, %v3180
        %v3182 = vmul.f32 %v3181, %v377
        %v3183 = vadd.f32 %v3182, %v381
        %v3185 = vsel %vm437, %v3183, 0
        %3187 = vmatprep.subr.mxu0 0.0
        %3188 = vmatpush1.msra.mxu0 0.0
        %3189 = vmatprep.subr.mxu0 0.0
        %3190 = vmatpush1.msra.mxu0 0.0
        %3191 = vmatprep.subr.mxu0 0.0
        %3192 = vmatpush1.msra.mxu0 0.0
        %3193 = vmatprep.subr.mxu0 0.0
        %3194 = vmatpush1.msra.mxu0 0.0
        %3195 = vmatprep.subr.mxu0 0.0
        %3196 = vmatpush1.msra.mxu0 0.0
        %3197 = vmatprep.subr.mxu0 0.0
        %3198 = vmatpush1.msra.mxu0 0.0
        %3199 = vmatprep.subr.mxu0 0.0
        %3200 = vmatpush1.msra.mxu0 0.0
        %3201 = vmatprep.subr.mxu0 0.0
        %3202 = vmatpush1.msra.mxu0 0.0
        %3203 = vmatprep.subr.mxu0 0.0
        %3204 = vmatpush1.msra.mxu0 0.0
        %3205 = vmatprep.subr.mxu0 0.0
        %3206 = vmatpush1.msra.mxu0 0.0
        %3207 = vmatprep.subr.mxu0 0.0
        %3208 = vmatpush1.msra.mxu0 0.0
        %3209 = vmatprep.subr.mxu0 0.0
        %3210 = vmatpush1.msra.mxu0 0.0
        %3211 = vmatprep.subr.mxu0 0.0
        %3212 = vmatpush1.msra.mxu0 %v309
        %3213 = vmatprep.subr.mxu0 0.0
        %3214 = vmatpush1.msra.mxu0 %v308
        %3215 = vmatprep.subr.mxu0 0.0
        %3216 = vmatpush1.msra.mxu0 %v307
        %3217 = vmatprep.subr.mxu0 0.0
        %3218 = vmatpush1.msra.mxu0 %v306
        %3219 = vmatprep.subr.mxu0 0.0
        %3220 = vmatpush2.msra.mxu0 0.0
        %3221 = vmatprep.subr.mxu0 0.0
        %3222 = vmatpush2.msra.mxu0 0.0
        %3223 = vmatprep.subr.mxu0 0.0
        %3224 = vmatpush2.msra.mxu0 0.0
        %3225 = vmatprep.subr.mxu0 0.0
        %3226 = vmatpush2.msra.mxu0 0.0
        %3227 = vmatprep.subr.mxu0 0.0
        %3228 = vmatpush2.msra.mxu0 0.0
        %3229 = vmatprep.subr.mxu0 0.0
        %3230 = vmatpush2.msra.mxu0 0.0
        %3231 = vmatprep.subr.mxu0 0.0
        %3232 = vmatpush2.msra.mxu0 0.0
        %3233 = vmatprep.subr.mxu0 0.0
        %3234 = vmatpush2.msra.mxu0 0.0
        %3235 = vmatprep.subr.mxu0 0.0
        %3236 = vmatpush2.msra.mxu0 0.0
        %3237 = vmatprep.subr.mxu0 0.0
        %3238 = vmatpush2.msra.mxu0 0.0
        %3239 = vmatprep.subr.mxu0 0.0
        %3240 = vmatpush2.msra.mxu0 0.0
        %3241 = vmatprep.subr.mxu0 0.0
        %3242 = vmatpush2.msra.mxu0 0.0
        %3243 = vmatprep.subr.mxu0 0.0
        %3244 = vmatpush2.msra.mxu0 0.0
        %3245 = vmatprep.subr.mxu0 0.0
        %3246 = vmatpush2.msra.mxu0 0.0
        %3247 = vmatprep.subr.mxu0 0.0
        %3248 = vmatpush2.msra.mxu0 0.0
        %3249 = vmatprep.subr.mxu0 0.0
        %3250 = vmatpush2.msra.mxu0 0.0
        %3251 = vmatprep.mubr.f32.mxu0 0.0
        %3252 = vmatmul.mubr.f32.gmra.mxu0 %v3185
        %v3253 = vpop.f32.mrf.mxu0
        %v3254 = vadd.f32 %v393, %v3253
        %v3255 = vpop.f32.mrf.mxu0
        %3256 = vdwg.mxu0
        %v3258 = vsel %vm437, %v3254, 0
        %3260 = vmatprep.subr.mxu0 0.0
        %3261 = vmatpush1.xpose.msra.mxu0 0.0
        %3262 = vmatprep.subr.mxu0 0.0
        %3263 = vmatpush1.xpose.msra.mxu0 0.0
        %3264 = vmatprep.subr.mxu0 0.0
        %3265 = vmatpush1.xpose.msra.mxu0 0.0
        %3266 = vmatprep.subr.mxu0 0.0
        %3267 = vmatpush1.xpose.msra.mxu0 0.0
        %3268 = vmatprep.subr.mxu0 0.0
        %3269 = vmatpush1.xpose.msra.mxu0 0.0
        %3270 = vmatprep.subr.mxu0 0.0
        %3271 = vmatpush1.xpose.msra.mxu0 0.0
        %3272 = vmatprep.subr.mxu0 0.0
        %3273 = vmatpush1.xpose.msra.mxu0 0.0
        %3274 = vmatprep.subr.mxu0 0.0
        %3275 = vmatpush1.xpose.msra.mxu0 0.0
        %3276 = vmatprep.subr.mxu0 0.0
        %3277 = vmatpush1.xpose.msra.mxu0 %v1147
        %3278 = vmatprep.subr.mxu0 0.0
        %3279 = vmatpush1.xpose.msra.mxu0 %v1144
        %3280 = vmatprep.subr.mxu0 0.0
        %3281 = vmatpush1.xpose.msra.mxu0 %v1141
        %3282 = vmatprep.subr.mxu0 0.0
        %3283 = vmatpush1.xpose.msra.mxu0 %v1138
        %3284 = vmatprep.subr.mxu0 0.0
        %3285 = vmatpush1.xpose.msra.mxu0 %v1135
        %3286 = vmatprep.subr.mxu0 0.0
        %3287 = vmatpush1.xpose.msra.mxu0 %v1132
        %3288 = vmatprep.subr.mxu0 0.0
        %3289 = vmatpush1.xpose.msra.mxu0 %v1129
        %3290 = vmatprep.subr.mxu0 0.0
        %3291 = vmatpush1.xpose.msra.mxu0 %v1126
        %3292 = vmatprep.subr.mxu0 0.0
        %3293 = vmatpush2.xpose.msra.mxu0 0.0
        %3294 = vmatprep.subr.mxu0 0.0
        %3295 = vmatpush2.xpose.msra.mxu0 0.0
        %3296 = vmatprep.subr.mxu0 0.0
        %3297 = vmatpush2.xpose.msra.mxu0 0.0
        %3298 = vmatprep.subr.mxu0 0.0
        %3299 = vmatpush2.xpose.msra.mxu0 0.0
        %3300 = vmatprep.subr.mxu0 0.0
        %3301 = vmatpush2.xpose.msra.mxu0 0.0
        %3302 = vmatprep.subr.mxu0 0.0
        %3303 = vmatpush2.xpose.msra.mxu0 0.0
        %3304 = vmatprep.subr.mxu0 0.0
        %3305 = vmatpush2.xpose.msra.mxu0 0.0
        %3306 = vmatprep.subr.mxu0 0.0
        %3307 = vmatpush2.xpose.msra.mxu0 0.0
        %3308 = vmatprep.subr.mxu0 0.0
        %3309 = vmatpush2.xpose.msra.mxu0 0.0
        %3310 = vmatprep.subr.mxu0 0.0
        %3311 = vmatpush2.xpose.msra.mxu0 0.0
        %3312 = vmatprep.subr.mxu0 0.0
        %3313 = vmatpush2.xpose.msra.mxu0 0.0
        %3314 = vmatprep.subr.mxu0 0.0
        %3315 = vmatpush2.xpose.msra.mxu0 0.0
        %3316 = vmatprep.subr.mxu0 0.0
        %3317 = vmatpush2.xpose.msra.mxu0 0.0
        %3318 = vmatprep.subr.mxu0 0.0
        %3319 = vmatpush2.xpose.msra.mxu0 0.0
        %3320 = vmatprep.subr.mxu0 0.0
        %3321 = vmatpush2.xpose.msra.mxu0 0.0
        %3322 = vmatprep.subr.mxu0 0.0
        %3323 = vmatpush2.xpose.msra.mxu0 0.0
        %3324 = vmatprep.mubr.f32.mxu0 0.0
        %3325 = vmatmul.mubr.f32.gmra.mxu0 %v3258
        %v3326 = vpop.f32.mrf.mxu0
        %v3327 = vadd.f32 0.0, %v3326
        %v3328 = vpop.f32.mrf.mxu0
        %3329 = vdwg.mxu0
        %v3330 = vsel %vm1219, %v3327, -inf
        %v3331 = vrot.slane %v3330, 4
        %v3332 = vmax.f32 %v3330, %v3331
        %v3333 = vrot.slane %v3332, 2
        %v3334 = vmax.f32 %v3332, %v3333
        %v3335 = vrot.slane %v3334, 1
        %v3336 = vmax.f32 %v3334, %v3335
        %v3337 = vsub.f32 %v3327, %v3336
        %v3338 = vmul.f32 %v3337, 1.442695
        %v3339 = vpow.pop %v3338
        %v3340 = vsel %vm1219, %v3339, 0.0
        %v3341 = vrot.slane %v3340, 4
        %v3342 = vadd.f32 %v3340, %v3341
        %v3343 = vrot.slane %v3342, 2
        %v3344 = vadd.f32 %v3342, %v3343
        %v3345 = vrot.slane %v3344, 1
        %v3346 = vadd.f32 %v3344, %v3345
        %v3347 = vrcp.pop %v3346
        %v3348 = vmul.f32 %v3339, %v3347
        %v3349 = vadd.f32 %v3348, 1e-08
        %v3350 = vsel %vm1219, %v3349, 0.0
        %3351 = vadd.xlane.f32.xlu0 %v3350
        %v3352 = vpop.xlane.xlu0 %3351
        %v3353 = vrcp.pop %v3352
        %v3354 = vmul.f32 %v3349, %v3353
        %v3356 = vsel %vm1245, %v3354, 0
        %3358 = vmatprep.subr.mxu0 0.0
        %3359 = vmatpush1.msra.mxu0 0.0
        %3360 = vmatprep.subr.mxu0 0.0
        %3361 = vmatpush1.msra.mxu0 0.0
        %3362 = vmatprep.subr.mxu0 0.0
        %3363 = vmatpush1.msra.mxu0 0.0
        %3364 = vmatprep.subr.mxu0 0.0
        %3365 = vmatpush1.msra.mxu0 0.0
        %3366 = vmatprep.subr.mxu0 0.0
        %3367 = vmatpush1.msra.mxu0 0.0
        %3368 = vmatprep.subr.mxu0 0.0
        %3369 = vmatpush1.msra.mxu0 0.0
        %3370 = vmatprep.subr.mxu0 0.0
        %3371 = vmatpush1.msra.mxu0 0.0
        %3372 = vmatprep.subr.mxu0 0.0
        %3373 = vmatpush1.msra.mxu0 0.0
        %3374 = vmatprep.subr.mxu0 0.0
        %3375 = vmatpush1.msra.mxu0 %v990
        %3376 = vmatprep.subr.mxu0 0.0
        %3377 = vmatpush1.msra.mxu0 %v985
        %3378 = vmatprep.subr.mxu0 0.0
        %3379 = vmatpush1.msra.mxu0 %v980
        %3380 = vmatprep.subr.mxu0 0.0
        %3381 = vmatpush1.msra.mxu0 %v975
        %3382 = vmatprep.subr.mxu0 0.0
        %3383 = vmatpush1.msra.mxu0 %v970
        %3384 = vmatprep.subr.mxu0 0.0
        %3385 = vmatpush1.msra.mxu0 %v965
        %3386 = vmatprep.subr.mxu0 0.0
        %3387 = vmatpush1.msra.mxu0 %v960
        %3388 = vmatprep.subr.mxu0 0.0
        %3389 = vmatpush1.msra.mxu0 %v955
        %3390 = vmatprep.subr.mxu0 0.0
        %3391 = vmatpush2.msra.mxu0 0.0
        %3392 = vmatprep.subr.mxu0 0.0
        %3393 = vmatpush2.msra.mxu0 0.0
        %3394 = vmatprep.subr.mxu0 0.0
        %3395 = vmatpush2.msra.mxu0 0.0
        %3396 = vmatprep.subr.mxu0 0.0
        %3397 = vmatpush2.msra.mxu0 0.0
        %3398 = vmatprep.subr.mxu0 0.0
        %3399 = vmatpush2.msra.mxu0 0.0
        %3400 = vmatprep.subr.mxu0 0.0
        %3401 = vmatpush2.msra.mxu0 0.0
        %3402 = vmatprep.subr.mxu0 0.0
        %3403 = vmatpush2.msra.mxu0 0.0
        %3404 = vmatprep.subr.mxu0 0.0
        %3405 = vmatpush2.msra.mxu0 0.0
        %3406 = vmatprep.subr.mxu0 0.0
        %3407 = vmatpush2.msra.mxu0 0.0
        %3408 = vmatprep.subr.mxu0 0.0
        %3409 = vmatpush2.msra.mxu0 0.0
        %3410 = vmatprep.subr.mxu0 0.0
        %3411 = vmatpush2.msra.mxu0 0.0
        %3412 = vmatprep.subr.mxu0 0.0
        %3413 = vmatpush2.msra.mxu0 0.0
        %3414 = vmatprep.subr.mxu0 0.0
        %3415 = vmatpush2.msra.mxu0 0.0
        %3416 = vmatprep.subr.mxu0 0.0
        %3417 = vmatpush2.msra.mxu0 0.0
        %3418 = vmatprep.subr.mxu0 0.0
        %3419 = vmatpush2.msra.mxu0 0.0
        %3420 = vmatprep.subr.mxu0 0.0
        %3421 = vmatpush2.msra.mxu0 0.0
        %3422 = vmatprep.mubr.f32.mxu0 0.0
        %3423 = vmatmul.mubr.f32.gmra.mxu0 %v3356
        %v3424 = vpop.f32.mrf.mxu0
        %v3425 = vadd.f32 0.0, %v3424
        %v3426 = vpop.f32.mrf.mxu0
        %3427 = vdwg.mxu0
        %v3428 = vrot.slane %v3254, 4
        %v3429 = vsel %vm437, %v3428, 0
        %3431 = vmatprep.subr.mxu0 0.0
        %3432 = vmatpush1.xpose.msra.mxu0 0.0
        %3433 = vmatprep.subr.mxu0 0.0
        %3434 = vmatpush1.xpose.msra.mxu0 0.0
        %3435 = vmatprep.subr.mxu0 0.0
        %3436 = vmatpush1.xpose.msra.mxu0 0.0
        %3437 = vmatprep.subr.mxu0 0.0
        %3438 = vmatpush1.xpose.msra.mxu0 0.0
        %3439 = vmatprep.subr.mxu0 0.0
        %3440 = vmatpush1.xpose.msra.mxu0 0.0
        %3441 = vmatprep.subr.mxu0 0.0
        %3442 = vmatpush1.xpose.msra.mxu0 0.0
        %3443 = vmatprep.subr.mxu0 0.0
        %3444 = vmatpush1.xpose.msra.mxu0 0.0
        %3445 = vmatprep.subr.mxu0 0.0
        %3446 = vmatpush1.xpose.msra.mxu0 0.0
        %3447 = vmatprep.subr.mxu0 0.0
        %3448 = vmatpush1.xpose.msra.mxu0 %v1344
        %3449 = vmatprep.subr.mxu0 0.0
        %3450 = vmatpush1.xpose.msra.mxu0 %v1341
        %3451 = vmatprep.subr.mxu0 0.0
        %3452 = vmatpush1.xpose.msra.mxu0 %v1338
        %3453 = vmatprep.subr.mxu0 0.0
        %3454 = vmatpush1.xpose.msra.mxu0 %v1335
        %3455 = vmatprep.subr.mxu0 0.0
        %3456 = vmatpush1.xpose.msra.mxu0 %v1332
        %3457 = vmatprep.subr.mxu0 0.0
        %3458 = vmatpush1.xpose.msra.mxu0 %v1329
        %3459 = vmatprep.subr.mxu0 0.0
        %3460 = vmatpush1.xpose.msra.mxu0 %v1326
        %3461 = vmatprep.subr.mxu0 0.0
        %3462 = vmatpush1.xpose.msra.mxu0 %v1323
        %3463 = vmatprep.subr.mxu0 0.0
        %3464 = vmatpush2.xpose.msra.mxu0 0.0
        %3465 = vmatprep.subr.mxu0 0.0
        %3466 = vmatpush2.xpose.msra.mxu0 0.0
        %3467 = vmatprep.subr.mxu0 0.0
        %3468 = vmatpush2.xpose.msra.mxu0 0.0
        %3469 = vmatprep.subr.mxu0 0.0
        %3470 = vmatpush2.xpose.msra.mxu0 0.0
        %3471 = vmatprep.subr.mxu0 0.0
        %3472 = vmatpush2.xpose.msra.mxu0 0.0
        %3473 = vmatprep.subr.mxu0 0.0
        %3474 = vmatpush2.xpose.msra.mxu0 0.0
        %3475 = vmatprep.subr.mxu0 0.0
        %3476 = vmatpush2.xpose.msra.mxu0 0.0
        %3477 = vmatprep.subr.mxu0 0.0
        %3478 = vmatpush2.xpose.msra.mxu0 0.0
        %3479 = vmatprep.subr.mxu0 0.0
        %3480 = vmatpush2.xpose.msra.mxu0 0.0
        %3481 = vmatprep.subr.mxu0 0.0
        %3482 = vmatpush2.xpose.msra.mxu0 0.0
        %3483 = vmatprep.subr.mxu0 0.0
        %3484 = vmatpush2.xpose.msra.mxu0 0.0
        %3485 = vmatprep.subr.mxu0 0.0
        %3486 = vmatpush2.xpose.msra.mxu0 0.0
        %3487 = vmatprep.subr.mxu0 0.0
        %3488 = vmatpush2.xpose.msra.mxu0 0.0
        %3489 = vmatprep.subr.mxu0 0.0
        %3490 = vmatpush2.xpose.msra.mxu0 0.0
        %3491 = vmatprep.subr.mxu0 0.0
        %3492 = vmatpush2.xpose.msra.mxu0 0.0
        %3493 = vmatprep.subr.mxu0 0.0
        %3494 = vmatpush2.xpose.msra.mxu0 0.0
        %3495 = vmatprep.mubr.f32.mxu0 0.0
        %3496 = vmatmul.mubr.f32.gmra.mxu0 %v3429
        %v3497 = vpop.f32.mrf.mxu0
        %v3498 = vadd.f32 0.0, %v3497
        %v3499 = vpop.f32.mrf.mxu0
        %3500 = vdwg.mxu0
        %v3501 = vsel %vm1219, %v3498, -inf
        %v3502 = vrot.slane %v3501, 4
        %v3503 = vmax.f32 %v3501, %v3502
        %v3504 = vrot.slane %v3503, 2
        %v3505 = vmax.f32 %v3503, %v3504
        %v3506 = vrot.slane %v3505, 1
        %v3507 = vmax.f32 %v3505, %v3506
        %v3508 = vsub.f32 %v3498, %v3507
        %v3509 = vmul.f32 %v3508, 1.442695
        %v3510 = vpow.pop %v3509
        %v3511 = vsel %vm1219, %v3510, 0.0
        %v3512 = vrot.slane %v3511, 4
        %v3513 = vadd.f32 %v3511, %v3512
        %v3514 = vrot.slane %v3513, 2
        %v3515 = vadd.f32 %v3513, %v3514
        %v3516 = vrot.slane %v3515, 1
        %v3517 = vadd.f32 %v3515, %v3516
        %v3518 = vrcp.pop %v3517
        %v3519 = vmul.f32 %v3510, %v3518
        %v3520 = vadd.f32 %v3519, 1e-08
        %v3521 = vsel %vm1219, %v3520, 0.0
        %3522 = vadd.xlane.f32.xlu0 %v3521
        %v3523 = vpop.xlane.xlu0 %3522
        %v3524 = vrcp.pop %v3523
        %v3525 = vmul.f32 %v3520, %v3524
        %v3527 = vsel %vm1245, %v3525, 0
        %3529 = vmatprep.subr.mxu0 0.0
        %3530 = vmatpush1.msra.mxu0 0.0
        %3531 = vmatprep.subr.mxu0 0.0
        %3532 = vmatpush1.msra.mxu0 0.0
        %3533 = vmatprep.subr.mxu0 0.0
        %3534 = vmatpush1.msra.mxu0 0.0
        %3535 = vmatprep.subr.mxu0 0.0
        %3536 = vmatpush1.msra.mxu0 0.0
        %3537 = vmatprep.subr.mxu0 0.0
        %3538 = vmatpush1.msra.mxu0 0.0
        %3539 = vmatprep.subr.mxu0 0.0
        %3540 = vmatpush1.msra.mxu0 0.0
        %3541 = vmatprep.subr.mxu0 0.0
        %3542 = vmatpush1.msra.mxu0 0.0
        %3543 = vmatprep.subr.mxu0 0.0
        %3544 = vmatpush1.msra.mxu0 0.0
        %3545 = vmatprep.subr.mxu0 0.0
        %3546 = vmatpush1.msra.mxu0 %v1030
        %3547 = vmatprep.subr.mxu0 0.0
        %3548 = vmatpush1.msra.mxu0 %v1025
        %3549 = vmatprep.subr.mxu0 0.0
        %3550 = vmatpush1.msra.mxu0 %v1020
        %3551 = vmatprep.subr.mxu0 0.0
        %3552 = vmatpush1.msra.mxu0 %v1015
        %3553 = vmatprep.subr.mxu0 0.0
        %3554 = vmatpush1.msra.mxu0 %v1010
        %3555 = vmatprep.subr.mxu0 0.0
        %3556 = vmatpush1.msra.mxu0 %v1005
        %3557 = vmatprep.subr.mxu0 0.0
        %3558 = vmatpush1.msra.mxu0 %v1000
        %3559 = vmatprep.subr.mxu0 0.0
        %3560 = vmatpush1.msra.mxu0 %v995
        %3561 = vmatprep.subr.mxu0 0.0
        %3562 = vmatpush2.msra.mxu0 0.0
        %3563 = vmatprep.subr.mxu0 0.0
        %3564 = vmatpush2.msra.mxu0 0.0
        %3565 = vmatprep.subr.mxu0 0.0
        %3566 = vmatpush2.msra.mxu0 0.0
        %3567 = vmatprep.subr.mxu0 0.0
        %3568 = vmatpush2.msra.mxu0 0.0
        %3569 = vmatprep.subr.mxu0 0.0
        %3570 = vmatpush2.msra.mxu0 0.0
        %3571 = vmatprep.subr.mxu0 0.0
        %3572 = vmatpush2.msra.mxu0 0.0
        %3573 = vmatprep.subr.mxu0 0.0
        %3574 = vmatpush2.msra.mxu0 0.0
        %3575 = vmatprep.subr.mxu0 0.0
        %3576 = vmatpush2.msra.mxu0 0.0
        %3577 = vmatprep.subr.mxu0 0.0
        %3578 = vmatpush2.msra.mxu0 0.0
        %3579 = vmatprep.subr.mxu0 0.0
        %3580 = vmatpush2.msra.mxu0 0.0
        %3581 = vmatprep.subr.mxu0 0.0
        %3582 = vmatpush2.msra.mxu0 0.0
        %3583 = vmatprep.subr.mxu0 0.0
        %3584 = vmatpush2.msra.mxu0 0.0
        %3585 = vmatprep.subr.mxu0 0.0
        %3586 = vmatpush2.msra.mxu0 0.0
        %3587 = vmatprep.subr.mxu0 0.0
        %3588 = vmatpush2.msra.mxu0 0.0
        %3589 = vmatprep.subr.mxu0 0.0
        %3590 = vmatpush2.msra.mxu0 0.0
        %3591 = vmatprep.subr.mxu0 0.0
        %3592 = vmatpush2.msra.mxu0 0.0
        %3593 = vmatprep.mubr.f32.mxu0 0.0
        %3594 = vmatmul.mubr.f32.gmra.mxu0 %v3527
        %v3595 = vpop.f32.mrf.mxu0
        %v3596 = vadd.f32 0.0, %v3595
        %v3597 = vpop.f32.mrf.mxu0
        %3598 = vdwg.mxu0
        %v3600 = vrot.slane %v3596, 4
        %v3602 = vsel %vm1517, %v3425, %v3600
        %v3604 = vsel %vm437, %v3168, 0
        %3606 = vmatprep.subr.mxu0 0.0
        %3607 = vmatpush1.msra.mxu0 0.0
        %3608 = vmatprep.subr.mxu0 0.0
        %3609 = vmatpush1.msra.mxu0 0.0
        %3610 = vmatprep.subr.mxu0 0.0
        %3611 = vmatpush1.msra.mxu0 0.0
        %3612 = vmatprep.subr.mxu0 0.0
        %3613 = vmatpush1.msra.mxu0 0.0
        %3614 = vmatprep.subr.mxu0 0.0
        %3615 = vmatpush1.msra.mxu0 0.0
        %3616 = vmatprep.subr.mxu0 0.0
        %3617 = vmatpush1.msra.mxu0 0.0
        %3618 = vmatprep.subr.mxu0 0.0
        %3619 = vmatpush1.msra.mxu0 0.0
        %3620 = vmatprep.subr.mxu0 0.0
        %3621 = vmatpush1.msra.mxu0 0.0
        %3622 = vmatprep.subr.mxu0 0.0
        %3623 = vmatpush1.msra.mxu0 0.0
        %3624 = vmatprep.subr.mxu0 0.0
        %3625 = vmatpush1.msra.mxu0 0.0
        %3626 = vmatprep.subr.mxu0 0.0
        %3627 = vmatpush1.msra.mxu0 0.0
        %3628 = vmatprep.subr.mxu0 0.0
        %3629 = vmatpush1.msra.mxu0 0.0
        %3630 = vmatprep.subr.mxu0 0.0
        %3631 = vmatpush1.msra.mxu0 %v329
        %3632 = vmatprep.subr.mxu0 0.0
        %3633 = vmatpush1.msra.mxu0 %v328
        %3634 = vmatprep.subr.mxu0 0.0
        %3635 = vmatpush1.msra.mxu0 %v327
        %3636 = vmatprep.subr.mxu0 0.0
        %3637 = vmatpush1.msra.mxu0 %v326
        %3638 = vmatprep.subr.mxu0 0.0
        %3639 = vmatpush2.msra.mxu0 0.0
        %3640 = vmatprep.subr.mxu0 0.0
        %3641 = vmatpush2.msra.mxu0 0.0
        %3642 = vmatprep.subr.mxu0 0.0
        %3643 = vmatpush2.msra.mxu0 0.0
        %3644 = vmatprep.subr.mxu0 0.0
        %3645 = vmatpush2.msra.mxu0 0.0
        %3646 = vmatprep.subr.mxu0 0.0
        %3647 = vmatpush2.msra.mxu0 0.0
        %3648 = vmatprep.subr.mxu0 0.0
        %3649 = vmatpush2.msra.mxu0 0.0
        %3650 = vmatprep.subr.mxu0 0.0
        %3651 = vmatpush2.msra.mxu0 0.0
        %3652 = vmatprep.subr.mxu0 0.0
        %3653 = vmatpush2.msra.mxu0 0.0
        %3654 = vmatprep.subr.mxu0 0.0
        %3655 = vmatpush2.msra.mxu0 0.0
        %3656 = vmatprep.subr.mxu0 0.0
        %3657 = vmatpush2.msra.mxu0 0.0
        %3658 = vmatprep.subr.mxu0 0.0
        %3659 = vmatpush2.msra.mxu0 0.0
        %3660 = vmatprep.subr.mxu0 0.0
        %3661 = vmatpush2.msra.mxu0 0.0
        %3662 = vmatprep.subr.mxu0 0.0
        %3663 = vmatpush2.msra.mxu0 0.0
        %3664 = vmatprep.subr.mxu0 0.0
        %3665 = vmatpush2.msra.mxu0 0.0
        %3666 = vmatprep.subr.mxu0 0.0
        %3667 = vmatpush2.msra.mxu0 0.0
        %3668 = vmatprep.subr.mxu0 0.0
        %3669 = vmatpush2.msra.mxu0 0.0
        %3670 = vmatprep.mubr.f32.mxu0 0.0
        %3671 = vmatmul.mubr.f32.gmra.mxu0 %v3604
        %v3672 = vpop.f32.mrf.mxu0
        %v3673 = vadd.f32 0.0, %v3672
        %v3674 = vpop.f32.mrf.mxu0
        %3675 = vdwg.mxu0
        %v3677 = vsel %vm437, %v3602, 0
        %3679 = vmatprep.subr.mxu0 0.0
        %3680 = vmatpush1.msra.mxu0 0.0
        %3681 = vmatprep.subr.mxu0 0.0
        %3682 = vmatpush1.msra.mxu0 0.0
        %3683 = vmatprep.subr.mxu0 0.0
        %3684 = vmatpush1.msra.mxu0 0.0
        %3685 = vmatprep.subr.mxu0 0.0
        %3686 = vmatpush1.msra.mxu0 0.0
        %3687 = vmatprep.subr.mxu0 0.0
        %3688 = vmatpush1.msra.mxu0 0.0
        %3689 = vmatprep.subr.mxu0 0.0
        %3690 = vmatpush1.msra.mxu0 0.0
        %3691 = vmatprep.subr.mxu0 0.0
        %3692 = vmatpush1.msra.mxu0 0.0
        %3693 = vmatprep.subr.mxu0 0.0
        %3694 = vmatpush1.msra.mxu0 0.0
        %3695 = vmatprep.subr.mxu0 0.0
        %3696 = vmatpush1.msra.mxu0 0.0
        %3697 = vmatprep.subr.mxu0 0.0
        %3698 = vmatpush1.msra.mxu0 0.0
        %3699 = vmatprep.subr.mxu0 0.0
        %3700 = vmatpush1.msra.mxu0 0.0
        %3701 = vmatprep.subr.mxu0 0.0
        %3702 = vmatpush1.msra.mxu0 0.0
        %3703 = vmatprep.subr.mxu0 0.0
        %3704 = vmatpush1.msra.mxu0 %v314
        %3705 = vmatprep.subr.mxu0 0.0
        %3706 = vmatpush1.msra.mxu0 %v313
        %3707 = vmatprep.subr.mxu0 0.0
        %3708 = vmatpush1.msra.mxu0 %v312
        %3709 = vmatprep.subr.mxu0 0.0
        %3710 = vmatpush1.msra.mxu0 %v311
        %3711 = vmatprep.subr.mxu0 0.0
        %3712 = vmatpush2.msra.mxu0 0.0
        %3713 = vmatprep.subr.mxu0 0.0
        %3714 = vmatpush2.msra.mxu0 0.0
        %3715 = vmatprep.subr.mxu0 0.0
        %3716 = vmatpush2.msra.mxu0 0.0
        %3717 = vmatprep.subr.mxu0 0.0
        %3718 = vmatpush2.msra.mxu0 0.0
        %3719 = vmatprep.subr.mxu0 0.0
        %3720 = vmatpush2.msra.mxu0 0.0
        %3721 = vmatprep.subr.mxu0 0.0
        %3722 = vmatpush2.msra.mxu0 0.0
        %3723 = vmatprep.subr.mxu0 0.0
        %3724 = vmatpush2.msra.mxu0 0.0
        %3725 = vmatprep.subr.mxu0 0.0
        %3726 = vmatpush2.msra.mxu0 0.0
        %3727 = vmatprep.subr.mxu0 0.0
        %3728 = vmatpush2.msra.mxu0 0.0
        %3729 = vmatprep.subr.mxu0 0.0
        %3730 = vmatpush2.msra.mxu0 0.0
        %3731 = vmatprep.subr.mxu0 0.0
        %3732 = vmatpush2.msra.mxu0 0.0
        %3733 = vmatprep.subr.mxu0 0.0
        %3734 = vmatpush2.msra.mxu0 0.0
        %3735 = vmatprep.subr.mxu0 0.0
        %3736 = vmatpush2.msra.mxu0 0.0
        %3737 = vmatprep.subr.mxu0 0.0
        %3738 = vmatpush2.msra.mxu0 0.0
        %3739 = vmatprep.subr.mxu0 0.0
        %3740 = vmatpush2.msra.mxu0 0.0
        %3741 = vmatprep.subr.mxu0 0.0
        %3742 = vmatpush2.msra.mxu0 0.0
        %3743 = vmatprep.mubr.f32.mxu0 0.0
        %3744 = vmatmul.mubr.f32.gmra.mxu0 %v3677
        %v3745 = vpop.f32.mrf.mxu0
        %v3746 = vadd.f32 %v3673, %v3745
        %v3747 = vpop.f32.mrf.mxu0
        %3748 = vdwg.mxu0
        %v3749 = vadd.f32 %v3746, %v397
        %v3750 = vxor.u32 %v3749, 2147483648
        %v3751 = vmul.f32 %v3750, 1.442695
        %v3752 = vpow.pop %v3751
        %v3753 = vadd.f32 %v3752, 1.0
        %v3754 = vrcp.pop %v3753
        %v3755 = vmul.f32 1.0, %v3754
        %3756 = vmatprep.subr.mxu0 0.0
        %3757 = vmatpush1.msra.mxu0 0.0
        %3758 = vmatprep.subr.mxu0 0.0
        %3759 = vmatpush1.msra.mxu0 0.0
        %3760 = vmatprep.subr.mxu0 0.0
        %3761 = vmatpush1.msra.mxu0 0.0
        %3762 = vmatprep.subr.mxu0 0.0
        %3763 = vmatpush1.msra.mxu0 0.0
        %3764 = vmatprep.subr.mxu0 0.0
        %3765 = vmatpush1.msra.mxu0 0.0
        %3766 = vmatprep.subr.mxu0 0.0
        %3767 = vmatpush1.msra.mxu0 0.0
        %3768 = vmatprep.subr.mxu0 0.0
        %3769 = vmatpush1.msra.mxu0 0.0
        %3770 = vmatprep.subr.mxu0 0.0
        %3771 = vmatpush1.msra.mxu0 0.0
        %3772 = vmatprep.subr.mxu0 0.0
        %3773 = vmatpush1.msra.mxu0 0.0
        %3774 = vmatprep.subr.mxu0 0.0
        %3775 = vmatpush1.msra.mxu0 0.0
        %3776 = vmatprep.subr.mxu0 0.0
        %3777 = vmatpush1.msra.mxu0 0.0
        %3778 = vmatprep.subr.mxu0 0.0
        %3779 = vmatpush1.msra.mxu0 0.0
        %3780 = vmatprep.subr.mxu0 0.0
        %3781 = vmatpush1.msra.mxu0 %v334
        %3782 = vmatprep.subr.mxu0 0.0
        %3783 = vmatpush1.msra.mxu0 %v333
        %3784 = vmatprep.subr.mxu0 0.0
        %3785 = vmatpush1.msra.mxu0 %v332
        %3786 = vmatprep.subr.mxu0 0.0
        %3787 = vmatpush1.msra.mxu0 %v331
        %3788 = vmatprep.subr.mxu0 0.0
        %3789 = vmatpush2.msra.mxu0 0.0
        %3790 = vmatprep.subr.mxu0 0.0
        %3791 = vmatpush2.msra.mxu0 0.0
        %3792 = vmatprep.subr.mxu0 0.0
        %3793 = vmatpush2.msra.mxu0 0.0
        %3794 = vmatprep.subr.mxu0 0.0
        %3795 = vmatpush2.msra.mxu0 0.0
        %3796 = vmatprep.subr.mxu0 0.0
        %3797 = vmatpush2.msra.mxu0 0.0
        %3798 = vmatprep.subr.mxu0 0.0
        %3799 = vmatpush2.msra.mxu0 0.0
        %3800 = vmatprep.subr.mxu0 0.0
        %3801 = vmatpush2.msra.mxu0 0.0
        %3802 = vmatprep.subr.mxu0 0.0
        %3803 = vmatpush2.msra.mxu0 0.0
        %3804 = vmatprep.subr.mxu0 0.0
        %3805 = vmatpush2.msra.mxu0 0.0
        %3806 = vmatprep.subr.mxu0 0.0
        %3807 = vmatpush2.msra.mxu0 0.0
        %3808 = vmatprep.subr.mxu0 0.0
        %3809 = vmatpush2.msra.mxu0 0.0
        %3810 = vmatprep.subr.mxu0 0.0
        %3811 = vmatpush2.msra.mxu0 0.0
        %3812 = vmatprep.subr.mxu0 0.0
        %3813 = vmatpush2.msra.mxu0 0.0
        %3814 = vmatprep.subr.mxu0 0.0
        %3815 = vmatpush2.msra.mxu0 0.0
        %3816 = vmatprep.subr.mxu0 0.0
        %3817 = vmatpush2.msra.mxu0 0.0
        %3818 = vmatprep.subr.mxu0 0.0
        %3819 = vmatpush2.msra.mxu0 0.0
        %3820 = vmatprep.mubr.f32.mxu0 0.0
        %3821 = vmatmul.mubr.f32.gmra.mxu0 %v3604
        %v3822 = vpop.f32.mrf.mxu0
        %v3823 = vadd.f32 0.0, %v3822
        %v3824 = vpop.f32.mrf.mxu0
        %3825 = vdwg.mxu0
        %3826 = vmatprep.subr.mxu0 0.0
        %3827 = vmatpush1.msra.mxu0 0.0
        %3828 = vmatprep.subr.mxu0 0.0
        %3829 = vmatpush1.msra.mxu0 0.0
        %3830 = vmatprep.subr.mxu0 0.0
        %3831 = vmatpush1.msra.mxu0 0.0
        %3832 = vmatprep.subr.mxu0 0.0
        %3833 = vmatpush1.msra.mxu0 0.0
        %3834 = vmatprep.subr.mxu0 0.0
        %3835 = vmatpush1.msra.mxu0 0.0
        %3836 = vmatprep.subr.mxu0 0.0
        %3837 = vmatpush1.msra.mxu0 0.0
        %3838 = vmatprep.subr.mxu0 0.0
        %3839 = vmatpush1.msra.mxu0 0.0
        %3840 = vmatprep.subr.mxu0 0.0
        %3841 = vmatpush1.msra.mxu0 0.0
        %3842 = vmatprep.subr.mxu0 0.0
        %3843 = vmatpush1.msra.mxu0 0.0
        %3844 = vmatprep.subr.mxu0 0.0
        %3845 = vmatpush1.msra.mxu0 0.0
        %3846 = vmatprep.subr.mxu0 0.0
        %3847 = vmatpush1.msra.mxu0 0.0
        %3848 = vmatprep.subr.mxu0 0.0
        %3849 = vmatpush1.msra.mxu0 0.0
        %3850 = vmatprep.subr.mxu0 0.0
        %3851 = vmatpush1.msra.mxu0 %v319
        %3852 = vmatprep.subr.mxu0 0.0
        %3853 = vmatpush1.msra.mxu0 %v318
        %3854 = vmatprep.subr.mxu0 0.0
        %3855 = vmatpush1.msra.mxu0 %v317
        %3856 = vmatprep.subr.mxu0 0.0
        %3857 = vmatpush1.msra.mxu0 %v316
        %3858 = vmatprep.subr.mxu0 0.0
        %3859 = vmatpush2.msra.mxu0 0.0
        %3860 = vmatprep.subr.mxu0 0.0
        %3861 = vmatpush2.msra.mxu0 0.0
        %3862 = vmatprep.subr.mxu0 0.0
        %3863 = vmatpush2.msra.mxu0 0.0
        %3864 = vmatprep.subr.mxu0 0.0
        %3865 = vmatpush2.msra.mxu0 0.0
        %3866 = vmatprep.subr.mxu0 0.0
        %3867 = vmatpush2.msra.mxu0 0.0
        %3868 = vmatprep.subr.mxu0 0.0
        %3869 = vmatpush2.msra.mxu0 0.0
        %3870 = vmatprep.subr.mxu0 0.0
        %3871 = vmatpush2.msra.mxu0 0.0
        %3872 = vmatprep.subr.mxu0 0.0
        %3873 = vmatpush2.msra.mxu0 0.0
        %3874 = vmatprep.subr.mxu0 0.0
        %3875 = vmatpush2.msra.mxu0 0.0
        %3876 = vmatprep.subr.mxu0 0.0
        %3877 = vmatpush2.msra.mxu0 0.0
        %3878 = vmatprep.subr.mxu0 0.0
        %3879 = vmatpush2.msra.mxu0 0.0
        %3880 = vmatprep.subr.mxu0 0.0
        %3881 = vmatpush2.msra.mxu0 0.0
        %3882 = vmatprep.subr.mxu0 0.0
        %3883 = vmatpush2.msra.mxu0 0.0
        %3884 = vmatprep.subr.mxu0 0.0
        %3885 = vmatpush2.msra.mxu0 0.0
        %3886 = vmatprep.subr.mxu0 0.0
        %3887 = vmatpush2.msra.mxu0 0.0
        %3888 = vmatprep.subr.mxu0 0.0
        %3889 = vmatpush2.msra.mxu0 0.0
        %3890 = vmatprep.mubr.f32.mxu0 0.0
        %3891 = vmatmul.mubr.f32.gmra.mxu0 %v3677
        %v3892 = vpop.f32.mrf.mxu0
        %v3893 = vadd.f32 %v3823, %v3892
        %v3894 = vpop.f32.mrf.mxu0
        %3895 = vdwg.mxu0
        %v3896 = vadd.f32 %v3893, %v401
        %v3897 = vxor.u32 %v3896, 2147483648
        %v3898 = vmul.f32 %v3897, 1.442695
        %v3899 = vpow.pop %v3898
        %v3900 = vadd.f32 %v3899, 1.0
        %v3901 = vrcp.pop %v3900
        %v3902 = vmul.f32 1.0, %v3901
        %3903 = vmatprep.subr.mxu0 0.0
        %3904 = vmatpush1.msra.mxu0 0.0
        %3905 = vmatprep.subr.mxu0 0.0
        %3906 = vmatpush1.msra.mxu0 0.0
        %3907 = vmatprep.subr.mxu0 0.0
        %3908 = vmatpush1.msra.mxu0 0.0
        %3909 = vmatprep.subr.mxu0 0.0
        %3910 = vmatpush1.msra.mxu0 0.0
        %3911 = vmatprep.subr.mxu0 0.0
        %3912 = vmatpush1.msra.mxu0 0.0
        %3913 = vmatprep.subr.mxu0 0.0
        %3914 = vmatpush1.msra.mxu0 0.0
        %3915 = vmatprep.subr.mxu0 0.0
        %3916 = vmatpush1.msra.mxu0 0.0
        %3917 = vmatprep.subr.mxu0 0.0
        %3918 = vmatpush1.msra.mxu0 0.0
        %3919 = vmatprep.subr.mxu0 0.0
        %3920 = vmatpush1.msra.mxu0 0.0
        %3921 = vmatprep.subr.mxu0 0.0
        %3922 = vmatpush1.msra.mxu0 0.0
        %3923 = vmatprep.subr.mxu0 0.0
        %3924 = vmatpush1.msra.mxu0 0.0
        %3925 = vmatprep.subr.mxu0 0.0
        %3926 = vmatpush1.msra.mxu0 0.0
        %3927 = vmatprep.subr.mxu0 0.0
        %3928 = vmatpush1.msra.mxu0 %v339
        %3929 = vmatprep.subr.mxu0 0.0
        %3930 = vmatpush1.msra.mxu0 %v338
        %3931 = vmatprep.subr.mxu0 0.0
        %3932 = vmatpush1.msra.mxu0 %v337
        %3933 = vmatprep.subr.mxu0 0.0
        %3934 = vmatpush1.msra.mxu0 %v336
        %3935 = vmatprep.subr.mxu0 0.0
        %3936 = vmatpush2.msra.mxu0 0.0
        %3937 = vmatprep.subr.mxu0 0.0
        %3938 = vmatpush2.msra.mxu0 0.0
        %3939 = vmatprep.subr.mxu0 0.0
        %3940 = vmatpush2.msra.mxu0 0.0
        %3941 = vmatprep.subr.mxu0 0.0
        %3942 = vmatpush2.msra.mxu0 0.0
        %3943 = vmatprep.subr.mxu0 0.0
        %3944 = vmatpush2.msra.mxu0 0.0
        %3945 = vmatprep.subr.mxu0 0.0
        %3946 = vmatpush2.msra.mxu0 0.0
        %3947 = vmatprep.subr.mxu0 0.0
        %3948 = vmatpush2.msra.mxu0 0.0
        %3949 = vmatprep.subr.mxu0 0.0
        %3950 = vmatpush2.msra.mxu0 0.0
        %3951 = vmatprep.subr.mxu0 0.0
        %3952 = vmatpush2.msra.mxu0 0.0
        %3953 = vmatprep.subr.mxu0 0.0
        %3954 = vmatpush2.msra.mxu0 0.0
        %3955 = vmatprep.subr.mxu0 0.0
        %3956 = vmatpush2.msra.mxu0 0.0
        %3957 = vmatprep.subr.mxu0 0.0
        %3958 = vmatpush2.msra.mxu0 0.0
        %3959 = vmatprep.subr.mxu0 0.0
        %3960 = vmatpush2.msra.mxu0 0.0
        %3961 = vmatprep.subr.mxu0 0.0
        %3962 = vmatpush2.msra.mxu0 0.0
        %3963 = vmatprep.subr.mxu0 0.0
        %3964 = vmatpush2.msra.mxu0 0.0
        %3965 = vmatprep.subr.mxu0 0.0
        %3966 = vmatpush2.msra.mxu0 0.0
        %3967 = vmatprep.mubr.f32.mxu0 0.0
        %3968 = vmatmul.mubr.f32.gmra.mxu0 %v3604
        %v3969 = vpop.f32.mrf.mxu0
        %v3970 = vadd.f32 %v409, %v3969
        %v3971 = vpop.f32.mrf.mxu0
        %3972 = vdwg.mxu0
        %3973 = vmatprep.subr.mxu0 0.0
        %3974 = vmatpush1.msra.mxu0 0.0
        %3975 = vmatprep.subr.mxu0 0.0
        %3976 = vmatpush1.msra.mxu0 0.0
        %3977 = vmatprep.subr.mxu0 0.0
        %3978 = vmatpush1.msra.mxu0 0.0
        %3979 = vmatprep.subr.mxu0 0.0
        %3980 = vmatpush1.msra.mxu0 0.0
        %3981 = vmatprep.subr.mxu0 0.0
        %3982 = vmatpush1.msra.mxu0 0.0
        %3983 = vmatprep.subr.mxu0 0.0
        %3984 = vmatpush1.msra.mxu0 0.0
        %3985 = vmatprep.subr.mxu0 0.0
        %3986 = vmatpush1.msra.mxu0 0.0
        %3987 = vmatprep.subr.mxu0 0.0
        %3988 = vmatpush1.msra.mxu0 0.0
        %3989 = vmatprep.subr.mxu0 0.0
        %3990 = vmatpush1.msra.mxu0 0.0
        %3991 = vmatprep.subr.mxu0 0.0
        %3992 = vmatpush1.msra.mxu0 0.0
        %3993 = vmatprep.subr.mxu0 0.0
        %3994 = vmatpush1.msra.mxu0 0.0
        %3995 = vmatprep.subr.mxu0 0.0
        %3996 = vmatpush1.msra.mxu0 0.0
        %3997 = vmatprep.subr.mxu0 0.0
        %3998 = vmatpush1.msra.mxu0 %v324
        %3999 = vmatprep.subr.mxu0 0.0
        %4000 = vmatpush1.msra.mxu0 %v323
        %4001 = vmatprep.subr.mxu0 0.0
        %4002 = vmatpush1.msra.mxu0 %v322
        %4003 = vmatprep.subr.mxu0 0.0
        %4004 = vmatpush1.msra.mxu0 %v321
        %4005 = vmatprep.subr.mxu0 0.0
        %4006 = vmatpush2.msra.mxu0 0.0
        %4007 = vmatprep.subr.mxu0 0.0
        %4008 = vmatpush2.msra.mxu0 0.0
        %4009 = vmatprep.subr.mxu0 0.0
        %4010 = vmatpush2.msra.mxu0 0.0
        %4011 = vmatprep.subr.mxu0 0.0
        %4012 = vmatpush2.msra.mxu0 0.0
        %4013 = vmatprep.subr.mxu0 0.0
        %4014 = vmatpush2.msra.mxu0 0.0
        %4015 = vmatprep.subr.mxu0 0.0
        %4016 = vmatpush2.msra.mxu0 0.0
        %4017 = vmatprep.subr.mxu0 0.0
        %4018 = vmatpush2.msra.mxu0 0.0
        %4019 = vmatprep.subr.mxu0 0.0
        %4020 = vmatpush2.msra.mxu0 0.0
        %4021 = vmatprep.subr.mxu0 0.0
        %4022 = vmatpush2.msra.mxu0 0.0
        %4023 = vmatprep.subr.mxu0 0.0
        %4024 = vmatpush2.msra.mxu0 0.0
        %4025 = vmatprep.subr.mxu0 0.0
        %4026 = vmatpush2.msra.mxu0 0.0
        %4027 = vmatprep.subr.mxu0 0.0
        %4028 = vmatpush2.msra.mxu0 0.0
        %4029 = vmatprep.subr.mxu0 0.0
        %4030 = vmatpush2.msra.mxu0 0.0
        %4031 = vmatprep.subr.mxu0 0.0
        %4032 = vmatpush2.msra.mxu0 0.0
        %4033 = vmatprep.subr.mxu0 0.0
        %4034 = vmatpush2.msra.mxu0 0.0
        %4035 = vmatprep.subr.mxu0 0.0
        %4036 = vmatpush2.msra.mxu0 0.0
        %4037 = vmatprep.mubr.f32.mxu0 0.0
        %4038 = vmatmul.mubr.f32.gmra.mxu0 %v3677
        %v4039 = vpop.f32.mrf.mxu0
        %v4040 = vadd.f32 %v405, %v4039
        %v4041 = vpop.f32.mrf.mxu0
        %4042 = vdwg.mxu0
        %v4043 = vmul.f32 %v3755, %v3970
        %v4044 = vadd.f32 %v4040, %v4043
        %v4045 = vtanh.pop %v4044
        %v4046 = vsub.f32 1.0, %v3902
        %v4047 = vmul.f32 %v4046, %v4045
        %v4048 = vmul.f32 %v3902, %v3168
        %v4049 = vadd.f32 %v4047, %v4048
        %v4050 = vsel %vm437, %v4049, 0.0
        %4051 = vadd.xlane.f32.xlu0 %v4050
        %v4052 = vpop.xlane.xlu0 %4051
        %v4053 = vmul.f32 %v4052, %v486
        %v4054 = vsub.f32 %v4049, %v4053
        %v4055 = vmul.f32 %v4054, %v4054
        %v4056 = vsel %vm437, %v4055, 0.0
        %4057 = vadd.xlane.f32.xlu0 %v4056
        %v4058 = vpop.xlane.xlu0 %4057
        %v4059 = vmul.f32 %v4058, %v486
        %v4060 = vadd.f32 %v4059, 1e-05
        %v4061 = vrsqrt.pop %v4060
        %v4062 = vmul.f32 %v4054, %v4061
        %v4063 = vmul.f32 %v4062, %v385
        %v4064 = vadd.f32 %v4063, %v389
        %v4066 = vsel %vm437, %v4064, 0
        %4068 = vmatprep.subr.mxu0 0.0
        %4069 = vmatpush1.msra.mxu0 0.0
        %4070 = vmatprep.subr.mxu0 0.0
        %4071 = vmatpush1.msra.mxu0 0.0
        %4072 = vmatprep.subr.mxu0 0.0
        %4073 = vmatpush1.msra.mxu0 0.0
        %4074 = vmatprep.subr.mxu0 0.0
        %4075 = vmatpush1.msra.mxu0 0.0
        %4076 = vmatprep.subr.mxu0 0.0
        %4077 = vmatpush1.msra.mxu0 0.0
        %4078 = vmatprep.subr.mxu0 0.0
        %4079 = vmatpush1.msra.mxu0 0.0
        %4080 = vmatprep.subr.mxu0 0.0
        %4081 = vmatpush1.msra.mxu0 0.0
        %4082 = vmatprep.subr.mxu0 0.0
        %4083 = vmatpush1.msra.mxu0 0.0
        %4084 = vmatprep.subr.mxu0 0.0
        %4085 = vmatpush1.msra.mxu0 0.0
        %4086 = vmatprep.subr.mxu0 0.0
        %4087 = vmatpush1.msra.mxu0 0.0
        %4088 = vmatprep.subr.mxu0 0.0
        %4089 = vmatpush1.msra.mxu0 0.0
        %4090 = vmatprep.subr.mxu0 0.0
        %4091 = vmatpush1.msra.mxu0 0.0
        %4092 = vmatprep.subr.mxu0 0.0
        %4093 = vmatpush1.msra.mxu0 %v357
        %4094 = vmatprep.subr.mxu0 0.0
        %4095 = vmatpush1.msra.mxu0 %v356
        %4096 = vmatprep.subr.mxu0 0.0
        %4097 = vmatpush1.msra.mxu0 %v355
        %4098 = vmatprep.subr.mxu0 0.0
        %4099 = vmatpush1.msra.mxu0 %v354
        %4100 = vmatprep.subr.mxu0 0.0
        %4101 = vmatpush2.msra.mxu0 0.0
        %4102 = vmatprep.subr.mxu0 0.0
        %4103 = vmatpush2.msra.mxu0 0.0
        %4104 = vmatprep.subr.mxu0 0.0
        %4105 = vmatpush2.msra.mxu0 0.0
        %4106 = vmatprep.subr.mxu0 0.0
        %4107 = vmatpush2.msra.mxu0 0.0
        %4108 = vmatprep.subr.mxu0 0.0
        %4109 = vmatpush2.msra.mxu0 0.0
        %4110 = vmatprep.subr.mxu0 0.0
        %4111 = vmatpush2.msra.mxu0 0.0
        %4112 = vmatprep.subr.mxu0 0.0
        %4113 = vmatpush2.msra.mxu0 0.0
        %4114 = vmatprep.subr.mxu0 0.0
        %4115 = vmatpush2.msra.mxu0 0.0
        %4116 = vmatprep.subr.mxu0 0.0
        %4117 = vmatpush2.msra.mxu0 0.0
        %4118 = vmatprep.subr.mxu0 0.0
        %4119 = vmatpush2.msra.mxu0 0.0
        %4120 = vmatprep.subr.mxu0 0.0
        %4121 = vmatpush2.msra.mxu0 0.0
        %4122 = vmatprep.subr.mxu0 0.0
        %4123 = vmatpush2.msra.mxu0 0.0
        %4124 = vmatprep.subr.mxu0 0.0
        %4125 = vmatpush2.msra.mxu0 0.0
        %4126 = vmatprep.subr.mxu0 0.0
        %4127 = vmatpush2.msra.mxu0 0.0
        %4128 = vmatprep.subr.mxu0 0.0
        %4129 = vmatpush2.msra.mxu0 0.0
        %4130 = vmatprep.subr.mxu0 0.0
        %4131 = vmatpush2.msra.mxu0 0.0
        %4132 = vmatprep.mubr.f32.mxu0 0.0
        %4133 = vmatmul.mubr.f32.gmra.mxu0 %v4066
        %v4134 = vpop.f32.mrf.mxu0
        %v4135 = vadd.f32 %v419, %v4134
        %v4136 = vpop.f32.mrf.mxu0
        %4137 = vdwg.mxu0
        %v4138 = vmax.f32 %v4135, 0.0
        %4139 = vmatprep.subr.mxu0 0.0
        %4140 = vmatpush1.msra.mxu0 %v373
        %4141 = vmatprep.subr.mxu0 0.0
        %4142 = vmatpush1.msra.mxu0 %v372
        %4143 = vmatprep.subr.mxu0 0.0
        %4144 = vmatpush1.msra.mxu0 %v371
        %4145 = vmatprep.subr.mxu0 0.0
        %4146 = vmatpush1.msra.mxu0 %v370
        %4147 = vmatprep.subr.mxu0 0.0
        %4148 = vmatpush1.msra.mxu0 %v369
        %4149 = vmatprep.subr.mxu0 0.0
        %4150 = vmatpush1.msra.mxu0 %v368
        %4151 = vmatprep.subr.mxu0 0.0
        %4152 = vmatpush1.msra.mxu0 %v367
        %4153 = vmatprep.subr.mxu0 0.0
        %4154 = vmatpush1.msra.mxu0 %v366
        %4155 = vmatprep.subr.mxu0 0.0
        %4156 = vmatpush1.msra.mxu0 %v365
        %4157 = vmatprep.subr.mxu0 0.0
        %4158 = vmatpush1.msra.mxu0 %v364
        %4159 = vmatprep.subr.mxu0 0.0
        %4160 = vmatpush1.msra.mxu0 %v363
        %4161 = vmatprep.subr.mxu0 0.0
        %4162 = vmatpush1.msra.mxu0 %v362
        %4163 = vmatprep.subr.mxu0 0.0
        %4164 = vmatpush1.msra.mxu0 %v361
        %4165 = vmatprep.subr.mxu0 0.0
        %4166 = vmatpush1.msra.mxu0 %v360
        %4167 = vmatprep.subr.mxu0 0.0
        %4168 = vmatpush1.msra.mxu0 %v359
        %4169 = vmatprep.subr.mxu0 0.0
        %4170 = vmatpush1.msra.mxu0 %v358
        %4171 = vmatprep.subr.mxu0 0.0
        %4172 = vmatpush2.msra.mxu0 0.0
        %4173 = vmatprep.subr.mxu0 0.0
        %4174 = vmatpush2.msra.mxu0 0.0
        %4175 = vmatprep.subr.mxu0 0.0
        %4176 = vmatpush2.msra.mxu0 0.0
        %4177 = vmatprep.subr.mxu0 0.0
        %4178 = vmatpush2.msra.mxu0 0.0
        %4179 = vmatprep.subr.mxu0 0.0
        %4180 = vmatpush2.msra.mxu0 0.0
        %4181 = vmatprep.subr.mxu0 0.0
        %4182 = vmatpush2.msra.mxu0 0.0
        %4183 = vmatprep.subr.mxu0 0.0
        %4184 = vmatpush2.msra.mxu0 0.0
        %4185 = vmatprep.subr.mxu0 0.0
        %4186 = vmatpush2.msra.mxu0 0.0
        %4187 = vmatprep.subr.mxu0 0.0
        %4188 = vmatpush2.msra.mxu0 0.0
        %4189 = vmatprep.subr.mxu0 0.0
        %4190 = vmatpush2.msra.mxu0 0.0
        %4191 = vmatprep.subr.mxu0 0.0
        %4192 = vmatpush2.msra.mxu0 0.0
        %4193 = vmatprep.subr.mxu0 0.0
        %4194 = vmatpush2.msra.mxu0 0.0
        %4195 = vmatprep.subr.mxu0 0.0
        %4196 = vmatpush2.msra.mxu0 0.0
        %4197 = vmatprep.subr.mxu0 0.0
        %4198 = vmatpush2.msra.mxu0 0.0
        %4199 = vmatprep.subr.mxu0 0.0
        %4200 = vmatpush2.msra.mxu0 0.0
        %4201 = vmatprep.subr.mxu0 0.0
        %4202 = vmatpush2.msra.mxu0 0.0
        %4203 = vmatprep.mubr.f32.mxu0 0.0
        %4204 = vmatmul.mubr.f32.gmra.mxu0 %v4138
        %v4205 = vpop.f32.mrf.mxu0
        %v4206 = vadd.f32 0.0, %v4205
        %v4207 = vpop.f32.mrf.mxu0
        %4208 = vdwg.mxu0
        %v4209 = vadd.f32 %v4049, %v4206
        %v4210 = vadd.f32 %v4209, %v413
        %v4211 = vsel %vm437, %v4210, 0.0
        %4212 = vadd.xlane.f32.xlu0 %v4211
        %v4213 = vpop.xlane.xlu0 %4212
        %v4214 = vmul.f32 %v4213, %v486
        %v4215 = vsub.f32 %v4210, %v4214
        %v4216 = vmul.f32 %v4215, %v4215
        %v4217 = vsel %vm437, %v4216, 0.0
        %4218 = vadd.xlane.f32.xlu0 %v4217
        %v4219 = vpop.xlane.xlu0 %4218
        %v4220 = vmul.f32 %v4219, %v486
        %v4221 = vadd.f32 %v4220, 1e-05
        %v4222 = vrsqrt.pop %v4221
        %v4223 = vmul.f32 %v4215, %v4222
        %v4224 = vmul.f32 %v4223, %v377
        %v4225 = vadd.f32 %v4224, %v381
        %v4227 = vsel %vm437, %v4225, 0
        %4229 = vmatprep.subr.mxu0 0.0
        %4230 = vmatpush1.msra.mxu0 0.0
        %4231 = vmatprep.subr.mxu0 0.0
        %4232 = vmatpush1.msra.mxu0 0.0
        %4233 = vmatprep.subr.mxu0 0.0
        %4234 = vmatpush1.msra.mxu0 0.0
        %4235 = vmatprep.subr.mxu0 0.0
        %4236 = vmatpush1.msra.mxu0 0.0
        %4237 = vmatprep.subr.mxu0 0.0
        %4238 = vmatpush1.msra.mxu0 0.0
        %4239 = vmatprep.subr.mxu0 0.0
        %4240 = vmatpush1.msra.mxu0 0.0
        %4241 = vmatprep.subr.mxu0 0.0
        %4242 = vmatpush1.msra.mxu0 0.0
        %4243 = vmatprep.subr.mxu0 0.0
        %4244 = vmatpush1.msra.mxu0 0.0
        %4245 = vmatprep.subr.mxu0 0.0
        %4246 = vmatpush1.msra.mxu0 0.0
        %4247 = vmatprep.subr.mxu0 0.0
        %4248 = vmatpush1.msra.mxu0 0.0
        %4249 = vmatprep.subr.mxu0 0.0
        %4250 = vmatpush1.msra.mxu0 0.0
        %4251 = vmatprep.subr.mxu0 0.0
        %4252 = vmatpush1.msra.mxu0 0.0
        %4253 = vmatprep.subr.mxu0 0.0
        %4254 = vmatpush1.msra.mxu0 %v309
        %4255 = vmatprep.subr.mxu0 0.0
        %4256 = vmatpush1.msra.mxu0 %v308
        %4257 = vmatprep.subr.mxu0 0.0
        %4258 = vmatpush1.msra.mxu0 %v307
        %4259 = vmatprep.subr.mxu0 0.0
        %4260 = vmatpush1.msra.mxu0 %v306
        %4261 = vmatprep.subr.mxu0 0.0
        %4262 = vmatpush2.msra.mxu0 0.0
        %4263 = vmatprep.subr.mxu0 0.0
        %4264 = vmatpush2.msra.mxu0 0.0
        %4265 = vmatprep.subr.mxu0 0.0
        %4266 = vmatpush2.msra.mxu0 0.0
        %4267 = vmatprep.subr.mxu0 0.0
        %4268 = vmatpush2.msra.mxu0 0.0
        %4269 = vmatprep.subr.mxu0 0.0
        %4270 = vmatpush2.msra.mxu0 0.0
        %4271 = vmatprep.subr.mxu0 0.0
        %4272 = vmatpush2.msra.mxu0 0.0
        %4273 = vmatprep.subr.mxu0 0.0
        %4274 = vmatpush2.msra.mxu0 0.0
        %4275 = vmatprep.subr.mxu0 0.0
        %4276 = vmatpush2.msra.mxu0 0.0
        %4277 = vmatprep.subr.mxu0 0.0
        %4278 = vmatpush2.msra.mxu0 0.0
        %4279 = vmatprep.subr.mxu0 0.0
        %4280 = vmatpush2.msra.mxu0 0.0
        %4281 = vmatprep.subr.mxu0 0.0
        %4282 = vmatpush2.msra.mxu0 0.0
        %4283 = vmatprep.subr.mxu0 0.0
        %4284 = vmatpush2.msra.mxu0 0.0
        %4285 = vmatprep.subr.mxu0 0.0
        %4286 = vmatpush2.msra.mxu0 0.0
        %4287 = vmatprep.subr.mxu0 0.0
        %4288 = vmatpush2.msra.mxu0 0.0
        %4289 = vmatprep.subr.mxu0 0.0
        %4290 = vmatpush2.msra.mxu0 0.0
        %4291 = vmatprep.subr.mxu0 0.0
        %4292 = vmatpush2.msra.mxu0 0.0
        %4293 = vmatprep.mubr.f32.mxu0 0.0
        %4294 = vmatmul.mubr.f32.gmra.mxu0 %v4227
        %v4295 = vpop.f32.mrf.mxu0
        %v4296 = vadd.f32 %v393, %v4295
        %v4297 = vpop.f32.mrf.mxu0
        %4298 = vdwg.mxu0
        %v4300 = vsel %vm437, %v4296, 0
        %4302 = vmatprep.subr.mxu0 0.0
        %4303 = vmatpush1.xpose.msra.mxu0 0.0
        %4304 = vmatprep.subr.mxu0 0.0
        %4305 = vmatpush1.xpose.msra.mxu0 0.0
        %4306 = vmatprep.subr.mxu0 0.0
        %4307 = vmatpush1.xpose.msra.mxu0 0.0
        %4308 = vmatprep.subr.mxu0 0.0
        %4309 = vmatpush1.xpose.msra.mxu0 0.0
        %4310 = vmatprep.subr.mxu0 0.0
        %4311 = vmatpush1.xpose.msra.mxu0 0.0
        %4312 = vmatprep.subr.mxu0 0.0
        %4313 = vmatpush1.xpose.msra.mxu0 0.0
        %4314 = vmatprep.subr.mxu0 0.0
        %4315 = vmatpush1.xpose.msra.mxu0 0.0
        %4316 = vmatprep.subr.mxu0 0.0
        %4317 = vmatpush1.xpose.msra.mxu0 0.0
        %4318 = vmatprep.subr.mxu0 0.0
        %4319 = vmatpush1.xpose.msra.mxu0 %v1147
        %4320 = vmatprep.subr.mxu0 0.0
        %4321 = vmatpush1.xpose.msra.mxu0 %v1144
        %4322 = vmatprep.subr.mxu0 0.0
        %4323 = vmatpush1.xpose.msra.mxu0 %v1141
        %4324 = vmatprep.subr.mxu0 0.0
        %4325 = vmatpush1.xpose.msra.mxu0 %v1138
        %4326 = vmatprep.subr.mxu0 0.0
        %4327 = vmatpush1.xpose.msra.mxu0 %v1135
        %4328 = vmatprep.subr.mxu0 0.0
        %4329 = vmatpush1.xpose.msra.mxu0 %v1132
        %4330 = vmatprep.subr.mxu0 0.0
        %4331 = vmatpush1.xpose.msra.mxu0 %v1129
        %4332 = vmatprep.subr.mxu0 0.0
        %4333 = vmatpush1.xpose.msra.mxu0 %v1126
        %4334 = vmatprep.subr.mxu0 0.0
        %4335 = vmatpush2.xpose.msra.mxu0 0.0
        %4336 = vmatprep.subr.mxu0 0.0
        %4337 = vmatpush2.xpose.msra.mxu0 0.0
        %4338 = vmatprep.subr.mxu0 0.0
        %4339 = vmatpush2.xpose.msra.mxu0 0.0
        %4340 = vmatprep.subr.mxu0 0.0
        %4341 = vmatpush2.xpose.msra.mxu0 0.0
        %4342 = vmatprep.subr.mxu0 0.0
        %4343 = vmatpush2.xpose.msra.mxu0 0.0
        %4344 = vmatprep.subr.mxu0 0.0
        %4345 = vmatpush2.xpose.msra.mxu0 0.0
        %4346 = vmatprep.subr.mxu0 0.0
        %4347 = vmatpush2.xpose.msra.mxu0 0.0
        %4348 = vmatprep.subr.mxu0 0.0
        %4349 = vmatpush2.xpose.msra.mxu0 0.0
        %4350 = vmatprep.subr.mxu0 0.0
        %4351 = vmatpush2.xpose.msra.mxu0 0.0
        %4352 = vmatprep.subr.mxu0 0.0
        %4353 = vmatpush2.xpose.msra.mxu0 0.0
        %4354 = vmatprep.subr.mxu0 0.0
        %4355 = vmatpush2.xpose.msra.mxu0 0.0
        %4356 = vmatprep.subr.mxu0 0.0
        %4357 = vmatpush2.xpose.msra.mxu0 0.0
        %4358 = vmatprep.subr.mxu0 0.0
        %4359 = vmatpush2.xpose.msra.mxu0 0.0
        %4360 = vmatprep.subr.mxu0 0.0
        %4361 = vmatpush2.xpose.msra.mxu0 0.0
        %4362 = vmatprep.subr.mxu0 0.0
        %4363 = vmatpush2.xpose.msra.mxu0 0.0
        %4364 = vmatprep.subr.mxu0 0.0
        %4365 = vmatpush2.xpose.msra.mxu0 0.0
        %4366 = vmatprep.mubr.f32.mxu0 0.0
        %4367 = vmatmul.mubr.f32.gmra.mxu0 %v4300
        %v4368 = vpop.f32.mrf.mxu0
        %v4369 = vadd.f32 0.0, %v4368
        %v4370 = vpop.f32.mrf.mxu0
        %4371 = vdwg.mxu0
        %v4372 = vsel %vm1219, %v4369, -inf
        %v4373 = vrot.slane %v4372, 4
        %v4374 = vmax.f32 %v4372, %v4373
        %v4375 = vrot.slane %v4374, 2
        %v4376 = vmax.f32 %v4374, %v4375
        %v4377 = vrot.slane %v4376, 1
        %v4378 = vmax.f32 %v4376, %v4377
        %v4379 = vsub.f32 %v4369, %v4378
        %v4380 = vmul.f32 %v4379, 1.442695
        %v4381 = vpow.pop %v4380
        %v4382 = vsel %vm1219, %v4381, 0.0
        %v4383 = vrot.slane %v4382, 4
        %v4384 = vadd.f32 %v4382, %v4383
        %v4385 = vrot.slane %v4384, 2
        %v4386 = vadd.f32 %v4384, %v4385
        %v4387 = vrot.slane %v4386, 1
        %v4388 = vadd.f32 %v4386, %v4387
        %v4389 = vrcp.pop %v4388
        %v4390 = vmul.f32 %v4381, %v4389
        %v4391 = vadd.f32 %v4390, 1e-08
        %v4392 = vsel %vm1219, %v4391, 0.0
        %4393 = vadd.xlane.f32.xlu0 %v4392
        %v4394 = vpop.xlane.xlu0 %4393
        %v4395 = vrcp.pop %v4394
        %v4396 = vmul.f32 %v4391, %v4395
        %v4398 = vsel %vm1245, %v4396, 0
        %4400 = vmatprep.subr.mxu0 0.0
        %4401 = vmatpush1.msra.mxu0 0.0
        %4402 = vmatprep.subr.mxu0 0.0
        %4403 = vmatpush1.msra.mxu0 0.0
        %4404 = vmatprep.subr.mxu0 0.0
        %4405 = vmatpush1.msra.mxu0 0.0
        %4406 = vmatprep.subr.mxu0 0.0
        %4407 = vmatpush1.msra.mxu0 0.0
        %4408 = vmatprep.subr.mxu0 0.0
        %4409 = vmatpush1.msra.mxu0 0.0
        %4410 = vmatprep.subr.mxu0 0.0
        %4411 = vmatpush1.msra.mxu0 0.0
        %4412 = vmatprep.subr.mxu0 0.0
        %4413 = vmatpush1.msra.mxu0 0.0
        %4414 = vmatprep.subr.mxu0 0.0
        %4415 = vmatpush1.msra.mxu0 0.0
        %4416 = vmatprep.subr.mxu0 0.0
        %4417 = vmatpush1.msra.mxu0 %v990
        %4418 = vmatprep.subr.mxu0 0.0
        %4419 = vmatpush1.msra.mxu0 %v985
        %4420 = vmatprep.subr.mxu0 0.0
        %4421 = vmatpush1.msra.mxu0 %v980
        %4422 = vmatprep.subr.mxu0 0.0
        %4423 = vmatpush1.msra.mxu0 %v975
        %4424 = vmatprep.subr.mxu0 0.0
        %4425 = vmatpush1.msra.mxu0 %v970
        %4426 = vmatprep.subr.mxu0 0.0
        %4427 = vmatpush1.msra.mxu0 %v965
        %4428 = vmatprep.subr.mxu0 0.0
        %4429 = vmatpush1.msra.mxu0 %v960
        %4430 = vmatprep.subr.mxu0 0.0
        %4431 = vmatpush1.msra.mxu0 %v955
        %4432 = vmatprep.subr.mxu0 0.0
        %4433 = vmatpush2.msra.mxu0 0.0
        %4434 = vmatprep.subr.mxu0 0.0
        %4435 = vmatpush2.msra.mxu0 0.0
        %4436 = vmatprep.subr.mxu0 0.0
        %4437 = vmatpush2.msra.mxu0 0.0
        %4438 = vmatprep.subr.mxu0 0.0
        %4439 = vmatpush2.msra.mxu0 0.0
        %4440 = vmatprep.subr.mxu0 0.0
        %4441 = vmatpush2.msra.mxu0 0.0
        %4442 = vmatprep.subr.mxu0 0.0
        %4443 = vmatpush2.msra.mxu0 0.0
        %4444 = vmatprep.subr.mxu0 0.0
        %4445 = vmatpush2.msra.mxu0 0.0
        %4446 = vmatprep.subr.mxu0 0.0
        %4447 = vmatpush2.msra.mxu0 0.0
        %4448 = vmatprep.subr.mxu0 0.0
        %4449 = vmatpush2.msra.mxu0 0.0
        %4450 = vmatprep.subr.mxu0 0.0
        %4451 = vmatpush2.msra.mxu0 0.0
        %4452 = vmatprep.subr.mxu0 0.0
        %4453 = vmatpush2.msra.mxu0 0.0
        %4454 = vmatprep.subr.mxu0 0.0
        %4455 = vmatpush2.msra.mxu0 0.0
        %4456 = vmatprep.subr.mxu0 0.0
        %4457 = vmatpush2.msra.mxu0 0.0
        %4458 = vmatprep.subr.mxu0 0.0
        %4459 = vmatpush2.msra.mxu0 0.0
        %4460 = vmatprep.subr.mxu0 0.0
        %4461 = vmatpush2.msra.mxu0 0.0
        %4462 = vmatprep.subr.mxu0 0.0
        %4463 = vmatpush2.msra.mxu0 0.0
        %4464 = vmatprep.mubr.f32.mxu0 0.0
        %4465 = vmatmul.mubr.f32.gmra.mxu0 %v4398
        %v4466 = vpop.f32.mrf.mxu0
        %v4467 = vadd.f32 0.0, %v4466
        %v4468 = vpop.f32.mrf.mxu0
        %4469 = vdwg.mxu0
        %v4470 = vrot.slane %v4296, 4
        %v4471 = vsel %vm437, %v4470, 0
        %4473 = vmatprep.subr.mxu0 0.0
        %4474 = vmatpush1.xpose.msra.mxu0 0.0
        %4475 = vmatprep.subr.mxu0 0.0
        %4476 = vmatpush1.xpose.msra.mxu0 0.0
        %4477 = vmatprep.subr.mxu0 0.0
        %4478 = vmatpush1.xpose.msra.mxu0 0.0
        %4479 = vmatprep.subr.mxu0 0.0
        %4480 = vmatpush1.xpose.msra.mxu0 0.0
        %4481 = vmatprep.subr.mxu0 0.0
        %4482 = vmatpush1.xpose.msra.mxu0 0.0
        %4483 = vmatprep.subr.mxu0 0.0
        %4484 = vmatpush1.xpose.msra.mxu0 0.0
        %4485 = vmatprep.subr.mxu0 0.0
        %4486 = vmatpush1.xpose.msra.mxu0 0.0
        %4487 = vmatprep.subr.mxu0 0.0
        %4488 = vmatpush1.xpose.msra.mxu0 0.0
        %4489 = vmatprep.subr.mxu0 0.0
        %4490 = vmatpush1.xpose.msra.mxu0 %v1344
        %4491 = vmatprep.subr.mxu0 0.0
        %4492 = vmatpush1.xpose.msra.mxu0 %v1341
        %4493 = vmatprep.subr.mxu0 0.0
        %4494 = vmatpush1.xpose.msra.mxu0 %v1338
        %4495 = vmatprep.subr.mxu0 0.0
        %4496 = vmatpush1.xpose.msra.mxu0 %v1335
        %4497 = vmatprep.subr.mxu0 0.0
        %4498 = vmatpush1.xpose.msra.mxu0 %v1332
        %4499 = vmatprep.subr.mxu0 0.0
        %4500 = vmatpush1.xpose.msra.mxu0 %v1329
        %4501 = vmatprep.subr.mxu0 0.0
        %4502 = vmatpush1.xpose.msra.mxu0 %v1326
        %4503 = vmatprep.subr.mxu0 0.0
        %4504 = vmatpush1.xpose.msra.mxu0 %v1323
        %4505 = vmatprep.subr.mxu0 0.0
        %4506 = vmatpush2.xpose.msra.mxu0 0.0
        %4507 = vmatprep.subr.mxu0 0.0
        %4508 = vmatpush2.xpose.msra.mxu0 0.0
        %4509 = vmatprep.subr.mxu0 0.0
        %4510 = vmatpush2.xpose.msra.mxu0 0.0
        %4511 = vmatprep.subr.mxu0 0.0
        %4512 = vmatpush2.xpose.msra.mxu0 0.0
        %4513 = vmatprep.subr.mxu0 0.0
        %4514 = vmatpush2.xpose.msra.mxu0 0.0
        %4515 = vmatprep.subr.mxu0 0.0
        %4516 = vmatpush2.xpose.msra.mxu0 0.0
        %4517 = vmatprep.subr.mxu0 0.0
        %4518 = vmatpush2.xpose.msra.mxu0 0.0
        %4519 = vmatprep.subr.mxu0 0.0
        %4520 = vmatpush2.xpose.msra.mxu0 0.0
        %4521 = vmatprep.subr.mxu0 0.0
        %4522 = vmatpush2.xpose.msra.mxu0 0.0
        %4523 = vmatprep.subr.mxu0 0.0
        %4524 = vmatpush2.xpose.msra.mxu0 0.0
        %4525 = vmatprep.subr.mxu0 0.0
        %4526 = vmatpush2.xpose.msra.mxu0 0.0
        %4527 = vmatprep.subr.mxu0 0.0
        %4528 = vmatpush2.xpose.msra.mxu0 0.0
        %4529 = vmatprep.subr.mxu0 0.0
        %4530 = vmatpush2.xpose.msra.mxu0 0.0
        %4531 = vmatprep.subr.mxu0 0.0
        %4532 = vmatpush2.xpose.msra.mxu0 0.0
        %4533 = vmatprep.subr.mxu0 0.0
        %4534 = vmatpush2.xpose.msra.mxu0 0.0
        %4535 = vmatprep.subr.mxu0 0.0
        %4536 = vmatpush2.xpose.msra.mxu0 0.0
        %4537 = vmatprep.mubr.f32.mxu0 0.0
        %4538 = vmatmul.mubr.f32.gmra.mxu0 %v4471
        %v4539 = vpop.f32.mrf.mxu0
        %v4540 = vadd.f32 0.0, %v4539
        %v4541 = vpop.f32.mrf.mxu0
        %4542 = vdwg.mxu0
        %v4543 = vsel %vm1219, %v4540, -inf
        %v4544 = vrot.slane %v4543, 4
        %v4545 = vmax.f32 %v4543, %v4544
        %v4546 = vrot.slane %v4545, 2
        %v4547 = vmax.f32 %v4545, %v4546
        %v4548 = vrot.slane %v4547, 1
        %v4549 = vmax.f32 %v4547, %v4548
        %v4550 = vsub.f32 %v4540, %v4549
        %v4551 = vmul.f32 %v4550, 1.442695
        %v4552 = vpow.pop %v4551
        %v4553 = vsel %vm1219, %v4552, 0.0
        %v4554 = vrot.slane %v4553, 4
        %v4555 = vadd.f32 %v4553, %v4554
        %v4556 = vrot.slane %v4555, 2
        %v4557 = vadd.f32 %v4555, %v4556
        %v4558 = vrot.slane %v4557, 1
        %v4559 = vadd.f32 %v4557, %v4558
        %v4560 = vrcp.pop %v4559
        %v4561 = vmul.f32 %v4552, %v4560
        %v4562 = vadd.f32 %v4561, 1e-08
        %v4563 = vsel %vm1219, %v4562, 0.0
        %4564 = vadd.xlane.f32.xlu0 %v4563
        %v4565 = vpop.xlane.xlu0 %4564
        %v4566 = vrcp.pop %v4565
        %v4567 = vmul.f32 %v4562, %v4566
        %v4569 = vsel %vm1245, %v4567, 0
        %4571 = vmatprep.subr.mxu0 0.0
        %4572 = vmatpush1.msra.mxu0 0.0
        %4573 = vmatprep.subr.mxu0 0.0
        %4574 = vmatpush1.msra.mxu0 0.0
        %4575 = vmatprep.subr.mxu0 0.0
        %4576 = vmatpush1.msra.mxu0 0.0
        %4577 = vmatprep.subr.mxu0 0.0
        %4578 = vmatpush1.msra.mxu0 0.0
        %4579 = vmatprep.subr.mxu0 0.0
        %4580 = vmatpush1.msra.mxu0 0.0
        %4581 = vmatprep.subr.mxu0 0.0
        %4582 = vmatpush1.msra.mxu0 0.0
        %4583 = vmatprep.subr.mxu0 0.0
        %4584 = vmatpush1.msra.mxu0 0.0
        %4585 = vmatprep.subr.mxu0 0.0
        %4586 = vmatpush1.msra.mxu0 0.0
        %4587 = vmatprep.subr.mxu0 0.0
        %4588 = vmatpush1.msra.mxu0 %v1030
        %4589 = vmatprep.subr.mxu0 0.0
        %4590 = vmatpush1.msra.mxu0 %v1025
        %4591 = vmatprep.subr.mxu0 0.0
        %4592 = vmatpush1.msra.mxu0 %v1020
        %4593 = vmatprep.subr.mxu0 0.0
        %4594 = vmatpush1.msra.mxu0 %v1015
        %4595 = vmatprep.subr.mxu0 0.0
        %4596 = vmatpush1.msra.mxu0 %v1010
        %4597 = vmatprep.subr.mxu0 0.0
        %4598 = vmatpush1.msra.mxu0 %v1005
        %4599 = vmatprep.subr.mxu0 0.0
        %4600 = vmatpush1.msra.mxu0 %v1000
        %4601 = vmatprep.subr.mxu0 0.0
        %4602 = vmatpush1.msra.mxu0 %v995
        %4603 = vmatprep.subr.mxu0 0.0
        %4604 = vmatpush2.msra.mxu0 0.0
        %4605 = vmatprep.subr.mxu0 0.0
        %4606 = vmatpush2.msra.mxu0 0.0
        %4607 = vmatprep.subr.mxu0 0.0
        %4608 = vmatpush2.msra.mxu0 0.0
        %4609 = vmatprep.subr.mxu0 0.0
        %4610 = vmatpush2.msra.mxu0 0.0
        %4611 = vmatprep.subr.mxu0 0.0
        %4612 = vmatpush2.msra.mxu0 0.0
        %4613 = vmatprep.subr.mxu0 0.0
        %4614 = vmatpush2.msra.mxu0 0.0
        %4615 = vmatprep.subr.mxu0 0.0
        %4616 = vmatpush2.msra.mxu0 0.0
        %4617 = vmatprep.subr.mxu0 0.0
        %4618 = vmatpush2.msra.mxu0 0.0
        %4619 = vmatprep.subr.mxu0 0.0
        %4620 = vmatpush2.msra.mxu0 0.0
        %4621 = vmatprep.subr.mxu0 0.0
        %4622 = vmatpush2.msra.mxu0 0.0
        %4623 = vmatprep.subr.mxu0 0.0
        %4624 = vmatpush2.msra.mxu0 0.0
        %4625 = vmatprep.subr.mxu0 0.0
        %4626 = vmatpush2.msra.mxu0 0.0
        %4627 = vmatprep.subr.mxu0 0.0
        %4628 = vmatpush2.msra.mxu0 0.0
        %4629 = vmatprep.subr.mxu0 0.0
        %4630 = vmatpush2.msra.mxu0 0.0
        %4631 = vmatprep.subr.mxu0 0.0
        %4632 = vmatpush2.msra.mxu0 0.0
        %4633 = vmatprep.subr.mxu0 0.0
        %4634 = vmatpush2.msra.mxu0 0.0
        %4635 = vmatprep.mubr.f32.mxu0 0.0
        %4636 = vmatmul.mubr.f32.gmra.mxu0 %v4569
        %v4637 = vpop.f32.mrf.mxu0
        %v4638 = vadd.f32 0.0, %v4637
        %v4639 = vpop.f32.mrf.mxu0
        %4640 = vdwg.mxu0
        %v4642 = vrot.slane %v4638, 4
        %v4644 = vsel %vm1517, %v4467, %v4642
        %v4646 = vsel %vm437, %v4210, 0
        %4648 = vmatprep.subr.mxu0 0.0
        %4649 = vmatpush1.msra.mxu0 0.0
        %4650 = vmatprep.subr.mxu0 0.0
        %4651 = vmatpush1.msra.mxu0 0.0
        %4652 = vmatprep.subr.mxu0 0.0
        %4653 = vmatpush1.msra.mxu0 0.0
        %4654 = vmatprep.subr.mxu0 0.0
        %4655 = vmatpush1.msra.mxu0 0.0
        %4656 = vmatprep.subr.mxu0 0.0
        %4657 = vmatpush1.msra.mxu0 0.0
        %4658 = vmatprep.subr.mxu0 0.0
        %4659 = vmatpush1.msra.mxu0 0.0
        %4660 = vmatprep.subr.mxu0 0.0
        %4661 = vmatpush1.msra.mxu0 0.0
        %4662 = vmatprep.subr.mxu0 0.0
        %4663 = vmatpush1.msra.mxu0 0.0
        %4664 = vmatprep.subr.mxu0 0.0
        %4665 = vmatpush1.msra.mxu0 0.0
        %4666 = vmatprep.subr.mxu0 0.0
        %4667 = vmatpush1.msra.mxu0 0.0
        %4668 = vmatprep.subr.mxu0 0.0
        %4669 = vmatpush1.msra.mxu0 0.0
        %4670 = vmatprep.subr.mxu0 0.0
        %4671 = vmatpush1.msra.mxu0 0.0
        %4672 = vmatprep.subr.mxu0 0.0
        %4673 = vmatpush1.msra.mxu0 %v329
        %4674 = vmatprep.subr.mxu0 0.0
        %4675 = vmatpush1.msra.mxu0 %v328
        %4676 = vmatprep.subr.mxu0 0.0
        %4677 = vmatpush1.msra.mxu0 %v327
        %4678 = vmatprep.subr.mxu0 0.0
        %4679 = vmatpush1.msra.mxu0 %v326
        %4680 = vmatprep.subr.mxu0 0.0
        %4681 = vmatpush2.msra.mxu0 0.0
        %4682 = vmatprep.subr.mxu0 0.0
        %4683 = vmatpush2.msra.mxu0 0.0
        %4684 = vmatprep.subr.mxu0 0.0
        %4685 = vmatpush2.msra.mxu0 0.0
        %4686 = vmatprep.subr.mxu0 0.0
        %4687 = vmatpush2.msra.mxu0 0.0
        %4688 = vmatprep.subr.mxu0 0.0
        %4689 = vmatpush2.msra.mxu0 0.0
        %4690 = vmatprep.subr.mxu0 0.0
        %4691 = vmatpush2.msra.mxu0 0.0
        %4692 = vmatprep.subr.mxu0 0.0
        %4693 = vmatpush2.msra.mxu0 0.0
        %4694 = vmatprep.subr.mxu0 0.0
        %4695 = vmatpush2.msra.mxu0 0.0
        %4696 = vmatprep.subr.mxu0 0.0
        %4697 = vmatpush2.msra.mxu0 0.0
        %4698 = vmatprep.subr.mxu0 0.0
        %4699 = vmatpush2.msra.mxu0 0.0
        %4700 = vmatprep.subr.mxu0 0.0
        %4701 = vmatpush2.msra.mxu0 0.0
        %4702 = vmatprep.subr.mxu0 0.0
        %4703 = vmatpush2.msra.mxu0 0.0
        %4704 = vmatprep.subr.mxu0 0.0
        %4705 = vmatpush2.msra.mxu0 0.0
        %4706 = vmatprep.subr.mxu0 0.0
        %4707 = vmatpush2.msra.mxu0 0.0
        %4708 = vmatprep.subr.mxu0 0.0
        %4709 = vmatpush2.msra.mxu0 0.0
        %4710 = vmatprep.subr.mxu0 0.0
        %4711 = vmatpush2.msra.mxu0 0.0
        %4712 = vmatprep.mubr.f32.mxu0 0.0
        %4713 = vmatmul.mubr.f32.gmra.mxu0 %v4646
        %v4714 = vpop.f32.mrf.mxu0
        %v4715 = vadd.f32 0.0, %v4714
        %v4716 = vpop.f32.mrf.mxu0
        %4717 = vdwg.mxu0
        %v4719 = vsel %vm437, %v4644, 0
        %4721 = vmatprep.subr.mxu0 0.0
        %4722 = vmatpush1.msra.mxu0 0.0
        %4723 = vmatprep.subr.mxu0 0.0
        %4724 = vmatpush1.msra.mxu0 0.0
        %4725 = vmatprep.subr.mxu0 0.0
        %4726 = vmatpush1.msra.mxu0 0.0
        %4727 = vmatprep.subr.mxu0 0.0
        %4728 = vmatpush1.msra.mxu0 0.0
        %4729 = vmatprep.subr.mxu0 0.0
        %4730 = vmatpush1.msra.mxu0 0.0
        %4731 = vmatprep.subr.mxu0 0.0
        %4732 = vmatpush1.msra.mxu0 0.0
        %4733 = vmatprep.subr.mxu0 0.0
        %4734 = vmatpush1.msra.mxu0 0.0
        %4735 = vmatprep.subr.mxu0 0.0
        %4736 = vmatpush1.msra.mxu0 0.0
        %4737 = vmatprep.subr.mxu0 0.0
        %4738 = vmatpush1.msra.mxu0 0.0
        %4739 = vmatprep.subr.mxu0 0.0
        %4740 = vmatpush1.msra.mxu0 0.0
        %4741 = vmatprep.subr.mxu0 0.0
        %4742 = vmatpush1.msra.mxu0 0.0
        %4743 = vmatprep.subr.mxu0 0.0
        %4744 = vmatpush1.msra.mxu0 0.0
        %4745 = vmatprep.subr.mxu0 0.0
        %4746 = vmatpush1.msra.mxu0 %v314
        %4747 = vmatprep.subr.mxu0 0.0
        %4748 = vmatpush1.msra.mxu0 %v313
        %4749 = vmatprep.subr.mxu0 0.0
        %4750 = vmatpush1.msra.mxu0 %v312
        %4751 = vmatprep.subr.mxu0 0.0
        %4752 = vmatpush1.msra.mxu0 %v311
        %4753 = vmatprep.subr.mxu0 0.0
        %4754 = vmatpush2.msra.mxu0 0.0
        %4755 = vmatprep.subr.mxu0 0.0
        %4756 = vmatpush2.msra.mxu0 0.0
        %4757 = vmatprep.subr.mxu0 0.0
        %4758 = vmatpush2.msra.mxu0 0.0
        %4759 = vmatprep.subr.mxu0 0.0
        %4760 = vmatpush2.msra.mxu0 0.0
        %4761 = vmatprep.subr.mxu0 0.0
        %4762 = vmatpush2.msra.mxu0 0.0
        %4763 = vmatprep.subr.mxu0 0.0
        %4764 = vmatpush2.msra.mxu0 0.0
        %4765 = vmatprep.subr.mxu0 0.0
        %4766 = vmatpush2.msra.mxu0 0.0
        %4767 = vmatprep.subr.mxu0 0.0
        %4768 = vmatpush2.msra.mxu0 0.0
        %4769 = vmatprep.subr.mxu0 0.0
        %4770 = vmatpush2.msra.mxu0 0.0
        %4771 = vmatprep.subr.mxu0 0.0
        %4772 = vmatpush2.msra.mxu0 0.0
        %4773 = vmatprep.subr.mxu0 0.0
        %4774 = vmatpush2.msra.mxu0 0.0
        %4775 = vmatprep.subr.mxu0 0.0
        %4776 = vmatpush2.msra.mxu0 0.0
        %4777 = vmatprep.subr.mxu0 0.0
        %4778 = vmatpush2.msra.mxu0 0.0
        %4779 = vmatprep.subr.mxu0 0.0
        %4780 = vmatpush2.msra.mxu0 0.0
        %4781 = vmatprep.subr.mxu0 0.0
        %4782 = vmatpush2.msra.mxu0 0.0
        %4783 = vmatprep.subr.mxu0 0.0
        %4784 = vmatpush2.msra.mxu0 0.0
        %4785 = vmatprep.mubr.f32.mxu0 0.0
        %4786 = vmatmul.mubr.f32.gmra.mxu0 %v4719
        %v4787 = vpop.f32.mrf.mxu0
        %v4788 = vadd.f32 %v4715, %v4787
        %v4789 = vpop.f32.mrf.mxu0
        %4790 = vdwg.mxu0
        %v4791 = vadd.f32 %v4788, %v397
        %v4792 = vxor.u32 %v4791, 2147483648
        %v4793 = vmul.f32 %v4792, 1.442695
        %v4794 = vpow.pop %v4793
        %v4795 = vadd.f32 %v4794, 1.0
        %v4796 = vrcp.pop %v4795
        %v4797 = vmul.f32 1.0, %v4796
        %4798 = vmatprep.subr.mxu0 0.0
        %4799 = vmatpush1.msra.mxu0 0.0
        %4800 = vmatprep.subr.mxu0 0.0
        %4801 = vmatpush1.msra.mxu0 0.0
        %4802 = vmatprep.subr.mxu0 0.0
        %4803 = vmatpush1.msra.mxu0 0.0
        %4804 = vmatprep.subr.mxu0 0.0
        %4805 = vmatpush1.msra.mxu0 0.0
        %4806 = vmatprep.subr.mxu0 0.0
        %4807 = vmatpush1.msra.mxu0 0.0
        %4808 = vmatprep.subr.mxu0 0.0
        %4809 = vmatpush1.msra.mxu0 0.0
        %4810 = vmatprep.subr.mxu0 0.0
        %4811 = vmatpush1.msra.mxu0 0.0
        %4812 = vmatprep.subr.mxu0 0.0
        %4813 = vmatpush1.msra.mxu0 0.0
        %4814 = vmatprep.subr.mxu0 0.0
        %4815 = vmatpush1.msra.mxu0 0.0
        %4816 = vmatprep.subr.mxu0 0.0
        %4817 = vmatpush1.msra.mxu0 0.0
        %4818 = vmatprep.subr.mxu0 0.0
        %4819 = vmatpush1.msra.mxu0 0.0
        %4820 = vmatprep.subr.mxu0 0.0
        %4821 = vmatpush1.msra.mxu0 0.0
        %4822 = vmatprep.subr.mxu0 0.0
        %4823 = vmatpush1.msra.mxu0 %v334
        %4824 = vmatprep.subr.mxu0 0.0
        %4825 = vmatpush1.msra.mxu0 %v333
        %4826 = vmatprep.subr.mxu0 0.0
        %4827 = vmatpush1.msra.mxu0 %v332
        %4828 = vmatprep.subr.mxu0 0.0
        %4829 = vmatpush1.msra.mxu0 %v331
        %4830 = vmatprep.subr.mxu0 0.0
        %4831 = vmatpush2.msra.mxu0 0.0
        %4832 = vmatprep.subr.mxu0 0.0
        %4833 = vmatpush2.msra.mxu0 0.0
        %4834 = vmatprep.subr.mxu0 0.0
        %4835 = vmatpush2.msra.mxu0 0.0
        %4836 = vmatprep.subr.mxu0 0.0
        %4837 = vmatpush2.msra.mxu0 0.0
        %4838 = vmatprep.subr.mxu0 0.0
        %4839 = vmatpush2.msra.mxu0 0.0
        %4840 = vmatprep.subr.mxu0 0.0
        %4841 = vmatpush2.msra.mxu0 0.0
        %4842 = vmatprep.subr.mxu0 0.0
        %4843 = vmatpush2.msra.mxu0 0.0
        %4844 = vmatprep.subr.mxu0 0.0
        %4845 = vmatpush2.msra.mxu0 0.0
        %4846 = vmatprep.subr.mxu0 0.0
        %4847 = vmatpush2.msra.mxu0 0.0
        %4848 = vmatprep.subr.mxu0 0.0
        %4849 = vmatpush2.msra.mxu0 0.0
        %4850 = vmatprep.subr.mxu0 0.0
        %4851 = vmatpush2.msra.mxu0 0.0
        %4852 = vmatprep.subr.mxu0 0.0
        %4853 = vmatpush2.msra.mxu0 0.0
        %4854 = vmatprep.subr.mxu0 0.0
        %4855 = vmatpush2.msra.mxu0 0.0
        %4856 = vmatprep.subr.mxu0 0.0
        %4857 = vmatpush2.msra.mxu0 0.0
        %4858 = vmatprep.subr.mxu0 0.0
        %4859 = vmatpush2.msra.mxu0 0.0
        %4860 = vmatprep.subr.mxu0 0.0
        %4861 = vmatpush2.msra.mxu0 0.0
        %4862 = vmatprep.mubr.f32.mxu0 0.0
        %4863 = vmatmul.mubr.f32.gmra.mxu0 %v4646
        %v4864 = vpop.f32.mrf.mxu0
        %v4865 = vadd.f32 0.0, %v4864
        %v4866 = vpop.f32.mrf.mxu0
        %4867 = vdwg.mxu0
        %4868 = vmatprep.subr.mxu0 0.0
        %4869 = vmatpush1.msra.mxu0 0.0
        %4870 = vmatprep.subr.mxu0 0.0
        %4871 = vmatpush1.msra.mxu0 0.0
        %4872 = vmatprep.subr.mxu0 0.0
        %4873 = vmatpush1.msra.mxu0 0.0
        %4874 = vmatprep.subr.mxu0 0.0
        %4875 = vmatpush1.msra.mxu0 0.0
        %4876 = vmatprep.subr.mxu0 0.0
        %4877 = vmatpush1.msra.mxu0 0.0
        %4878 = vmatprep.subr.mxu0 0.0
        %4879 = vmatpush1.msra.mxu0 0.0
        %4880 = vmatprep.subr.mxu0 0.0
        %4881 = vmatpush1.msra.mxu0 0.0
        %4882 = vmatprep.subr.mxu0 0.0
        %4883 = vmatpush1.msra.mxu0 0.0
        %4884 = vmatprep.subr.mxu0 0.0
        %4885 = vmatpush1.msra.mxu0 0.0
        %4886 = vmatprep.subr.mxu0 0.0
        %4887 = vmatpush1.msra.mxu0 0.0
        %4888 = vmatprep.subr.mxu0 0.0
        %4889 = vmatpush1.msra.mxu0 0.0
        %4890 = vmatprep.subr.mxu0 0.0
        %4891 = vmatpush1.msra.mxu0 0.0
        %4892 = vmatprep.subr.mxu0 0.0
        %4893 = vmatpush1.msra.mxu0 %v319
        %4894 = vmatprep.subr.mxu0 0.0
        %4895 = vmatpush1.msra.mxu0 %v318
        %4896 = vmatprep.subr.mxu0 0.0
        %4897 = vmatpush1.msra.mxu0 %v317
        %4898 = vmatprep.subr.mxu0 0.0
        %4899 = vmatpush1.msra.mxu0 %v316
        %4900 = vmatprep.subr.mxu0 0.0
        %4901 = vmatpush2.msra.mxu0 0.0
        %4902 = vmatprep.subr.mxu0 0.0
        %4903 = vmatpush2.msra.mxu0 0.0
        %4904 = vmatprep.subr.mxu0 0.0
        %4905 = vmatpush2.msra.mxu0 0.0
        %4906 = vmatprep.subr.mxu0 0.0
        %4907 = vmatpush2.msra.mxu0 0.0
        %4908 = vmatprep.subr.mxu0 0.0
        %4909 = vmatpush2.msra.mxu0 0.0
        %4910 = vmatprep.subr.mxu0 0.0
        %4911 = vmatpush2.msra.mxu0 0.0
        %4912 = vmatprep.subr.mxu0 0.0
        %4913 = vmatpush2.msra.mxu0 0.0
        %4914 = vmatprep.subr.mxu0 0.0
        %4915 = vmatpush2.msra.mxu0 0.0
        %4916 = vmatprep.subr.mxu0 0.0
        %4917 = vmatpush2.msra.mxu0 0.0
        %4918 = vmatprep.subr.mxu0 0.0
        %4919 = vmatpush2.msra.mxu0 0.0
        %4920 = vmatprep.subr.mxu0 0.0
        %4921 = vmatpush2.msra.mxu0 0.0
        %4922 = vmatprep.subr.mxu0 0.0
        %4923 = vmatpush2.msra.mxu0 0.0
        %4924 = vmatprep.subr.mxu0 0.0
        %4925 = vmatpush2.msra.mxu0 0.0
        %4926 = vmatprep.subr.mxu0 0.0
        %4927 = vmatpush2.msra.mxu0 0.0
        %4928 = vmatprep.subr.mxu0 0.0
        %4929 = vmatpush2.msra.mxu0 0.0
        %4930 = vmatprep.subr.mxu0 0.0
        %4931 = vmatpush2.msra.mxu0 0.0
        %4932 = vmatprep.mubr.f32.mxu0 0.0
        %4933 = vmatmul.mubr.f32.gmra.mxu0 %v4719
        %v4934 = vpop.f32.mrf.mxu0
        %v4935 = vadd.f32 %v4865, %v4934
        %v4936 = vpop.f32.mrf.mxu0
        %4937 = vdwg.mxu0
        %v4938 = vadd.f32 %v4935, %v401
        %v4939 = vxor.u32 %v4938, 2147483648
        %v4940 = vmul.f32 %v4939, 1.442695
        %v4941 = vpow.pop %v4940
        %v4942 = vadd.f32 %v4941, 1.0
        %v4943 = vrcp.pop %v4942
        %v4944 = vmul.f32 1.0, %v4943
        %4945 = vmatprep.subr.mxu0 0.0
        %4946 = vmatpush1.msra.mxu0 0.0
        %4947 = vmatprep.subr.mxu0 0.0
        %4948 = vmatpush1.msra.mxu0 0.0
        %4949 = vmatprep.subr.mxu0 0.0
        %4950 = vmatpush1.msra.mxu0 0.0
        %4951 = vmatprep.subr.mxu0 0.0
        %4952 = vmatpush1.msra.mxu0 0.0
        %4953 = vmatprep.subr.mxu0 0.0
        %4954 = vmatpush1.msra.mxu0 0.0
        %4955 = vmatprep.subr.mxu0 0.0
        %4956 = vmatpush1.msra.mxu0 0.0
        %4957 = vmatprep.subr.mxu0 0.0
        %4958 = vmatpush1.msra.mxu0 0.0
        %4959 = vmatprep.subr.mxu0 0.0
        %4960 = vmatpush1.msra.mxu0 0.0
        %4961 = vmatprep.subr.mxu0 0.0
        %4962 = vmatpush1.msra.mxu0 0.0
        %4963 = vmatprep.subr.mxu0 0.0
        %4964 = vmatpush1.msra.mxu0 0.0
        %4965 = vmatprep.subr.mxu0 0.0
        %4966 = vmatpush1.msra.mxu0 0.0
        %4967 = vmatprep.subr.mxu0 0.0
        %4968 = vmatpush1.msra.mxu0 0.0
        %4969 = vmatprep.subr.mxu0 0.0
        %4970 = vmatpush1.msra.mxu0 %v339
        %4971 = vmatprep.subr.mxu0 0.0
        %4972 = vmatpush1.msra.mxu0 %v338
        %4973 = vmatprep.subr.mxu0 0.0
        %4974 = vmatpush1.msra.mxu0 %v337
        %4975 = vmatprep.subr.mxu0 0.0
        %4976 = vmatpush1.msra.mxu0 %v336
        %4977 = vmatprep.subr.mxu0 0.0
        %4978 = vmatpush2.msra.mxu0 0.0
        %4979 = vmatprep.subr.mxu0 0.0
        %4980 = vmatpush2.msra.mxu0 0.0
        %4981 = vmatprep.subr.mxu0 0.0
        %4982 = vmatpush2.msra.mxu0 0.0
        %4983 = vmatprep.subr.mxu0 0.0
        %4984 = vmatpush2.msra.mxu0 0.0
        %4985 = vmatprep.subr.mxu0 0.0
        %4986 = vmatpush2.msra.mxu0 0.0
        %4987 = vmatprep.subr.mxu0 0.0
        %4988 = vmatpush2.msra.mxu0 0.0
        %4989 = vmatprep.subr.mxu0 0.0
        %4990 = vmatpush2.msra.mxu0 0.0
        %4991 = vmatprep.subr.mxu0 0.0
        %4992 = vmatpush2.msra.mxu0 0.0
        %4993 = vmatprep.subr.mxu0 0.0
        %4994 = vmatpush2.msra.mxu0 0.0
        %4995 = vmatprep.subr.mxu0 0.0
        %4996 = vmatpush2.msra.mxu0 0.0
        %4997 = vmatprep.subr.mxu0 0.0
        %4998 = vmatpush2.msra.mxu0 0.0
        %4999 = vmatprep.subr.mxu0 0.0
        %5000 = vmatpush2.msra.mxu0 0.0
        %5001 = vmatprep.subr.mxu0 0.0
        %5002 = vmatpush2.msra.mxu0 0.0
        %5003 = vmatprep.subr.mxu0 0.0
        %5004 = vmatpush2.msra.mxu0 0.0
        %5005 = vmatprep.subr.mxu0 0.0
        %5006 = vmatpush2.msra.mxu0 0.0
        %5007 = vmatprep.subr.mxu0 0.0
        %5008 = vmatpush2.msra.mxu0 0.0
        %5009 = vmatprep.mubr.f32.mxu0 0.0
        %5010 = vmatmul.mubr.f32.gmra.mxu0 %v4646
        %v5011 = vpop.f32.mrf.mxu0
        %v5012 = vadd.f32 %v409, %v5011
        %v5013 = vpop.f32.mrf.mxu0
        %5014 = vdwg.mxu0
        %5015 = vmatprep.subr.mxu0 0.0
        %5016 = vmatpush1.msra.mxu0 0.0
        %5017 = vmatprep.subr.mxu0 0.0
        %5018 = vmatpush1.msra.mxu0 0.0
        %5019 = vmatprep.subr.mxu0 0.0
        %5020 = vmatpush1.msra.mxu0 0.0
        %5021 = vmatprep.subr.mxu0 0.0
        %5022 = vmatpush1.msra.mxu0 0.0
        %5023 = vmatprep.subr.mxu0 0.0
        %5024 = vmatpush1.msra.mxu0 0.0
        %5025 = vmatprep.subr.mxu0 0.0
        %5026 = vmatpush1.msra.mxu0 0.0
        %5027 = vmatprep.subr.mxu0 0.0
        %5028 = vmatpush1.msra.mxu0 0.0
        %5029 = vmatprep.subr.mxu0 0.0
        %5030 = vmatpush1.msra.mxu0 0.0
        %5031 = vmatprep.subr.mxu0 0.0
        %5032 = vmatpush1.msra.mxu0 0.0
        %5033 = vmatprep.subr.mxu0 0.0
        %5034 = vmatpush1.msra.mxu0 0.0
        %5035 = vmatprep.subr.mxu0 0.0
        %5036 = vmatpush1.msra.mxu0 0.0
        %5037 = vmatprep.subr.mxu0 0.0
        %5038 = vmatpush1.msra.mxu0 0.0
        %5039 = vmatprep.subr.mxu0 0.0
        %5040 = vmatpush1.msra.mxu0 %v324
        %5041 = vmatprep.subr.mxu0 0.0
        %5042 = vmatpush1.msra.mxu0 %v323
        %5043 = vmatprep.subr.mxu0 0.0
        %5044 = vmatpush1.msra.mxu0 %v322
        %5045 = vmatprep.subr.mxu0 0.0
        %5046 = vmatpush1.msra.mxu0 %v321
        %5047 = vmatprep.subr.mxu0 0.0
        %5048 = vmatpush2.msra.mxu0 0.0
        %5049 = vmatprep.subr.mxu0 0.0
        %5050 = vmatpush2.msra.mxu0 0.0
        %5051 = vmatprep.subr.mxu0 0.0
        %5052 = vmatpush2.msra.mxu0 0.0
        %5053 = vmatprep.subr.mxu0 0.0
        %5054 = vmatpush2.msra.mxu0 0.0
        %5055 = vmatprep.subr.mxu0 0.0
        %5056 = vmatpush2.msra.mxu0 0.0
        %5057 = vmatprep.subr.mxu0 0.0
        %5058 = vmatpush2.msra.mxu0 0.0
        %5059 = vmatprep.subr.mxu0 0.0
        %5060 = vmatpush2.msra.mxu0 0.0
        %5061 = vmatprep.subr.mxu0 0.0
        %5062 = vmatpush2.msra.mxu0 0.0
        %5063 = vmatprep.subr.mxu0 0.0
        %5064 = vmatpush2.msra.mxu0 0.0
        %5065 = vmatprep.subr.mxu0 0.0
        %5066 = vmatpush2.msra.mxu0 0.0
        %5067 = vmatprep.subr.mxu0 0.0
        %5068 = vmatpush2.msra.mxu0 0.0
        %5069 = vmatprep.subr.mxu0 0.0
        %5070 = vmatpush2.msra.mxu0 0.0
        %5071 = vmatprep.subr.mxu0 0.0
        %5072 = vmatpush2.msra.mxu0 0.0
        %5073 = vmatprep.subr.mxu0 0.0
        %5074 = vmatpush2.msra.mxu0 0.0
        %5075 = vmatprep.subr.mxu0 0.0
        %5076 = vmatpush2.msra.mxu0 0.0
        %5077 = vmatprep.subr.mxu0 0.0
        %5078 = vmatpush2.msra.mxu0 0.0
        %5079 = vmatprep.mubr.f32.mxu0 0.0
        %5080 = vmatmul.mubr.f32.gmra.mxu0 %v4719
        %v5081 = vpop.f32.mrf.mxu0
        %v5082 = vadd.f32 %v405, %v5081
        %v5083 = vpop.f32.mrf.mxu0
        %5084 = vdwg.mxu0
        %v5085 = vmul.f32 %v4797, %v5012
        %v5086 = vadd.f32 %v5082, %v5085
        %v5087 = vtanh.pop %v5086
        %v5088 = vsub.f32 1.0, %v4944
        %v5089 = vmul.f32 %v5088, %v5087
        %v5090 = vmul.f32 %v4944, %v4210
        %v5091 = vadd.f32 %v5089, %v5090
        %v5092 = vsel %vm437, %v5091, 0.0
        %5093 = vadd.xlane.f32.xlu0 %v5092
        %v5094 = vpop.xlane.xlu0 %5093
        %v5095 = vmul.f32 %v5094, %v486
        %v5096 = vsub.f32 %v5091, %v5095
        %v5097 = vmul.f32 %v5096, %v5096
        %v5098 = vsel %vm437, %v5097, 0.0
        %5099 = vadd.xlane.f32.xlu0 %v5098
        %v5100 = vpop.xlane.xlu0 %5099
        %v5101 = vmul.f32 %v5100, %v486
        %v5102 = vadd.f32 %v5101, 1e-05
        %v5103 = vrsqrt.pop %v5102
        %v5104 = vmul.f32 %v5096, %v5103
        %v5105 = vmul.f32 %v5104, %v385
        %v5106 = vadd.f32 %v5105, %v389
        %v5108 = vsel %vm437, %v5106, 0
        %5110 = vmatprep.subr.mxu0 0.0
        %5111 = vmatpush1.msra.mxu0 0.0
        %5112 = vmatprep.subr.mxu0 0.0
        %5113 = vmatpush1.msra.mxu0 0.0
        %5114 = vmatprep.subr.mxu0 0.0
        %5115 = vmatpush1.msra.mxu0 0.0
        %5116 = vmatprep.subr.mxu0 0.0
        %5117 = vmatpush1.msra.mxu0 0.0
        %5118 = vmatprep.subr.mxu0 0.0
        %5119 = vmatpush1.msra.mxu0 0.0
        %5120 = vmatprep.subr.mxu0 0.0
        %5121 = vmatpush1.msra.mxu0 0.0
        %5122 = vmatprep.subr.mxu0 0.0
        %5123 = vmatpush1.msra.mxu0 0.0
        %5124 = vmatprep.subr.mxu0 0.0
        %5125 = vmatpush1.msra.mxu0 0.0
        %5126 = vmatprep.subr.mxu0 0.0
        %5127 = vmatpush1.msra.mxu0 0.0
        %5128 = vmatprep.subr.mxu0 0.0
        %5129 = vmatpush1.msra.mxu0 0.0
        %5130 = vmatprep.subr.mxu0 0.0
        %5131 = vmatpush1.msra.mxu0 0.0
        %5132 = vmatprep.subr.mxu0 0.0
        %5133 = vmatpush1.msra.mxu0 0.0
        %5134 = vmatprep.subr.mxu0 0.0
        %5135 = vmatpush1.msra.mxu0 %v357
        %5136 = vmatprep.subr.mxu0 0.0
        %5137 = vmatpush1.msra.mxu0 %v356
        %5138 = vmatprep.subr.mxu0 0.0
        %5139 = vmatpush1.msra.mxu0 %v355
        %5140 = vmatprep.subr.mxu0 0.0
        %5141 = vmatpush1.msra.mxu0 %v354
        %5142 = vmatprep.subr.mxu0 0.0
        %5143 = vmatpush2.msra.mxu0 0.0
        %5144 = vmatprep.subr.mxu0 0.0
        %5145 = vmatpush2.msra.mxu0 0.0
        %5146 = vmatprep.subr.mxu0 0.0
        %5147 = vmatpush2.msra.mxu0 0.0
        %5148 = vmatprep.subr.mxu0 0.0
        %5149 = vmatpush2.msra.mxu0 0.0
        %5150 = vmatprep.subr.mxu0 0.0
        %5151 = vmatpush2.msra.mxu0 0.0
        %5152 = vmatprep.subr.mxu0 0.0
        %5153 = vmatpush2.msra.mxu0 0.0
        %5154 = vmatprep.subr.mxu0 0.0
        %5155 = vmatpush2.msra.mxu0 0.0
        %5156 = vmatprep.subr.mxu0 0.0
        %5157 = vmatpush2.msra.mxu0 0.0
        %5158 = vmatprep.subr.mxu0 0.0
        %5159 = vmatpush2.msra.mxu0 0.0
        %5160 = vmatprep.subr.mxu0 0.0
        %5161 = vmatpush2.msra.mxu0 0.0
        %5162 = vmatprep.subr.mxu0 0.0
        %5163 = vmatpush2.msra.mxu0 0.0
        %5164 = vmatprep.subr.mxu0 0.0
        %5165 = vmatpush2.msra.mxu0 0.0
        %5166 = vmatprep.subr.mxu0 0.0
        %5167 = vmatpush2.msra.mxu0 0.0
        %5168 = vmatprep.subr.mxu0 0.0
        %5169 = vmatpush2.msra.mxu0 0.0
        %5170 = vmatprep.subr.mxu0 0.0
        %5171 = vmatpush2.msra.mxu0 0.0
        %5172 = vmatprep.subr.mxu0 0.0
        %5173 = vmatpush2.msra.mxu0 0.0
        %5174 = vmatprep.mubr.f32.mxu0 0.0
        %5175 = vmatmul.mubr.f32.gmra.mxu0 %v5108
        %v5176 = vpop.f32.mrf.mxu0
        %v5177 = vadd.f32 %v419, %v5176
        %v5178 = vpop.f32.mrf.mxu0
        %5179 = vdwg.mxu0
        %v5180 = vmax.f32 %v5177, 0.0
        %5181 = vmatprep.subr.mxu0 0.0
        %5182 = vmatpush1.msra.mxu0 %v373
        %5183 = vmatprep.subr.mxu0 0.0
        %5184 = vmatpush1.msra.mxu0 %v372
        %5185 = vmatprep.subr.mxu0 0.0
        %5186 = vmatpush1.msra.mxu0 %v371
        %5187 = vmatprep.subr.mxu0 0.0
        %5188 = vmatpush1.msra.mxu0 %v370
        %5189 = vmatprep.subr.mxu0 0.0
        %5190 = vmatpush1.msra.mxu0 %v369
        %5191 = vmatprep.subr.mxu0 0.0
        %5192 = vmatpush1.msra.mxu0 %v368
        %5193 = vmatprep.subr.mxu0 0.0
        %5194 = vmatpush1.msra.mxu0 %v367
        %5195 = vmatprep.subr.mxu0 0.0
        %5196 = vmatpush1.msra.mxu0 %v366
        %5197 = vmatprep.subr.mxu0 0.0
        %5198 = vmatpush1.msra.mxu0 %v365
        %5199 = vmatprep.subr.mxu0 0.0
        %5200 = vmatpush1.msra.mxu0 %v364
        %5201 = vmatprep.subr.mxu0 0.0
        %5202 = vmatpush1.msra.mxu0 %v363
        %5203 = vmatprep.subr.mxu0 0.0
        %5204 = vmatpush1.msra.mxu0 %v362
        %5205 = vmatprep.subr.mxu0 0.0
        %5206 = vmatpush1.msra.mxu0 %v361
        %5207 = vmatprep.subr.mxu0 0.0
        %5208 = vmatpush1.msra.mxu0 %v360
        %5209 = vmatprep.subr.mxu0 0.0
        %5210 = vmatpush1.msra.mxu0 %v359
        %5211 = vmatprep.subr.mxu0 0.0
        %5212 = vmatpush1.msra.mxu0 %v358
        %5213 = vmatprep.subr.mxu0 0.0
        %5214 = vmatpush2.msra.mxu0 0.0
        %5215 = vmatprep.subr.mxu0 0.0
        %5216 = vmatpush2.msra.mxu0 0.0
        %5217 = vmatprep.subr.mxu0 0.0
        %5218 = vmatpush2.msra.mxu0 0.0
        %5219 = vmatprep.subr.mxu0 0.0
        %5220 = vmatpush2.msra.mxu0 0.0
        %5221 = vmatprep.subr.mxu0 0.0
        %5222 = vmatpush2.msra.mxu0 0.0
        %5223 = vmatprep.subr.mxu0 0.0
        %5224 = vmatpush2.msra.mxu0 0.0
        %5225 = vmatprep.subr.mxu0 0.0
        %5226 = vmatpush2.msra.mxu0 0.0
        %5227 = vmatprep.subr.mxu0 0.0
        %5228 = vmatpush2.msra.mxu0 0.0
        %5229 = vmatprep.subr.mxu0 0.0
        %5230 = vmatpush2.msra.mxu0 0.0
        %5231 = vmatprep.subr.mxu0 0.0
        %5232 = vmatpush2.msra.mxu0 0.0
        %5233 = vmatprep.subr.mxu0 0.0
        %5234 = vmatpush2.msra.mxu0 0.0
        %5235 = vmatprep.subr.mxu0 0.0
        %5236 = vmatpush2.msra.mxu0 0.0
        %5237 = vmatprep.subr.mxu0 0.0
        %5238 = vmatpush2.msra.mxu0 0.0
        %5239 = vmatprep.subr.mxu0 0.0
        %5240 = vmatpush2.msra.mxu0 0.0
        %5241 = vmatprep.subr.mxu0 0.0
        %5242 = vmatpush2.msra.mxu0 0.0
        %5243 = vmatprep.subr.mxu0 0.0
        %5244 = vmatpush2.msra.mxu0 0.0
        %5245 = vmatprep.mubr.f32.mxu0 0.0
        %5246 = vmatmul.mubr.f32.gmra.mxu0 %v5180
        %v5247 = vpop.f32.mrf.mxu0
        %v5248 = vadd.f32 0.0, %v5247
        %v5249 = vpop.f32.mrf.mxu0
        %5250 = vdwg.mxu0
        %v5251 = vadd.f32 %v5091, %v5248
        %v5252 = vadd.f32 %v5251, %v413
        %v5253 = vsel %vm437, %v5252, 0.0
        %5254 = vadd.xlane.f32.xlu0 %v5253
        %v5255 = vpop.xlane.xlu0 %5254
        %v5256 = vmul.f32 %v5255, %v486
        %v5257 = vsub.f32 %v5252, %v5256
        %v5258 = vmul.f32 %v5257, %v5257
        %v5259 = vsel %vm437, %v5258, 0.0
        %5260 = vadd.xlane.f32.xlu0 %v5259
        %v5261 = vpop.xlane.xlu0 %5260
        %v5262 = vmul.f32 %v5261, %v486
        %v5263 = vadd.f32 %v5262, 1e-05
        %v5264 = vrsqrt.pop %v5263
        %v5265 = vmul.f32 %v5257, %v5264
        %v5266 = vmul.f32 %v5265, %v377
        %v5267 = vadd.f32 %v5266, %v381
        %v5269 = vsel %vm437, %v5267, 0
        %5271 = vmatprep.subr.mxu0 0.0
        %5272 = vmatpush1.msra.mxu0 0.0
        %5273 = vmatprep.subr.mxu0 0.0
        %5274 = vmatpush1.msra.mxu0 0.0
        %5275 = vmatprep.subr.mxu0 0.0
        %5276 = vmatpush1.msra.mxu0 0.0
        %5277 = vmatprep.subr.mxu0 0.0
        %5278 = vmatpush1.msra.mxu0 0.0
        %5279 = vmatprep.subr.mxu0 0.0
        %5280 = vmatpush1.msra.mxu0 0.0
        %5281 = vmatprep.subr.mxu0 0.0
        %5282 = vmatpush1.msra.mxu0 0.0
        %5283 = vmatprep.subr.mxu0 0.0
        %5284 = vmatpush1.msra.mxu0 0.0
        %5285 = vmatprep.subr.mxu0 0.0
        %5286 = vmatpush1.msra.mxu0 0.0
        %5287 = vmatprep.subr.mxu0 0.0
        %5288 = vmatpush1.msra.mxu0 0.0
        %5289 = vmatprep.subr.mxu0 0.0
        %5290 = vmatpush1.msra.mxu0 0.0
        %5291 = vmatprep.subr.mxu0 0.0
        %5292 = vmatpush1.msra.mxu0 0.0
        %5293 = vmatprep.subr.mxu0 0.0
        %5294 = vmatpush1.msra.mxu0 0.0
        %5295 = vmatprep.subr.mxu0 0.0
        %5296 = vmatpush1.msra.mxu0 %v309
        %5297 = vmatprep.subr.mxu0 0.0
        %5298 = vmatpush1.msra.mxu0 %v308
        %5299 = vmatprep.subr.mxu0 0.0
        %5300 = vmatpush1.msra.mxu0 %v307
        %5301 = vmatprep.subr.mxu0 0.0
        %5302 = vmatpush1.msra.mxu0 %v306
        %5303 = vmatprep.subr.mxu0 0.0
        %5304 = vmatpush2.msra.mxu0 0.0
        %5305 = vmatprep.subr.mxu0 0.0
        %5306 = vmatpush2.msra.mxu0 0.0
        %5307 = vmatprep.subr.mxu0 0.0
        %5308 = vmatpush2.msra.mxu0 0.0
        %5309 = vmatprep.subr.mxu0 0.0
        %5310 = vmatpush2.msra.mxu0 0.0
        %5311 = vmatprep.subr.mxu0 0.0
        %5312 = vmatpush2.msra.mxu0 0.0
        %5313 = vmatprep.subr.mxu0 0.0
        %5314 = vmatpush2.msra.mxu0 0.0
        %5315 = vmatprep.subr.mxu0 0.0
        %5316 = vmatpush2.msra.mxu0 0.0
        %5317 = vmatprep.subr.mxu0 0.0
        %5318 = vmatpush2.msra.mxu0 0.0
        %5319 = vmatprep.subr.mxu0 0.0
        %5320 = vmatpush2.msra.mxu0 0.0
        %5321 = vmatprep.subr.mxu0 0.0
        %5322 = vmatpush2.msra.mxu0 0.0
        %5323 = vmatprep.subr.mxu0 0.0
        %5324 = vmatpush2.msra.mxu0 0.0
        %5325 = vmatprep.subr.mxu0 0.0
        %5326 = vmatpush2.msra.mxu0 0.0
        %5327 = vmatprep.subr.mxu0 0.0
        %5328 = vmatpush2.msra.mxu0 0.0
        %5329 = vmatprep.subr.mxu0 0.0
        %5330 = vmatpush2.msra.mxu0 0.0
        %5331 = vmatprep.subr.mxu0 0.0
        %5332 = vmatpush2.msra.mxu0 0.0
        %5333 = vmatprep.subr.mxu0 0.0
        %5334 = vmatpush2.msra.mxu0 0.0
        %5335 = vmatprep.mubr.f32.mxu0 0.0
        %5336 = vmatmul.mubr.f32.gmra.mxu0 %v5269
        %v5337 = vpop.f32.mrf.mxu0
        %v5338 = vadd.f32 %v393, %v5337
        %v5339 = vpop.f32.mrf.mxu0
        %5340 = vdwg.mxu0
        %v5342 = vsel %vm437, %v5338, 0
        %5344 = vmatprep.subr.mxu0 0.0
        %5345 = vmatpush1.xpose.msra.mxu0 0.0
        %5346 = vmatprep.subr.mxu0 0.0
        %5347 = vmatpush1.xpose.msra.mxu0 0.0
        %5348 = vmatprep.subr.mxu0 0.0
        %5349 = vmatpush1.xpose.msra.mxu0 0.0
        %5350 = vmatprep.subr.mxu0 0.0
        %5351 = vmatpush1.xpose.msra.mxu0 0.0
        %5352 = vmatprep.subr.mxu0 0.0
        %5353 = vmatpush1.xpose.msra.mxu0 0.0
        %5354 = vmatprep.subr.mxu0 0.0
        %5355 = vmatpush1.xpose.msra.mxu0 0.0
        %5356 = vmatprep.subr.mxu0 0.0
        %5357 = vmatpush1.xpose.msra.mxu0 0.0
        %5358 = vmatprep.subr.mxu0 0.0
        %5359 = vmatpush1.xpose.msra.mxu0 0.0
        %5360 = vmatprep.subr.mxu0 0.0
        %5361 = vmatpush1.xpose.msra.mxu0 %v1147
        %5362 = vmatprep.subr.mxu0 0.0
        %5363 = vmatpush1.xpose.msra.mxu0 %v1144
        %5364 = vmatprep.subr.mxu0 0.0
        %5365 = vmatpush1.xpose.msra.mxu0 %v1141
        %5366 = vmatprep.subr.mxu0 0.0
        %5367 = vmatpush1.xpose.msra.mxu0 %v1138
        %5368 = vmatprep.subr.mxu0 0.0
        %5369 = vmatpush1.xpose.msra.mxu0 %v1135
        %5370 = vmatprep.subr.mxu0 0.0
        %5371 = vmatpush1.xpose.msra.mxu0 %v1132
        %5372 = vmatprep.subr.mxu0 0.0
        %5373 = vmatpush1.xpose.msra.mxu0 %v1129
        %5374 = vmatprep.subr.mxu0 0.0
        %5375 = vmatpush1.xpose.msra.mxu0 %v1126
        %5376 = vmatprep.subr.mxu0 0.0
        %5377 = vmatpush2.xpose.msra.mxu0 0.0
        %5378 = vmatprep.subr.mxu0 0.0
        %5379 = vmatpush2.xpose.msra.mxu0 0.0
        %5380 = vmatprep.subr.mxu0 0.0
        %5381 = vmatpush2.xpose.msra.mxu0 0.0
        %5382 = vmatprep.subr.mxu0 0.0
        %5383 = vmatpush2.xpose.msra.mxu0 0.0
        %5384 = vmatprep.subr.mxu0 0.0
        %5385 = vmatpush2.xpose.msra.mxu0 0.0
        %5386 = vmatprep.subr.mxu0 0.0
        %5387 = vmatpush2.xpose.msra.mxu0 0.0
        %5388 = vmatprep.subr.mxu0 0.0
        %5389 = vmatpush2.xpose.msra.mxu0 0.0
        %5390 = vmatprep.subr.mxu0 0.0
        %5391 = vmatpush2.xpose.msra.mxu0 0.0
        %5392 = vmatprep.subr.mxu0 0.0
        %5393 = vmatpush2.xpose.msra.mxu0 0.0
        %5394 = vmatprep.subr.mxu0 0.0
        %5395 = vmatpush2.xpose.msra.mxu0 0.0
        %5396 = vmatprep.subr.mxu0 0.0
        %5397 = vmatpush2.xpose.msra.mxu0 0.0
        %5398 = vmatprep.subr.mxu0 0.0
        %5399 = vmatpush2.xpose.msra.mxu0 0.0
        %5400 = vmatprep.subr.mxu0 0.0
        %5401 = vmatpush2.xpose.msra.mxu0 0.0
        %5402 = vmatprep.subr.mxu0 0.0
        %5403 = vmatpush2.xpose.msra.mxu0 0.0
        %5404 = vmatprep.subr.mxu0 0.0
        %5405 = vmatpush2.xpose.msra.mxu0 0.0
        %5406 = vmatprep.subr.mxu0 0.0
        %5407 = vmatpush2.xpose.msra.mxu0 0.0
        %5408 = vmatprep.mubr.f32.mxu0 0.0
        %5409 = vmatmul.mubr.f32.gmra.mxu0 %v5342
        %v5410 = vpop.f32.mrf.mxu0
        %v5411 = vadd.f32 0.0, %v5410
        %v5412 = vpop.f32.mrf.mxu0
        %5413 = vdwg.mxu0
        %v5414 = vsel %vm1219, %v5411, -inf
        %v5415 = vrot.slane %v5414, 4
        %v5416 = vmax.f32 %v5414, %v5415
        %v5417 = vrot.slane %v5416, 2
        %v5418 = vmax.f32 %v5416, %v5417
        %v5419 = vrot.slane %v5418, 1
        %v5420 = vmax.f32 %v5418, %v5419
        %v5421 = vsub.f32 %v5411, %v5420
        %v5422 = vmul.f32 %v5421, 1.442695
        %v5423 = vpow.pop %v5422
        %v5424 = vsel %vm1219, %v5423, 0.0
        %v5425 = vrot.slane %v5424, 4
        %v5426 = vadd.f32 %v5424, %v5425
        %v5427 = vrot.slane %v5426, 2
        %v5428 = vadd.f32 %v5426, %v5427
        %v5429 = vrot.slane %v5428, 1
        %v5430 = vadd.f32 %v5428, %v5429
        %v5431 = vrcp.pop %v5430
        %v5432 = vmul.f32 %v5423, %v5431
        %v5433 = vadd.f32 %v5432, 1e-08
        %v5434 = vsel %vm1219, %v5433, 0.0
        %5435 = vadd.xlane.f32.xlu0 %v5434
        %v5436 = vpop.xlane.xlu0 %5435
        %v5437 = vrcp.pop %v5436
        %v5438 = vmul.f32 %v5433, %v5437
        %v5440 = vsel %vm1245, %v5438, 0
        %5442 = vmatprep.subr.mxu0 0.0
        %5443 = vmatpush1.msra.mxu0 0.0
        %5444 = vmatprep.subr.mxu0 0.0
        %5445 = vmatpush1.msra.mxu0 0.0
        %5446 = vmatprep.subr.mxu0 0.0
        %5447 = vmatpush1.msra.mxu0 0.0
        %5448 = vmatprep.subr.mxu0 0.0
        %5449 = vmatpush1.msra.mxu0 0.0
        %5450 = vmatprep.subr.mxu0 0.0
        %5451 = vmatpush1.msra.mxu0 0.0
        %5452 = vmatprep.subr.mxu0 0.0
        %5453 = vmatpush1.msra.mxu0 0.0
        %5454 = vmatprep.subr.mxu0 0.0
        %5455 = vmatpush1.msra.mxu0 0.0
        %5456 = vmatprep.subr.mxu0 0.0
        %5457 = vmatpush1.msra.mxu0 0.0
        %5458 = vmatprep.subr.mxu0 0.0
        %5459 = vmatpush1.msra.mxu0 %v990
        %5460 = vmatprep.subr.mxu0 0.0
        %5461 = vmatpush1.msra.mxu0 %v985
        %5462 = vmatprep.subr.mxu0 0.0
        %5463 = vmatpush1.msra.mxu0 %v980
        %5464 = vmatprep.subr.mxu0 0.0
        %5465 = vmatpush1.msra.mxu0 %v975
        %5466 = vmatprep.subr.mxu0 0.0
        %5467 = vmatpush1.msra.mxu0 %v970
        %5468 = vmatprep.subr.mxu0 0.0
        %5469 = vmatpush1.msra.mxu0 %v965
        %5470 = vmatprep.subr.mxu0 0.0
        %5471 = vmatpush1.msra.mxu0 %v960
        %5472 = vmatprep.subr.mxu0 0.0
        %5473 = vmatpush1.msra.mxu0 %v955
        %5474 = vmatprep.subr.mxu0 0.0
        %5475 = vmatpush2.msra.mxu0 0.0
        %5476 = vmatprep.subr.mxu0 0.0
        %5477 = vmatpush2.msra.mxu0 0.0
        %5478 = vmatprep.subr.mxu0 0.0
        %5479 = vmatpush2.msra.mxu0 0.0
        %5480 = vmatprep.subr.mxu0 0.0
        %5481 = vmatpush2.msra.mxu0 0.0
        %5482 = vmatprep.subr.mxu0 0.0
        %5483 = vmatpush2.msra.mxu0 0.0
        %5484 = vmatprep.subr.mxu0 0.0
        %5485 = vmatpush2.msra.mxu0 0.0
        %5486 = vmatprep.subr.mxu0 0.0
        %5487 = vmatpush2.msra.mxu0 0.0
        %5488 = vmatprep.subr.mxu0 0.0
        %5489 = vmatpush2.msra.mxu0 0.0
        %5490 = vmatprep.subr.mxu0 0.0
        %5491 = vmatpush2.msra.mxu0 0.0
        %5492 = vmatprep.subr.mxu0 0.0
        %5493 = vmatpush2.msra.mxu0 0.0
        %5494 = vmatprep.subr.mxu0 0.0
        %5495 = vmatpush2.msra.mxu0 0.0
        %5496 = vmatprep.subr.mxu0 0.0
        %5497 = vmatpush2.msra.mxu0 0.0
        %5498 = vmatprep.subr.mxu0 0.0
        %5499 = vmatpush2.msra.mxu0 0.0
        %5500 = vmatprep.subr.mxu0 0.0
        %5501 = vmatpush2.msra.mxu0 0.0
        %5502 = vmatprep.subr.mxu0 0.0
        %5503 = vmatpush2.msra.mxu0 0.0
        %5504 = vmatprep.subr.mxu0 0.0
        %5505 = vmatpush2.msra.mxu0 0.0
        %5506 = vmatprep.mubr.f32.mxu0 0.0
        %5507 = vmatmul.mubr.f32.gmra.mxu0 %v5440
        %v5508 = vpop.f32.mrf.mxu0
        %v5509 = vadd.f32 0.0, %v5508
        %v5510 = vpop.f32.mrf.mxu0
        %5511 = vdwg.mxu0
        %v5512 = vrot.slane %v5338, 4
        %v5513 = vsel %vm437, %v5512, 0
        %5515 = vmatprep.subr.mxu0 0.0
        %5516 = vmatpush1.xpose.msra.mxu0 0.0
        %5517 = vmatprep.subr.mxu0 0.0
        %5518 = vmatpush1.xpose.msra.mxu0 0.0
        %5519 = vmatprep.subr.mxu0 0.0
        %5520 = vmatpush1.xpose.msra.mxu0 0.0
        %5521 = vmatprep.subr.mxu0 0.0
        %5522 = vmatpush1.xpose.msra.mxu0 0.0
        %5523 = vmatprep.subr.mxu0 0.0
        %5524 = vmatpush1.xpose.msra.mxu0 0.0
        %5525 = vmatprep.subr.mxu0 0.0
        %5526 = vmatpush1.xpose.msra.mxu0 0.0
        %5527 = vmatprep.subr.mxu0 0.0
        %5528 = vmatpush1.xpose.msra.mxu0 0.0
        %5529 = vmatprep.subr.mxu0 0.0
        %5530 = vmatpush1.xpose.msra.mxu0 0.0
        %5531 = vmatprep.subr.mxu0 0.0
        %5532 = vmatpush1.xpose.msra.mxu0 %v1344
        %5533 = vmatprep.subr.mxu0 0.0
        %5534 = vmatpush1.xpose.msra.mxu0 %v1341
        %5535 = vmatprep.subr.mxu0 0.0
        %5536 = vmatpush1.xpose.msra.mxu0 %v1338
        %5537 = vmatprep.subr.mxu0 0.0
        %5538 = vmatpush1.xpose.msra.mxu0 %v1335
        %5539 = vmatprep.subr.mxu0 0.0
        %5540 = vmatpush1.xpose.msra.mxu0 %v1332
        %5541 = vmatprep.subr.mxu0 0.0
        %5542 = vmatpush1.xpose.msra.mxu0 %v1329
        %5543 = vmatprep.subr.mxu0 0.0
        %5544 = vmatpush1.xpose.msra.mxu0 %v1326
        %5545 = vmatprep.subr.mxu0 0.0
        %5546 = vmatpush1.xpose.msra.mxu0 %v1323
        %5547 = vmatprep.subr.mxu0 0.0
        %5548 = vmatpush2.xpose.msra.mxu0 0.0
        %5549 = vmatprep.subr.mxu0 0.0
        %5550 = vmatpush2.xpose.msra.mxu0 0.0
        %5551 = vmatprep.subr.mxu0 0.0
        %5552 = vmatpush2.xpose.msra.mxu0 0.0
        %5553 = vmatprep.subr.mxu0 0.0
        %5554 = vmatpush2.xpose.msra.mxu0 0.0
        %5555 = vmatprep.subr.mxu0 0.0
        %5556 = vmatpush2.xpose.msra.mxu0 0.0
        %5557 = vmatprep.subr.mxu0 0.0
        %5558 = vmatpush2.xpose.msra.mxu0 0.0
        %5559 = vmatprep.subr.mxu0 0.0
        %5560 = vmatpush2.xpose.msra.mxu0 0.0
        %5561 = vmatprep.subr.mxu0 0.0
        %5562 = vmatpush2.xpose.msra.mxu0 0.0
        %5563 = vmatprep.subr.mxu0 0.0
        %5564 = vmatpush2.xpose.msra.mxu0 0.0
        %5565 = vmatprep.subr.mxu0 0.0
        %5566 = vmatpush2.xpose.msra.mxu0 0.0
        %5567 = vmatprep.subr.mxu0 0.0
        %5568 = vmatpush2.xpose.msra.mxu0 0.0
        %5569 = vmatprep.subr.mxu0 0.0
        %5570 = vmatpush2.xpose.msra.mxu0 0.0
        %5571 = vmatprep.subr.mxu0 0.0
        %5572 = vmatpush2.xpose.msra.mxu0 0.0
        %5573 = vmatprep.subr.mxu0 0.0
        %5574 = vmatpush2.xpose.msra.mxu0 0.0
        %5575 = vmatprep.subr.mxu0 0.0
        %5576 = vmatpush2.xpose.msra.mxu0 0.0
        %5577 = vmatprep.subr.mxu0 0.0
        %5578 = vmatpush2.xpose.msra.mxu0 0.0
        %5579 = vmatprep.mubr.f32.mxu0 0.0
        %5580 = vmatmul.mubr.f32.gmra.mxu0 %v5513
        %v5581 = vpop.f32.mrf.mxu0
        %v5582 = vadd.f32 0.0, %v5581
        %v5583 = vpop.f32.mrf.mxu0
        %5584 = vdwg.mxu0
        %v5585 = vsel %vm1219, %v5582, -inf
        %v5586 = vrot.slane %v5585, 4
        %v5587 = vmax.f32 %v5585, %v5586
        %v5588 = vrot.slane %v5587, 2
        %v5589 = vmax.f32 %v5587, %v5588
        %v5590 = vrot.slane %v5589, 1
        %v5591 = vmax.f32 %v5589, %v5590
        %v5592 = vsub.f32 %v5582, %v5591
        %v5593 = vmul.f32 %v5592, 1.442695
        %v5594 = vpow.pop %v5593
        %v5595 = vsel %vm1219, %v5594, 0.0
        %v5596 = vrot.slane %v5595, 4
        %v5597 = vadd.f32 %v5595, %v5596
        %v5598 = vrot.slane %v5597, 2
        %v5599 = vadd.f32 %v5597, %v5598
        %v5600 = vrot.slane %v5599, 1
        %v5601 = vadd.f32 %v5599, %v5600
        %v5602 = vrcp.pop %v5601
        %v5603 = vmul.f32 %v5594, %v5602
        %v5604 = vadd.f32 %v5603, 1e-08
        %v5605 = vsel %vm1219, %v5604, 0.0
        %5606 = vadd.xlane.f32.xlu0 %v5605
        %v5607 = vpop.xlane.xlu0 %5606
        %v5608 = vrcp.pop %v5607
        %v5609 = vmul.f32 %v5604, %v5608
        %v5611 = vsel %vm1245, %v5609, 0
        %5613 = vmatprep.subr.mxu0 0.0
        %5614 = vmatpush1.msra.mxu0 0.0
        %5615 = vmatprep.subr.mxu0 0.0
        %5616 = vmatpush1.msra.mxu0 0.0
        %5617 = vmatprep.subr.mxu0 0.0
        %5618 = vmatpush1.msra.mxu0 0.0
        %5619 = vmatprep.subr.mxu0 0.0
        %5620 = vmatpush1.msra.mxu0 0.0
        %5621 = vmatprep.subr.mxu0 0.0
        %5622 = vmatpush1.msra.mxu0 0.0
        %5623 = vmatprep.subr.mxu0 0.0
        %5624 = vmatpush1.msra.mxu0 0.0
        %5625 = vmatprep.subr.mxu0 0.0
        %5626 = vmatpush1.msra.mxu0 0.0
        %5627 = vmatprep.subr.mxu0 0.0
        %5628 = vmatpush1.msra.mxu0 0.0
        %5629 = vmatprep.subr.mxu0 0.0
        %5630 = vmatpush1.msra.mxu0 %v1030
        %5631 = vmatprep.subr.mxu0 0.0
        %5632 = vmatpush1.msra.mxu0 %v1025
        %5633 = vmatprep.subr.mxu0 0.0
        %5634 = vmatpush1.msra.mxu0 %v1020
        %5635 = vmatprep.subr.mxu0 0.0
        %5636 = vmatpush1.msra.mxu0 %v1015
        %5637 = vmatprep.subr.mxu0 0.0
        %5638 = vmatpush1.msra.mxu0 %v1010
        %5639 = vmatprep.subr.mxu0 0.0
        %5640 = vmatpush1.msra.mxu0 %v1005
        %5641 = vmatprep.subr.mxu0 0.0
        %5642 = vmatpush1.msra.mxu0 %v1000
        %5643 = vmatprep.subr.mxu0 0.0
        %5644 = vmatpush1.msra.mxu0 %v995
        %5645 = vmatprep.subr.mxu0 0.0
        %5646 = vmatpush2.msra.mxu0 0.0
        %5647 = vmatprep.subr.mxu0 0.0
        %5648 = vmatpush2.msra.mxu0 0.0
        %5649 = vmatprep.subr.mxu0 0.0
        %5650 = vmatpush2.msra.mxu0 0.0
        %5651 = vmatprep.subr.mxu0 0.0
        %5652 = vmatpush2.msra.mxu0 0.0
        %5653 = vmatprep.subr.mxu0 0.0
        %5654 = vmatpush2.msra.mxu0 0.0
        %5655 = vmatprep.subr.mxu0 0.0
        %5656 = vmatpush2.msra.mxu0 0.0
        %5657 = vmatprep.subr.mxu0 0.0
        %5658 = vmatpush2.msra.mxu0 0.0
        %5659 = vmatprep.subr.mxu0 0.0
        %5660 = vmatpush2.msra.mxu0 0.0
        %5661 = vmatprep.subr.mxu0 0.0
        %5662 = vmatpush2.msra.mxu0 0.0
        %5663 = vmatprep.subr.mxu0 0.0
        %5664 = vmatpush2.msra.mxu0 0.0
        %5665 = vmatprep.subr.mxu0 0.0
        %5666 = vmatpush2.msra.mxu0 0.0
        %5667 = vmatprep.subr.mxu0 0.0
        %5668 = vmatpush2.msra.mxu0 0.0
        %5669 = vmatprep.subr.mxu0 0.0
        %5670 = vmatpush2.msra.mxu0 0.0
        %5671 = vmatprep.subr.mxu0 0.0
        %5672 = vmatpush2.msra.mxu0 0.0
        %5673 = vmatprep.subr.mxu0 0.0
        %5674 = vmatpush2.msra.mxu0 0.0
        %5675 = vmatprep.subr.mxu0 0.0
        %5676 = vmatpush2.msra.mxu0 0.0
        %5677 = vmatprep.mubr.f32.mxu0 0.0
        %5678 = vmatmul.mubr.f32.gmra.mxu0 %v5611
        %v5679 = vpop.f32.mrf.mxu0
        %v5680 = vadd.f32 0.0, %v5679
        %v5681 = vpop.f32.mrf.mxu0
        %5682 = vdwg.mxu0
        %v5684 = vrot.slane %v5680, 4
        %v5686 = vsel %vm1517, %v5509, %v5684
        %v5688 = vsel %vm437, %v5252, 0
        %5690 = vmatprep.subr.mxu0 0.0
        %5691 = vmatpush1.msra.mxu0 0.0
        %5692 = vmatprep.subr.mxu0 0.0
        %5693 = vmatpush1.msra.mxu0 0.0
        %5694 = vmatprep.subr.mxu0 0.0
        %5695 = vmatpush1.msra.mxu0 0.0
        %5696 = vmatprep.subr.mxu0 0.0
        %5697 = vmatpush1.msra.mxu0 0.0
        %5698 = vmatprep.subr.mxu0 0.0
        %5699 = vmatpush1.msra.mxu0 0.0
        %5700 = vmatprep.subr.mxu0 0.0
        %5701 = vmatpush1.msra.mxu0 0.0
        %5702 = vmatprep.subr.mxu0 0.0
        %5703 = vmatpush1.msra.mxu0 0.0
        %5704 = vmatprep.subr.mxu0 0.0
        %5705 = vmatpush1.msra.mxu0 0.0
        %5706 = vmatprep.subr.mxu0 0.0
        %5707 = vmatpush1.msra.mxu0 0.0
        %5708 = vmatprep.subr.mxu0 0.0
        %5709 = vmatpush1.msra.mxu0 0.0
        %5710 = vmatprep.subr.mxu0 0.0
        %5711 = vmatpush1.msra.mxu0 0.0
        %5712 = vmatprep.subr.mxu0 0.0
        %5713 = vmatpush1.msra.mxu0 0.0
        %5714 = vmatprep.subr.mxu0 0.0
        %5715 = vmatpush1.msra.mxu0 %v329
        %5716 = vmatprep.subr.mxu0 0.0
        %5717 = vmatpush1.msra.mxu0 %v328
        %5718 = vmatprep.subr.mxu0 0.0
        %5719 = vmatpush1.msra.mxu0 %v327
        %5720 = vmatprep.subr.mxu0 0.0
        %5721 = vmatpush1.msra.mxu0 %v326
        %5722 = vmatprep.subr.mxu0 0.0
        %5723 = vmatpush2.msra.mxu0 0.0
        %5724 = vmatprep.subr.mxu0 0.0
        %5725 = vmatpush2.msra.mxu0 0.0
        %5726 = vmatprep.subr.mxu0 0.0
        %5727 = vmatpush2.msra.mxu0 0.0
        %5728 = vmatprep.subr.mxu0 0.0
        %5729 = vmatpush2.msra.mxu0 0.0
        %5730 = vmatprep.subr.mxu0 0.0
        %5731 = vmatpush2.msra.mxu0 0.0
        %5732 = vmatprep.subr.mxu0 0.0
        %5733 = vmatpush2.msra.mxu0 0.0
        %5734 = vmatprep.subr.mxu0 0.0
        %5735 = vmatpush2.msra.mxu0 0.0
        %5736 = vmatprep.subr.mxu0 0.0
        %5737 = vmatpush2.msra.mxu0 0.0
        %5738 = vmatprep.subr.mxu0 0.0
        %5739 = vmatpush2.msra.mxu0 0.0
        %5740 = vmatprep.subr.mxu0 0.0
        %5741 = vmatpush2.msra.mxu0 0.0
        %5742 = vmatprep.subr.mxu0 0.0
        %5743 = vmatpush2.msra.mxu0 0.0
        %5744 = vmatprep.subr.mxu0 0.0
        %5745 = vmatpush2.msra.mxu0 0.0
        %5746 = vmatprep.subr.mxu0 0.0
        %5747 = vmatpush2.msra.mxu0 0.0
        %5748 = vmatprep.subr.mxu0 0.0
        %5749 = vmatpush2.msra.mxu0 0.0
        %5750 = vmatprep.subr.mxu0 0.0
        %5751 = vmatpush2.msra.mxu0 0.0
        %5752 = vmatprep.subr.mxu0 0.0
        %5753 = vmatpush2.msra.mxu0 0.0
        %5754 = vmatprep.mubr.f32.mxu0 0.0
        %5755 = vmatmul.mubr.f32.gmra.mxu0 %v5688
        %v5756 = vpop.f32.mrf.mxu0
        %v5757 = vadd.f32 0.0, %v5756
        %v5758 = vpop.f32.mrf.mxu0
        %5759 = vdwg.mxu0
        %v5761 = vsel %vm437, %v5686, 0
        %5763 = vmatprep.subr.mxu0 0.0
        %5764 = vmatpush1.msra.mxu0 0.0
        %5765 = vmatprep.subr.mxu0 0.0
        %5766 = vmatpush1.msra.mxu0 0.0
        %5767 = vmatprep.subr.mxu0 0.0
        %5768 = vmatpush1.msra.mxu0 0.0
        %5769 = vmatprep.subr.mxu0 0.0
        %5770 = vmatpush1.msra.mxu0 0.0
        %5771 = vmatprep.subr.mxu0 0.0
        %5772 = vmatpush1.msra.mxu0 0.0
        %5773 = vmatprep.subr.mxu0 0.0
        %5774 = vmatpush1.msra.mxu0 0.0
        %5775 = vmatprep.subr.mxu0 0.0
        %5776 = vmatpush1.msra.mxu0 0.0
        %5777 = vmatprep.subr.mxu0 0.0
        %5778 = vmatpush1.msra.mxu0 0.0
        %5779 = vmatprep.subr.mxu0 0.0
        %5780 = vmatpush1.msra.mxu0 0.0
        %5781 = vmatprep.subr.mxu0 0.0
        %5782 = vmatpush1.msra.mxu0 0.0
        %5783 = vmatprep.subr.mxu0 0.0
        %5784 = vmatpush1.msra.mxu0 0.0
        %5785 = vmatprep.subr.mxu0 0.0
        %5786 = vmatpush1.msra.mxu0 0.0
        %5787 = vmatprep.subr.mxu0 0.0
        %5788 = vmatpush1.msra.mxu0 %v314
        %5789 = vmatprep.subr.mxu0 0.0
        %5790 = vmatpush1.msra.mxu0 %v313
        %5791 = vmatprep.subr.mxu0 0.0
        %5792 = vmatpush1.msra.mxu0 %v312
        %5793 = vmatprep.subr.mxu0 0.0
        %5794 = vmatpush1.msra.mxu0 %v311
        %5795 = vmatprep.subr.mxu0 0.0
        %5796 = vmatpush2.msra.mxu0 0.0
        %5797 = vmatprep.subr.mxu0 0.0
        %5798 = vmatpush2.msra.mxu0 0.0
        %5799 = vmatprep.subr.mxu0 0.0
        %5800 = vmatpush2.msra.mxu0 0.0
        %5801 = vmatprep.subr.mxu0 0.0
        %5802 = vmatpush2.msra.mxu0 0.0
        %5803 = vmatprep.subr.mxu0 0.0
        %5804 = vmatpush2.msra.mxu0 0.0
        %5805 = vmatprep.subr.mxu0 0.0
        %5806 = vmatpush2.msra.mxu0 0.0
        %5807 = vmatprep.subr.mxu0 0.0
        %5808 = vmatpush2.msra.mxu0 0.0
        %5809 = vmatprep.subr.mxu0 0.0
        %5810 = vmatpush2.msra.mxu0 0.0
        %5811 = vmatprep.subr.mxu0 0.0
        %5812 = vmatpush2.msra.mxu0 0.0
        %5813 = vmatprep.subr.mxu0 0.0
        %5814 = vmatpush2.msra.mxu0 0.0
        %5815 = vmatprep.subr.mxu0 0.0
        %5816 = vmatpush2.msra.mxu0 0.0
        %5817 = vmatprep.subr.mxu0 0.0
        %5818 = vmatpush2.msra.mxu0 0.0
        %5819 = vmatprep.subr.mxu0 0.0
        %5820 = vmatpush2.msra.mxu0 0.0
        %5821 = vmatprep.subr.mxu0 0.0
        %5822 = vmatpush2.msra.mxu0 0.0
        %5823 = vmatprep.subr.mxu0 0.0
        %5824 = vmatpush2.msra.mxu0 0.0
        %5825 = vmatprep.subr.mxu0 0.0
        %5826 = vmatpush2.msra.mxu0 0.0
        %5827 = vmatprep.mubr.f32.mxu0 0.0
        %5828 = vmatmul.mubr.f32.gmra.mxu0 %v5761
        %v5829 = vpop.f32.mrf.mxu0
        %v5830 = vadd.f32 %v5757, %v5829
        %v5831 = vpop.f32.mrf.mxu0
        %5832 = vdwg.mxu0
        %v5833 = vadd.f32 %v5830, %v397
        %v5834 = vxor.u32 %v5833, 2147483648
        %v5835 = vmul.f32 %v5834, 1.442695
        %v5836 = vpow.pop %v5835
        %v5837 = vadd.f32 %v5836, 1.0
        %v5838 = vrcp.pop %v5837
        %v5839 = vmul.f32 1.0, %v5838
        %5840 = vmatprep.subr.mxu0 0.0
        %5841 = vmatpush1.msra.mxu0 0.0
        %5842 = vmatprep.subr.mxu0 0.0
        %5843 = vmatpush1.msra.mxu0 0.0
        %5844 = vmatprep.subr.mxu0 0.0
        %5845 = vmatpush1.msra.mxu0 0.0
        %5846 = vmatprep.subr.mxu0 0.0
        %5847 = vmatpush1.msra.mxu0 0.0
        %5848 = vmatprep.subr.mxu0 0.0
        %5849 = vmatpush1.msra.mxu0 0.0
        %5850 = vmatprep.subr.mxu0 0.0
        %5851 = vmatpush1.msra.mxu0 0.0
        %5852 = vmatprep.subr.mxu0 0.0
        %5853 = vmatpush1.msra.mxu0 0.0
        %5854 = vmatprep.subr.mxu0 0.0
        %5855 = vmatpush1.msra.mxu0 0.0
        %5856 = vmatprep.subr.mxu0 0.0
        %5857 = vmatpush1.msra.mxu0 0.0
        %5858 = vmatprep.subr.mxu0 0.0
        %5859 = vmatpush1.msra.mxu0 0.0
        %5860 = vmatprep.subr.mxu0 0.0
        %5861 = vmatpush1.msra.mxu0 0.0
        %5862 = vmatprep.subr.mxu0 0.0
        %5863 = vmatpush1.msra.mxu0 0.0
        %5864 = vmatprep.subr.mxu0 0.0
        %5865 = vmatpush1.msra.mxu0 %v334
        %5866 = vmatprep.subr.mxu0 0.0
        %5867 = vmatpush1.msra.mxu0 %v333
        %5868 = vmatprep.subr.mxu0 0.0
        %5869 = vmatpush1.msra.mxu0 %v332
        %5870 = vmatprep.subr.mxu0 0.0
        %5871 = vmatpush1.msra.mxu0 %v331
        %5872 = vmatprep.subr.mxu0 0.0
        %5873 = vmatpush2.msra.mxu0 0.0
        %5874 = vmatprep.subr.mxu0 0.0
        %5875 = vmatpush2.msra.mxu0 0.0
        %5876 = vmatprep.subr.mxu0 0.0
        %5877 = vmatpush2.msra.mxu0 0.0
        %5878 = vmatprep.subr.mxu0 0.0
        %5879 = vmatpush2.msra.mxu0 0.0
        %5880 = vmatprep.subr.mxu0 0.0
        %5881 = vmatpush2.msra.mxu0 0.0
        %5882 = vmatprep.subr.mxu0 0.0
        %5883 = vmatpush2.msra.mxu0 0.0
        %5884 = vmatprep.subr.mxu0 0.0
        %5885 = vmatpush2.msra.mxu0 0.0
        %5886 = vmatprep.subr.mxu0 0.0
        %5887 = vmatpush2.msra.mxu0 0.0
        %5888 = vmatprep.subr.mxu0 0.0
        %5889 = vmatpush2.msra.mxu0 0.0
        %5890 = vmatprep.subr.mxu0 0.0
        %5891 = vmatpush2.msra.mxu0 0.0
        %5892 = vmatprep.subr.mxu0 0.0
        %5893 = vmatpush2.msra.mxu0 0.0
        %5894 = vmatprep.subr.mxu0 0.0
        %5895 = vmatpush2.msra.mxu0 0.0
        %5896 = vmatprep.subr.mxu0 0.0
        %5897 = vmatpush2.msra.mxu0 0.0
        %5898 = vmatprep.subr.mxu0 0.0
        %5899 = vmatpush2.msra.mxu0 0.0
        %5900 = vmatprep.subr.mxu0 0.0
        %5901 = vmatpush2.msra.mxu0 0.0
        %5902 = vmatprep.subr.mxu0 0.0
        %5903 = vmatpush2.msra.mxu0 0.0
        %5904 = vmatprep.mubr.f32.mxu0 0.0
        %5905 = vmatmul.mubr.f32.gmra.mxu0 %v5688
        %v5906 = vpop.f32.mrf.mxu0
        %v5907 = vadd.f32 0.0, %v5906
        %v5908 = vpop.f32.mrf.mxu0
        %5909 = vdwg.mxu0
        %5910 = vmatprep.subr.mxu0 0.0
        %5911 = vmatpush1.msra.mxu0 0.0
        %5912 = vmatprep.subr.mxu0 0.0
        %5913 = vmatpush1.msra.mxu0 0.0
        %5914 = vmatprep.subr.mxu0 0.0
        %5915 = vmatpush1.msra.mxu0 0.0
        %5916 = vmatprep.subr.mxu0 0.0
        %5917 = vmatpush1.msra.mxu0 0.0
        %5918 = vmatprep.subr.mxu0 0.0
        %5919 = vmatpush1.msra.mxu0 0.0
        %5920 = vmatprep.subr.mxu0 0.0
        %5921 = vmatpush1.msra.mxu0 0.0
        %5922 = vmatprep.subr.mxu0 0.0
        %5923 = vmatpush1.msra.mxu0 0.0
        %5924 = vmatprep.subr.mxu0 0.0
        %5925 = vmatpush1.msra.mxu0 0.0
        %5926 = vmatprep.subr.mxu0 0.0
        %5927 = vmatpush1.msra.mxu0 0.0
        %5928 = vmatprep.subr.mxu0 0.0
        %5929 = vmatpush1.msra.mxu0 0.0
        %5930 = vmatprep.subr.mxu0 0.0
        %5931 = vmatpush1.msra.mxu0 0.0
        %5932 = vmatprep.subr.mxu0 0.0
        %5933 = vmatpush1.msra.mxu0 0.0
        %5934 = vmatprep.subr.mxu0 0.0
        %5935 = vmatpush1.msra.mxu0 %v319
        %5936 = vmatprep.subr.mxu0 0.0
        %5937 = vmatpush1.msra.mxu0 %v318
        %5938 = vmatprep.subr.mxu0 0.0
        %5939 = vmatpush1.msra.mxu0 %v317
        %5940 = vmatprep.subr.mxu0 0.0
        %5941 = vmatpush1.msra.mxu0 %v316
        %5942 = vmatprep.subr.mxu0 0.0
        %5943 = vmatpush2.msra.mxu0 0.0
        %5944 = vmatprep.subr.mxu0 0.0
        %5945 = vmatpush2.msra.mxu0 0.0
        %5946 = vmatprep.subr.mxu0 0.0
        %5947 = vmatpush2.msra.mxu0 0.0
        %5948 = vmatprep.subr.mxu0 0.0
        %5949 = vmatpush2.msra.mxu0 0.0
        %5950 = vmatprep.subr.mxu0 0.0
        %5951 = vmatpush2.msra.mxu0 0.0
        %5952 = vmatprep.subr.mxu0 0.0
        %5953 = vmatpush2.msra.mxu0 0.0
        %5954 = vmatprep.subr.mxu0 0.0
        %5955 = vmatpush2.msra.mxu0 0.0
        %5956 = vmatprep.subr.mxu0 0.0
        %5957 = vmatpush2.msra.mxu0 0.0
        %5958 = vmatprep.subr.mxu0 0.0
        %5959 = vmatpush2.msra.mxu0 0.0
        %5960 = vmatprep.subr.mxu0 0.0
        %5961 = vmatpush2.msra.mxu0 0.0
        %5962 = vmatprep.subr.mxu0 0.0
        %5963 = vmatpush2.msra.mxu0 0.0
        %5964 = vmatprep.subr.mxu0 0.0
        %5965 = vmatpush2.msra.mxu0 0.0
        %5966 = vmatprep.subr.mxu0 0.0
        %5967 = vmatpush2.msra.mxu0 0.0
        %5968 = vmatprep.subr.mxu0 0.0
        %5969 = vmatpush2.msra.mxu0 0.0
        %5970 = vmatprep.subr.mxu0 0.0
        %5971 = vmatpush2.msra.mxu0 0.0
        %5972 = vmatprep.subr.mxu0 0.0
        %5973 = vmatpush2.msra.mxu0 0.0
        %5974 = vmatprep.mubr.f32.mxu0 0.0
        %5975 = vmatmul.mubr.f32.gmra.mxu0 %v5761
        %v5976 = vpop.f32.mrf.mxu0
        %v5977 = vadd.f32 %v5907, %v5976
        %v5978 = vpop.f32.mrf.mxu0
        %5979 = vdwg.mxu0
        %v5980 = vadd.f32 %v5977, %v401
        %v5981 = vxor.u32 %v5980, 2147483648
        %v5982 = vmul.f32 %v5981, 1.442695
        %v5983 = vpow.pop %v5982
        %v5984 = vadd.f32 %v5983, 1.0
        %v5985 = vrcp.pop %v5984
        %v5986 = vmul.f32 1.0, %v5985
        %5987 = vmatprep.subr.mxu0 0.0
        %5988 = vmatpush1.msra.mxu0 0.0
        %5989 = vmatprep.subr.mxu0 0.0
        %5990 = vmatpush1.msra.mxu0 0.0
        %5991 = vmatprep.subr.mxu0 0.0
        %5992 = vmatpush1.msra.mxu0 0.0
        %5993 = vmatprep.subr.mxu0 0.0
        %5994 = vmatpush1.msra.mxu0 0.0
        %5995 = vmatprep.subr.mxu0 0.0
        %5996 = vmatpush1.msra.mxu0 0.0
        %5997 = vmatprep.subr.mxu0 0.0
        %5998 = vmatpush1.msra.mxu0 0.0
        %5999 = vmatprep.subr.mxu0 0.0
        %6000 = vmatpush1.msra.mxu0 0.0
        %6001 = vmatprep.subr.mxu0 0.0
        %6002 = vmatpush1.msra.mxu0 0.0
        %6003 = vmatprep.subr.mxu0 0.0
        %6004 = vmatpush1.msra.mxu0 0.0
        %6005 = vmatprep.subr.mxu0 0.0
        %6006 = vmatpush1.msra.mxu0 0.0
        %6007 = vmatprep.subr.mxu0 0.0
        %6008 = vmatpush1.msra.mxu0 0.0
        %6009 = vmatprep.subr.mxu0 0.0
        %6010 = vmatpush1.msra.mxu0 0.0
        %6011 = vmatprep.subr.mxu0 0.0
        %6012 = vmatpush1.msra.mxu0 %v339
        %6013 = vmatprep.subr.mxu0 0.0
        %6014 = vmatpush1.msra.mxu0 %v338
        %6015 = vmatprep.subr.mxu0 0.0
        %6016 = vmatpush1.msra.mxu0 %v337
        %6017 = vmatprep.subr.mxu0 0.0
        %6018 = vmatpush1.msra.mxu0 %v336
        %6019 = vmatprep.subr.mxu0 0.0
        %6020 = vmatpush2.msra.mxu0 0.0
        %6021 = vmatprep.subr.mxu0 0.0
        %6022 = vmatpush2.msra.mxu0 0.0
        %6023 = vmatprep.subr.mxu0 0.0
        %6024 = vmatpush2.msra.mxu0 0.0
        %6025 = vmatprep.subr.mxu0 0.0
        %6026 = vmatpush2.msra.mxu0 0.0
        %6027 = vmatprep.subr.mxu0 0.0
        %6028 = vmatpush2.msra.mxu0 0.0
        %6029 = vmatprep.subr.mxu0 0.0
        %6030 = vmatpush2.msra.mxu0 0.0
        %6031 = vmatprep.subr.mxu0 0.0
        %6032 = vmatpush2.msra.mxu0 0.0
        %6033 = vmatprep.subr.mxu0 0.0
        %6034 = vmatpush2.msra.mxu0 0.0
        %6035 = vmatprep.subr.mxu0 0.0
        %6036 = vmatpush2.msra.mxu0 0.0
        %6037 = vmatprep.subr.mxu0 0.0
        %6038 = vmatpush2.msra.mxu0 0.0
        %6039 = vmatprep.subr.mxu0 0.0
        %6040 = vmatpush2.msra.mxu0 0.0
        %6041 = vmatprep.subr.mxu0 0.0
        %6042 = vmatpush2.msra.mxu0 0.0
        %6043 = vmatprep.subr.mxu0 0.0
        %6044 = vmatpush2.msra.mxu0 0.0
        %6045 = vmatprep.subr.mxu0 0.0
        %6046 = vmatpush2.msra.mxu0 0.0
        %6047 = vmatprep.subr.mxu0 0.0
        %6048 = vmatpush2.msra.mxu0 0.0
        %6049 = vmatprep.subr.mxu0 0.0
        %6050 = vmatpush2.msra.mxu0 0.0
        %6051 = vmatprep.mubr.f32.mxu0 0.0
        %6052 = vmatmul.mubr.f32.gmra.mxu0 %v5688
        %v6053 = vpop.f32.mrf.mxu0
        %v6054 = vadd.f32 %v409, %v6053
        %v6055 = vpop.f32.mrf.mxu0
        %6056 = vdwg.mxu0
        %6057 = vmatprep.subr.mxu0 0.0
        %6058 = vmatpush1.msra.mxu0 0.0
        %6059 = vmatprep.subr.mxu0 0.0
        %6060 = vmatpush1.msra.mxu0 0.0
        %6061 = vmatprep.subr.mxu0 0.0
        %6062 = vmatpush1.msra.mxu0 0.0
        %6063 = vmatprep.subr.mxu0 0.0
        %6064 = vmatpush1.msra.mxu0 0.0
        %6065 = vmatprep.subr.mxu0 0.0
        %6066 = vmatpush1.msra.mxu0 0.0
        %6067 = vmatprep.subr.mxu0 0.0
        %6068 = vmatpush1.msra.mxu0 0.0
        %6069 = vmatprep.subr.mxu0 0.0
        %6070 = vmatpush1.msra.mxu0 0.0
        %6071 = vmatprep.subr.mxu0 0.0
        %6072 = vmatpush1.msra.mxu0 0.0
        %6073 = vmatprep.subr.mxu0 0.0
        %6074 = vmatpush1.msra.mxu0 0.0
        %6075 = vmatprep.subr.mxu0 0.0
        %6076 = vmatpush1.msra.mxu0 0.0
        %6077 = vmatprep.subr.mxu0 0.0
        %6078 = vmatpush1.msra.mxu0 0.0
        %6079 = vmatprep.subr.mxu0 0.0
        %6080 = vmatpush1.msra.mxu0 0.0
        %6081 = vmatprep.subr.mxu0 0.0
        %6082 = vmatpush1.msra.mxu0 %v324
        %6083 = vmatprep.subr.mxu0 0.0
        %6084 = vmatpush1.msra.mxu0 %v323
        %6085 = vmatprep.subr.mxu0 0.0
        %6086 = vmatpush1.msra.mxu0 %v322
        %6087 = vmatprep.subr.mxu0 0.0
        %6088 = vmatpush1.msra.mxu0 %v321
        %6089 = vmatprep.subr.mxu0 0.0
        %6090 = vmatpush2.msra.mxu0 0.0
        %6091 = vmatprep.subr.mxu0 0.0
        %6092 = vmatpush2.msra.mxu0 0.0
        %6093 = vmatprep.subr.mxu0 0.0
        %6094 = vmatpush2.msra.mxu0 0.0
        %6095 = vmatprep.subr.mxu0 0.0
        %6096 = vmatpush2.msra.mxu0 0.0
        %6097 = vmatprep.subr.mxu0 0.0
        %6098 = vmatpush2.msra.mxu0 0.0
        %6099 = vmatprep.subr.mxu0 0.0
        %6100 = vmatpush2.msra.mxu0 0.0
        %6101 = vmatprep.subr.mxu0 0.0
        %6102 = vmatpush2.msra.mxu0 0.0
        %6103 = vmatprep.subr.mxu0 0.0
        %6104 = vmatpush2.msra.mxu0 0.0
        %6105 = vmatprep.subr.mxu0 0.0
        %6106 = vmatpush2.msra.mxu0 0.0
        %6107 = vmatprep.subr.mxu0 0.0
        %6108 = vmatpush2.msra.mxu0 0.0
        %6109 = vmatprep.subr.mxu0 0.0
        %6110 = vmatpush2.msra.mxu0 0.0
        %6111 = vmatprep.subr.mxu0 0.0
        %6112 = vmatpush2.msra.mxu0 0.0
        %6113 = vmatprep.subr.mxu0 0.0
        %6114 = vmatpush2.msra.mxu0 0.0
        %6115 = vmatprep.subr.mxu0 0.0
        %6116 = vmatpush2.msra.mxu0 0.0
        %6117 = vmatprep.subr.mxu0 0.0
        %6118 = vmatpush2.msra.mxu0 0.0
        %6119 = vmatprep.subr.mxu0 0.0
        %6120 = vmatpush2.msra.mxu0 0.0
        %6121 = vmatprep.mubr.f32.mxu0 0.0
        %6122 = vmatmul.mubr.f32.gmra.mxu0 %v5761
        %v6123 = vpop.f32.mrf.mxu0
        %v6124 = vadd.f32 %v405, %v6123
        %v6125 = vpop.f32.mrf.mxu0
        %6126 = vdwg.mxu0
        %v6127 = vmul.f32 %v5839, %v6054
        %v6128 = vadd.f32 %v6124, %v6127
        %v6129 = vtanh.pop %v6128
        %v6130 = vsub.f32 1.0, %v5986
        %v6131 = vmul.f32 %v6130, %v6129
        %v6132 = vmul.f32 %v5986, %v5252
        %v6133 = vadd.f32 %v6131, %v6132
        %v6134 = vsel %vm437, %v6133, 0.0
        %6135 = vadd.xlane.f32.xlu0 %v6134
        %v6136 = vpop.xlane.xlu0 %6135
        %v6137 = vmul.f32 %v6136, %v486
        %v6138 = vsub.f32 %v6133, %v6137
        %v6139 = vmul.f32 %v6138, %v6138
        %v6140 = vsel %vm437, %v6139, 0.0
        %6141 = vadd.xlane.f32.xlu0 %v6140
        %v6142 = vpop.xlane.xlu0 %6141
        %v6143 = vmul.f32 %v6142, %v486
        %v6144 = vadd.f32 %v6143, 1e-05
        %v6145 = vrsqrt.pop %v6144
        %v6146 = vmul.f32 %v6138, %v6145
        %v6147 = vmul.f32 %v6146, %v385
        %v6148 = vadd.f32 %v6147, %v389
        %v6150 = vsel %vm437, %v6148, 0
        %6152 = vmatprep.subr.mxu0 0.0
        %6153 = vmatpush1.msra.mxu0 0.0
        %6154 = vmatprep.subr.mxu0 0.0
        %6155 = vmatpush1.msra.mxu0 0.0
        %6156 = vmatprep.subr.mxu0 0.0
        %6157 = vmatpush1.msra.mxu0 0.0
        %6158 = vmatprep.subr.mxu0 0.0
        %6159 = vmatpush1.msra.mxu0 0.0
        %6160 = vmatprep.subr.mxu0 0.0
        %6161 = vmatpush1.msra.mxu0 0.0
        %6162 = vmatprep.subr.mxu0 0.0
        %6163 = vmatpush1.msra.mxu0 0.0
        %6164 = vmatprep.subr.mxu0 0.0
        %6165 = vmatpush1.msra.mxu0 0.0
        %6166 = vmatprep.subr.mxu0 0.0
        %6167 = vmatpush1.msra.mxu0 0.0
        %6168 = vmatprep.subr.mxu0 0.0
        %6169 = vmatpush1.msra.mxu0 0.0
        %6170 = vmatprep.subr.mxu0 0.0
        %6171 = vmatpush1.msra.mxu0 0.0
        %6172 = vmatprep.subr.mxu0 0.0
        %6173 = vmatpush1.msra.mxu0 0.0
        %6174 = vmatprep.subr.mxu0 0.0
        %6175 = vmatpush1.msra.mxu0 0.0
        %6176 = vmatprep.subr.mxu0 0.0
        %6177 = vmatpush1.msra.mxu0 %v357
        %6178 = vmatprep.subr.mxu0 0.0
        %6179 = vmatpush1.msra.mxu0 %v356
        %6180 = vmatprep.subr.mxu0 0.0
        %6181 = vmatpush1.msra.mxu0 %v355
        %6182 = vmatprep.subr.mxu0 0.0
        %6183 = vmatpush1.msra.mxu0 %v354
        %6184 = vmatprep.subr.mxu0 0.0
        %6185 = vmatpush2.msra.mxu0 0.0
        %6186 = vmatprep.subr.mxu0 0.0
        %6187 = vmatpush2.msra.mxu0 0.0
        %6188 = vmatprep.subr.mxu0 0.0
        %6189 = vmatpush2.msra.mxu0 0.0
        %6190 = vmatprep.subr.mxu0 0.0
        %6191 = vmatpush2.msra.mxu0 0.0
        %6192 = vmatprep.subr.mxu0 0.0
        %6193 = vmatpush2.msra.mxu0 0.0
        %6194 = vmatprep.subr.mxu0 0.0
        %6195 = vmatpush2.msra.mxu0 0.0
        %6196 = vmatprep.subr.mxu0 0.0
        %6197 = vmatpush2.msra.mxu0 0.0
        %6198 = vmatprep.subr.mxu0 0.0
        %6199 = vmatpush2.msra.mxu0 0.0
        %6200 = vmatprep.subr.mxu0 0.0
        %6201 = vmatpush2.msra.mxu0 0.0
        %6202 = vmatprep.subr.mxu0 0.0
        %6203 = vmatpush2.msra.mxu0 0.0
        %6204 = vmatprep.subr.mxu0 0.0
        %6205 = vmatpush2.msra.mxu0 0.0
        %6206 = vmatprep.subr.mxu0 0.0
        %6207 = vmatpush2.msra.mxu0 0.0
        %6208 = vmatprep.subr.mxu0 0.0
        %6209 = vmatpush2.msra.mxu0 0.0
        %6210 = vmatprep.subr.mxu0 0.0
        %6211 = vmatpush2.msra.mxu0 0.0
        %6212 = vmatprep.subr.mxu0 0.0
        %6213 = vmatpush2.msra.mxu0 0.0
        %6214 = vmatprep.subr.mxu0 0.0
        %6215 = vmatpush2.msra.mxu0 0.0
        %6216 = vmatprep.mubr.f32.mxu0 0.0
        %6217 = vmatmul.mubr.f32.gmra.mxu0 %v6150
        %v6218 = vpop.f32.mrf.mxu0
        %v6219 = vadd.f32 %v419, %v6218
        %v6220 = vpop.f32.mrf.mxu0
        %6221 = vdwg.mxu0
        %v6222 = vmax.f32 %v6219, 0.0
        %6223 = vmatprep.subr.mxu0 0.0
        %6224 = vmatpush1.msra.mxu0 %v373
        %6225 = vmatprep.subr.mxu0 0.0
        %6226 = vmatpush1.msra.mxu0 %v372
        %6227 = vmatprep.subr.mxu0 0.0
        %6228 = vmatpush1.msra.mxu0 %v371
        %6229 = vmatprep.subr.mxu0 0.0
        %6230 = vmatpush1.msra.mxu0 %v370
        %6231 = vmatprep.subr.mxu0 0.0
        %6232 = vmatpush1.msra.mxu0 %v369
        %6233 = vmatprep.subr.mxu0 0.0
        %6234 = vmatpush1.msra.mxu0 %v368
        %6235 = vmatprep.subr.mxu0 0.0
        %6236 = vmatpush1.msra.mxu0 %v367
        %6237 = vmatprep.subr.mxu0 0.0
        %6238 = vmatpush1.msra.mxu0 %v366
        %6239 = vmatprep.subr.mxu0 0.0
        %6240 = vmatpush1.msra.mxu0 %v365
        %6241 = vmatprep.subr.mxu0 0.0
        %6242 = vmatpush1.msra.mxu0 %v364
        %6243 = vmatprep.subr.mxu0 0.0
        %6244 = vmatpush1.msra.mxu0 %v363
        %6245 = vmatprep.subr.mxu0 0.0
        %6246 = vmatpush1.msra.mxu0 %v362
        %6247 = vmatprep.subr.mxu0 0.0
        %6248 = vmatpush1.msra.mxu0 %v361
        %6249 = vmatprep.subr.mxu0 0.0
        %6250 = vmatpush1.msra.mxu0 %v360
        %6251 = vmatprep.subr.mxu0 0.0
        %6252 = vmatpush1.msra.mxu0 %v359
        %6253 = vmatprep.subr.mxu0 0.0
        %6254 = vmatpush1.msra.mxu0 %v358
        %6255 = vmatprep.subr.mxu0 0.0
        %6256 = vmatpush2.msra.mxu0 0.0
        %6257 = vmatprep.subr.mxu0 0.0
        %6258 = vmatpush2.msra.mxu0 0.0
        %6259 = vmatprep.subr.mxu0 0.0
        %6260 = vmatpush2.msra.mxu0 0.0
        %6261 = vmatprep.subr.mxu0 0.0
        %6262 = vmatpush2.msra.mxu0 0.0
        %6263 = vmatprep.subr.mxu0 0.0
        %6264 = vmatpush2.msra.mxu0 0.0
        %6265 = vmatprep.subr.mxu0 0.0
        %6266 = vmatpush2.msra.mxu0 0.0
        %6267 = vmatprep.subr.mxu0 0.0
        %6268 = vmatpush2.msra.mxu0 0.0
        %6269 = vmatprep.subr.mxu0 0.0
        %6270 = vmatpush2.msra.mxu0 0.0
        %6271 = vmatprep.subr.mxu0 0.0
        %6272 = vmatpush2.msra.mxu0 0.0
        %6273 = vmatprep.subr.mxu0 0.0
        %6274 = vmatpush2.msra.mxu0 0.0
        %6275 = vmatprep.subr.mxu0 0.0
        %6276 = vmatpush2.msra.mxu0 0.0
        %6277 = vmatprep.subr.mxu0 0.0
        %6278 = vmatpush2.msra.mxu0 0.0
        %6279 = vmatprep.subr.mxu0 0.0
        %6280 = vmatpush2.msra.mxu0 0.0
        %6281 = vmatprep.subr.mxu0 0.0
        %6282 = vmatpush2.msra.mxu0 0.0
        %6283 = vmatprep.subr.mxu0 0.0
        %6284 = vmatpush2.msra.mxu0 0.0
        %6285 = vmatprep.subr.mxu0 0.0
        %6286 = vmatpush2.msra.mxu0 0.0
        %6287 = vmatprep.mubr.f32.mxu0 0.0
        %6288 = vmatmul.mubr.f32.gmra.mxu0 %v6222
        %v6289 = vpop.f32.mrf.mxu0
        %v6290 = vadd.f32 0.0, %v6289
        %v6291 = vpop.f32.mrf.mxu0
        %6292 = vdwg.mxu0
        %v6293 = vadd.f32 %v6133, %v6290
        %v6294 = vadd.f32 %v6293, %v413
        %6295 = vst.msk [vmem:[%s285] sm:$0xff] %vm437, %v6294
        %s6296 = sand.u32 %s186, 1
        %s6297 = scalar_lea.sflag [#allocation3], %s6296
        %s6298 = sand.u32 %s186, 1
        %s6299 = smul.addr %s6298, 8
        %s6300 = scalar_lea.vmem [#allocation2], %s6299
        // Predicated region
        $region49: #{tpu_custom_call.1} parent=47 // pred_check
          %p6301 = pneg %p196
        $region50: #{tpu_custom_call.1} parent=47 // pred_check_branch
          %6303 = sbr.rel (%p6301) target = $region52
        $region51: #{tpu_custom_call.1} parent=47 // pred_region
          %s6305 = ssub.s32 128, 128
          %6306 = vsyncadd %s6297, %s6305
          %s6307 = smul.addr %s21, 128
          %s6308 = scalar_lea.hbm %s7, %s6307
          %s6310 = sshll.u32 %s6300, 4
          %s6311 = int_to_ptr.vmem [resolvable:$true] %s6310
          %6313 = dma.vmem_to_hbm [thread:$0]  %s6311, 128, %s6308, %s6297
        $region52: #{tpu_custom_call.1} parent=47 // pred_fallthru
          _
      $region48: #{tpu_custom_call.1} parent=5 // pred_fallthru
        _
      %p6314 = scmp.le.s32.totalorder 2, %s16
      // Predicated region
      $region53: #{tpu_custom_call.1} parent=5 // pred_check
        %p6315 = pneg %p6314
      $region54: #{tpu_custom_call.1} parent=5 // pred_check_branch
        %6317 = sbr.rel (%p6315) target = $region56
      $region55: #{tpu_custom_call.1} parent=5 // pred_region
        %s6318 = ssub.s32 %s16, 2
        // Predicated region
        $region57: #{tpu_custom_call.1} parent=55 // pred_check
          %p6319 = pneg %p202
        $region58: #{tpu_custom_call.1} parent=55 // pred_check_branch
          %6321 = sbr.rel (%p6319) target = $region60
        $region59: #{tpu_custom_call.1} parent=55 // pred_region
          %s6322 = sand.u32 %s187, 1
          %s6323 = scalar_lea.sflag [#allocation3], %s6322
          %s6324 = sand.u32 %s187, 1
          %s6325 = smul.addr %s6324, 8
          %s6326 = scalar_lea.vmem [#allocation2], %s6325
          %6327 = dma.done %s6323, 128
        $region60: #{tpu_custom_call.1} parent=55 // pred_fallthru
          _
      $region56: #{tpu_custom_call.1} parent=5 // pred_fallthru
        _
    $region6: #{tpu_custom_call.1} parent=1 // loop_footer
      %s20 = sadd.s32 1, %s16
    $region7: #{tpu_custom_call.1} parent=1 // loop_footer_branch
      %15 = sbr.rel target = $region3
    $region8: #{tpu_custom_call.1} parent=1 // loop_exit
      _
    %6328 = vsyncpa [#allocation3], 1
    %s6329 = scalar_lea.sflag [#allocation3], 1
    %6330 = vsyncpa %s6329, 1

</llo_original>
